<compile_context>
chip_gen: v7x
topology: tpu7x:2x2x1
jax: 0.10.0
libtpu: 0.0.40
codegen_flags: <defaults>
</compile_context>

<pallas_src>
import jax
import jax.numpy as jnp
from jax import lax
from jax.experimental import pallas as pl
from jax.experimental.pallas import tpu as pltpu

BN_EPS = 1e-5
LANE = 128
COMPUTE_DTYPE = jnp.bfloat16        # MXU operand dtype (f32 accumulation)


def _round_up(x, m):
    return (x + m - 1) // m * m


# =============================================================================
# 1) Img_Block: BasicBlock (conv3x3 s1 -> BN2d(train) -> ReLU -> conv3x3 s2)
# =============================================================================
def _img_basic_block_kernel(xph_ref, w1_ref, w2_ref, g_ref, b_ref, out_ref,
                            xpad_ref, ypad_ref):
    """Fused BasicBlock forward.

    xph_ref : (4*N, Hh, Wh, Cin)  2x2 phase-decomposed input; phase p = 2*pr+pc
                                  holds x[:, 2*hh+pr, 2*wh+pc, :]        (bf16)
    w1_ref  : (9*Cin, Cp)         im2col slab of conv1 weights           (bf16)
    w2_ref  : (9*Cp,  Cp)         im2col slab of conv2 weights           (bf16)
    g_ref/b_ref : (1, Cp)         BN gamma/beta, zero-padded             (f32)
    out_ref : (N, Hh, Wh, Cp)     conv2 output, lane-dense channels      (f32)
    xpad_ref: (4*N, Hh+2, Wh+2, Cin)  VMEM scratch with zero halo
    ypad_ref: (4*N, Hh+2, Wh+2, Cp)   VMEM scratch with zero halo (post BN+ReLU)
    """
    Pn, Hh, Wh, Cin = xph_ref.shape
    N = Pn // 4
    Cp = out_ref.shape[-1]
    R = N * Hh * Wh                                   # rows per output phase
    taps = [(dy, dx) for dy in (-1, 0, 1) for dx in (-1, 0, 1)]

    def tap(pad_ref, p_src, qh, qw, c):
        v = pad_ref[p_src * N:(p_src + 1) * N,
                    1 + qh:1 + qh + Hh,
                    1 + qw:1 + qw + Wh, :]
        return v.reshape(R, c)

    # in-kernel 1-px zero halo (no jnp.pad / extra HBM copy of activations)
    xpad_ref[...] = jnp.zeros_like(xpad_ref)
    xpad_ref[:, 1:Hh + 1, 1:Wh + 1, :] = xph_ref[...]

    # ---- conv1 (3x3, stride 1): ONE im2col matmul over all 4 output phases ----
    phase_blocks = []
    for pr in range(2):
        for pc in range(2):
            cols = []
            for dy, dx in taps:
                sr, qh = (pr + dy) % 2, (pr + dy) // 2
                sc, qw = (pc + dx) % 2, (pc + dx) // 2
                cols.append(tap(xpad_ref, 2 * sr + sc, qh, qw, Cin))
            phase_blocks.append(jnp.concatenate(cols, axis=1))       # (R, 9*Cin)
    col1 = jnp.concatenate(phase_blocks, axis=0)                     # (4R, 9*Cin)
    acc1 = jnp.dot(col1, w1_ref[...], preferred_element_type=jnp.float32)

    # ---- BatchNorm2d (training batch stats, biased var) + ReLU, single pass ---
    inv_n = 1.0 / (4 * R)
    mean = jnp.sum(acc1, axis=0, keepdims=True) * inv_n
    var = jnp.sum(acc1 * acc1, axis=0, keepdims=True) * inv_n - mean * mean
    scale = g_ref[...] * lax.rsqrt(var + BN_EPS)
    shift = b_ref[...] - mean * scale
    y = jnp.maximum(acc1 * scale + shift, 0.0)

    # keep the activation (and its halo) in VMEM only — never written to HBM
    ypad_ref[...] = jnp.zeros_like(ypad_ref)
    ypad_ref[:, 1:Hh + 1, 1:Wh + 1, :] = (
        y.astype(ypad_ref.dtype).reshape(Pn, Hh, Wh, Cp))

    # ---- conv2 (3x3, stride 2): ONE im2col matmul on the even-phase outputs ---
    cols2 = []
    for dy, dx in taps:
        sr, qh = dy % 2, dy // 2
        sc, qw = dx % 2, dx // 2
        cols2.append(tap(ypad_ref, 2 * sr + sc, qh, qw, Cp))
    col2 = jnp.concatenate(cols2, axis=1)                            # (R, 9*Cp)
    acc2 = jnp.dot(col2, w2_ref[...], preferred_element_type=jnp.float32)

    out_ref[...] = acc2.reshape(N, Hh, Wh, Cp)


def img_basic_block(x_nchw, w1, w2, gamma, beta):
    """BasicBlock(inplanes, outplanes, stride=1) as used by PointNet2MSG.Img_Block:
       conv3x3(s1, p1, no bias) -> BatchNorm2d(train) -> ReLU -> conv3x3(s2, p1).
       x: (N, Cin, H, W) -> (N, Cout, H//2, W//2)."""
    N, Cin, H, W = x_nchw.shape
    Cout = w1.shape[0]
    assert H % 2 == 0 and W % 2 == 0, "even spatial dims required (stride-2 conv2)"
    Hh, Wh = H // 2, W // 2
    Cp = _round_up(Cout, LANE)

    # 2x2 spatial phase decomposition (cheap XLA glue, done once on the raw input):
    # phase p = 2*pr+pc holds x[:, :, 2*hh+pr, 2*wh+pc]; this turns both the
    # stride-1 and stride-2 convs into contiguous-slice im2col inside the kernel.
    x = jnp.transpose(x_nchw, (0, 2, 3, 1))                          # NHWC
    x = x.reshape(N, Hh, 2, Wh, 2, Cin).transpose(2, 4, 0, 1, 3, 5)
    x = x.reshape(4 * N, Hh, Wh, Cin).astype(COMPUTE_DTYPE)

    # im2col weight slabs with lane-padded output channels (lane-dense matmul/store)
    w1s = jnp.transpose(w1, (2, 3, 1, 0)).reshape(9 * Cin, Cout)
    w1s = jnp.pad(w1s, ((0, 0), (0, Cp - Cout))).astype(COMPUTE_DTYPE)
    w2s = jnp.transpose(w2, (2, 3, 1, 0)).reshape(9, Cout, Cout)
    w2s = jnp.pad(w2s, ((0, 0), (0, Cp - Cout), (0, Cp - Cout)))
    w2s = w2s.reshape(9 * Cp, Cp).astype(COMPUTE_DTYPE)
    g = jnp.pad(gamma.astype(jnp.float32), (0, Cp - Cout)).reshape(1, Cp)
    b = jnp.pad(beta.astype(jnp.float32), (0, Cp - Cout)).reshape(1, Cp)

    flops = 2 * (4 * N * Hh * Wh) * (9 * Cin) * Cp + 2 * (N * Hh * Wh) * (9 * Cp) * Cp
    bytes_accessed = (x.size + w1s.size + w2s.size) * 2 + (N * Hh * Wh * Cp + 2 * Cp) * 4

    # TODO(synk): at full image resolution, tile rows with a grid + a two-pass
    # (partial-sum) BN reduction and dimension_semantics=("parallel", ...); at these
    # VMEM-resident sizes one fused invocation avoids an extra HBM pass entirely.
    out_pad = pl.pallas_call(
        _img_basic_block_kernel,
        out_shape=jax.ShapeDtypeStruct((N, Hh, Wh, Cp), jnp.float32),
        in_specs=[pl.BlockSpec(memory_space=pltpu.MemorySpace.VMEM)] * 5,
        out_specs=pl.BlockSpec(memory_space=pltpu.MemorySpace.VMEM),
        scratch_shapes=[
            pltpu.VMEM((4 * N, Hh + 2, Wh + 2, Cin), COMPUTE_DTYPE),
            pltpu.VMEM((4 * N, Hh + 2, Wh + 2, Cp), COMPUTE_DTYPE),
        ],
        compiler_params=pltpu.CompilerParams(vmem_limit_bytes=64 * 1024 * 1024),
        cost_estimate=pl.CostEstimate(flops=int(flops), transcendentals=0,
                                      bytes_accessed=int(bytes_accessed)),
    )(x, w1s, w2s, g, b)

    # back to NCHW, dropping the channel lane padding (cheap XLA glue)
    return jnp.transpose(out_pad[..., :Cout], (0, 3, 1, 2))


def img_basic_block_ref(x, w1, w2, gamma, beta):
    """Pure-JAX reference of BasicBlock.forward (BN in training mode), using the
       same bf16-rounded operands as the kernel."""
    cast = lambda a: a.astype(COMPUTE_DTYPE).astype(jnp.float32)
    dn = ("NCHW", "OIHW", "NCHW")
    y = lax.conv_general_dilated(cast(x), cast(w1), (1, 1), ((1, 1), (1, 1)),
                                 dimension_numbers=dn)
    mean = jnp.mean(y, axis=(0, 2, 3), keepdims=True)
    var = jnp.var(y, axis=(0, 2, 3), keepdims=True)          # biased (training fwd)
    y = (y - mean) * lax.rsqrt(var + BN_EPS) * gamma[None, :, None, None] \
        + beta[None, :, None, None]
    y = cast(jnp.maximum(y, 0.0))
    return lax.conv_general_dilated(y, cast(w2), (2, 2), ((1, 1), (1, 1)),
                                    dimension_numbers=dn)


# =============================================================================
# 2) Atten_Fusion_Conv1 (IA_Layer1 attention + 1x1 Conv1d fusion + BN1d + ReLU)
# =============================================================================
def _atten_fusion_kernel(pt_ref, im_ref,
                         wia_ref, bia_ref, gia_ref, beia_ref,
                         w1_ref, w2_ref, b12_ref, w3_ref, b3_ref,
                         wfp_ref, wfi_ref, bf_ref, gf_ref, bef_ref,
                         out_ref):
    """rows = B*Npoints, channels on lanes; BN1d uses training-mode batch stats."""
    pt = pt_ref[...]                                     # (R, PC)
    im = im_ref[...]                                     # (R, IC)
    inv_r = 1.0 / pt.shape[0]

    # attention: sigmoid(fc3(tanh(fc1(img) + fc2(point))))
    t = jnp.tanh(jnp.dot(im, w1_ref[...], preferred_element_type=jnp.float32)
                 + jnp.dot(pt, w2_ref[...], preferred_element_type=jnp.float32)
                 + b12_ref[...])
    logit = jnp.sum(t * w3_ref[...], axis=1, keepdims=True) + b3_ref[...]
    att = 1.0 / (1.0 + jnp.exp(-logit))                  # (R, 1)

    # IA branch: Conv1d(ic->pc, 1) + BN1d(train) + ReLU, then attention scaling
    z = jnp.dot(im, wia_ref[...], preferred_element_type=jnp.float32) + bia_ref[...]
    mean = jnp.sum(z, axis=0, keepdims=True) * inv_r
    var = jnp.sum(z * z, axis=0, keepdims=True) * inv_r - mean * mean
    z = jnp.maximum((z - mean) * lax.rsqrt(var + BN_EPS) * gia_ref[...]
                    + beia_ref[...], 0.0)
    im_att = z * att

    # fusion conv: concat([point, img]) @ Wf^T == point @ Wf_p + img @ Wf_i
    f = (jnp.dot(pt, wfp_ref[...], preferred_element_type=jnp.float32)
         + jnp.dot(im_att, wfi_ref[...], preferred_element_type=jnp.float32)
         + bf_ref[...])
    mean = jnp.sum(f, axis=0, keepdims=True) * inv_r
    var = jnp.sum(f * f, axis=0, keepdims=True) * inv_r - mean * mean
    out_ref[...] = jnp.maximum((f - mean) * lax.rsqrt(var + BN_EPS) * gf_ref[...]
                               + bef_ref[...], 0.0)


def atten_fusion_conv1(point_bcn, img_bcn, p):
    """Atten_Fusion_Conv1.forward: point (B, PC, Np), img (B, IC, Np) -> (B, OUT, Np)."""
    B, PC, Np = point_bcn.shape
    IC = img_bcn.shape[1]
    OUT = p["g_f"].shape[0]
    rc = p["w_fc1"].shape[0]
    R = B * Np

    f32 = lambda a: jnp.asarray(a, jnp.float32)
    pt = jnp.transpose(point_bcn, (0, 2, 1)).reshape(R, PC).astype(jnp.float32)
    im = jnp.transpose(img_bcn, (0, 2, 1)).reshape(R, IC).astype(jnp.float32)
    args = (
        pt, im,
        f32(p["w_ia"]).T, f32(p["b_ia"]).reshape(1, PC),
        f32(p["g_ia"]).reshape(1, PC), f32(p["be_ia"]).reshape(1, PC),
        f32(p["w_fc1"]).T, f32(p["w_fc2"]).T,
        f32(p["b_fc1"] + p["b_fc2"]).reshape(1, rc),
        f32(p["w_fc3"]).reshape(1, rc), f32(p["b_fc3"]).reshape(1, 1),
        f32(p["w_f"][:, :PC]).T, f32(p["w_f"][:, PC:]).T,
        f32(p["b_f"]).reshape(1, OUT), f32(p["g_f"]).reshape(1, OUT),
        f32(p["be_f"]).reshape(1, OUT),
    )
    out = pl.pallas_call(
        _atten_fusion_kernel,
        out_shape=jax.ShapeDtypeStruct((R, OUT), jnp.float32),
        in_specs=[pl.BlockSpec(memory_space=pltpu.MemorySpace.VMEM)] * len(args),
        out_specs=pl.BlockSpec(memory_space=pltpu.MemorySpace.VMEM),
        compiler_params=pltpu.CompilerParams(vmem_limit_bytes=64 * 1024 * 1024),
    )(*args)
    return jnp.transpose(out.reshape(B, Np, OUT), (0, 2, 1))


def atten_fusion_conv1_ref(point_bcn, img_bcn, p):
    B, PC, Np = point_bcn.shape
    IC = img_bcn.shape[1]
    im_f = jnp.transpose(img_bcn, (0, 2, 1)).reshape(-1, IC)
    pt_f = jnp.transpose(point_bcn, (0, 2, 1)).reshape(-1, PC)
    ri = im_f @ p["w_fc1"].T + p["b_fc1"]
    rp = pt_f @ p["w_fc2"].T + p["b_fc2"]
    logit = jnp.tanh(ri + rp) @ p["w_fc3"].T + p["b_fc3"]
    att = (1.0 / (1.0 + jnp.exp(-logit))).reshape(B, 1, Np)

    z = jnp.einsum("bin,oi->bon", img_bcn, p["w_ia"]) + p["b_ia"][None, :, None]
    mean = jnp.mean(z, axis=(0, 2), keepdims=True)
    var = jnp.var(z, axis=(0, 2), keepdims=True)
    z = jnp.maximum((z - mean) * lax.rsqrt(var + BN_EPS) * p["g_ia"][None, :, None]
                    + p["be_ia"][None, :, None], 0.0)
    img_new = z * att

    fusion = jnp.concatenate([point_bcn, img_new], axis=1)
    f = jnp.einsum("bcn,oc->bon", fusion, p["w_f"]) + p["b_f"][None, :, None]
    mean = jnp.mean(f, axis=(0, 2), keepdims=True)
    var = jnp.var(f, axis=(0, 2), keepdims=True)
    return jnp.maximum((f - mean) * lax.rsqrt(var + BN_EPS) * p["g_f"][None, :, None]
                       + p["be_f"][None, :, None], 0.0)


# =============================================================================
if __name__ == "__main__":
    key = jax.random.PRNGKey(0)
    keys = jax.random.split(key, 20)
    q = lambda a: a.astype(jnp.bfloat16).astype(jnp.float32)   # bf16-representable

    # ---------- Img_Block BasicBlock: conv3x3 s1 -> BN -> ReLU -> conv3x3 s2 ------
    N, Cin, Cout, H, W = 2, 4, 8, 16, 16
    x = jax.random.normal(keys[0], (N, Cin, H, W), jnp.float32)
    w1 = 0.3 * jax.random.normal(keys[1], (Cout, Cin, 3, 3), jnp.float32)
    w2 = 0.3 * jax.random.normal(keys[2], (Cout, Cout, 3, 3), jnp.float32)
    gamma = 1.0 + 0.1 * jax.random.normal(keys[3], (Cout,), jnp.float32)
    beta = 0.1 * jax.random.normal(keys[4], (Cout,), jnp.float32)

    out = jax.block_until_ready(img_basic_block(x, w1, w2, gamma, beta))
    ref = jax.block_until_ready(img_basic_block_ref(x, w1, w2, gamma, beta))
    assert out.shape == (N, Cout, H // 2, W // 2), out.shape
    err = float(jnp.max(jnp.abs(out - ref)))
    assert err < 2e-2, f"BasicBlock max abs err {err}"

    # ---------- Atten_Fusion_Conv1 (attention + 1x1 conv fusion) ------------------
    B, Np, IC, PC = 2, 64, 8, 16
    OUT, rc = PC, PC // 4
    pt = q(jax.random.normal(keys[5], (B, PC, Np), jnp.float32))
    im = q(jax.random.normal(keys[6], (B, IC, Np), jnp.float32))
    prm = {
        "w_ia": q(0.3 * jax.random.normal(keys[7], (PC, IC), jnp.float32)),
        "b_ia": q(0.1 * jax.random.normal(keys[8], (PC,), jnp.float32)),
        "g_ia": q(1.0 + 0.1 * jax.random.normal(keys[9], (PC,), jnp.float32)),
        "be_ia": q(0.1 * jax.random.normal(keys[10], (PC,), jnp.float32)),
        "w_fc1": q(0.3 * jax.random.normal(keys[11], (rc, IC), jnp.float32)),
        "b_fc1": q(0.1 * jax.random.normal(keys[12], (rc,), jnp.float32)),
        "w_fc2": q(0.3 * jax.random.normal(keys[13], (rc, PC), jnp.float32)),
        "b_fc2": q(0.1 * jax.random.normal(keys[14], (rc,), jnp.float32)),
        "w_fc3": q(0.3 * jax.random.normal(keys[15], (1, rc), jnp.float32)),
        "b_fc3": q(0.1 * jax.random.normal(keys[16], (1,), jnp.float32)),
        "w_f": q(0.3 * jax.random.normal(keys[17], (OUT, 2 * PC), jnp.float32)),
        "b_f": q(0.1 * jax.random.normal(keys[18], (OUT,), jnp.float32)),
        "g_f": q(1.0 + 0.1 * jax.random.normal(keys[19], (OUT,), jnp.float32)),
        "be_f": jnp.zeros((OUT,), jnp.float32),
    }
    fout = jax.block_until_ready(atten_fusion_conv1(pt, im, prm))
    fref = jax.block_until_ready(atten_fusion_conv1_ref(pt, im, prm))
    assert fout.shape == (B, OUT, Np), fout.shape
    ferr = float(jnp.max(jnp.abs(fout - fref)))
    assert ferr < 5e-3, f"Atten_Fusion_Conv1 max abs err {ferr}"

    print("KERNEL_OK")
</pallas_src>

<mosaic_0001>
module attributes {stable_mosaic.version = 11 : i64} {
  func.func @_img_basic_block_kernel(%arg0: memref<8x8x8x4xbf16, #tpu.memory_space<vmem>>, %arg1: memref<36x128xbf16, #tpu.memory_space<vmem>>, %arg2: memref<1152x128xbf16, #tpu.memory_space<vmem>>, %arg3: memref<1x128xf32, #tpu.memory_space<vmem>>, %arg4: memref<1x128xf32, #tpu.memory_space<vmem>>, %arg5: memref<2x8x8x128xf32, #tpu.memory_space<vmem>>, %arg6: memref<8x10x10x4xbf16, #tpu.memory_space<vmem>>, %arg7: memref<8x10x10x128xbf16, #tpu.memory_space<vmem>>) attributes {dimension_semantics = [], scalar_prefetch = 0 : i64, scratch_operands = 2 : i64, tpu.core_type = #tpu.core_type<tc>} {
    %cst = arith.constant 0.000000e+00 : bf16
    %0 = vector.broadcast %cst : bf16 to vector<8x10x10x4xbf16>
    %c0 = arith.constant 0 : index
    %c0_0 = arith.constant 0 : index
    %c0_1 = arith.constant 0 : index
    %c0_2 = arith.constant 0 : index
    %1 = vector.load %arg6[%c0, %c0_0, %c0_1, %c0_2] : memref<8x10x10x4xbf16, #tpu.memory_space<vmem>>, vector<8x10x10x4xbf16>
    tpu.vector_store %arg6[%c0, %c0_0, %c0_1, %c0_2], %0 {strides = array<i32>} : memref<8x10x10x4xbf16, #tpu.memory_space<vmem>>, vector<8x10x10x4xbf16>,
    %c0_3 = arith.constant 0 : index
    %c0_4 = arith.constant 0 : index
    %c0_5 = arith.constant 0 : index
    %c0_6 = arith.constant 0 : index
    %2 = vector.load %arg0[%c0_3, %c0_4, %c0_5, %c0_6] : memref<8x8x8x4xbf16, #tpu.memory_space<vmem>>, vector<8x8x8x4xbf16>
    %c0_7 = arith.constant 0 : index
    %c1 = arith.constant 1 : index
    %c1_8 = arith.constant 1 : index
    %c0_9 = arith.constant 0 : index
    %3 = vector.load %arg6[%c0_7, %c1, %c1_8, %c0_9] : memref<8x10x10x4xbf16, #tpu.memory_space<vmem>>, vector<8x8x8x4xbf16>
    tpu.vector_store %arg6[%c0_7, %c1, %c1_8, %c0_9], %2 {strides = array<i32>} : memref<8x10x10x4xbf16, #tpu.memory_space<vmem>>, vector<8x8x8x4xbf16>,
    %c6 = arith.constant 6 : index
    %c0_10 = arith.constant 0 : index
    %c0_11 = arith.constant 0 : index
    %c0_12 = arith.constant 0 : index
    %4 = vector.load %arg6[%c6, %c0_10, %c0_11, %c0_12] : memref<8x10x10x4xbf16, #tpu.memory_space<vmem>>, vector<2x8x8x4xbf16>
    %5 = vector.shape_cast %4 : vector<2x8x8x4xbf16> to vector<128x4xbf16>
    %c4 = arith.constant 4 : index
    %c0_13 = arith.constant 0 : index
    %c1_14 = arith.constant 1 : index
    %c0_15 = arith.constant 0 : index
    %6 = vector.load %arg6[%c4, %c0_13, %c1_14, %c0_15] : memref<8x10x10x4xbf16, #tpu.memory_space<vmem>>, vector<2x8x8x4xbf16>
    %7 = vector.shape_cast %6 : vector<2x8x8x4xbf16> to vector<128x4xbf16>
    %c6_16 = arith.constant 6 : index
    %c0_17 = arith.constant 0 : index
    %c1_18 = arith.constant 1 : index
    %c0_19 = arith.constant 0 : index
    %8 = vector.load %arg6[%c6_16, %c0_17, %c1_18, %c0_19] : memref<8x10x10x4xbf16, #tpu.memory_space<vmem>>, vector<2x8x8x4xbf16>
    %9 = vector.shape_cast %8 : vector<2x8x8x4xbf16> to vector<128x4xbf16>
    %c2 = arith.constant 2 : index
    %c1_20 = arith.constant 1 : index
    %c0_21 = arith.constant 0 : index
    %c0_22 = arith.constant 0 : index
    %10 = vector.load %arg6[%c2, %c1_20, %c0_21, %c0_22] : memref<8x10x10x4xbf16, #tpu.memory_space<vmem>>, vector<2x8x8x4xbf16>
    %11 = vector.shape_cast %10 : vector<2x8x8x4xbf16> to vector<128x4xbf16>
    %c0_23 = arith.constant 0 : index
    %c1_24 = arith.constant 1 : index
    %c1_25 = arith.constant 1 : index
    %c0_26 = arith.constant 0 : index
    %12 = vector.load %arg6[%c0_23, %c1_24, %c1_25, %c0_26] : memref<8x10x10x4xbf16, #tpu.memory_space<vmem>>, vector<2x8x8x4xbf16>
    %13 = vector.shape_cast %12 : vector<2x8x8x4xbf16> to vector<128x4xbf16>
    %c2_27 = arith.constant 2 : index
    %c1_28 = arith.constant 1 : index
    %c1_29 = arith.constant 1 : index
    %c0_30 = arith.constant 0 : index
    %14 = vector.load %arg6[%c2_27, %c1_28, %c1_29, %c0_30] : memref<8x10x10x4xbf16, #tpu.memory_space<vmem>>, vector<2x8x8x4xbf16>
    %15 = vector.shape_cast %14 : vector<2x8x8x4xbf16> to vector<128x4xbf16>
    %c6_31 = arith.constant 6 : index
    %c1_32 = arith.constant 1 : index
    %c0_33 = arith.constant 0 : index
    %c0_34 = arith.constant 0 : index
    %16 = vector.load %arg6[%c6_31, %c1_32, %c0_33, %c0_34] : memref<8x10x10x4xbf16, #tpu.memory_space<vmem>>, vector<2x8x8x4xbf16>
    %17 = vector.shape_cast %16 : vector<2x8x8x4xbf16> to vector<128x4xbf16>
    %c4_35 = arith.constant 4 : index
    %c1_36 = arith.constant 1 : index
    %c1_37 = arith.constant 1 : index
    %c0_38 = arith.constant 0 : index
    %18 = vector.load %arg6[%c4_35, %c1_36, %c1_37, %c0_38] : memref<8x10x10x4xbf16, #tpu.memory_space<vmem>>, vector<2x8x8x4xbf16>
    %19 = vector.shape_cast %18 : vector<2x8x8x4xbf16> to vector<128x4xbf16>
    %c6_39 = arith.constant 6 : index
    %c1_40 = arith.constant 1 : index
    %c1_41 = arith.constant 1 : index
    %c0_42 = arith.constant 0 : index
    %20 = vector.load %arg6[%c6_39, %c1_40, %c1_41, %c0_42] : memref<8x10x10x4xbf16, #tpu.memory_space<vmem>>, vector<2x8x8x4xbf16>
    %21 = vector.shape_cast %20 : vector<2x8x8x4xbf16> to vector<128x4xbf16>
    %22 = tpu.concatenate %5, %7, %9, %11, %13, %15, %17, %19, %21 in 1 : vector<128x4xbf16>, vector<128x4xbf16>, vector<128x4xbf16>, vector<128x4xbf16>, vector<128x4xbf16>, vector<128x4xbf16>, vector<128x4xbf16>, vector<128x4xbf16>, vector<128x4xbf16> -> vector<128x36xbf16>
    %c4_43 = arith.constant 4 : index
    %c0_44 = arith.constant 0 : index
    %c1_45 = arith.constant 1 : index
    %c0_46 = arith.constant 0 : index
    %23 = vector.load %arg6[%c4_43, %c0_44, %c1_45, %c0_46] : memref<8x10x10x4xbf16, #tpu.memory_space<vmem>>, vector<2x8x8x4xbf16>
    %24 = vector.shape_cast %23 : vector<2x8x8x4xbf16> to vector<128x4xbf16>
    %c6_47 = arith.constant 6 : index
    %c0_48 = arith.constant 0 : index
    %c1_49 = arith.constant 1 : index
    %c0_50 = arith.constant 0 : index
    %25 = vector.load %arg6[%c6_47, %c0_48, %c1_49, %c0_50] : memref<8x10x10x4xbf16, #tpu.memory_space<vmem>>, vector<2x8x8x4xbf16>
    %26 = vector.shape_cast %25 : vector<2x8x8x4xbf16> to vector<128x4xbf16>
    %c4_51 = arith.constant 4 : index
    %c0_52 = arith.constant 0 : index
    %c2_53 = arith.constant 2 : index
    %c0_54 = arith.constant 0 : index
    %27 = vector.load %arg6[%c4_51, %c0_52, %c2_53, %c0_54] : memref<8x10x10x4xbf16, #tpu.memory_space<vmem>>, vector<2x8x8x4xbf16>
    %28 = vector.shape_cast %27 : vector<2x8x8x4xbf16> to vector<128x4xbf16>
    %c0_55 = arith.constant 0 : index
    %c1_56 = arith.constant 1 : index
    %c1_57 = arith.constant 1 : index
    %c0_58 = arith.constant 0 : index
    %29 = vector.load %arg6[%c0_55, %c1_56, %c1_57, %c0_58] : memref<8x10x10x4xbf16, #tpu.memory_space<vmem>>, vector<2x8x8x4xbf16>
    %30 = vector.shape_cast %29 : vector<2x8x8x4xbf16> to vector<128x4xbf16>
    %c2_59 = arith.constant 2 : index
    %c1_60 = arith.constant 1 : index
    %c1_61 = arith.constant 1 : index
    %c0_62 = arith.constant 0 : index
    %31 = vector.load %arg6[%c2_59, %c1_60, %c1_61, %c0_62] : memref<8x10x10x4xbf16, #tpu.memory_space<vmem>>, vector<2x8x8x4xbf16>
    %32 = vector.shape_cast %31 : vector<2x8x8x4xbf16> to vector<128x4xbf16>
    %c0_63 = arith.constant 0 : index
    %c1_64 = arith.constant 1 : index
    %c2_65 = arith.constant 2 : index
    %c0_66 = arith.constant 0 : index
    %33 = vector.load %arg6[%c0_63, %c1_64, %c2_65, %c0_66] : memref<8x10x10x4xbf16, #tpu.memory_space<vmem>>, vector<2x8x8x4xbf16>
    %34 = vector.shape_cast %33 : vector<2x8x8x4xbf16> to vector<128x4xbf16>
    %c4_67 = arith.constant 4 : index
    %c1_68 = arith.constant 1 : index
    %c1_69 = arith.constant 1 : index
    %c0_70 = arith.constant 0 : index
    %35 = vector.load %arg6[%c4_67, %c1_68, %c1_69, %c0_70] : memref<8x10x10x4xbf16, #tpu.memory_space<vmem>>, vector<2x8x8x4xbf16>
    %36 = vector.shape_cast %35 : vector<2x8x8x4xbf16> to vector<128x4xbf16>
    %c6_71 = arith.constant 6 : index
    %c1_72 = arith.constant 1 : index
    %c1_73 = arith.constant 1 : index
    %c0_74 = arith.constant 0 : index
    %37 = vector.load %arg6[%c6_71, %c1_72, %c1_73, %c0_74] : memref<8x10x10x4xbf16, #tpu.memory_space<vmem>>, vector<2x8x8x4xbf16>
    %38 = vector.shape_cast %37 : vector<2x8x8x4xbf16> to vector<128x4xbf16>
    %c4_75 = arith.constant 4 : index
    %c1_76 = arith.constant 1 : index
    %c2_77 = arith.constant 2 : index
    %c0_78 = arith.constant 0 : index
    %39 = vector.load %arg6[%c4_75, %c1_76, %c2_77, %c0_78] : memref<8x10x10x4xbf16, #tpu.memory_space<vmem>>, vector<2x8x8x4xbf16>
    %40 = vector.shape_cast %39 : vector<2x8x8x4xbf16> to vector<128x4xbf16>
    %41 = tpu.concatenate %24, %26, %28, %30, %32, %34, %36, %38, %40 in 1 : vector<128x4xbf16>, vector<128x4xbf16>, vector<128x4xbf16>, vector<128x4xbf16>, vector<128x4xbf16>, vector<128x4xbf16>, vector<128x4xbf16>, vector<128x4xbf16>, vector<128x4xbf16> -> vector<128x36xbf16>
    %c2_79 = arith.constant 2 : index
    %c1_80 = arith.constant 1 : index
    %c0_81 = arith.constant 0 : index
    %c0_82 = arith.constant 0 : index
    %42 = vector.load %arg6[%c2_79, %c1_80, %c0_81, %c0_82] : memref<8x10x10x4xbf16, #tpu.memory_space<vmem>>, vector<2x8x8x4xbf16>
    %43 = vector.shape_cast %42 : vector<2x8x8x4xbf16> to vector<128x4xbf16>
    %c0_83 = arith.constant 0 : index
    %c1_84 = arith.constant 1 : index
    %c1_85 = arith.constant 1 : index
    %c0_86 = arith.constant 0 : index
    %44 = vector.load %arg6[%c0_83, %c1_84, %c1_85, %c0_86] : memref<8x10x10x4xbf16, #tpu.memory_space<vmem>>, vector<2x8x8x4xbf16>
    %45 = vector.shape_cast %44 : vector<2x8x8x4xbf16> to vector<128x4xbf16>
    %c2_87 = arith.constant 2 : index
    %c1_88 = arith.constant 1 : index
    %c1_89 = arith.constant 1 : index
    %c0_90 = arith.constant 0 : index
    %46 = vector.load %arg6[%c2_87, %c1_88, %c1_89, %c0_90] : memref<8x10x10x4xbf16, #tpu.memory_space<vmem>>, vector<2x8x8x4xbf16>
    %47 = vector.shape_cast %46 : vector<2x8x8x4xbf16> to vector<128x4xbf16>
    %c6_91 = arith.constant 6 : index
    %c1_92 = arith.constant 1 : index
    %c0_93 = arith.constant 0 : index
    %c0_94 = arith.constant 0 : index
    %48 = vector.load %arg6[%c6_91, %c1_92, %c0_93, %c0_94] : memref<8x10x10x4xbf16, #tpu.memory_space<vmem>>, vector<2x8x8x4xbf16>
    %49 = vector.shape_cast %48 : vector<2x8x8x4xbf16> to vector<128x4xbf16>
    %c4_95 = arith.constant 4 : index
    %c1_96 = arith.constant 1 : index
    %c1_97 = arith.constant 1 : index
    %c0_98 = arith.constant 0 : index
    %50 = vector.load %arg6[%c4_95, %c1_96, %c1_97, %c0_98] : memref<8x10x10x4xbf16, #tpu.memory_space<vmem>>, vector<2x8x8x4xbf16>
    %51 = vector.shape_cast %50 : vector<2x8x8x4xbf16> to vector<128x4xbf16>
    %c6_99 = arith.constant 6 : index
    %c1_100 = arith.constant 1 : index
    %c1_101 = arith.constant 1 : index
    %c0_102 = arith.constant 0 : index
    %52 = vector.load %arg6[%c6_99, %c1_100, %c1_101, %c0_102] : memref<8x10x10x4xbf16, #tpu.memory_space<vmem>>, vector<2x8x8x4xbf16>
    %53 = vector.shape_cast %52 : vector<2x8x8x4xbf16> to vector<128x4xbf16>
    %c2_103 = arith.constant 2 : index
    %c2_104 = arith.constant 2 : index
    %c0_105 = arith.constant 0 : index
    %c0_106 = arith.constant 0 : index
    %54 = vector.load %arg6[%c2_103, %c2_104, %c0_105, %c0_106] : memref<8x10x10x4xbf16, #tpu.memory_space<vmem>>, vector<2x8x8x4xbf16>
    %55 = vector.shape_cast %54 : vector<2x8x8x4xbf16> to vector<128x4xbf16>
    %c0_107 = arith.constant 0 : index
    %c2_108 = arith.constant 2 : index
    %c1_109 = arith.constant 1 : index
    %c0_110 = arith.constant 0 : index
    %56 = vector.load %arg6[%c0_107, %c2_108, %c1_109, %c0_110] : memref<8x10x10x4xbf16, #tpu.memory_space<vmem>>, vector<2x8x8x4xbf16>
    %57 = vector.shape_cast %56 : vector<2x8x8x4xbf16> to vector<128x4xbf16>
    %c2_111 = arith.constant 2 : index
    %c2_112 = arith.constant 2 : index
    %c1_113 = arith.constant 1 : index
    %c0_114 = arith.constant 0 : index
    %58 = vector.load %arg6[%c2_111, %c2_112, %c1_113, %c0_114] : memref<8x10x10x4xbf16, #tpu.memory_space<vmem>>, vector<2x8x8x4xbf16>
    %59 = vector.shape_cast %58 : vector<2x8x8x4xbf16> to vector<128x4xbf16>
    %60 = tpu.concatenate %43, %45, %47, %49, %51, %53, %55, %57, %59 in 1 : vector<128x4xbf16>, vector<128x4xbf16>, vector<128x4xbf16>, vector<128x4xbf16>, vector<128x4xbf16>, vector<128x4xbf16>, vector<128x4xbf16>, vector<128x4xbf16>, vector<128x4xbf16> -> vector<128x36xbf16>
    %c0_115 = arith.constant 0 : index
    %c1_116 = arith.constant 1 : index
    %c1_117 = arith.constant 1 : index
    %c0_118 = arith.constant 0 : index
    %61 = vector.load %arg6[%c0_115, %c1_116, %c1_117, %c0_118] : memref<8x10x10x4xbf16, #tpu.memory_space<vmem>>, vector<2x8x8x4xbf16>
    %62 = vector.shape_cast %61 : vector<2x8x8x4xbf16> to vector<128x4xbf16>
    %c2_119 = arith.constant 2 : index
    %c1_120 = arith.constant 1 : index
    %c1_121 = arith.constant 1 : index
    %c0_122 = arith.constant 0 : index
    %63 = vector.load %arg6[%c2_119, %c1_120, %c1_121, %c0_122] : memref<8x10x10x4xbf16, #tpu.memory_space<vmem>>, vector<2x8x8x4xbf16>
    %64 = vector.shape_cast %63 : vector<2x8x8x4xbf16> to vector<128x4xbf16>
    %c0_123 = arith.constant 0 : index
    %c1_124 = arith.constant 1 : index
    %c2_125 = arith.constant 2 : index
    %c0_126 = arith.constant 0 : index
    %65 = vector.load %arg6[%c0_123, %c1_124, %c2_125, %c0_126] : memref<8x10x10x4xbf16, #tpu.memory_space<vmem>>, vector<2x8x8x4xbf16>
    %66 = vector.shape_cast %65 : vector<2x8x8x4xbf16> to vector<128x4xbf16>
    %c4_127 = arith.constant 4 : index
    %c1_128 = arith.constant 1 : index
    %c1_129 = arith.constant 1 : index
    %c0_130 = arith.constant 0 : index
    %67 = vector.load %arg6[%c4_127, %c1_128, %c1_129, %c0_130] : memref<8x10x10x4xbf16, #tpu.memory_space<vmem>>, vector<2x8x8x4xbf16>
    %68 = vector.shape_cast %67 : vector<2x8x8x4xbf16> to vector<128x4xbf16>
    %c6_131 = arith.constant 6 : index
    %c1_132 = arith.constant 1 : index
    %c1_133 = arith.constant 1 : index
    %c0_134 = arith.constant 0 : index
    %69 = vector.load %arg6[%c6_131, %c1_132, %c1_133, %c0_134] : memref<8x10x10x4xbf16, #tpu.memory_space<vmem>>, vector<2x8x8x4xbf16>
    %70 = vector.shape_cast %69 : vector<2x8x8x4xbf16> to vector<128x4xbf16>
    %c4_135 = arith.constant 4 : index
    %c1_136 = arith.constant 1 : index
    %c2_137 = arith.constant 2 : index
    %c0_138 = arith.constant 0 : index
    %71 = vector.load %arg6[%c4_135, %c1_136, %c2_137, %c0_138] : memref<8x10x10x4xbf16, #tpu.memory_space<vmem>>, vector<2x8x8x4xbf16>
    %72 = vector.shape_cast %71 : vector<2x8x8x4xbf16> to vector<128x4xbf16>
    %c0_139 = arith.constant 0 : index
    %c2_140 = arith.constant 2 : index
    %c1_141 = arith.constant 1 : index
    %c0_142 = arith.constant 0 : index
    %73 = vector.load %arg6[%c0_139, %c2_140, %c1_141, %c0_142] : memref<8x10x10x4xbf16, #tpu.memory_space<vmem>>, vector<2x8x8x4xbf16>
    %74 = vector.shape_cast %73 : vector<2x8x8x4xbf16> to vector<128x4xbf16>
    %c2_143 = arith.constant 2 : index
    %c2_144 = arith.constant 2 : index
    %c1_145 = arith.constant 1 : index
    %c0_146 = arith.constant 0 : index
    %75 = vector.load %arg6[%c2_143, %c2_144, %c1_145, %c0_146] : memref<8x10x10x4xbf16, #tpu.memory_space<vmem>>, vector<2x8x8x4xbf16>
    %76 = vector.shape_cast %75 : vector<2x8x8x4xbf16> to vector<128x4xbf16>
    %c0_147 = arith.constant 0 : index
    %c2_148 = arith.constant 2 : index
    %c2_149 = arith.constant 2 : index
    %c0_150 = arith.constant 0 : index
    %77 = vector.load %arg6[%c0_147, %c2_148, %c2_149, %c0_150] : memref<8x10x10x4xbf16, #tpu.memory_space<vmem>>, vector<2x8x8x4xbf16>
    %78 = vector.shape_cast %77 : vector<2x8x8x4xbf16> to vector<128x4xbf16>
    %79 = tpu.concatenate %62, %64, %66, %68, %70, %72, %74, %76, %78 in 1 : vector<128x4xbf16>, vector<128x4xbf16>, vector<128x4xbf16>, vector<128x4xbf16>, vector<128x4xbf16>, vector<128x4xbf16>, vector<128x4xbf16>, vector<128x4xbf16>, vector<128x4xbf16> -> vector<128x36xbf16>
    %80 = tpu.concatenate %22, %41, %60, %79 in 0 : vector<128x36xbf16>, vector<128x36xbf16>, vector<128x36xbf16>, vector<128x36xbf16> -> vector<512x36xbf16>
    %c0_151 = arith.constant 0 : index
    %c0_152 = arith.constant 0 : index
    %81 = vector.load %arg1[%c0_151, %c0_152] : memref<36x128xbf16, #tpu.memory_space<vmem>>, vector<36x128xbf16>
    %cst_153 = arith.constant dense<0.000000e+00> : vector<512x128xf32>
    %82 = tpu.matmul %80, %81, %cst_153 {dimension_numbers = #tpu.dot_dimension_numbers<[1], [0], [0], [1], [0, 0, 1, 1], [], []>} : vector<512x36xbf16>, vector<36x128xbf16>, vector<512x128xf32> -> vector<512x128xf32>
    %cst_154 = arith.constant dense<0.000000e+00> : vector<128xf32>
    %83 = vector.multi_reduction <add>, %82, %cst_154 [0] : vector<512x128xf32> to vector<128xf32>
    %84 = vector.shape_cast %83 : vector<128xf32> to vector<1x128xf32>
    %cst_155 = arith.constant 0.001953125 : f32
    %85 = vector.broadcast %cst_155 : f32 to vector<1x128xf32>
    %86 = arith.mulf %84, %85 : vector<1x128xf32>
    %87 = arith.mulf %82, %82 : vector<512x128xf32>
    %cst_156 = arith.constant dense<0.000000e+00> : vector<128xf32>
    %88 = vector.multi_reduction <add>, %87, %cst_156 [0] : vector<512x128xf32> to vector<128xf32>
    %89 = vector.shape_cast %88 : vector<128xf32> to vector<1x128xf32>
    %cst_157 = arith.constant 0.001953125 : f32
    %90 = vector.broadcast %cst_157 : f32 to vector<1x128xf32>
    %91 = arith.mulf %89, %90 : vector<1x128xf32>
    %92 = arith.mulf %86, %86 : vector<1x128xf32>
    %93 = arith.subf %91, %92 : vector<1x128xf32>
    %c0_158 = arith.constant 0 : index
    %c0_159 = arith.constant 0 : index
    %94 = vector.load %arg3[%c0_158, %c0_159] : memref<1x128xf32, #tpu.memory_space<vmem>>, vector<1x128xf32>
    %cst_160 = arith.constant 9.99999974E-6 : f32
    %95 = vector.broadcast %cst_160 : f32 to vector<1x128xf32>
    %96 = arith.addf %93, %95 : vector<1x128xf32>
    %97 = math.rsqrt %96 : vector<1x128xf32>
    %98 = arith.mulf %94, %97 : vector<1x128xf32>
    %c0_161 = arith.constant 0 : index
    %c0_162 = arith.constant 0 : index
    %99 = vector.load %arg4[%c0_161, %c0_162] : memref<1x128xf32, #tpu.memory_space<vmem>>, vector<1x128xf32>
    %100 = arith.mulf %86, %98 : vector<1x128xf32>
    %101 = arith.subf %99, %100 : vector<1x128xf32>
    %102 = vector.broadcast %98 : vector<1x128xf32> to vector<512x128xf32>
    %103 = arith.mulf %82, %102 : vector<512x128xf32>
    %104 = vector.broadcast %101 : vector<1x128xf32> to vector<512x128xf32>
    %105 = arith.addf %103, %104 : vector<512x128xf32>
    %cst_163 = arith.constant 0.000000e+00 : f32
    %106 = vector.broadcast %cst_163 : f32 to vector<512x128xf32>
    %107 = arith.maximumf %105, %106 : vector<512x128xf32>
    %cst_164 = arith.constant 0.000000e+00 : bf16
    %108 = vector.broadcast %cst_164 : bf16 to vector<8x10x10x128xbf16>
    %c0_165 = arith.constant 0 : index
    %c0_166 = arith.constant 0 : index
    %c0_167 = arith.constant 0 : index
    %c0_168 = arith.constant 0 : index
    %109 = vector.load %arg7[%c0_165, %c0_166, %c0_167, %c0_168] : memref<8x10x10x128xbf16, #tpu.memory_space<vmem>>, vector<8x10x10x128xbf16>
    tpu.vector_store %arg7[%c0_165, %c0_166, %c0_167, %c0_168], %108 {strides = array<i32>} : memref<8x10x10x128xbf16, #tpu.memory_space<vmem>>, vector<8x10x10x128xbf16>,
    %110 = arith.truncf %107 : vector<512x128xf32> to vector<512x128xbf16>
    %111 = vector.shape_cast %110 : vector<512x128xbf16> to vector<8x8x8x128xbf16>
    %c0_169 = arith.constant 0 : index
    %c1_170 = arith.constant 1 : index
    %c1_171 = arith.constant 1 : index
    %c0_172 = arith.constant 0 : index
    %112 = vector.load %arg7[%c0_169, %c1_170, %c1_171, %c0_172] : memref<8x10x10x128xbf16, #tpu.memory_space<vmem>>, vector<8x8x8x128xbf16>
    tpu.vector_store %arg7[%c0_169, %c1_170, %c1_171, %c0_172], %111 {strides = array<i32>} : memref<8x10x10x128xbf16, #tpu.memory_space<vmem>>, vector<8x8x8x128xbf16>,
    %c6_173 = arith.constant 6 : index
    %c0_174 = arith.constant 0 : index
    %c0_175 = arith.constant 0 : index
    %c0_176 = arith.constant 0 : index
    %113 = vector.load %arg7[%c6_173, %c0_174, %c0_175, %c0_176] : memref<8x10x10x128xbf16, #tpu.memory_space<vmem>>, vector<2x8x8x128xbf16>
    %114 = vector.shape_cast %113 : vector<2x8x8x128xbf16> to vector<128x128xbf16>
    %c4_177 = arith.constant 4 : index
    %c0_178 = arith.constant 0 : index
    %c1_179 = arith.constant 1 : index
    %c0_180 = arith.constant 0 : index
    %115 = vector.load %arg7[%c4_177, %c0_178, %c1_179, %c0_180] : memref<8x10x10x128xbf16, #tpu.memory_space<vmem>>, vector<2x8x8x128xbf16>
    %116 = vector.shape_cast %115 : vector<2x8x8x128xbf16> to vector<128x128xbf16>
    %c6_181 = arith.constant 6 : index
    %c0_182 = arith.constant 0 : index
    %c1_183 = arith.constant 1 : index
    %c0_184 = arith.constant 0 : index
    %117 = vector.load %arg7[%c6_181, %c0_182, %c1_183, %c0_184] : memref<8x10x10x128xbf16, #tpu.memory_space<vmem>>, vector<2x8x8x128xbf16>
    %118 = vector.shape_cast %117 : vector<2x8x8x128xbf16> to vector<128x128xbf16>
    %c2_185 = arith.constant 2 : index
    %c1_186 = arith.constant 1 : index
    %c0_187 = arith.constant 0 : index
    %c0_188 = arith.constant 0 : index
    %119 = vector.load %arg7[%c2_185, %c1_186, %c0_187, %c0_188] : memref<8x10x10x128xbf16, #tpu.memory_space<vmem>>, vector<2x8x8x128xbf16>
    %120 = vector.shape_cast %119 : vector<2x8x8x128xbf16> to vector<128x128xbf16>
    %c0_189 = arith.constant 0 : index
    %c1_190 = arith.constant 1 : index
    %c1_191 = arith.constant 1 : index
    %c0_192 = arith.constant 0 : index
    %121 = vector.load %arg7[%c0_189, %c1_190, %c1_191, %c0_192] : memref<8x10x10x128xbf16, #tpu.memory_space<vmem>>, vector<2x8x8x128xbf16>
    %122 = vector.shape_cast %121 : vector<2x8x8x128xbf16> to vector<128x128xbf16>
    %c2_193 = arith.constant 2 : index
    %c1_194 = arith.constant 1 : index
    %c1_195 = arith.constant 1 : index
    %c0_196 = arith.constant 0 : index
    %123 = vector.load %arg7[%c2_193, %c1_194, %c1_195, %c0_196] : memref<8x10x10x128xbf16, #tpu.memory_space<vmem>>, vector<2x8x8x128xbf16>
    %124 = vector.shape_cast %123 : vector<2x8x8x128xbf16> to vector<128x128xbf16>
    %c6_197 = arith.constant 6 : index
    %c1_198 = arith.constant 1 : index
    %c0_199 = arith.constant 0 : index
    %c0_200 = arith.constant 0 : index
    %125 = vector.load %arg7[%c6_197, %c1_198, %c0_199, %c0_200] : memref<8x10x10x128xbf16, #tpu.memory_space<vmem>>, vector<2x8x8x128xbf16>
    %126 = vector.shape_cast %125 : vector<2x8x8x128xbf16> to vector<128x128xbf16>
    %c4_201 = arith.constant 4 : index
    %c1_202 = arith.constant 1 : index
    %c1_203 = arith.constant 1 : index
    %c0_204 = arith.constant 0 : index
    %127 = vector.load %arg7[%c4_201, %c1_202, %c1_203, %c0_204] : memref<8x10x10x128xbf16, #tpu.memory_space<vmem>>, vector<2x8x8x128xbf16>
    %128 = vector.shape_cast %127 : vector<2x8x8x128xbf16> to vector<128x128xbf16>
    %c6_205 = arith.constant 6 : index
    %c1_206 = arith.constant 1 : index
    %c1_207 = arith.constant 1 : index
    %c0_208 = arith.constant 0 : index
    %129 = vector.load %arg7[%c6_205, %c1_206, %c1_207, %c0_208] : memref<8x10x10x128xbf16, #tpu.memory_space<vmem>>, vector<2x8x8x128xbf16>
    %130 = vector.shape_cast %129 : vector<2x8x8x128xbf16> to vector<128x128xbf16>
    %131 = tpu.concatenate %114, %116, %118, %120, %122, %124, %126, %128, %130 in 1 : vector<128x128xbf16>, vector<128x128xbf16>, vector<128x128xbf16>, vector<128x128xbf16>, vector<128x128xbf16>, vector<128x128xbf16>, vector<128x128xbf16>, vector<128x128xbf16>, vector<128x128xbf16> -> vector<128x1152xbf16>
    %c0_209 = arith.constant 0 : index
    %c0_210 = arith.constant 0 : index
    %132 = vector.load %arg2[%c0_209, %c0_210] : memref<1152x128xbf16, #tpu.memory_space<vmem>>, vector<1152x128xbf16>
    %cst_211 = arith.constant dense<0.000000e+00> : vector<128x128xf32>
    %133 = tpu.matmul %131, %132, %cst_211 {dimension_numbers = #tpu.dot_dimension_numbers<[1], [0], [0], [1], [0, 0, 1, 1], [], []>} : vector<128x1152xbf16>, vector<1152x128xbf16>, vector<128x128xf32> -> vector<128x128xf32>
    %134 = vector.shape_cast %133 : vector<128x128xf32> to vector<2x8x8x128xf32>
    %c0_212 = arith.constant 0 : index
    %c0_213 = arith.constant 0 : index
    %c0_214 = arith.constant 0 : index
    %c0_215 = arith.constant 0 : index
    %135 = vector.load %arg5[%c0_212, %c0_213, %c0_214, %c0_215] : memref<2x8x8x128xf32, #tpu.memory_space<vmem>>, vector<2x8x8x128xf32>
    tpu.vector_store %arg5[%c0_212, %c0_213, %c0_214, %c0_215], %134 {strides = array<i32>} : memref<2x8x8x128xf32, #tpu.memory_space<vmem>>, vector<2x8x8x128xf32>,
    return
  }
}

</mosaic_0001>

<llo_original>
// kernel: tpu_custom_call.1
$region0: #{tpu_custom_call.1}
  #allocation0 [shape = 'u32[]', space=smem, size = 0x4, offset = 0x4, fixed_abs, tag = 'smem constant byte address 0x4 - core index']
  #allocation1 [shape = 'u32[144,128]{1,0:T(1,128)}', space=vmem, size = 0x12000, scoped, tag = 'internal scratch']
  #allocation2 [shape = 'bf16[8,10,10,4]{3,2,1,0:T(8,128)(2,1)}', space=vmem, size = 0x50000, scoped, tag = 'scratch operand']
  #allocation3 [shape = 'bf16[8,10,10,128]{3,2,1,0:T(8,128)(2,1)}', space=vmem, size = 0x50000, scoped, tag = 'scratch operand']
  %s0 = inlined_call_operand.hbm [shape: bf16[8,8,8,4], index: 0, kind: input, shape index: {}]
  %s1 = inlined_call_operand.hbm [shape: bf16[36,128], index: 1, kind: input, shape index: {}]
  %s2 = inlined_call_operand.hbm [shape: bf16[1152,128], index: 2, kind: input, shape index: {}]
  %s3 = inlined_call_operand.hbm [shape: f32[1,128], index: 3, kind: input, shape index: {}]
  %s4 = inlined_call_operand.hbm [shape: f32[1,128], index: 4, kind: input, shape index: {}]
  %s5 = inlined_call_operand.hbm [shape: f32[2,8,8,128], index: 5, kind: output, shape index: {}]
  %s6 = sld [smem:[#allocation0]]
  $region50: #{tpu_custom_call.1} parent=0
    _
  %s8 = ssub.s32 1, %s6
  %s9 = scalar_select 0, %s8, %s6
  $region1: #{tpu_custom_call.1} parent=0
    #allocation4 [shape = 'u8[131072]{0}', space=vmem, size = 0x20000, scoped, tag = 'input window, operand 0, single buffered']
    #allocation5 [shape = 's32[1]{0}', space=sflag, size = 0x4, scoped, tag = 'scoped memory for tpu_custom_call.1']
    #allocation6 [shape = 's32[1]{0}', space=sflag, size = 0x4, scoped, tag = 'scoped memory for tpu_custom_call.1']
    #allocation7 [shape = 'u8[10240]{0}', space=vmem, size = 0x2800, scoped, tag = 'input window, operand 1, single buffered']
    #allocation8 [shape = 's32[1]{0}', space=sflag, size = 0x4, scoped, tag = 'scoped memory for tpu_custom_call.1']
    #allocation9 [shape = 'u8[294912]{0}', space=vmem, size = 0x48000, scoped, tag = 'input window, operand 2, single buffered']
    #allocation10 [shape = 'u8[512]{0}', space=vmem, size = 0x400, scoped, tag = 'input window, operand 3, single buffered']
    #allocation11 [shape = 's32[1]{0}', space=sflag, size = 0x4, scoped, tag = 'scoped memory for tpu_custom_call.1']
    #allocation12 [shape = 'u8[512]{0}', space=vmem, size = 0x400, scoped, tag = 'input window, operand 4, single buffered']
    #allocation13 [shape = 'u8[65536]{0}', space=vmem, size = 0x10000, scoped, tag = 'output window, operand 0, single buffered']
    %10 = vsyncpa [#allocation5], 0
    %11 = vsyncpa [#allocation8], 0
    %12 = vsyncpa [#allocation11], 0
    %13 = vsyncpa [#allocation6], 0
    // Predicated region
    $region2: #{tpu_custom_call.1} parent=1 // pred_check
      _
    $region3: #{tpu_custom_call.1} parent=1 // pred_check_branch
      %15 = sbr.rel (0) target = $region5
    $region4: #{tpu_custom_call.1} parent=1 // pred_region
      %s17 = ssub.s32 4096, 4096
      %18 = vsyncadd [#allocation5], %s17
      %s19 = sshll.u32 [#allocation4], 4
      %s20 = int_to_ptr.vmem [resolvable:$true] %s19
      %25 = dma.hbm_to_vmem [thread:$0]  %s0, 4096, %s20, [#allocation5], 64, 64, 4
    $region5: #{tpu_custom_call.1} parent=1 // pred_fallthru
      _
    // Predicated region
    $region6: #{tpu_custom_call.1} parent=1 // pred_check
      _
    $region7: #{tpu_custom_call.1} parent=1 // pred_check_branch
      %27 = sbr.rel (0) target = $region9
    $region8: #{tpu_custom_call.1} parent=1 // pred_region
      %s29 = ssub.s32 320, 320
      %30 = vsyncadd [#allocation8], %s29
      %s31 = sshll.u32 [#allocation7], 4
      %s32 = int_to_ptr.vmem [resolvable:$true] %s31
      %37 = dma.hbm_to_vmem [thread:$0]  %s1, 320, %s32, [#allocation8], 64, 64, 4
    $region9: #{tpu_custom_call.1} parent=1 // pred_fallthru
      _
    // Predicated region
    $region10: #{tpu_custom_call.1} parent=1 // pred_check
      _
    $region11: #{tpu_custom_call.1} parent=1 // pred_check_branch
      %39 = sbr.rel (0) target = $region13
    $region12: #{tpu_custom_call.1} parent=1 // pred_region
      %s41 = ssub.s32 9216, 9216
      %42 = vsyncadd [#allocation8], %s41
      %s43 = sshll.u32 [#allocation9], 4
      %s44 = int_to_ptr.vmem [resolvable:$true] %s43
      %49 = dma.hbm_to_vmem [thread:$0]  %s2, 9216, %s44, [#allocation8], 64, 64, 4
    $region13: #{tpu_custom_call.1} parent=1 // pred_fallthru
      _
    // Predicated region
    $region14: #{tpu_custom_call.1} parent=1 // pred_check
      _
    $region15: #{tpu_custom_call.1} parent=1 // pred_check_branch
      %51 = sbr.rel (0) target = $region17
    $region16: #{tpu_custom_call.1} parent=1 // pred_region
      %s53 = ssub.s32 16, 16
      %54 = vsyncadd [#allocation11], %s53
      %s56 = sshll.u32 [#allocation10], 4
      %s57 = int_to_ptr.vmem [resolvable:$true] %s56
      %59 = dma.hbm_to_vmem [thread:$0]  %s3, 16, %s57, [#allocation11]
    $region17: #{tpu_custom_call.1} parent=1 // pred_fallthru
      _
    // Predicated region
    $region18: #{tpu_custom_call.1} parent=1 // pred_check
      _
    $region19: #{tpu_custom_call.1} parent=1 // pred_check_branch
      %61 = sbr.rel (0) target = $region21
    $region20: #{tpu_custom_call.1} parent=1 // pred_region
      %s63 = ssub.s32 16, 16
      %64 = vsyncadd [#allocation11], %s63
      %s66 = sshll.u32 [#allocation12], 4
      %s67 = int_to_ptr.vmem [resolvable:$true] %s66
      %69 = dma.hbm_to_vmem [thread:$0]  %s4, 16, %s67, [#allocation11]
    $region21: #{tpu_custom_call.1} parent=1 // pred_fallthru
      _
    // Predicated region
    $region22: #{tpu_custom_call.1} parent=1 // pred_check
      _
    $region23: #{tpu_custom_call.1} parent=1 // pred_check_branch
      %71 = sbr.rel (0) target = $region25
    $region24: #{tpu_custom_call.1} parent=1 // pred_region
      %72 = dma.done [#allocation5], 4096
    $region25: #{tpu_custom_call.1} parent=1 // pred_fallthru
      _
    // Predicated region
    $region26: #{tpu_custom_call.1} parent=1 // pred_check
      _
    $region27: #{tpu_custom_call.1} parent=1 // pred_check_branch
      %74 = sbr.rel (0) target = $region29
    $region28: #{tpu_custom_call.1} parent=1 // pred_region
      %75 = dma.done [#allocation8], 320
    $region29: #{tpu_custom_call.1} parent=1 // pred_fallthru
      _
    // Predicated region
    $region30: #{tpu_custom_call.1} parent=1 // pred_check
      _
    $region31: #{tpu_custom_call.1} parent=1 // pred_check_branch
      %77 = sbr.rel (0) target = $region33
    $region32: #{tpu_custom_call.1} parent=1 // pred_region
      %78 = dma.done [#allocation8], 9216
    $region33: #{tpu_custom_call.1} parent=1 // pred_fallthru
      _
    // Predicated region
    $region34: #{tpu_custom_call.1} parent=1 // pred_check
      _
    $region35: #{tpu_custom_call.1} parent=1 // pred_check_branch
      %80 = sbr.rel (0) target = $region37
    $region36: #{tpu_custom_call.1} parent=1 // pred_region
      %81 = dma.done [#allocation11], 16
    $region37: #{tpu_custom_call.1} parent=1 // pred_fallthru
      _
    // Predicated region
    $region38: #{tpu_custom_call.1} parent=1 // pred_check
      _
    $region39: #{tpu_custom_call.1} parent=1 // pred_check_branch
      %83 = sbr.rel (0) target = $region41
    $region40: #{tpu_custom_call.1} parent=1 // pred_region
      %84 = dma.done [#allocation11], 16
    $region41: #{tpu_custom_call.1} parent=1 // pred_fallthru
      _
    %vm86 = vcmask 27648
    %87 = vst.msk [vmem:[#allocation2] sm:$0xf] %vm86, 0
    %vm88 = vcmask 24576
    %89 = vst.msk [vmem:[#allocation2 + $0x4] sm:$0x1] %vm88, 0
    %90 = vst.msk [vmem:[#allocation2 + $0x8] sm:$0xf] %vm86, 0
    %91 = vst.msk [vmem:[#allocation2 + $0xc] sm:$0x1] %vm88, 0
    %92 = vst.msk [vmem:[#allocation2 + $0x10] sm:$0xf] %vm86, 0
    %93 = vst.msk [vmem:[#allocation2 + $0x14] sm:$0x1] %vm88, 0
    %94 = vst.msk [vmem:[#allocation2 + $0x18] sm:$0xf] %vm86, 0
    %95 = vst.msk [vmem:[#allocation2 + $0x1c] sm:$0x1] %vm88, 0
    %96 = vst.msk [vmem:[#allocation2 + $0x20] sm:$0xf] %vm86, 0
    %97 = vst.msk [vmem:[#allocation2 + $0x24] sm:$0x1] %vm88, 0
    %98 = vst.msk [vmem:[#allocation2 + $0x28] sm:$0xf] %vm86, 0
    %99 = vst.msk [vmem:[#allocation2 + $0x2c] sm:$0x1] %vm88, 0
    %100 = vst.msk [vmem:[#allocation2 + $0x30] sm:$0xf] %vm86, 0
    %101 = vst.msk [vmem:[#allocation2 + $0x34] sm:$0x1] %vm88, 0
    %102 = vst.msk [vmem:[#allocation2 + $0x38] sm:$0xf] %vm86, 0
    %103 = vst.msk [vmem:[#allocation2 + $0x3c] sm:$0x1] %vm88, 0
    %104 = vst.msk [vmem:[#allocation2 + $0x40] sm:$0xf] %vm86, 0
    %105 = vst.msk [vmem:[#allocation2 + $0x44] sm:$0x1] %vm88, 0
    %106 = vst.msk [vmem:[#allocation2 + $0x48] sm:$0xf] %vm86, 0
    %107 = vst.msk [vmem:[#allocation2 + $0x4c] sm:$0x1] %vm88, 0
    %108 = vst.msk [vmem:[#allocation2 + $0x50] sm:$0xf] %vm86, 0
    %109 = vst.msk [vmem:[#allocation2 + $0x54] sm:$0x1] %vm88, 0
    %110 = vst.msk [vmem:[#allocation2 + $0x58] sm:$0xf] %vm86, 0
    %111 = vst.msk [vmem:[#allocation2 + $0x5c] sm:$0x1] %vm88, 0
    %112 = vst.msk [vmem:[#allocation2 + $0x60] sm:$0xf] %vm86, 0
    %113 = vst.msk [vmem:[#allocation2 + $0x64] sm:$0x1] %vm88, 0
    %114 = vst.msk [vmem:[#allocation2 + $0x68] sm:$0xf] %vm86, 0
    %115 = vst.msk [vmem:[#allocation2 + $0x6c] sm:$0x1] %vm88, 0
    %116 = vst.msk [vmem:[#allocation2 + $0x70] sm:$0xf] %vm86, 0
    %117 = vst.msk [vmem:[#allocation2 + $0x74] sm:$0x1] %vm88, 0
    %118 = vst.msk [vmem:[#allocation2 + $0x78] sm:$0xf] %vm86, 0
    %119 = vst.msk [vmem:[#allocation2 + $0x7c] sm:$0x1] %vm88, 0
    %120 = vst.msk [vmem:[#allocation2 + $0x80] sm:$0xf] %vm86, 0
    %121 = vst.msk [vmem:[#allocation2 + $0x84] sm:$0x1] %vm88, 0
    %122 = vst.msk [vmem:[#allocation2 + $0x88] sm:$0xf] %vm86, 0
    %123 = vst.msk [vmem:[#allocation2 + $0x8c] sm:$0x1] %vm88, 0
    %124 = vst.msk [vmem:[#allocation2 + $0x90] sm:$0xf] %vm86, 0
    %125 = vst.msk [vmem:[#allocation2 + $0x94] sm:$0x1] %vm88, 0
    %126 = vst.msk [vmem:[#allocation2 + $0x98] sm:$0xf] %vm86, 0
    %127 = vst.msk [vmem:[#allocation2 + $0x9c] sm:$0x1] %vm88, 0
    %128 = vst.msk [vmem:[#allocation2 + $0xa0] sm:$0xf] %vm86, 0
    %129 = vst.msk [vmem:[#allocation2 + $0xa4] sm:$0x1] %vm88, 0
    %130 = vst.msk [vmem:[#allocation2 + $0xa8] sm:$0xf] %vm86, 0
    %131 = vst.msk [vmem:[#allocation2 + $0xac] sm:$0x1] %vm88, 0
    %132 = vst.msk [vmem:[#allocation2 + $0xb0] sm:$0xf] %vm86, 0
    %133 = vst.msk [vmem:[#allocation2 + $0xb4] sm:$0x1] %vm88, 0
    %134 = vst.msk [vmem:[#allocation2 + $0xb8] sm:$0xf] %vm86, 0
    %135 = vst.msk [vmem:[#allocation2 + $0xbc] sm:$0x1] %vm88, 0
    %136 = vst.msk [vmem:[#allocation2 + $0xc0] sm:$0xf] %vm86, 0
    %137 = vst.msk [vmem:[#allocation2 + $0xc4] sm:$0x1] %vm88, 0
    %138 = vst.msk [vmem:[#allocation2 + $0xc8] sm:$0xf] %vm86, 0
    %139 = vst.msk [vmem:[#allocation2 + $0xcc] sm:$0x1] %vm88, 0
    %140 = vst.msk [vmem:[#allocation2 + $0xd0] sm:$0xf] %vm86, 0
    %141 = vst.msk [vmem:[#allocation2 + $0xd4] sm:$0x1] %vm88, 0
    %142 = vst.msk [vmem:[#allocation2 + $0xd8] sm:$0xf] %vm86, 0
    %143 = vst.msk [vmem:[#allocation2 + $0xdc] sm:$0x1] %vm88, 0
    %144 = vst.msk [vmem:[#allocation2 + $0xe0] sm:$0xf] %vm86, 0
    %145 = vst.msk [vmem:[#allocation2 + $0xe4] sm:$0x1] %vm88, 0
    %146 = vst.msk [vmem:[#allocation2 + $0xe8] sm:$0xf] %vm86, 0
    %147 = vst.msk [vmem:[#allocation2 + $0xec] sm:$0x1] %vm88, 0
    %148 = vst.msk [vmem:[#allocation2 + $0xf0] sm:$0xf] %vm86, 0
    %149 = vst.msk [vmem:[#allocation2 + $0xf4] sm:$0x1] %vm88, 0
    %150 = vst.msk [vmem:[#allocation2 + $0xf8] sm:$0xf] %vm86, 0
    %151 = vst.msk [vmem:[#allocation2 + $0xfc] sm:$0x1] %vm88, 0
    %152 = vst.msk [vmem:[#allocation2 + $0x100] sm:$0xf] %vm86, 0
    %153 = vst.msk [vmem:[#allocation2 + $0x104] sm:$0x1] %vm88, 0
    %154 = vst.msk [vmem:[#allocation2 + $0x108] sm:$0xf] %vm86, 0
    %155 = vst.msk [vmem:[#allocation2 + $0x10c] sm:$0x1] %vm88, 0
    %156 = vst.msk [vmem:[#allocation2 + $0x110] sm:$0xf] %vm86, 0
    %157 = vst.msk [vmem:[#allocation2 + $0x114] sm:$0x1] %vm88, 0
    %158 = vst.msk [vmem:[#allocation2 + $0x118] sm:$0xf] %vm86, 0
    %159 = vst.msk [vmem:[#allocation2 + $0x11c] sm:$0x1] %vm88, 0
    %160 = vst.msk [vmem:[#allocation2 + $0x120] sm:$0xf] %vm86, 0
    %161 = vst.msk [vmem:[#allocation2 + $0x124] sm:$0x1] %vm88, 0
    %162 = vst.msk [vmem:[#allocation2 + $0x128] sm:$0xf] %vm86, 0
    %163 = vst.msk [vmem:[#allocation2 + $0x12c] sm:$0x1] %vm88, 0
    %164 = vst.msk [vmem:[#allocation2 + $0x130] sm:$0xf] %vm86, 0
    %165 = vst.msk [vmem:[#allocation2 + $0x134] sm:$0x1] %vm88, 0
    %166 = vst.msk [vmem:[#allocation2 + $0x138] sm:$0xf] %vm86, 0
    %167 = vst.msk [vmem:[#allocation2 + $0x13c] sm:$0x1] %vm88, 0
    %168 = vst.msk [vmem:[#allocation2 + $0x140] sm:$0xf] %vm86, 0
    %169 = vst.msk [vmem:[#allocation2 + $0x144] sm:$0x1] %vm88, 0
    %170 = vst.msk [vmem:[#allocation2 + $0x148] sm:$0xf] %vm86, 0
    %171 = vst.msk [vmem:[#allocation2 + $0x14c] sm:$0x1] %vm88, 0
    %172 = vst.msk [vmem:[#allocation2 + $0x150] sm:$0xf] %vm86, 0
    %173 = vst.msk [vmem:[#allocation2 + $0x154] sm:$0x1] %vm88, 0
    %174 = vst.msk [vmem:[#allocation2 + $0x158] sm:$0xf] %vm86, 0
    %175 = vst.msk [vmem:[#allocation2 + $0x15c] sm:$0x1] %vm88, 0
    %176 = vst.msk [vmem:[#allocation2 + $0x160] sm:$0xf] %vm86, 0
    %177 = vst.msk [vmem:[#allocation2 + $0x164] sm:$0x1] %vm88, 0
    %178 = vst.msk [vmem:[#allocation2 + $0x168] sm:$0xf] %vm86, 0
    %179 = vst.msk [vmem:[#allocation2 + $0x16c] sm:$0x1] %vm88, 0
    %180 = vst.msk [vmem:[#allocation2 + $0x170] sm:$0xf] %vm86, 0
    %181 = vst.msk [vmem:[#allocation2 + $0x174] sm:$0x1] %vm88, 0
    %182 = vst.msk [vmem:[#allocation2 + $0x178] sm:$0xf] %vm86, 0
    %183 = vst.msk [vmem:[#allocation2 + $0x17c] sm:$0x1] %vm88, 0
    %184 = vst.msk [vmem:[#allocation2 + $0x180] sm:$0xf] %vm86, 0
    %185 = vst.msk [vmem:[#allocation2 + $0x184] sm:$0x1] %vm88, 0
    %186 = vst.msk [vmem:[#allocation2 + $0x188] sm:$0xf] %vm86, 0
    %187 = vst.msk [vmem:[#allocation2 + $0x18c] sm:$0x1] %vm88, 0
    %188 = vst.msk [vmem:[#allocation2 + $0x190] sm:$0xf] %vm86, 0
    %189 = vst.msk [vmem:[#allocation2 + $0x194] sm:$0x1] %vm88, 0
    %190 = vst.msk [vmem:[#allocation2 + $0x198] sm:$0xf] %vm86, 0
    %191 = vst.msk [vmem:[#allocation2 + $0x19c] sm:$0x1] %vm88, 0
    %192 = vst.msk [vmem:[#allocation2 + $0x1a0] sm:$0xf] %vm86, 0
    %193 = vst.msk [vmem:[#allocation2 + $0x1a4] sm:$0x1] %vm88, 0
    %194 = vst.msk [vmem:[#allocation2 + $0x1a8] sm:$0xf] %vm86, 0
    %195 = vst.msk [vmem:[#allocation2 + $0x1ac] sm:$0x1] %vm88, 0
    %196 = vst.msk [vmem:[#allocation2 + $0x1b0] sm:$0xf] %vm86, 0
    %197 = vst.msk [vmem:[#allocation2 + $0x1b4] sm:$0x1] %vm88, 0
    %198 = vst.msk [vmem:[#allocation2 + $0x1b8] sm:$0xf] %vm86, 0
    %199 = vst.msk [vmem:[#allocation2 + $0x1bc] sm:$0x1] %vm88, 0
    %200 = vst.msk [vmem:[#allocation2 + $0x1c0] sm:$0xf] %vm86, 0
    %201 = vst.msk [vmem:[#allocation2 + $0x1c4] sm:$0x1] %vm88, 0
    %202 = vst.msk [vmem:[#allocation2 + $0x1c8] sm:$0xf] %vm86, 0
    %203 = vst.msk [vmem:[#allocation2 + $0x1cc] sm:$0x1] %vm88, 0
    %204 = vst.msk [vmem:[#allocation2 + $0x1d0] sm:$0xf] %vm86, 0
    %205 = vst.msk [vmem:[#allocation2 + $0x1d4] sm:$0x1] %vm88, 0
    %206 = vst.msk [vmem:[#allocation2 + $0x1d8] sm:$0xf] %vm86, 0
    %207 = vst.msk [vmem:[#allocation2 + $0x1dc] sm:$0x1] %vm88, 0
    %208 = vst.msk [vmem:[#allocation2 + $0x1e0] sm:$0xf] %vm86, 0
    %209 = vst.msk [vmem:[#allocation2 + $0x1e4] sm:$0x1] %vm88, 0
    %210 = vst.msk [vmem:[#allocation2 + $0x1e8] sm:$0xf] %vm86, 0
    %211 = vst.msk [vmem:[#allocation2 + $0x1ec] sm:$0x1] %vm88, 0
    %212 = vst.msk [vmem:[#allocation2 + $0x1f0] sm:$0xf] %vm86, 0
    %213 = vst.msk [vmem:[#allocation2 + $0x1f4] sm:$0x1] %vm88, 0
    %214 = vst.msk [vmem:[#allocation2 + $0x1f8] sm:$0xf] %vm86, 0
    %215 = vst.msk [vmem:[#allocation2 + $0x1fc] sm:$0x1] %vm88, 0
    %216 = vst.msk [vmem:[#allocation2 + $0x200] sm:$0xf] %vm86, 0
    %217 = vst.msk [vmem:[#allocation2 + $0x204] sm:$0x1] %vm88, 0
    %218 = vst.msk [vmem:[#allocation2 + $0x208] sm:$0xf] %vm86, 0
    %219 = vst.msk [vmem:[#allocation2 + $0x20c] sm:$0x1] %vm88, 0
    %220 = vst.msk [vmem:[#allocation2 + $0x210] sm:$0xf] %vm86, 0
    %221 = vst.msk [vmem:[#allocation2 + $0x214] sm:$0x1] %vm88, 0
    %222 = vst.msk [vmem:[#allocation2 + $0x218] sm:$0xf] %vm86, 0
    %223 = vst.msk [vmem:[#allocation2 + $0x21c] sm:$0x1] %vm88, 0
    %224 = vst.msk [vmem:[#allocation2 + $0x220] sm:$0xf] %vm86, 0
    %225 = vst.msk [vmem:[#allocation2 + $0x224] sm:$0x1] %vm88, 0
    %226 = vst.msk [vmem:[#allocation2 + $0x228] sm:$0xf] %vm86, 0
    %227 = vst.msk [vmem:[#allocation2 + $0x22c] sm:$0x1] %vm88, 0
    %228 = vst.msk [vmem:[#allocation2 + $0x230] sm:$0xf] %vm86, 0
    %229 = vst.msk [vmem:[#allocation2 + $0x234] sm:$0x1] %vm88, 0
    %230 = vst.msk [vmem:[#allocation2 + $0x238] sm:$0xf] %vm86, 0
    %231 = vst.msk [vmem:[#allocation2 + $0x23c] sm:$0x1] %vm88, 0
    %232 = vst.msk [vmem:[#allocation2 + $0x240] sm:$0xf] %vm86, 0
    %233 = vst.msk [vmem:[#allocation2 + $0x244] sm:$0x1] %vm88, 0
    %234 = vst.msk [vmem:[#allocation2 + $0x248] sm:$0xf] %vm86, 0
    %235 = vst.msk [vmem:[#allocation2 + $0x24c] sm:$0x1] %vm88, 0
    %236 = vst.msk [vmem:[#allocation2 + $0x250] sm:$0xf] %vm86, 0
    %237 = vst.msk [vmem:[#allocation2 + $0x254] sm:$0x1] %vm88, 0
    %238 = vst.msk [vmem:[#allocation2 + $0x258] sm:$0xf] %vm86, 0
    %239 = vst.msk [vmem:[#allocation2 + $0x25c] sm:$0x1] %vm88, 0
    %240 = vst.msk [vmem:[#allocation2 + $0x260] sm:$0xf] %vm86, 0
    %241 = vst.msk [vmem:[#allocation2 + $0x264] sm:$0x1] %vm88, 0
    %242 = vst.msk [vmem:[#allocation2 + $0x268] sm:$0xf] %vm86, 0
    %243 = vst.msk [vmem:[#allocation2 + $0x26c] sm:$0x1] %vm88, 0
    %244 = vst.msk [vmem:[#allocation2 + $0x270] sm:$0xf] %vm86, 0
    %245 = vst.msk [vmem:[#allocation2 + $0x274] sm:$0x1] %vm88, 0
    %246 = vst.msk [vmem:[#allocation2 + $0x278] sm:$0xf] %vm86, 0
    %247 = vst.msk [vmem:[#allocation2 + $0x27c] sm:$0x1] %vm88, 0
    %v248 = vld [vmem:[#allocation4] sm:$0xf]
    %v249 = vld [vmem:[#allocation4 + $0x4] sm:$0xf]
    %v250 = vld [vmem:[#allocation4 + $0x8] sm:$0xf]
    %v251 = vld [vmem:[#allocation4 + $0xc] sm:$0xf]
    %v252 = vld [vmem:[#allocation4 + $0x10] sm:$0xf]
    %v253 = vld [vmem:[#allocation4 + $0x14] sm:$0xf]
    %v254 = vld [vmem:[#allocation4 + $0x18] sm:$0xf]
    %v255 = vld [vmem:[#allocation4 + $0x1c] sm:$0xf]
    %v256 = vld [vmem:[#allocation4 + $0x20] sm:$0xf]
    %v257 = vld [vmem:[#allocation4 + $0x24] sm:$0xf]
    %v258 = vld [vmem:[#allocation4 + $0x28] sm:$0xf]
    %v259 = vld [vmem:[#allocation4 + $0x2c] sm:$0xf]
    %v260 = vld [vmem:[#allocation4 + $0x30] sm:$0xf]
    %v261 = vld [vmem:[#allocation4 + $0x34] sm:$0xf]
    %v262 = vld [vmem:[#allocation4 + $0x38] sm:$0xf]
    %v263 = vld [vmem:[#allocation4 + $0x3c] sm:$0xf]
    %v264 = vld [vmem:[#allocation4 + $0x40] sm:$0xf]
    %v265 = vld [vmem:[#allocation4 + $0x44] sm:$0xf]
    %v266 = vld [vmem:[#allocation4 + $0x48] sm:$0xf]
    %v267 = vld [vmem:[#allocation4 + $0x4c] sm:$0xf]
    %v268 = vld [vmem:[#allocation4 + $0x50] sm:$0xf]
    %v269 = vld [vmem:[#allocation4 + $0x54] sm:$0xf]
    %v270 = vld [vmem:[#allocation4 + $0x58] sm:$0xf]
    %v271 = vld [vmem:[#allocation4 + $0x5c] sm:$0xf]
    %v272 = vld [vmem:[#allocation4 + $0x60] sm:$0xf]
    %v273 = vld [vmem:[#allocation4 + $0x64] sm:$0xf]
    %v274 = vld [vmem:[#allocation4 + $0x68] sm:$0xf]
    %v275 = vld [vmem:[#allocation4 + $0x6c] sm:$0xf]
    %v276 = vld [vmem:[#allocation4 + $0x70] sm:$0xf]
    %v277 = vld [vmem:[#allocation4 + $0x74] sm:$0xf]
    %v278 = vld [vmem:[#allocation4 + $0x78] sm:$0xf]
    %v279 = vld [vmem:[#allocation4 + $0x7c] sm:$0xf]
    %v280 = vld [vmem:[#allocation4 + $0x80] sm:$0xf]
    %v281 = vld [vmem:[#allocation4 + $0x84] sm:$0xf]
    %v282 = vld [vmem:[#allocation4 + $0x88] sm:$0xf]
    %v283 = vld [vmem:[#allocation4 + $0x8c] sm:$0xf]
    %v284 = vld [vmem:[#allocation4 + $0x90] sm:$0xf]
    %v285 = vld [vmem:[#allocation4 + $0x94] sm:$0xf]
    %v286 = vld [vmem:[#allocation4 + $0x98] sm:$0xf]
    %v287 = vld [vmem:[#allocation4 + $0x9c] sm:$0xf]
    %v288 = vld [vmem:[#allocation4 + $0xa0] sm:$0xf]
    %v289 = vld [vmem:[#allocation4 + $0xa4] sm:$0xf]
    %v290 = vld [vmem:[#allocation4 + $0xa8] sm:$0xf]
    %v291 = vld [vmem:[#allocation4 + $0xac] sm:$0xf]
    %v292 = vld [vmem:[#allocation4 + $0xb0] sm:$0xf]
    %v293 = vld [vmem:[#allocation4 + $0xb4] sm:$0xf]
    %v294 = vld [vmem:[#allocation4 + $0xb8] sm:$0xf]
    %v295 = vld [vmem:[#allocation4 + $0xbc] sm:$0xf]
    %v296 = vld [vmem:[#allocation4 + $0xc0] sm:$0xf]
    %v297 = vld [vmem:[#allocation4 + $0xc4] sm:$0xf]
    %v298 = vld [vmem:[#allocation4 + $0xc8] sm:$0xf]
    %v299 = vld [vmem:[#allocation4 + $0xcc] sm:$0xf]
    %v300 = vld [vmem:[#allocation4 + $0xd0] sm:$0xf]
    %v301 = vld [vmem:[#allocation4 + $0xd4] sm:$0xf]
    %v302 = vld [vmem:[#allocation4 + $0xd8] sm:$0xf]
    %v303 = vld [vmem:[#allocation4 + $0xdc] sm:$0xf]
    %v304 = vld [vmem:[#allocation4 + $0xe0] sm:$0xf]
    %v305 = vld [vmem:[#allocation4 + $0xe4] sm:$0xf]
    %v306 = vld [vmem:[#allocation4 + $0xe8] sm:$0xf]
    %v307 = vld [vmem:[#allocation4 + $0xec] sm:$0xf]
    %v308 = vld [vmem:[#allocation4 + $0xf0] sm:$0xf]
    %v309 = vld [vmem:[#allocation4 + $0xf4] sm:$0xf]
    %v310 = vld [vmem:[#allocation4 + $0xf8] sm:$0xf]
    %v311 = vld [vmem:[#allocation4 + $0xfc] sm:$0xf]
    %v313 = vshrl.u32 %v248, 16
    %v315 = vrot.slane %v313, 7
    %v316 = vshll.u32 %v248, 16
    %v318 = vor.u32 %v315, %v316
    %v319 = vrot.slane %v315, 4
    %v321 = vshrl.u32 %v249, 16
    %v323 = vrot.slane %v321, 7
    %v324 = vshll.u32 %v249, 16
    %v326 = vor.u32 %v323, %v324
    %v327 = vrot.slane %v323, 4
    %v329 = vshrl.u32 %v250, 16
    %v331 = vrot.slane %v329, 7
    %v332 = vshll.u32 %v250, 16
    %v334 = vor.u32 %v331, %v332
    %v335 = vrot.slane %v331, 4
    %v337 = vshrl.u32 %v251, 16
    %v339 = vrot.slane %v337, 7
    %v340 = vshll.u32 %v251, 16
    %v342 = vor.u32 %v339, %v340
    %v343 = vrot.slane %v339, 4
    %v345 = vshrl.u32 %v252, 16
    %v347 = vrot.slane %v345, 7
    %v348 = vshll.u32 %v252, 16
    %v350 = vor.u32 %v347, %v348
    %v351 = vrot.slane %v347, 4
    %v353 = vshrl.u32 %v253, 16
    %v355 = vrot.slane %v353, 7
    %v356 = vshll.u32 %v253, 16
    %v358 = vor.u32 %v355, %v356
    %v359 = vrot.slane %v355, 4
    %v361 = vshrl.u32 %v254, 16
    %v363 = vrot.slane %v361, 7
    %v364 = vshll.u32 %v254, 16
    %v366 = vor.u32 %v363, %v364
    %v367 = vrot.slane %v363, 4
    %v369 = vshrl.u32 %v255, 16
    %v371 = vrot.slane %v369, 7
    %v372 = vshll.u32 %v255, 16
    %v374 = vor.u32 %v371, %v372
    %v375 = vrot.slane %v371, 4
    %v377 = vshrl.u32 %v256, 16
    %v379 = vrot.slane %v377, 7
    %v380 = vshll.u32 %v256, 16
    %v382 = vor.u32 %v379, %v380
    %v383 = vrot.slane %v379, 4
    %v385 = vshrl.u32 %v257, 16
    %v387 = vrot.slane %v385, 7
    %v388 = vshll.u32 %v257, 16
    %v390 = vor.u32 %v387, %v388
    %v391 = vrot.slane %v387, 4
    %v393 = vshrl.u32 %v258, 16
    %v395 = vrot.slane %v393, 7
    %v396 = vshll.u32 %v258, 16
    %v398 = vor.u32 %v395, %v396
    %v399 = vrot.slane %v395, 4
    %v401 = vshrl.u32 %v259, 16
    %v403 = vrot.slane %v401, 7
    %v404 = vshll.u32 %v259, 16
    %v406 = vor.u32 %v403, %v404
    %v407 = vrot.slane %v403, 4
    %v409 = vshrl.u32 %v260, 16
    %v411 = vrot.slane %v409, 7
    %v412 = vshll.u32 %v260, 16
    %v414 = vor.u32 %v411, %v412
    %v415 = vrot.slane %v411, 4
    %v417 = vshrl.u32 %v261, 16
    %v419 = vrot.slane %v417, 7
    %v420 = vshll.u32 %v261, 16
    %v422 = vor.u32 %v419, %v420
    %v423 = vrot.slane %v419, 4
    %v425 = vshrl.u32 %v262, 16
    %v427 = vrot.slane %v425, 7
    %v428 = vshll.u32 %v262, 16
    %v430 = vor.u32 %v427, %v428
    %v431 = vrot.slane %v427, 4
    %v433 = vshrl.u32 %v263, 16
    %v435 = vrot.slane %v433, 7
    %v436 = vshll.u32 %v263, 16
    %v438 = vor.u32 %v435, %v436
    %v439 = vrot.slane %v435, 4
    %v441 = vshrl.u32 %v264, 16
    %v443 = vrot.slane %v441, 7
    %v444 = vshll.u32 %v264, 16
    %v446 = vor.u32 %v443, %v444
    %v447 = vrot.slane %v443, 4
    %v449 = vshrl.u32 %v265, 16
    %v451 = vrot.slane %v449, 7
    %v452 = vshll.u32 %v265, 16
    %v454 = vor.u32 %v451, %v452
    %v455 = vrot.slane %v451, 4
    %v457 = vshrl.u32 %v266, 16
    %v459 = vrot.slane %v457, 7
    %v460 = vshll.u32 %v266, 16
    %v462 = vor.u32 %v459, %v460
    %v463 = vrot.slane %v459, 4
    %v465 = vshrl.u32 %v267, 16
    %v467 = vrot.slane %v465, 7
    %v468 = vshll.u32 %v267, 16
    %v470 = vor.u32 %v467, %v468
    %v471 = vrot.slane %v467, 4
    %v473 = vshrl.u32 %v268, 16
    %v475 = vrot.slane %v473, 7
    %v476 = vshll.u32 %v268, 16
    %v478 = vor.u32 %v475, %v476
    %v479 = vrot.slane %v475, 4
    %v481 = vshrl.u32 %v269, 16
    %v483 = vrot.slane %v481, 7
    %v484 = vshll.u32 %v269, 16
    %v486 = vor.u32 %v483, %v484
    %v487 = vrot.slane %v483, 4
    %v489 = vshrl.u32 %v270, 16
    %v491 = vrot.slane %v489, 7
    %v492 = vshll.u32 %v270, 16
    %v494 = vor.u32 %v491, %v492
    %v495 = vrot.slane %v491, 4
    %v497 = vshrl.u32 %v271, 16
    %v499 = vrot.slane %v497, 7
    %v500 = vshll.u32 %v271, 16
    %v502 = vor.u32 %v499, %v500
    %v503 = vrot.slane %v499, 4
    %v505 = vshrl.u32 %v272, 16
    %v507 = vrot.slane %v505, 7
    %v508 = vshll.u32 %v272, 16
    %v510 = vor.u32 %v507, %v508
    %v511 = vrot.slane %v507, 4
    %v513 = vshrl.u32 %v273, 16
    %v515 = vrot.slane %v513, 7
    %v516 = vshll.u32 %v273, 16
    %v518 = vor.u32 %v515, %v516
    %v519 = vrot.slane %v515, 4
    %v521 = vshrl.u32 %v274, 16
    %v523 = vrot.slane %v521, 7
    %v524 = vshll.u32 %v274, 16
    %v526 = vor.u32 %v523, %v524
    %v527 = vrot.slane %v523, 4
    %v529 = vshrl.u32 %v275, 16
    %v531 = vrot.slane %v529, 7
    %v532 = vshll.u32 %v275, 16
    %v534 = vor.u32 %v531, %v532
    %v535 = vrot.slane %v531, 4
    %v537 = vshrl.u32 %v276, 16
    %v539 = vrot.slane %v537, 7
    %v540 = vshll.u32 %v276, 16
    %v542 = vor.u32 %v539, %v540
    %v543 = vrot.slane %v539, 4
    %v545 = vshrl.u32 %v277, 16
    %v547 = vrot.slane %v545, 7
    %v548 = vshll.u32 %v277, 16
    %v550 = vor.u32 %v547, %v548
    %v551 = vrot.slane %v547, 4
    %v553 = vshrl.u32 %v278, 16
    %v555 = vrot.slane %v553, 7
    %v556 = vshll.u32 %v278, 16
    %v558 = vor.u32 %v555, %v556
    %v559 = vrot.slane %v555, 4
    %v561 = vshrl.u32 %v279, 16
    %v563 = vrot.slane %v561, 7
    %v564 = vshll.u32 %v279, 16
    %v566 = vor.u32 %v563, %v564
    %v567 = vrot.slane %v563, 4
    %v569 = vshrl.u32 %v280, 16
    %v571 = vrot.slane %v569, 7
    %v572 = vshll.u32 %v280, 16
    %v574 = vor.u32 %v571, %v572
    %v575 = vrot.slane %v571, 4
    %v577 = vshrl.u32 %v281, 16
    %v579 = vrot.slane %v577, 7
    %v580 = vshll.u32 %v281, 16
    %v582 = vor.u32 %v579, %v580
    %v583 = vrot.slane %v579, 4
    %v585 = vshrl.u32 %v282, 16
    %v587 = vrot.slane %v585, 7
    %v588 = vshll.u32 %v282, 16
    %v590 = vor.u32 %v587, %v588
    %v591 = vrot.slane %v587, 4
    %v593 = vshrl.u32 %v283, 16
    %v595 = vrot.slane %v593, 7
    %v596 = vshll.u32 %v283, 16
    %v598 = vor.u32 %v595, %v596
    %v599 = vrot.slane %v595, 4
    %v601 = vshrl.u32 %v284, 16
    %v603 = vrot.slane %v601, 7
    %v604 = vshll.u32 %v284, 16
    %v606 = vor.u32 %v603, %v604
    %v607 = vrot.slane %v603, 4
    %v609 = vshrl.u32 %v285, 16
    %v611 = vrot.slane %v609, 7
    %v612 = vshll.u32 %v285, 16
    %v614 = vor.u32 %v611, %v612
    %v615 = vrot.slane %v611, 4
    %v617 = vshrl.u32 %v286, 16
    %v619 = vrot.slane %v617, 7
    %v620 = vshll.u32 %v286, 16
    %v622 = vor.u32 %v619, %v620
    %v623 = vrot.slane %v619, 4
    %v625 = vshrl.u32 %v287, 16
    %v627 = vrot.slane %v625, 7
    %v628 = vshll.u32 %v287, 16
    %v630 = vor.u32 %v627, %v628
    %v631 = vrot.slane %v627, 4
    %v633 = vshrl.u32 %v288, 16
    %v635 = vrot.slane %v633, 7
    %v636 = vshll.u32 %v288, 16
    %v638 = vor.u32 %v635, %v636
    %v639 = vrot.slane %v635, 4
    %v641 = vshrl.u32 %v289, 16
    %v643 = vrot.slane %v641, 7
    %v644 = vshll.u32 %v289, 16
    %v646 = vor.u32 %v643, %v644
    %v647 = vrot.slane %v643, 4
    %v649 = vshrl.u32 %v290, 16
    %v651 = vrot.slane %v649, 7
    %v652 = vshll.u32 %v290, 16
    %v654 = vor.u32 %v651, %v652
    %v655 = vrot.slane %v651, 4
    %v657 = vshrl.u32 %v291, 16
    %v659 = vrot.slane %v657, 7
    %v660 = vshll.u32 %v291, 16
    %v662 = vor.u32 %v659, %v660
    %v663 = vrot.slane %v659, 4
    %v665 = vshrl.u32 %v292, 16
    %v667 = vrot.slane %v665, 7
    %v668 = vshll.u32 %v292, 16
    %v670 = vor.u32 %v667, %v668
    %v671 = vrot.slane %v667, 4
    %v673 = vshrl.u32 %v293, 16
    %v675 = vrot.slane %v673, 7
    %v676 = vshll.u32 %v293, 16
    %v678 = vor.u32 %v675, %v676
    %v679 = vrot.slane %v675, 4
    %v681 = vshrl.u32 %v294, 16
    %v683 = vrot.slane %v681, 7
    %v684 = vshll.u32 %v294, 16
    %v686 = vor.u32 %v683, %v684
    %v687 = vrot.slane %v683, 4
    %v689 = vshrl.u32 %v295, 16
    %v691 = vrot.slane %v689, 7
    %v692 = vshll.u32 %v295, 16
    %v694 = vor.u32 %v691, %v692
    %v695 = vrot.slane %v691, 4
    %v697 = vshrl.u32 %v296, 16
    %v699 = vrot.slane %v697, 7
    %v700 = vshll.u32 %v296, 16
    %v702 = vor.u32 %v699, %v700
    %v703 = vrot.slane %v699, 4
    %v705 = vshrl.u32 %v297, 16
    %v707 = vrot.slane %v705, 7
    %v708 = vshll.u32 %v297, 16
    %v710 = vor.u32 %v707, %v708
    %v711 = vrot.slane %v707, 4
    %v713 = vshrl.u32 %v298, 16
    %v715 = vrot.slane %v713, 7
    %v716 = vshll.u32 %v298, 16
    %v718 = vor.u32 %v715, %v716
    %v719 = vrot.slane %v715, 4
    %v721 = vshrl.u32 %v299, 16
    %v723 = vrot.slane %v721, 7
    %v724 = vshll.u32 %v299, 16
    %v726 = vor.u32 %v723, %v724
    %v727 = vrot.slane %v723, 4
    %v729 = vshrl.u32 %v300, 16
    %v731 = vrot.slane %v729, 7
    %v732 = vshll.u32 %v300, 16
    %v734 = vor.u32 %v731, %v732
    %v735 = vrot.slane %v731, 4
    %v737 = vshrl.u32 %v301, 16
    %v739 = vrot.slane %v737, 7
    %v740 = vshll.u32 %v301, 16
    %v742 = vor.u32 %v739, %v740
    %v743 = vrot.slane %v739, 4
    %v745 = vshrl.u32 %v302, 16
    %v747 = vrot.slane %v745, 7
    %v748 = vshll.u32 %v302, 16
    %v750 = vor.u32 %v747, %v748
    %v751 = vrot.slane %v747, 4
    %v753 = vshrl.u32 %v303, 16
    %v755 = vrot.slane %v753, 7
    %v756 = vshll.u32 %v303, 16
    %v758 = vor.u32 %v755, %v756
    %v759 = vrot.slane %v755, 4
    %v761 = vshrl.u32 %v304, 16
    %v763 = vrot.slane %v761, 7
    %v764 = vshll.u32 %v304, 16
    %v766 = vor.u32 %v763, %v764
    %v767 = vrot.slane %v763, 4
    %v769 = vshrl.u32 %v305, 16
    %v771 = vrot.slane %v769, 7
    %v772 = vshll.u32 %v305, 16
    %v774 = vor.u32 %v771, %v772
    %v775 = vrot.slane %v771, 4
    %v777 = vshrl.u32 %v306, 16
    %v779 = vrot.slane %v777, 7
    %v780 = vshll.u32 %v306, 16
    %v782 = vor.u32 %v779, %v780
    %v783 = vrot.slane %v779, 4
    %v785 = vshrl.u32 %v307, 16
    %v787 = vrot.slane %v785, 7
    %v788 = vshll.u32 %v307, 16
    %v790 = vor.u32 %v787, %v788
    %v791 = vrot.slane %v787, 4
    %v793 = vshrl.u32 %v308, 16
    %v795 = vrot.slane %v793, 7
    %v796 = vshll.u32 %v308, 16
    %v798 = vor.u32 %v795, %v796
    %v799 = vrot.slane %v795, 4
    %v801 = vshrl.u32 %v309, 16
    %v803 = vrot.slane %v801, 7
    %v804 = vshll.u32 %v309, 16
    %v806 = vor.u32 %v803, %v804
    %v807 = vrot.slane %v803, 4
    %v809 = vshrl.u32 %v310, 16
    %v811 = vrot.slane %v809, 7
    %v812 = vshll.u32 %v310, 16
    %v814 = vor.u32 %v811, %v812
    %v815 = vrot.slane %v811, 4
    %v817 = vshrl.u32 %v311, 16
    %v819 = vrot.slane %v817, 7
    %v820 = vshll.u32 %v311, 16
    %v822 = vor.u32 %v819, %v820
    %v823 = vrot.slane %v819, 4
    %s952 = scalar_lea.vmem [#allocation2], 8
    %vm953 = vcmask 27648
    %vm954 = vsmask.f32 7938
    %vm955 = vmand %vm953, %vm954
    %v956 = vld [vmem:[%s952] sm:$0xf]
    %v957 = vsel %vm955, %v318, %v956
    %958 = vst [vmem:[%s952] sm:$0xf] %v957
    %vm959 = vcmask 24576
    %vm960 = vsmask.f32 256
    %vm961 = vmand %vm959, %vm960
    %v962 = vld [vmem:[%s952 + $0x4] sm:$0x1]
    %v963 = vsel %vm961, %v319, %v962
    %964 = vst [vmem:[%s952 + $0x4] sm:$0x1] %v963
    %v965 = vld [vmem:[%s952 + $0x8] sm:$0xf]
    %v966 = vsel %vm955, %v326, %v965
    %967 = vst [vmem:[%s952 + $0x8] sm:$0xf] %v966
    %v968 = vld [vmem:[%s952 + $0xc] sm:$0x1]
    %v969 = vsel %vm961, %v327, %v968
    %970 = vst [vmem:[%s952 + $0xc] sm:$0x1] %v969
    %v971 = vld [vmem:[%s952 + $0x10] sm:$0xf]
    %v972 = vsel %vm955, %v334, %v971
    %973 = vst [vmem:[%s952 + $0x10] sm:$0xf] %v972
    %v974 = vld [vmem:[%s952 + $0x14] sm:$0x1]
    %v975 = vsel %vm961, %v335, %v974
    %976 = vst [vmem:[%s952 + $0x14] sm:$0x1] %v975
    %v977 = vld [vmem:[%s952 + $0x18] sm:$0xf]
    %v978 = vsel %vm955, %v342, %v977
    %979 = vst [vmem:[%s952 + $0x18] sm:$0xf] %v978
    %v980 = vld [vmem:[%s952 + $0x1c] sm:$0x1]
    %v981 = vsel %vm961, %v343, %v980
    %982 = vst [vmem:[%s952 + $0x1c] sm:$0x1] %v981
    %v983 = vld [vmem:[%s952 + $0x20] sm:$0xf]
    %v984 = vsel %vm955, %v350, %v983
    %985 = vst [vmem:[%s952 + $0x20] sm:$0xf] %v984
    %v986 = vld [vmem:[%s952 + $0x24] sm:$0x1]
    %v987 = vsel %vm961, %v351, %v986
    %988 = vst [vmem:[%s952 + $0x24] sm:$0x1] %v987
    %v989 = vld [vmem:[%s952 + $0x28] sm:$0xf]
    %v990 = vsel %vm955, %v358, %v989
    %991 = vst [vmem:[%s952 + $0x28] sm:$0xf] %v990
    %v992 = vld [vmem:[%s952 + $0x2c] sm:$0x1]
    %v993 = vsel %vm961, %v359, %v992
    %994 = vst [vmem:[%s952 + $0x2c] sm:$0x1] %v993
    %v995 = vld [vmem:[%s952 + $0x30] sm:$0xf]
    %v996 = vsel %vm955, %v366, %v995
    %997 = vst [vmem:[%s952 + $0x30] sm:$0xf] %v996
    %v998 = vld [vmem:[%s952 + $0x34] sm:$0x1]
    %v999 = vsel %vm961, %v367, %v998
    %1000 = vst [vmem:[%s952 + $0x34] sm:$0x1] %v999
    %v1001 = vld [vmem:[%s952 + $0x38] sm:$0xf]
    %v1002 = vsel %vm955, %v374, %v1001
    %1003 = vst [vmem:[%s952 + $0x38] sm:$0xf] %v1002
    %v1004 = vld [vmem:[%s952 + $0x3c] sm:$0x1]
    %v1005 = vsel %vm961, %v375, %v1004
    %1006 = vst [vmem:[%s952 + $0x3c] sm:$0x1] %v1005
    %v1007 = vld [vmem:[%s952 + $0x50] sm:$0xf]
    %v1008 = vsel %vm955, %v382, %v1007
    %1009 = vst [vmem:[%s952 + $0x50] sm:$0xf] %v1008
    %v1010 = vld [vmem:[%s952 + $0x54] sm:$0x1]
    %v1011 = vsel %vm961, %v383, %v1010
    %1012 = vst [vmem:[%s952 + $0x54] sm:$0x1] %v1011
    %v1013 = vld [vmem:[%s952 + $0x58] sm:$0xf]
    %v1014 = vsel %vm955, %v390, %v1013
    %1015 = vst [vmem:[%s952 + $0x58] sm:$0xf] %v1014
    %v1016 = vld [vmem:[%s952 + $0x5c] sm:$0x1]
    %v1017 = vsel %vm961, %v391, %v1016
    %1018 = vst [vmem:[%s952 + $0x5c] sm:$0x1] %v1017
    %v1019 = vld [vmem:[%s952 + $0x60] sm:$0xf]
    %v1020 = vsel %vm955, %v398, %v1019
    %1021 = vst [vmem:[%s952 + $0x60] sm:$0xf] %v1020
    %v1022 = vld [vmem:[%s952 + $0x64] sm:$0x1]
    %v1023 = vsel %vm961, %v399, %v1022
    %1024 = vst [vmem:[%s952 + $0x64] sm:$0x1] %v1023
    %v1025 = vld [vmem:[%s952 + $0x68] sm:$0xf]
    %v1026 = vsel %vm955, %v406, %v1025
    %1027 = vst [vmem:[%s952 + $0x68] sm:$0xf] %v1026
    %v1028 = vld [vmem:[%s952 + $0x6c] sm:$0x1]
    %v1029 = vsel %vm961, %v407, %v1028
    %1030 = vst [vmem:[%s952 + $0x6c] sm:$0x1] %v1029
    %v1031 = vld [vmem:[%s952 + $0x70] sm:$0xf]
    %v1032 = vsel %vm955, %v414, %v1031
    %1033 = vst [vmem:[%s952 + $0x70] sm:$0xf] %v1032
    %v1034 = vld [vmem:[%s952 + $0x74] sm:$0x1]
    %v1035 = vsel %vm961, %v415, %v1034
    %1036 = vst [vmem:[%s952 + $0x74] sm:$0x1] %v1035
    %v1037 = vld [vmem:[%s952 + $0x78] sm:$0xf]
    %v1038 = vsel %vm955, %v422, %v1037
    %1039 = vst [vmem:[%s952 + $0x78] sm:$0xf] %v1038
    %v1040 = vld [vmem:[%s952 + $0x7c] sm:$0x1]
    %v1041 = vsel %vm961, %v423, %v1040
    %1042 = vst [vmem:[%s952 + $0x7c] sm:$0x1] %v1041
    %v1043 = vld [vmem:[%s952 + $0x80] sm:$0xf]
    %v1044 = vsel %vm955, %v430, %v1043
    %1045 = vst [vmem:[%s952 + $0x80] sm:$0xf] %v1044
    %v1046 = vld [vmem:[%s952 + $0x84] sm:$0x1]
    %v1047 = vsel %vm961, %v431, %v1046
    %1048 = vst [vmem:[%s952 + $0x84] sm:$0x1] %v1047
    %v1049 = vld [vmem:[%s952 + $0x88] sm:$0xf]
    %v1050 = vsel %vm955, %v438, %v1049
    %1051 = vst [vmem:[%s952 + $0x88] sm:$0xf] %v1050
    %v1052 = vld [vmem:[%s952 + $0x8c] sm:$0x1]
    %v1053 = vsel %vm961, %v439, %v1052
    %1054 = vst [vmem:[%s952 + $0x8c] sm:$0x1] %v1053
    %v1055 = vld [vmem:[%s952 + $0xa0] sm:$0xf]
    %v1056 = vsel %vm955, %v446, %v1055
    %1057 = vst [vmem:[%s952 + $0xa0] sm:$0xf] %v1056
    %v1058 = vld [vmem:[%s952 + $0xa4] sm:$0x1]
    %v1059 = vsel %vm961, %v447, %v1058
    %1060 = vst [vmem:[%s952 + $0xa4] sm:$0x1] %v1059
    %v1061 = vld [vmem:[%s952 + $0xa8] sm:$0xf]
    %v1062 = vsel %vm955, %v454, %v1061
    %1063 = vst [vmem:[%s952 + $0xa8] sm:$0xf] %v1062
    %v1064 = vld [vmem:[%s952 + $0xac] sm:$0x1]
    %v1065 = vsel %vm961, %v455, %v1064
    %1066 = vst [vmem:[%s952 + $0xac] sm:$0x1] %v1065
    %v1067 = vld [vmem:[%s952 + $0xb0] sm:$0xf]
    %v1068 = vsel %vm955, %v462, %v1067
    %1069 = vst [vmem:[%s952 + $0xb0] sm:$0xf] %v1068
    %v1070 = vld [vmem:[%s952 + $0xb4] sm:$0x1]
    %v1071 = vsel %vm961, %v463, %v1070
    %1072 = vst [vmem:[%s952 + $0xb4] sm:$0x1] %v1071
    %v1073 = vld [vmem:[%s952 + $0xb8] sm:$0xf]
    %v1074 = vsel %vm955, %v470, %v1073
    %1075 = vst [vmem:[%s952 + $0xb8] sm:$0xf] %v1074
    %v1076 = vld [vmem:[%s952 + $0xbc] sm:$0x1]
    %v1077 = vsel %vm961, %v471, %v1076
    %1078 = vst [vmem:[%s952 + $0xbc] sm:$0x1] %v1077
    %v1079 = vld [vmem:[%s952 + $0xc0] sm:$0xf]
    %v1080 = vsel %vm955, %v478, %v1079
    %1081 = vst [vmem:[%s952 + $0xc0] sm:$0xf] %v1080
    %v1082 = vld [vmem:[%s952 + $0xc4] sm:$0x1]
    %v1083 = vsel %vm961, %v479, %v1082
    %1084 = vst [vmem:[%s952 + $0xc4] sm:$0x1] %v1083
    %v1085 = vld [vmem:[%s952 + $0xc8] sm:$0xf]
    %v1086 = vsel %vm955, %v486, %v1085
    %1087 = vst [vmem:[%s952 + $0xc8] sm:$0xf] %v1086
    %v1088 = vld [vmem:[%s952 + $0xcc] sm:$0x1]
    %v1089 = vsel %vm961, %v487, %v1088
    %1090 = vst [vmem:[%s952 + $0xcc] sm:$0x1] %v1089
    %v1091 = vld [vmem:[%s952 + $0xd0] sm:$0xf]
    %v1092 = vsel %vm955, %v494, %v1091
    %1093 = vst [vmem:[%s952 + $0xd0] sm:$0xf] %v1092
    %v1094 = vld [vmem:[%s952 + $0xd4] sm:$0x1]
    %v1095 = vsel %vm961, %v495, %v1094
    %1096 = vst [vmem:[%s952 + $0xd4] sm:$0x1] %v1095
    %v1097 = vld [vmem:[%s952 + $0xd8] sm:$0xf]
    %v1098 = vsel %vm955, %v502, %v1097
    %1099 = vst [vmem:[%s952 + $0xd8] sm:$0xf] %v1098
    %v1100 = vld [vmem:[%s952 + $0xdc] sm:$0x1]
    %v1101 = vsel %vm961, %v503, %v1100
    %1102 = vst [vmem:[%s952 + $0xdc] sm:$0x1] %v1101
    %v1103 = vld [vmem:[%s952 + $0xf0] sm:$0xf]
    %v1104 = vsel %vm955, %v510, %v1103
    %1105 = vst [vmem:[%s952 + $0xf0] sm:$0xf] %v1104
    %v1106 = vld [vmem:[%s952 + $0xf4] sm:$0x1]
    %v1107 = vsel %vm961, %v511, %v1106
    %1108 = vst [vmem:[%s952 + $0xf4] sm:$0x1] %v1107
    %v1109 = vld [vmem:[%s952 + $0xf8] sm:$0xf]
    %v1110 = vsel %vm955, %v518, %v1109
    %1111 = vst [vmem:[%s952 + $0xf8] sm:$0xf] %v1110
    %v1112 = vld [vmem:[%s952 + $0xfc] sm:$0x1]
    %v1113 = vsel %vm961, %v519, %v1112
    %1114 = vst [vmem:[%s952 + $0xfc] sm:$0x1] %v1113
    %v1115 = vld [vmem:[%s952 + $0x100] sm:$0xf]
    %v1116 = vsel %vm955, %v526, %v1115
    %1117 = vst [vmem:[%s952 + $0x100] sm:$0xf] %v1116
    %v1118 = vld [vmem:[%s952 + $0x104] sm:$0x1]
    %v1119 = vsel %vm961, %v527, %v1118
    %1120 = vst [vmem:[%s952 + $0x104] sm:$0x1] %v1119
    %v1121 = vld [vmem:[%s952 + $0x108] sm:$0xf]
    %v1122 = vsel %vm955, %v534, %v1121
    %1123 = vst [vmem:[%s952 + $0x108] sm:$0xf] %v1122
    %v1124 = vld [vmem:[%s952 + $0x10c] sm:$0x1]
    %v1125 = vsel %vm961, %v535, %v1124
    %1126 = vst [vmem:[%s952 + $0x10c] sm:$0x1] %v1125
    %v1127 = vld [vmem:[%s952 + $0x110] sm:$0xf]
    %v1128 = vsel %vm955, %v542, %v1127
    %1129 = vst [vmem:[%s952 + $0x110] sm:$0xf] %v1128
    %v1130 = vld [vmem:[%s952 + $0x114] sm:$0x1]
    %v1131 = vsel %vm961, %v543, %v1130
    %1132 = vst [vmem:[%s952 + $0x114] sm:$0x1] %v1131
    %v1133 = vld [vmem:[%s952 + $0x118] sm:$0xf]
    %v1134 = vsel %vm955, %v550, %v1133
    %1135 = vst [vmem:[%s952 + $0x118] sm:$0xf] %v1134
    %v1136 = vld [vmem:[%s952 + $0x11c] sm:$0x1]
    %v1137 = vsel %vm961, %v551, %v1136
    %1138 = vst [vmem:[%s952 + $0x11c] sm:$0x1] %v1137
    %v1139 = vld [vmem:[%s952 + $0x120] sm:$0xf]
    %v1140 = vsel %vm955, %v558, %v1139
    %1141 = vst [vmem:[%s952 + $0x120] sm:$0xf] %v1140
    %v1142 = vld [vmem:[%s952 + $0x124] sm:$0x1]
    %v1143 = vsel %vm961, %v559, %v1142
    %1144 = vst [vmem:[%s952 + $0x124] sm:$0x1] %v1143
    %v1145 = vld [vmem:[%s952 + $0x128] sm:$0xf]
    %v1146 = vsel %vm955, %v566, %v1145
    %1147 = vst [vmem:[%s952 + $0x128] sm:$0xf] %v1146
    %v1148 = vld [vmem:[%s952 + $0x12c] sm:$0x1]
    %v1149 = vsel %vm961, %v567, %v1148
    %1150 = vst [vmem:[%s952 + $0x12c] sm:$0x1] %v1149
    %v1151 = vld [vmem:[%s952 + $0x140] sm:$0xf]
    %v1152 = vsel %vm955, %v574, %v1151
    %1153 = vst [vmem:[%s952 + $0x140] sm:$0xf] %v1152
    %v1154 = vld [vmem:[%s952 + $0x144] sm:$0x1]
    %v1155 = vsel %vm961, %v575, %v1154
    %1156 = vst [vmem:[%s952 + $0x144] sm:$0x1] %v1155
    %v1157 = vld [vmem:[%s952 + $0x148] sm:$0xf]
    %v1158 = vsel %vm955, %v582, %v1157
    %1159 = vst [vmem:[%s952 + $0x148] sm:$0xf] %v1158
    %v1160 = vld [vmem:[%s952 + $0x14c] sm:$0x1]
    %v1161 = vsel %vm961, %v583, %v1160
    %1162 = vst [vmem:[%s952 + $0x14c] sm:$0x1] %v1161
    %v1163 = vld [vmem:[%s952 + $0x150] sm:$0xf]
    %v1164 = vsel %vm955, %v590, %v1163
    %1165 = vst [vmem:[%s952 + $0x150] sm:$0xf] %v1164
    %v1166 = vld [vmem:[%s952 + $0x154] sm:$0x1]
    %v1167 = vsel %vm961, %v591, %v1166
    %1168 = vst [vmem:[%s952 + $0x154] sm:$0x1] %v1167
    %v1169 = vld [vmem:[%s952 + $0x158] sm:$0xf]
    %v1170 = vsel %vm955, %v598, %v1169
    %1171 = vst [vmem:[%s952 + $0x158] sm:$0xf] %v1170
    %v1172 = vld [vmem:[%s952 + $0x15c] sm:$0x1]
    %v1173 = vsel %vm961, %v599, %v1172
    %1174 = vst [vmem:[%s952 + $0x15c] sm:$0x1] %v1173
    %v1175 = vld [vmem:[%s952 + $0x160] sm:$0xf]
    %v1176 = vsel %vm955, %v606, %v1175
    %1177 = vst [vmem:[%s952 + $0x160] sm:$0xf] %v1176
    %v1178 = vld [vmem:[%s952 + $0x164] sm:$0x1]
    %v1179 = vsel %vm961, %v607, %v1178
    %1180 = vst [vmem:[%s952 + $0x164] sm:$0x1] %v1179
    %v1181 = vld [vmem:[%s952 + $0x168] sm:$0xf]
    %v1182 = vsel %vm955, %v614, %v1181
    %1183 = vst [vmem:[%s952 + $0x168] sm:$0xf] %v1182
    %v1184 = vld [vmem:[%s952 + $0x16c] sm:$0x1]
    %v1185 = vsel %vm961, %v615, %v1184
    %1186 = vst [vmem:[%s952 + $0x16c] sm:$0x1] %v1185
    %v1187 = vld [vmem:[%s952 + $0x170] sm:$0xf]
    %v1188 = vsel %vm955, %v622, %v1187
    %1189 = vst [vmem:[%s952 + $0x170] sm:$0xf] %v1188
    %v1190 = vld [vmem:[%s952 + $0x174] sm:$0x1]
    %v1191 = vsel %vm961, %v623, %v1190
    %1192 = vst [vmem:[%s952 + $0x174] sm:$0x1] %v1191
    %v1193 = vld [vmem:[%s952 + $0x178] sm:$0xf]
    %v1194 = vsel %vm955, %v630, %v1193
    %1195 = vst [vmem:[%s952 + $0x178] sm:$0xf] %v1194
    %v1196 = vld [vmem:[%s952 + $0x17c] sm:$0x1]
    %v1197 = vsel %vm961, %v631, %v1196
    %1198 = vst [vmem:[%s952 + $0x17c] sm:$0x1] %v1197
    %v1199 = vld [vmem:[%s952 + $0x190] sm:$0xf]
    %v1200 = vsel %vm955, %v638, %v1199
    %1201 = vst [vmem:[%s952 + $0x190] sm:$0xf] %v1200
    %v1202 = vld [vmem:[%s952 + $0x194] sm:$0x1]
    %v1203 = vsel %vm961, %v639, %v1202
    %1204 = vst [vmem:[%s952 + $0x194] sm:$0x1] %v1203
    %v1205 = vld [vmem:[%s952 + $0x198] sm:$0xf]
    %v1206 = vsel %vm955, %v646, %v1205
    %1207 = vst [vmem:[%s952 + $0x198] sm:$0xf] %v1206
    %v1208 = vld [vmem:[%s952 + $0x19c] sm:$0x1]
    %v1209 = vsel %vm961, %v647, %v1208
    %1210 = vst [vmem:[%s952 + $0x19c] sm:$0x1] %v1209
    %v1211 = vld [vmem:[%s952 + $0x1a0] sm:$0xf]
    %v1212 = vsel %vm955, %v654, %v1211
    %1213 = vst [vmem:[%s952 + $0x1a0] sm:$0xf] %v1212
    %v1214 = vld [vmem:[%s952 + $0x1a4] sm:$0x1]
    %v1215 = vsel %vm961, %v655, %v1214
    %1216 = vst [vmem:[%s952 + $0x1a4] sm:$0x1] %v1215
    %v1217 = vld [vmem:[%s952 + $0x1a8] sm:$0xf]
    %v1218 = vsel %vm955, %v662, %v1217
    %1219 = vst [vmem:[%s952 + $0x1a8] sm:$0xf] %v1218
    %v1220 = vld [vmem:[%s952 + $0x1ac] sm:$0x1]
    %v1221 = vsel %vm961, %v663, %v1220
    %1222 = vst [vmem:[%s952 + $0x1ac] sm:$0x1] %v1221
    %v1223 = vld [vmem:[%s952 + $0x1b0] sm:$0xf]
    %v1224 = vsel %vm955, %v670, %v1223
    %1225 = vst [vmem:[%s952 + $0x1b0] sm:$0xf] %v1224
    %v1226 = vld [vmem:[%s952 + $0x1b4] sm:$0x1]
    %v1227 = vsel %vm961, %v671, %v1226
    %1228 = vst [vmem:[%s952 + $0x1b4] sm:$0x1] %v1227
    %v1229 = vld [vmem:[%s952 + $0x1b8] sm:$0xf]
    %v1230 = vsel %vm955, %v678, %v1229
    %1231 = vst [vmem:[%s952 + $0x1b8] sm:$0xf] %v1230
    %v1232 = vld [vmem:[%s952 + $0x1bc] sm:$0x1]
    %v1233 = vsel %vm961, %v679, %v1232
    %1234 = vst [vmem:[%s952 + $0x1bc] sm:$0x1] %v1233
    %v1235 = vld [vmem:[%s952 + $0x1c0] sm:$0xf]
    %v1236 = vsel %vm955, %v686, %v1235
    %1237 = vst [vmem:[%s952 + $0x1c0] sm:$0xf] %v1236
    %v1238 = vld [vmem:[%s952 + $0x1c4] sm:$0x1]
    %v1239 = vsel %vm961, %v687, %v1238
    %1240 = vst [vmem:[%s952 + $0x1c4] sm:$0x1] %v1239
    %v1241 = vld [vmem:[%s952 + $0x1c8] sm:$0xf]
    %v1242 = vsel %vm955, %v694, %v1241
    %1243 = vst [vmem:[%s952 + $0x1c8] sm:$0xf] %v1242
    %v1244 = vld [vmem:[%s952 + $0x1cc] sm:$0x1]
    %v1245 = vsel %vm961, %v695, %v1244
    %1246 = vst [vmem:[%s952 + $0x1cc] sm:$0x1] %v1245
    %v1247 = vld [vmem:[%s952 + $0x1e0] sm:$0xf]
    %v1248 = vsel %vm955, %v702, %v1247
    %1249 = vst [vmem:[%s952 + $0x1e0] sm:$0xf] %v1248
    %v1250 = vld [vmem:[%s952 + $0x1e4] sm:$0x1]
    %v1251 = vsel %vm961, %v703, %v1250
    %1252 = vst [vmem:[%s952 + $0x1e4] sm:$0x1] %v1251
    %v1253 = vld [vmem:[%s952 + $0x1e8] sm:$0xf]
    %v1254 = vsel %vm955, %v710, %v1253
    %1255 = vst [vmem:[%s952 + $0x1e8] sm:$0xf] %v1254
    %v1256 = vld [vmem:[%s952 + $0x1ec] sm:$0x1]
    %v1257 = vsel %vm961, %v711, %v1256
    %1258 = vst [vmem:[%s952 + $0x1ec] sm:$0x1] %v1257
    %v1259 = vld [vmem:[%s952 + $0x1f0] sm:$0xf]
    %v1260 = vsel %vm955, %v718, %v1259
    %1261 = vst [vmem:[%s952 + $0x1f0] sm:$0xf] %v1260
    %v1262 = vld [vmem:[%s952 + $0x1f4] sm:$0x1]
    %v1263 = vsel %vm961, %v719, %v1262
    %1264 = vst [vmem:[%s952 + $0x1f4] sm:$0x1] %v1263
    %v1265 = vld [vmem:[%s952 + $0x1f8] sm:$0xf]
    %v1266 = vsel %vm955, %v726, %v1265
    %1267 = vst [vmem:[%s952 + $0x1f8] sm:$0xf] %v1266
    %v1268 = vld [vmem:[%s952 + $0x1fc] sm:$0x1]
    %v1269 = vsel %vm961, %v727, %v1268
    %1270 = vst [vmem:[%s952 + $0x1fc] sm:$0x1] %v1269
    %v1271 = vld [vmem:[%s952 + $0x200] sm:$0xf]
    %v1272 = vsel %vm955, %v734, %v1271
    %1273 = vst [vmem:[%s952 + $0x200] sm:$0xf] %v1272
    %v1274 = vld [vmem:[%s952 + $0x204] sm:$0x1]
    %v1275 = vsel %vm961, %v735, %v1274
    %1276 = vst [vmem:[%s952 + $0x204] sm:$0x1] %v1275
    %v1277 = vld [vmem:[%s952 + $0x208] sm:$0xf]
    %v1278 = vsel %vm955, %v742, %v1277
    %1279 = vst [vmem:[%s952 + $0x208] sm:$0xf] %v1278
    %v1280 = vld [vmem:[%s952 + $0x20c] sm:$0x1]
    %v1281 = vsel %vm961, %v743, %v1280
    %1282 = vst [vmem:[%s952 + $0x20c] sm:$0x1] %v1281
    %v1283 = vld [vmem:[%s952 + $0x210] sm:$0xf]
    %v1284 = vsel %vm955, %v750, %v1283
    %1285 = vst [vmem:[%s952 + $0x210] sm:$0xf] %v1284
    %v1286 = vld [vmem:[%s952 + $0x214] sm:$0x1]
    %v1287 = vsel %vm961, %v751, %v1286
    %1288 = vst [vmem:[%s952 + $0x214] sm:$0x1] %v1287
    %v1289 = vld [vmem:[%s952 + $0x218] sm:$0xf]
    %v1290 = vsel %vm955, %v758, %v1289
    %1291 = vst [vmem:[%s952 + $0x218] sm:$0xf] %v1290
    %v1292 = vld [vmem:[%s952 + $0x21c] sm:$0x1]
    %v1293 = vsel %vm961, %v759, %v1292
    %1294 = vst [vmem:[%s952 + $0x21c] sm:$0x1] %v1293
    %v1295 = vld [vmem:[%s952 + $0x230] sm:$0xf]
    %v1296 = vsel %vm955, %v766, %v1295
    %1297 = vst [vmem:[%s952 + $0x230] sm:$0xf] %v1296
    %v1298 = vld [vmem:[%s952 + $0x234] sm:$0x1]
    %v1299 = vsel %vm961, %v767, %v1298
    %1300 = vst [vmem:[%s952 + $0x234] sm:$0x1] %v1299
    %v1301 = vld [vmem:[%s952 + $0x238] sm:$0xf]
    %v1302 = vsel %vm955, %v774, %v1301
    %1303 = vst [vmem:[%s952 + $0x238] sm:$0xf] %v1302
    %v1304 = vld [vmem:[%s952 + $0x23c] sm:$0x1]
    %v1305 = vsel %vm961, %v775, %v1304
    %1306 = vst [vmem:[%s952 + $0x23c] sm:$0x1] %v1305
    %v1307 = vld [vmem:[%s952 + $0x240] sm:$0xf]
    %v1308 = vsel %vm955, %v782, %v1307
    %1309 = vst [vmem:[%s952 + $0x240] sm:$0xf] %v1308
    %v1310 = vld [vmem:[%s952 + $0x244] sm:$0x1]
    %v1311 = vsel %vm961, %v783, %v1310
    %1312 = vst [vmem:[%s952 + $0x244] sm:$0x1] %v1311
    %v1313 = vld [vmem:[%s952 + $0x248] sm:$0xf]
    %v1314 = vsel %vm955, %v790, %v1313
    %1315 = vst [vmem:[%s952 + $0x248] sm:$0xf] %v1314
    %v1316 = vld [vmem:[%s952 + $0x24c] sm:$0x1]
    %v1317 = vsel %vm961, %v791, %v1316
    %1318 = vst [vmem:[%s952 + $0x24c] sm:$0x1] %v1317
    %v1319 = vld [vmem:[%s952 + $0x250] sm:$0xf]
    %v1320 = vsel %vm955, %v798, %v1319
    %1321 = vst [vmem:[%s952 + $0x250] sm:$0xf] %v1320
    %v1322 = vld [vmem:[%s952 + $0x254] sm:$0x1]
    %v1323 = vsel %vm961, %v799, %v1322
    %1324 = vst [vmem:[%s952 + $0x254] sm:$0x1] %v1323
    %v1325 = vld [vmem:[%s952 + $0x258] sm:$0xf]
    %v1326 = vsel %vm955, %v806, %v1325
    %1327 = vst [vmem:[%s952 + $0x258] sm:$0xf] %v1326
    %v1328 = vld [vmem:[%s952 + $0x25c] sm:$0x1]
    %v1329 = vsel %vm961, %v807, %v1328
    %1330 = vst [vmem:[%s952 + $0x25c] sm:$0x1] %v1329
    %v1331 = vld [vmem:[%s952 + $0x260] sm:$0xf]
    %v1332 = vsel %vm955, %v814, %v1331
    %1333 = vst [vmem:[%s952 + $0x260] sm:$0xf] %v1332
    %v1334 = vld [vmem:[%s952 + $0x264] sm:$0x1]
    %v1335 = vsel %vm961, %v815, %v1334
    %1336 = vst [vmem:[%s952 + $0x264] sm:$0x1] %v1335
    %v1337 = vld [vmem:[%s952 + $0x268] sm:$0xf]
    %v1338 = vsel %vm955, %v822, %v1337
    %1339 = vst [vmem:[%s952 + $0x268] sm:$0xf] %v1338
    %v1340 = vld [vmem:[%s952 + $0x26c] sm:$0x1]
    %v1341 = vsel %vm961, %v823, %v1340
    %1342 = vst [vmem:[%s952 + $0x26c] sm:$0x1] %v1341
    %s1343 = scalar_lea.vmem [#allocation2], 480
    %v1344 = vld [vmem:[%s1343] sm:$0xf]
    %v1345 = vld [vmem:[%s1343 + $0x8] sm:$0xf]
    %v1346 = vld [vmem:[%s1343 + $0x10] sm:$0xf]
    %v1347 = vld [vmem:[%s1343 + $0x18] sm:$0xf]
    %v1348 = vld [vmem:[%s1343 + $0x20] sm:$0xf]
    %v1349 = vld [vmem:[%s1343 + $0x28] sm:$0xf]
    %v1350 = vld [vmem:[%s1343 + $0x30] sm:$0xf]
    %v1351 = vld [vmem:[%s1343 + $0x38] sm:$0xf]
    %v1352 = vld [vmem:[%s1343 + $0x50] sm:$0xf]
    %v1353 = vld [vmem:[%s1343 + $0x58] sm:$0xf]
    %v1354 = vld [vmem:[%s1343 + $0x60] sm:$0xf]
    %v1355 = vld [vmem:[%s1343 + $0x68] sm:$0xf]
    %v1356 = vld [vmem:[%s1343 + $0x70] sm:$0xf]
    %v1357 = vld [vmem:[%s1343 + $0x78] sm:$0xf]
    %v1358 = vld [vmem:[%s1343 + $0x80] sm:$0xf]
    %v1359 = vld [vmem:[%s1343 + $0x88] sm:$0xf]
    %s1360 = scalar_lea.vmem [#allocation2], 320
    %v1361 = vld [vmem:[%s1360] sm:$0xf]
    %v1362 = vld [vmem:[%s1360 + $0x4] sm:$0x1]
    %v1363 = vld [vmem:[%s1360 + $0x8] sm:$0xf]
    %v1364 = vld [vmem:[%s1360 + $0xc] sm:$0x1]
    %v1365 = vld [vmem:[%s1360 + $0x10] sm:$0xf]
    %v1366 = vld [vmem:[%s1360 + $0x14] sm:$0x1]
    %v1367 = vld [vmem:[%s1360 + $0x18] sm:$0xf]
    %v1368 = vld [vmem:[%s1360 + $0x1c] sm:$0x1]
    %v1369 = vld [vmem:[%s1360 + $0x20] sm:$0xf]
    %v1370 = vld [vmem:[%s1360 + $0x24] sm:$0x1]
    %v1371 = vld [vmem:[%s1360 + $0x28] sm:$0xf]
    %v1372 = vld [vmem:[%s1360 + $0x2c] sm:$0x1]
    %v1373 = vld [vmem:[%s1360 + $0x30] sm:$0xf]
    %v1374 = vld [vmem:[%s1360 + $0x34] sm:$0x1]
    %v1375 = vld [vmem:[%s1360 + $0x38] sm:$0xf]
    %v1376 = vld [vmem:[%s1360 + $0x3c] sm:$0x1]
    %v1377 = vld [vmem:[%s1360 + $0x50] sm:$0xf]
    %v1378 = vld [vmem:[%s1360 + $0x54] sm:$0x1]
    %v1379 = vld [vmem:[%s1360 + $0x58] sm:$0xf]
    %v1380 = vld [vmem:[%s1360 + $0x5c] sm:$0x1]
    %v1381 = vld [vmem:[%s1360 + $0x60] sm:$0xf]
    %v1382 = vld [vmem:[%s1360 + $0x64] sm:$0x1]
    %v1383 = vld [vmem:[%s1360 + $0x68] sm:$0xf]
    %v1384 = vld [vmem:[%s1360 + $0x6c] sm:$0x1]
    %v1385 = vld [vmem:[%s1360 + $0x70] sm:$0xf]
    %v1386 = vld [vmem:[%s1360 + $0x74] sm:$0x1]
    %v1387 = vld [vmem:[%s1360 + $0x78] sm:$0xf]
    %v1388 = vld [vmem:[%s1360 + $0x7c] sm:$0x1]
    %v1389 = vld [vmem:[%s1360 + $0x80] sm:$0xf]
    %v1390 = vld [vmem:[%s1360 + $0x84] sm:$0x1]
    %v1391 = vld [vmem:[%s1360 + $0x88] sm:$0xf]
    %v1392 = vld [vmem:[%s1360 + $0x8c] sm:$0x1]
    %vm1393 = vsmask.f32 3328
    %vm1394 = vsmask.f32 7440
    %vm1395 = vmor %vm1393, %vm1394
    %v1397 = vshrl.u32 %v1361, 16
    %v1399 = vrot.slane %v1397, 4
    %v1400 = vshll.u32 %v1361, 16
    %v1402 = vrot.slane %v1400, 5
    %v1403 = vor.u32 %v1399, %v1402
    %v1404 = vrot.slane %v1403, 4
    %v1406 = vshll.u32 %v1362, 16
    %v1408 = vrot.slane %v1406, 5
    %v1409 = vsel %vm1395, %v1404, %v1408
    %v1411 = vshrl.u32 %v1363, 16
    %v1413 = vrot.slane %v1411, 4
    %v1414 = vshll.u32 %v1363, 16
    %v1416 = vrot.slane %v1414, 5
    %v1417 = vor.u32 %v1413, %v1416
    %v1418 = vrot.slane %v1417, 4
    %v1420 = vshll.u32 %v1364, 16
    %v1422 = vrot.slane %v1420, 5
    %v1423 = vsel %vm1395, %v1418, %v1422
    %v1425 = vshrl.u32 %v1365, 16
    %v1427 = vrot.slane %v1425, 4
    %v1428 = vshll.u32 %v1365, 16
    %v1430 = vrot.slane %v1428, 5
    %v1431 = vor.u32 %v1427, %v1430
    %v1432 = vrot.slane %v1431, 4
    %v1434 = vshll.u32 %v1366, 16
    %v1436 = vrot.slane %v1434, 5
    %v1437 = vsel %vm1395, %v1432, %v1436
    %v1439 = vshrl.u32 %v1367, 16
    %v1441 = vrot.slane %v1439, 4
    %v1442 = vshll.u32 %v1367, 16
    %v1444 = vrot.slane %v1442, 5
    %v1445 = vor.u32 %v1441, %v1444
    %v1446 = vrot.slane %v1445, 4
    %v1448 = vshll.u32 %v1368, 16
    %v1450 = vrot.slane %v1448, 5
    %v1451 = vsel %vm1395, %v1446, %v1450
    %v1453 = vshrl.u32 %v1369, 16
    %v1455 = vrot.slane %v1453, 4
    %v1456 = vshll.u32 %v1369, 16
    %v1458 = vrot.slane %v1456, 5
    %v1459 = vor.u32 %v1455, %v1458
    %v1460 = vrot.slane %v1459, 4
    %v1462 = vshll.u32 %v1370, 16
    %v1464 = vrot.slane %v1462, 5
    %v1465 = vsel %vm1395, %v1460, %v1464
    %v1467 = vshrl.u32 %v1371, 16
    %v1469 = vrot.slane %v1467, 4
    %v1470 = vshll.u32 %v1371, 16
    %v1472 = vrot.slane %v1470, 5
    %v1473 = vor.u32 %v1469, %v1472
    %v1474 = vrot.slane %v1473, 4
    %v1476 = vshll.u32 %v1372, 16
    %v1478 = vrot.slane %v1476, 5
    %v1479 = vsel %vm1395, %v1474, %v1478
    %v1481 = vshrl.u32 %v1373, 16
    %v1483 = vrot.slane %v1481, 4
    %v1484 = vshll.u32 %v1373, 16
    %v1486 = vrot.slane %v1484, 5
    %v1487 = vor.u32 %v1483, %v1486
    %v1488 = vrot.slane %v1487, 4
    %v1490 = vshll.u32 %v1374, 16
    %v1492 = vrot.slane %v1490, 5
    %v1493 = vsel %vm1395, %v1488, %v1492
    %v1495 = vshrl.u32 %v1375, 16
    %v1497 = vrot.slane %v1495, 4
    %v1498 = vshll.u32 %v1375, 16
    %v1500 = vrot.slane %v1498, 5
    %v1501 = vor.u32 %v1497, %v1500
    %v1502 = vrot.slane %v1501, 4
    %v1504 = vshll.u32 %v1376, 16
    %v1506 = vrot.slane %v1504, 5
    %v1507 = vsel %vm1395, %v1502, %v1506
    %v1509 = vshrl.u32 %v1377, 16
    %v1511 = vrot.slane %v1509, 4
    %v1512 = vshll.u32 %v1377, 16
    %v1514 = vrot.slane %v1512, 5
    %v1515 = vor.u32 %v1511, %v1514
    %v1516 = vrot.slane %v1515, 4
    %v1518 = vshll.u32 %v1378, 16
    %v1520 = vrot.slane %v1518, 5
    %v1521 = vsel %vm1395, %v1516, %v1520
    %v1523 = vshrl.u32 %v1379, 16
    %v1525 = vrot.slane %v1523, 4
    %v1526 = vshll.u32 %v1379, 16
    %v1528 = vrot.slane %v1526, 5
    %v1529 = vor.u32 %v1525, %v1528
    %v1530 = vrot.slane %v1529, 4
    %v1532 = vshll.u32 %v1380, 16
    %v1534 = vrot.slane %v1532, 5
    %v1535 = vsel %vm1395, %v1530, %v1534
    %v1537 = vshrl.u32 %v1381, 16
    %v1539 = vrot.slane %v1537, 4
    %v1540 = vshll.u32 %v1381, 16
    %v1542 = vrot.slane %v1540, 5
    %v1543 = vor.u32 %v1539, %v1542
    %v1544 = vrot.slane %v1543, 4
    %v1546 = vshll.u32 %v1382, 16
    %v1548 = vrot.slane %v1546, 5
    %v1549 = vsel %vm1395, %v1544, %v1548
    %v1551 = vshrl.u32 %v1383, 16
    %v1553 = vrot.slane %v1551, 4
    %v1554 = vshll.u32 %v1383, 16
    %v1556 = vrot.slane %v1554, 5
    %v1557 = vor.u32 %v1553, %v1556
    %v1558 = vrot.slane %v1557, 4
    %v1560 = vshll.u32 %v1384, 16
    %v1562 = vrot.slane %v1560, 5
    %v1563 = vsel %vm1395, %v1558, %v1562
    %v1565 = vshrl.u32 %v1385, 16
    %v1567 = vrot.slane %v1565, 4
    %v1568 = vshll.u32 %v1385, 16
    %v1570 = vrot.slane %v1568, 5
    %v1571 = vor.u32 %v1567, %v1570
    %v1572 = vrot.slane %v1571, 4
    %v1574 = vshll.u32 %v1386, 16
    %v1576 = vrot.slane %v1574, 5
    %v1577 = vsel %vm1395, %v1572, %v1576
    %v1579 = vshrl.u32 %v1387, 16
    %v1581 = vrot.slane %v1579, 4
    %v1582 = vshll.u32 %v1387, 16
    %v1584 = vrot.slane %v1582, 5
    %v1585 = vor.u32 %v1581, %v1584
    %v1586 = vrot.slane %v1585, 4
    %v1588 = vshll.u32 %v1388, 16
    %v1590 = vrot.slane %v1588, 5
    %v1591 = vsel %vm1395, %v1586, %v1590
    %v1593 = vshrl.u32 %v1389, 16
    %v1595 = vrot.slane %v1593, 4
    %v1596 = vshll.u32 %v1389, 16
    %v1598 = vrot.slane %v1596, 5
    %v1599 = vor.u32 %v1595, %v1598
    %v1600 = vrot.slane %v1599, 4
    %v1602 = vshll.u32 %v1390, 16
    %v1604 = vrot.slane %v1602, 5
    %v1605 = vsel %vm1395, %v1600, %v1604
    %v1607 = vshrl.u32 %v1391, 16
    %v1609 = vrot.slane %v1607, 4
    %v1610 = vshll.u32 %v1391, 16
    %v1612 = vrot.slane %v1610, 5
    %v1613 = vor.u32 %v1609, %v1612
    %v1614 = vrot.slane %v1613, 4
    %v1616 = vshll.u32 %v1392, 16
    %v1618 = vrot.slane %v1616, 5
    %v1619 = vsel %vm1395, %v1614, %v1618
    %v1620 = vld [vmem:[%s1343 + $0x4] sm:$0x1]
    %v1621 = vld [vmem:[%s1343 + $0xc] sm:$0x1]
    %v1622 = vld [vmem:[%s1343 + $0x14] sm:$0x1]
    %v1623 = vld [vmem:[%s1343 + $0x1c] sm:$0x1]
    %v1624 = vld [vmem:[%s1343 + $0x24] sm:$0x1]
    %v1625 = vld [vmem:[%s1343 + $0x2c] sm:$0x1]
    %v1626 = vld [vmem:[%s1343 + $0x34] sm:$0x1]
    %v1627 = vld [vmem:[%s1343 + $0x3c] sm:$0x1]
    %v1628 = vld [vmem:[%s1343 + $0x54] sm:$0x1]
    %v1629 = vld [vmem:[%s1343 + $0x5c] sm:$0x1]
    %v1630 = vld [vmem:[%s1343 + $0x64] sm:$0x1]
    %v1631 = vld [vmem:[%s1343 + $0x6c] sm:$0x1]
    %v1632 = vld [vmem:[%s1343 + $0x74] sm:$0x1]
    %v1633 = vld [vmem:[%s1343 + $0x7c] sm:$0x1]
    %v1634 = vld [vmem:[%s1343 + $0x84] sm:$0x1]
    %v1635 = vld [vmem:[%s1343 + $0x8c] sm:$0x1]
    %v1637 = vshrl.u32 %v1344, 16
    %v1639 = vrot.slane %v1637, 4
    %v1640 = vshll.u32 %v1344, 16
    %v1642 = vrot.slane %v1640, 5
    %v1643 = vor.u32 %v1639, %v1642
    %v1644 = vrot.slane %v1643, 4
    %v1646 = vshll.u32 %v1620, 16
    %v1648 = vrot.slane %v1646, 5
    %v1649 = vsel %vm1395, %v1644, %v1648
    %v1651 = vshrl.u32 %v1345, 16
    %v1653 = vrot.slane %v1651, 4
    %v1654 = vshll.u32 %v1345, 16
    %v1656 = vrot.slane %v1654, 5
    %v1657 = vor.u32 %v1653, %v1656
    %v1658 = vrot.slane %v1657, 4
    %v1660 = vshll.u32 %v1621, 16
    %v1662 = vrot.slane %v1660, 5
    %v1663 = vsel %vm1395, %v1658, %v1662
    %v1665 = vshrl.u32 %v1346, 16
    %v1667 = vrot.slane %v1665, 4
    %v1668 = vshll.u32 %v1346, 16
    %v1670 = vrot.slane %v1668, 5
    %v1671 = vor.u32 %v1667, %v1670
    %v1672 = vrot.slane %v1671, 4
    %v1674 = vshll.u32 %v1622, 16
    %v1676 = vrot.slane %v1674, 5
    %v1677 = vsel %vm1395, %v1672, %v1676
    %v1679 = vshrl.u32 %v1347, 16
    %v1681 = vrot.slane %v1679, 4
    %v1682 = vshll.u32 %v1347, 16
    %v1684 = vrot.slane %v1682, 5
    %v1685 = vor.u32 %v1681, %v1684
    %v1686 = vrot.slane %v1685, 4
    %v1688 = vshll.u32 %v1623, 16
    %v1690 = vrot.slane %v1688, 5
    %v1691 = vsel %vm1395, %v1686, %v1690
    %v1693 = vshrl.u32 %v1348, 16
    %v1695 = vrot.slane %v1693, 4
    %v1696 = vshll.u32 %v1348, 16
    %v1698 = vrot.slane %v1696, 5
    %v1699 = vor.u32 %v1695, %v1698
    %v1700 = vrot.slane %v1699, 4
    %v1702 = vshll.u32 %v1624, 16
    %v1704 = vrot.slane %v1702, 5
    %v1705 = vsel %vm1395, %v1700, %v1704
    %v1707 = vshrl.u32 %v1349, 16
    %v1709 = vrot.slane %v1707, 4
    %v1710 = vshll.u32 %v1349, 16
    %v1712 = vrot.slane %v1710, 5
    %v1713 = vor.u32 %v1709, %v1712
    %v1714 = vrot.slane %v1713, 4
    %v1716 = vshll.u32 %v1625, 16
    %v1718 = vrot.slane %v1716, 5
    %v1719 = vsel %vm1395, %v1714, %v1718
    %v1721 = vshrl.u32 %v1350, 16
    %v1723 = vrot.slane %v1721, 4
    %v1724 = vshll.u32 %v1350, 16
    %v1726 = vrot.slane %v1724, 5
    %v1727 = vor.u32 %v1723, %v1726
    %v1728 = vrot.slane %v1727, 4
    %v1730 = vshll.u32 %v1626, 16
    %v1732 = vrot.slane %v1730, 5
    %v1733 = vsel %vm1395, %v1728, %v1732
    %v1735 = vshrl.u32 %v1351, 16
    %v1737 = vrot.slane %v1735, 4
    %v1738 = vshll.u32 %v1351, 16
    %v1740 = vrot.slane %v1738, 5
    %v1741 = vor.u32 %v1737, %v1740
    %v1742 = vrot.slane %v1741, 4
    %v1744 = vshll.u32 %v1627, 16
    %v1746 = vrot.slane %v1744, 5
    %v1747 = vsel %vm1395, %v1742, %v1746
    %v1749 = vshrl.u32 %v1352, 16
    %v1751 = vrot.slane %v1749, 4
    %v1752 = vshll.u32 %v1352, 16
    %v1754 = vrot.slane %v1752, 5
    %v1755 = vor.u32 %v1751, %v1754
    %v1756 = vrot.slane %v1755, 4
    %v1758 = vshll.u32 %v1628, 16
    %v1760 = vrot.slane %v1758, 5
    %v1761 = vsel %vm1395, %v1756, %v1760
    %v1763 = vshrl.u32 %v1353, 16
    %v1765 = vrot.slane %v1763, 4
    %v1766 = vshll.u32 %v1353, 16
    %v1768 = vrot.slane %v1766, 5
    %v1769 = vor.u32 %v1765, %v1768
    %v1770 = vrot.slane %v1769, 4
    %v1772 = vshll.u32 %v1629, 16
    %v1774 = vrot.slane %v1772, 5
    %v1775 = vsel %vm1395, %v1770, %v1774
    %v1777 = vshrl.u32 %v1354, 16
    %v1779 = vrot.slane %v1777, 4
    %v1780 = vshll.u32 %v1354, 16
    %v1782 = vrot.slane %v1780, 5
    %v1783 = vor.u32 %v1779, %v1782
    %v1784 = vrot.slane %v1783, 4
    %v1786 = vshll.u32 %v1630, 16
    %v1788 = vrot.slane %v1786, 5
    %v1789 = vsel %vm1395, %v1784, %v1788
    %v1791 = vshrl.u32 %v1355, 16
    %v1793 = vrot.slane %v1791, 4
    %v1794 = vshll.u32 %v1355, 16
    %v1796 = vrot.slane %v1794, 5
    %v1797 = vor.u32 %v1793, %v1796
    %v1798 = vrot.slane %v1797, 4
    %v1800 = vshll.u32 %v1631, 16
    %v1802 = vrot.slane %v1800, 5
    %v1803 = vsel %vm1395, %v1798, %v1802
    %v1805 = vshrl.u32 %v1356, 16
    %v1807 = vrot.slane %v1805, 4
    %v1808 = vshll.u32 %v1356, 16
    %v1810 = vrot.slane %v1808, 5
    %v1811 = vor.u32 %v1807, %v1810
    %v1812 = vrot.slane %v1811, 4
    %v1814 = vshll.u32 %v1632, 16
    %v1816 = vrot.slane %v1814, 5
    %v1817 = vsel %vm1395, %v1812, %v1816
    %v1819 = vshrl.u32 %v1357, 16
    %v1821 = vrot.slane %v1819, 4
    %v1822 = vshll.u32 %v1357, 16
    %v1824 = vrot.slane %v1822, 5
    %v1825 = vor.u32 %v1821, %v1824
    %v1826 = vrot.slane %v1825, 4
    %v1828 = vshll.u32 %v1633, 16
    %v1830 = vrot.slane %v1828, 5
    %v1831 = vsel %vm1395, %v1826, %v1830
    %v1833 = vshrl.u32 %v1358, 16
    %v1835 = vrot.slane %v1833, 4
    %v1836 = vshll.u32 %v1358, 16
    %v1838 = vrot.slane %v1836, 5
    %v1839 = vor.u32 %v1835, %v1838
    %v1840 = vrot.slane %v1839, 4
    %v1842 = vshll.u32 %v1634, 16
    %v1844 = vrot.slane %v1842, 5
    %v1845 = vsel %vm1395, %v1840, %v1844
    %v1847 = vshrl.u32 %v1359, 16
    %v1849 = vrot.slane %v1847, 4
    %v1850 = vshll.u32 %v1359, 16
    %v1852 = vrot.slane %v1850, 5
    %v1853 = vor.u32 %v1849, %v1852
    %v1854 = vrot.slane %v1853, 4
    %v1856 = vshll.u32 %v1635, 16
    %v1858 = vrot.slane %v1856, 5
    %v1859 = vsel %vm1395, %v1854, %v1858
    %s1860 = scalar_lea.vmem [#allocation2], 168
    %v1861 = vld [vmem:[%s1860] sm:$0xf]
    %v1862 = vld [vmem:[%s1860 + $0x8] sm:$0xf]
    %v1863 = vld [vmem:[%s1860 + $0x10] sm:$0xf]
    %v1864 = vld [vmem:[%s1860 + $0x18] sm:$0xf]
    %v1865 = vld [vmem:[%s1860 + $0x20] sm:$0xf]
    %v1866 = vld [vmem:[%s1860 + $0x28] sm:$0xf]
    %v1867 = vld [vmem:[%s1860 + $0x30] sm:$0xf]
    %v1868 = vld [vmem:[%s1860 + $0x38] sm:$0xf]
    %v1869 = vld [vmem:[%s1860 + $0x50] sm:$0xf]
    %v1870 = vld [vmem:[%s1860 + $0x58] sm:$0xf]
    %v1871 = vld [vmem:[%s1860 + $0x60] sm:$0xf]
    %v1872 = vld [vmem:[%s1860 + $0x68] sm:$0xf]
    %v1873 = vld [vmem:[%s1860 + $0x70] sm:$0xf]
    %v1874 = vld [vmem:[%s1860 + $0x78] sm:$0xf]
    %v1875 = vld [vmem:[%s1860 + $0x80] sm:$0xf]
    %v1876 = vld [vmem:[%s1860 + $0x88] sm:$0xf]
    %v1877 = vld [vmem:[%s952] sm:$0xf]
    %v1878 = vld [vmem:[%s952 + $0x4] sm:$0x1]
    %v1879 = vld [vmem:[%s952 + $0x8] sm:$0xf]
    %v1880 = vld [vmem:[%s952 + $0xc] sm:$0x1]
    %v1881 = vld [vmem:[%s952 + $0x10] sm:$0xf]
    %v1882 = vld [vmem:[%s952 + $0x14] sm:$0x1]
    %v1883 = vld [vmem:[%s952 + $0x18] sm:$0xf]
    %v1884 = vld [vmem:[%s952 + $0x1c] sm:$0x1]
    %v1885 = vld [vmem:[%s952 + $0x20] sm:$0xf]
    %v1886 = vld [vmem:[%s952 + $0x24] sm:$0x1]
    %v1887 = vld [vmem:[%s952 + $0x28] sm:$0xf]
    %v1888 = vld [vmem:[%s952 + $0x2c] sm:$0x1]
    %v1889 = vld [vmem:[%s952 + $0x30] sm:$0xf]
    %v1890 = vld [vmem:[%s952 + $0x34] sm:$0x1]
    %v1891 = vld [vmem:[%s952 + $0x38] sm:$0xf]
    %v1892 = vld [vmem:[%s952 + $0x3c] sm:$0x1]
    %v1893 = vld [vmem:[%s952 + $0x50] sm:$0xf]
    %v1894 = vld [vmem:[%s952 + $0x54] sm:$0x1]
    %v1895 = vld [vmem:[%s952 + $0x58] sm:$0xf]
    %v1896 = vld [vmem:[%s952 + $0x5c] sm:$0x1]
    %v1897 = vld [vmem:[%s952 + $0x60] sm:$0xf]
    %v1898 = vld [vmem:[%s952 + $0x64] sm:$0x1]
    %v1899 = vld [vmem:[%s952 + $0x68] sm:$0xf]
    %v1900 = vld [vmem:[%s952 + $0x6c] sm:$0x1]
    %v1901 = vld [vmem:[%s952 + $0x70] sm:$0xf]
    %v1902 = vld [vmem:[%s952 + $0x74] sm:$0x1]
    %v1903 = vld [vmem:[%s952 + $0x78] sm:$0xf]
    %v1904 = vld [vmem:[%s952 + $0x7c] sm:$0x1]
    %v1905 = vld [vmem:[%s952 + $0x80] sm:$0xf]
    %v1906 = vld [vmem:[%s952 + $0x84] sm:$0x1]
    %v1907 = vld [vmem:[%s952 + $0x88] sm:$0xf]
    %v1908 = vld [vmem:[%s952 + $0x8c] sm:$0x1]
    %v1910 = vshrl.u32 %v1877, 16
    %v1912 = vrot.slane %v1910, 4
    %v1913 = vshll.u32 %v1877, 16
    %v1915 = vrot.slane %v1913, 5
    %v1916 = vor.u32 %v1912, %v1915
    %v1917 = vrot.slane %v1916, 4
    %v1919 = vshll.u32 %v1878, 16
    %v1921 = vrot.slane %v1919, 5
    %v1922 = vsel %vm1395, %v1917, %v1921
    %v1924 = vshrl.u32 %v1879, 16
    %v1926 = vrot.slane %v1924, 4
    %v1927 = vshll.u32 %v1879, 16
    %v1929 = vrot.slane %v1927, 5
    %v1930 = vor.u32 %v1926, %v1929
    %v1931 = vrot.slane %v1930, 4
    %v1933 = vshll.u32 %v1880, 16
    %v1935 = vrot.slane %v1933, 5
    %v1936 = vsel %vm1395, %v1931, %v1935
    %v1938 = vshrl.u32 %v1881, 16
    %v1940 = vrot.slane %v1938, 4
    %v1941 = vshll.u32 %v1881, 16
    %v1943 = vrot.slane %v1941, 5
    %v1944 = vor.u32 %v1940, %v1943
    %v1945 = vrot.slane %v1944, 4
    %v1947 = vshll.u32 %v1882, 16
    %v1949 = vrot.slane %v1947, 5
    %v1950 = vsel %vm1395, %v1945, %v1949
    %v1952 = vshrl.u32 %v1883, 16
    %v1954 = vrot.slane %v1952, 4
    %v1955 = vshll.u32 %v1883, 16
    %v1957 = vrot.slane %v1955, 5
    %v1958 = vor.u32 %v1954, %v1957
    %v1959 = vrot.slane %v1958, 4
    %v1961 = vshll.u32 %v1884, 16
    %v1963 = vrot.slane %v1961, 5
    %v1964 = vsel %vm1395, %v1959, %v1963
    %v1966 = vshrl.u32 %v1885, 16
    %v1968 = vrot.slane %v1966, 4
    %v1969 = vshll.u32 %v1885, 16
    %v1971 = vrot.slane %v1969, 5
    %v1972 = vor.u32 %v1968, %v1971
    %v1973 = vrot.slane %v1972, 4
    %v1975 = vshll.u32 %v1886, 16
    %v1977 = vrot.slane %v1975, 5
    %v1978 = vsel %vm1395, %v1973, %v1977
    %v1980 = vshrl.u32 %v1887, 16
    %v1982 = vrot.slane %v1980, 4
    %v1983 = vshll.u32 %v1887, 16
    %v1985 = vrot.slane %v1983, 5
    %v1986 = vor.u32 %v1982, %v1985
    %v1987 = vrot.slane %v1986, 4
    %v1989 = vshll.u32 %v1888, 16
    %v1991 = vrot.slane %v1989, 5
    %v1992 = vsel %vm1395, %v1987, %v1991
    %v1994 = vshrl.u32 %v1889, 16
    %v1996 = vrot.slane %v1994, 4
    %v1997 = vshll.u32 %v1889, 16
    %v1999 = vrot.slane %v1997, 5
    %v2000 = vor.u32 %v1996, %v1999
    %v2001 = vrot.slane %v2000, 4
    %v2003 = vshll.u32 %v1890, 16
    %v2005 = vrot.slane %v2003, 5
    %v2006 = vsel %vm1395, %v2001, %v2005
    %v2008 = vshrl.u32 %v1891, 16
    %v2010 = vrot.slane %v2008, 4
    %v2011 = vshll.u32 %v1891, 16
    %v2013 = vrot.slane %v2011, 5
    %v2014 = vor.u32 %v2010, %v2013
    %v2015 = vrot.slane %v2014, 4
    %v2017 = vshll.u32 %v1892, 16
    %v2019 = vrot.slane %v2017, 5
    %v2020 = vsel %vm1395, %v2015, %v2019
    %v2022 = vshrl.u32 %v1893, 16
    %v2024 = vrot.slane %v2022, 4
    %v2025 = vshll.u32 %v1893, 16
    %v2027 = vrot.slane %v2025, 5
    %v2028 = vor.u32 %v2024, %v2027
    %v2029 = vrot.slane %v2028, 4
    %v2031 = vshll.u32 %v1894, 16
    %v2033 = vrot.slane %v2031, 5
    %v2034 = vsel %vm1395, %v2029, %v2033
    %v2036 = vshrl.u32 %v1895, 16
    %v2038 = vrot.slane %v2036, 4
    %v2039 = vshll.u32 %v1895, 16
    %v2041 = vrot.slane %v2039, 5
    %v2042 = vor.u32 %v2038, %v2041
    %v2043 = vrot.slane %v2042, 4
    %v2045 = vshll.u32 %v1896, 16
    %v2047 = vrot.slane %v2045, 5
    %v2048 = vsel %vm1395, %v2043, %v2047
    %v2050 = vshrl.u32 %v1897, 16
    %v2052 = vrot.slane %v2050, 4
    %v2053 = vshll.u32 %v1897, 16
    %v2055 = vrot.slane %v2053, 5
    %v2056 = vor.u32 %v2052, %v2055
    %v2057 = vrot.slane %v2056, 4
    %v2059 = vshll.u32 %v1898, 16
    %v2061 = vrot.slane %v2059, 5
    %v2062 = vsel %vm1395, %v2057, %v2061
    %v2064 = vshrl.u32 %v1899, 16
    %v2066 = vrot.slane %v2064, 4
    %v2067 = vshll.u32 %v1899, 16
    %v2069 = vrot.slane %v2067, 5
    %v2070 = vor.u32 %v2066, %v2069
    %v2071 = vrot.slane %v2070, 4
    %v2073 = vshll.u32 %v1900, 16
    %v2075 = vrot.slane %v2073, 5
    %v2076 = vsel %vm1395, %v2071, %v2075
    %v2078 = vshrl.u32 %v1901, 16
    %v2080 = vrot.slane %v2078, 4
    %v2081 = vshll.u32 %v1901, 16
    %v2083 = vrot.slane %v2081, 5
    %v2084 = vor.u32 %v2080, %v2083
    %v2085 = vrot.slane %v2084, 4
    %v2087 = vshll.u32 %v1902, 16
    %v2089 = vrot.slane %v2087, 5
    %v2090 = vsel %vm1395, %v2085, %v2089
    %v2092 = vshrl.u32 %v1903, 16
    %v2094 = vrot.slane %v2092, 4
    %v2095 = vshll.u32 %v1903, 16
    %v2097 = vrot.slane %v2095, 5
    %v2098 = vor.u32 %v2094, %v2097
    %v2099 = vrot.slane %v2098, 4
    %v2101 = vshll.u32 %v1904, 16
    %v2103 = vrot.slane %v2101, 5
    %v2104 = vsel %vm1395, %v2099, %v2103
    %v2106 = vshrl.u32 %v1905, 16
    %v2108 = vrot.slane %v2106, 4
    %v2109 = vshll.u32 %v1905, 16
    %v2111 = vrot.slane %v2109, 5
    %v2112 = vor.u32 %v2108, %v2111
    %v2113 = vrot.slane %v2112, 4
    %v2115 = vshll.u32 %v1906, 16
    %v2117 = vrot.slane %v2115, 5
    %v2118 = vsel %vm1395, %v2113, %v2117
    %v2120 = vshrl.u32 %v1907, 16
    %v2122 = vrot.slane %v2120, 4
    %v2123 = vshll.u32 %v1907, 16
    %v2125 = vrot.slane %v2123, 5
    %v2126 = vor.u32 %v2122, %v2125
    %v2127 = vrot.slane %v2126, 4
    %v2129 = vshll.u32 %v1908, 16
    %v2131 = vrot.slane %v2129, 5
    %v2132 = vsel %vm1395, %v2127, %v2131
    %v2133 = vld [vmem:[%s1860 + $0x4] sm:$0x1]
    %v2134 = vld [vmem:[%s1860 + $0xc] sm:$0x1]
    %v2135 = vld [vmem:[%s1860 + $0x14] sm:$0x1]
    %v2136 = vld [vmem:[%s1860 + $0x1c] sm:$0x1]
    %v2137 = vld [vmem:[%s1860 + $0x24] sm:$0x1]
    %v2138 = vld [vmem:[%s1860 + $0x2c] sm:$0x1]
    %v2139 = vld [vmem:[%s1860 + $0x34] sm:$0x1]
    %v2140 = vld [vmem:[%s1860 + $0x3c] sm:$0x1]
    %v2141 = vld [vmem:[%s1860 + $0x54] sm:$0x1]
    %v2142 = vld [vmem:[%s1860 + $0x5c] sm:$0x1]
    %v2143 = vld [vmem:[%s1860 + $0x64] sm:$0x1]
    %v2144 = vld [vmem:[%s1860 + $0x6c] sm:$0x1]
    %v2145 = vld [vmem:[%s1860 + $0x74] sm:$0x1]
    %v2146 = vld [vmem:[%s1860 + $0x7c] sm:$0x1]
    %v2147 = vld [vmem:[%s1860 + $0x84] sm:$0x1]
    %v2148 = vld [vmem:[%s1860 + $0x8c] sm:$0x1]
    %v2150 = vshrl.u32 %v1861, 16
    %v2152 = vrot.slane %v2150, 4
    %v2153 = vshll.u32 %v1861, 16
    %v2155 = vrot.slane %v2153, 5
    %v2156 = vor.u32 %v2152, %v2155
    %v2157 = vrot.slane %v2156, 4
    %v2159 = vshll.u32 %v2133, 16
    %v2161 = vrot.slane %v2159, 5
    %v2162 = vsel %vm1395, %v2157, %v2161
    %v2164 = vshrl.u32 %v1862, 16
    %v2166 = vrot.slane %v2164, 4
    %v2167 = vshll.u32 %v1862, 16
    %v2169 = vrot.slane %v2167, 5
    %v2170 = vor.u32 %v2166, %v2169
    %v2171 = vrot.slane %v2170, 4
    %v2173 = vshll.u32 %v2134, 16
    %v2175 = vrot.slane %v2173, 5
    %v2176 = vsel %vm1395, %v2171, %v2175
    %v2178 = vshrl.u32 %v1863, 16
    %v2180 = vrot.slane %v2178, 4
    %v2181 = vshll.u32 %v1863, 16
    %v2183 = vrot.slane %v2181, 5
    %v2184 = vor.u32 %v2180, %v2183
    %v2185 = vrot.slane %v2184, 4
    %v2187 = vshll.u32 %v2135, 16
    %v2189 = vrot.slane %v2187, 5
    %v2190 = vsel %vm1395, %v2185, %v2189
    %v2192 = vshrl.u32 %v1864, 16
    %v2194 = vrot.slane %v2192, 4
    %v2195 = vshll.u32 %v1864, 16
    %v2197 = vrot.slane %v2195, 5
    %v2198 = vor.u32 %v2194, %v2197
    %v2199 = vrot.slane %v2198, 4
    %v2201 = vshll.u32 %v2136, 16
    %v2203 = vrot.slane %v2201, 5
    %v2204 = vsel %vm1395, %v2199, %v2203
    %v2206 = vshrl.u32 %v1865, 16
    %v2208 = vrot.slane %v2206, 4
    %v2209 = vshll.u32 %v1865, 16
    %v2211 = vrot.slane %v2209, 5
    %v2212 = vor.u32 %v2208, %v2211
    %v2213 = vrot.slane %v2212, 4
    %v2215 = vshll.u32 %v2137, 16
    %v2217 = vrot.slane %v2215, 5
    %v2218 = vsel %vm1395, %v2213, %v2217
    %v2220 = vshrl.u32 %v1866, 16
    %v2222 = vrot.slane %v2220, 4
    %v2223 = vshll.u32 %v1866, 16
    %v2225 = vrot.slane %v2223, 5
    %v2226 = vor.u32 %v2222, %v2225
    %v2227 = vrot.slane %v2226, 4
    %v2229 = vshll.u32 %v2138, 16
    %v2231 = vrot.slane %v2229, 5
    %v2232 = vsel %vm1395, %v2227, %v2231
    %v2234 = vshrl.u32 %v1867, 16
    %v2236 = vrot.slane %v2234, 4
    %v2237 = vshll.u32 %v1867, 16
    %v2239 = vrot.slane %v2237, 5
    %v2240 = vor.u32 %v2236, %v2239
    %v2241 = vrot.slane %v2240, 4
    %v2243 = vshll.u32 %v2139, 16
    %v2245 = vrot.slane %v2243, 5
    %v2246 = vsel %vm1395, %v2241, %v2245
    %v2248 = vshrl.u32 %v1868, 16
    %v2250 = vrot.slane %v2248, 4
    %v2251 = vshll.u32 %v1868, 16
    %v2253 = vrot.slane %v2251, 5
    %v2254 = vor.u32 %v2250, %v2253
    %v2255 = vrot.slane %v2254, 4
    %v2257 = vshll.u32 %v2140, 16
    %v2259 = vrot.slane %v2257, 5
    %v2260 = vsel %vm1395, %v2255, %v2259
    %v2262 = vshrl.u32 %v1869, 16
    %v2264 = vrot.slane %v2262, 4
    %v2265 = vshll.u32 %v1869, 16
    %v2267 = vrot.slane %v2265, 5
    %v2268 = vor.u32 %v2264, %v2267
    %v2269 = vrot.slane %v2268, 4
    %v2271 = vshll.u32 %v2141, 16
    %v2273 = vrot.slane %v2271, 5
    %v2274 = vsel %vm1395, %v2269, %v2273
    %v2276 = vshrl.u32 %v1870, 16
    %v2278 = vrot.slane %v2276, 4
    %v2279 = vshll.u32 %v1870, 16
    %v2281 = vrot.slane %v2279, 5
    %v2282 = vor.u32 %v2278, %v2281
    %v2283 = vrot.slane %v2282, 4
    %v2285 = vshll.u32 %v2142, 16
    %v2287 = vrot.slane %v2285, 5
    %v2288 = vsel %vm1395, %v2283, %v2287
    %v2290 = vshrl.u32 %v1871, 16
    %v2292 = vrot.slane %v2290, 4
    %v2293 = vshll.u32 %v1871, 16
    %v2295 = vrot.slane %v2293, 5
    %v2296 = vor.u32 %v2292, %v2295
    %v2297 = vrot.slane %v2296, 4
    %v2299 = vshll.u32 %v2143, 16
    %v2301 = vrot.slane %v2299, 5
    %v2302 = vsel %vm1395, %v2297, %v2301
    %v2304 = vshrl.u32 %v1872, 16
    %v2306 = vrot.slane %v2304, 4
    %v2307 = vshll.u32 %v1872, 16
    %v2309 = vrot.slane %v2307, 5
    %v2310 = vor.u32 %v2306, %v2309
    %v2311 = vrot.slane %v2310, 4
    %v2313 = vshll.u32 %v2144, 16
    %v2315 = vrot.slane %v2313, 5
    %v2316 = vsel %vm1395, %v2311, %v2315
    %v2318 = vshrl.u32 %v1873, 16
    %v2320 = vrot.slane %v2318, 4
    %v2321 = vshll.u32 %v1873, 16
    %v2323 = vrot.slane %v2321, 5
    %v2324 = vor.u32 %v2320, %v2323
    %v2325 = vrot.slane %v2324, 4
    %v2327 = vshll.u32 %v2145, 16
    %v2329 = vrot.slane %v2327, 5
    %v2330 = vsel %vm1395, %v2325, %v2329
    %v2332 = vshrl.u32 %v1874, 16
    %v2334 = vrot.slane %v2332, 4
    %v2335 = vshll.u32 %v1874, 16
    %v2337 = vrot.slane %v2335, 5
    %v2338 = vor.u32 %v2334, %v2337
    %v2339 = vrot.slane %v2338, 4
    %v2341 = vshll.u32 %v2146, 16
    %v2343 = vrot.slane %v2341, 5
    %v2344 = vsel %vm1395, %v2339, %v2343
    %v2346 = vshrl.u32 %v1875, 16
    %v2348 = vrot.slane %v2346, 4
    %v2349 = vshll.u32 %v1875, 16
    %v2351 = vrot.slane %v2349, 5
    %v2352 = vor.u32 %v2348, %v2351
    %v2353 = vrot.slane %v2352, 4
    %v2355 = vshll.u32 %v2147, 16
    %v2357 = vrot.slane %v2355, 5
    %v2358 = vsel %vm1395, %v2353, %v2357
    %v2360 = vshrl.u32 %v1876, 16
    %v2362 = vrot.slane %v2360, 4
    %v2363 = vshll.u32 %v1876, 16
    %v2365 = vrot.slane %v2363, 5
    %v2366 = vor.u32 %v2362, %v2365
    %v2367 = vrot.slane %v2366, 4
    %v2369 = vshll.u32 %v2148, 16
    %v2371 = vrot.slane %v2369, 5
    %v2372 = vsel %vm1395, %v2367, %v2371
    %s2373 = scalar_lea.vmem [#allocation2], 488
    %v2374 = vld [vmem:[%s2373] sm:$0xf]
    %v2375 = vld [vmem:[%s2373 + $0x8] sm:$0xf]
    %v2376 = vld [vmem:[%s2373 + $0x10] sm:$0xf]
    %v2377 = vld [vmem:[%s2373 + $0x18] sm:$0xf]
    %v2378 = vld [vmem:[%s2373 + $0x20] sm:$0xf]
    %v2379 = vld [vmem:[%s2373 + $0x28] sm:$0xf]
    %v2380 = vld [vmem:[%s2373 + $0x30] sm:$0xf]
    %v2381 = vld [vmem:[%s2373 + $0x38] sm:$0xf]
    %v2382 = vld [vmem:[%s2373 + $0x50] sm:$0xf]
    %v2383 = vld [vmem:[%s2373 + $0x58] sm:$0xf]
    %v2384 = vld [vmem:[%s2373 + $0x60] sm:$0xf]
    %v2385 = vld [vmem:[%s2373 + $0x68] sm:$0xf]
    %v2386 = vld [vmem:[%s2373 + $0x70] sm:$0xf]
    %v2387 = vld [vmem:[%s2373 + $0x78] sm:$0xf]
    %v2388 = vld [vmem:[%s2373 + $0x80] sm:$0xf]
    %v2389 = vld [vmem:[%s2373 + $0x88] sm:$0xf]
    %s2390 = scalar_lea.vmem [#allocation2], 328
    %v2391 = vld [vmem:[%s2390] sm:$0xf]
    %v2392 = vld [vmem:[%s2390 + $0x4] sm:$0x1]
    %v2393 = vld [vmem:[%s2390 + $0x8] sm:$0xf]
    %v2394 = vld [vmem:[%s2390 + $0xc] sm:$0x1]
    %v2395 = vld [vmem:[%s2390 + $0x10] sm:$0xf]
    %v2396 = vld [vmem:[%s2390 + $0x14] sm:$0x1]
    %v2397 = vld [vmem:[%s2390 + $0x18] sm:$0xf]
    %v2398 = vld [vmem:[%s2390 + $0x1c] sm:$0x1]
    %v2399 = vld [vmem:[%s2390 + $0x20] sm:$0xf]
    %v2400 = vld [vmem:[%s2390 + $0x24] sm:$0x1]
    %v2401 = vld [vmem:[%s2390 + $0x28] sm:$0xf]
    %v2402 = vld [vmem:[%s2390 + $0x2c] sm:$0x1]
    %v2403 = vld [vmem:[%s2390 + $0x30] sm:$0xf]
    %v2404 = vld [vmem:[%s2390 + $0x34] sm:$0x1]
    %v2405 = vld [vmem:[%s2390 + $0x38] sm:$0xf]
    %v2406 = vld [vmem:[%s2390 + $0x3c] sm:$0x1]
    %v2407 = vld [vmem:[%s2390 + $0x50] sm:$0xf]
    %v2408 = vld [vmem:[%s2390 + $0x54] sm:$0x1]
    %v2409 = vld [vmem:[%s2390 + $0x58] sm:$0xf]
    %v2410 = vld [vmem:[%s2390 + $0x5c] sm:$0x1]
    %v2411 = vld [vmem:[%s2390 + $0x60] sm:$0xf]
    %v2412 = vld [vmem:[%s2390 + $0x64] sm:$0x1]
    %v2413 = vld [vmem:[%s2390 + $0x68] sm:$0xf]
    %v2414 = vld [vmem:[%s2390 + $0x6c] sm:$0x1]
    %v2415 = vld [vmem:[%s2390 + $0x70] sm:$0xf]
    %v2416 = vld [vmem:[%s2390 + $0x74] sm:$0x1]
    %v2417 = vld [vmem:[%s2390 + $0x78] sm:$0xf]
    %v2418 = vld [vmem:[%s2390 + $0x7c] sm:$0x1]
    %v2419 = vld [vmem:[%s2390 + $0x80] sm:$0xf]
    %v2420 = vld [vmem:[%s2390 + $0x84] sm:$0x1]
    %v2421 = vld [vmem:[%s2390 + $0x88] sm:$0xf]
    %v2422 = vld [vmem:[%s2390 + $0x8c] sm:$0x1]
    %v2424 = vshrl.u32 %v2391, 16
    %v2426 = vrot.slane %v2424, 4
    %v2427 = vshll.u32 %v2391, 16
    %v2429 = vrot.slane %v2427, 5
    %v2430 = vor.u32 %v2426, %v2429
    %v2431 = vrot.slane %v2430, 4
    %v2433 = vshll.u32 %v2392, 16
    %v2435 = vrot.slane %v2433, 5
    %v2436 = vsel %vm1395, %v2431, %v2435
    %v2438 = vshrl.u32 %v2393, 16
    %v2440 = vrot.slane %v2438, 4
    %v2441 = vshll.u32 %v2393, 16
    %v2443 = vrot.slane %v2441, 5
    %v2444 = vor.u32 %v2440, %v2443
    %v2445 = vrot.slane %v2444, 4
    %v2447 = vshll.u32 %v2394, 16
    %v2449 = vrot.slane %v2447, 5
    %v2450 = vsel %vm1395, %v2445, %v2449
    %v2452 = vshrl.u32 %v2395, 16
    %v2454 = vrot.slane %v2452, 4
    %v2455 = vshll.u32 %v2395, 16
    %v2457 = vrot.slane %v2455, 5
    %v2458 = vor.u32 %v2454, %v2457
    %v2459 = vrot.slane %v2458, 4
    %v2461 = vshll.u32 %v2396, 16
    %v2463 = vrot.slane %v2461, 5
    %v2464 = vsel %vm1395, %v2459, %v2463
    %v2466 = vshrl.u32 %v2397, 16
    %v2468 = vrot.slane %v2466, 4
    %v2469 = vshll.u32 %v2397, 16
    %v2471 = vrot.slane %v2469, 5
    %v2472 = vor.u32 %v2468, %v2471
    %v2473 = vrot.slane %v2472, 4
    %v2475 = vshll.u32 %v2398, 16
    %v2477 = vrot.slane %v2475, 5
    %v2478 = vsel %vm1395, %v2473, %v2477
    %v2480 = vshrl.u32 %v2399, 16
    %v2482 = vrot.slane %v2480, 4
    %v2483 = vshll.u32 %v2399, 16
    %v2485 = vrot.slane %v2483, 5
    %v2486 = vor.u32 %v2482, %v2485
    %v2487 = vrot.slane %v2486, 4
    %v2489 = vshll.u32 %v2400, 16
    %v2491 = vrot.slane %v2489, 5
    %v2492 = vsel %vm1395, %v2487, %v2491
    %v2494 = vshrl.u32 %v2401, 16
    %v2496 = vrot.slane %v2494, 4
    %v2497 = vshll.u32 %v2401, 16
    %v2499 = vrot.slane %v2497, 5
    %v2500 = vor.u32 %v2496, %v2499
    %v2501 = vrot.slane %v2500, 4
    %v2503 = vshll.u32 %v2402, 16
    %v2505 = vrot.slane %v2503, 5
    %v2506 = vsel %vm1395, %v2501, %v2505
    %v2508 = vshrl.u32 %v2403, 16
    %v2510 = vrot.slane %v2508, 4
    %v2511 = vshll.u32 %v2403, 16
    %v2513 = vrot.slane %v2511, 5
    %v2514 = vor.u32 %v2510, %v2513
    %v2515 = vrot.slane %v2514, 4
    %v2517 = vshll.u32 %v2404, 16
    %v2519 = vrot.slane %v2517, 5
    %v2520 = vsel %vm1395, %v2515, %v2519
    %v2522 = vshrl.u32 %v2405, 16
    %v2524 = vrot.slane %v2522, 4
    %v2525 = vshll.u32 %v2405, 16
    %v2527 = vrot.slane %v2525, 5
    %v2528 = vor.u32 %v2524, %v2527
    %v2529 = vrot.slane %v2528, 4
    %v2531 = vshll.u32 %v2406, 16
    %v2533 = vrot.slane %v2531, 5
    %v2534 = vsel %vm1395, %v2529, %v2533
    %v2536 = vshrl.u32 %v2407, 16
    %v2538 = vrot.slane %v2536, 4
    %v2539 = vshll.u32 %v2407, 16
    %v2541 = vrot.slane %v2539, 5
    %v2542 = vor.u32 %v2538, %v2541
    %v2543 = vrot.slane %v2542, 4
    %v2545 = vshll.u32 %v2408, 16
    %v2547 = vrot.slane %v2545, 5
    %v2548 = vsel %vm1395, %v2543, %v2547
    %v2550 = vshrl.u32 %v2409, 16
    %v2552 = vrot.slane %v2550, 4
    %v2553 = vshll.u32 %v2409, 16
    %v2555 = vrot.slane %v2553, 5
    %v2556 = vor.u32 %v2552, %v2555
    %v2557 = vrot.slane %v2556, 4
    %v2559 = vshll.u32 %v2410, 16
    %v2561 = vrot.slane %v2559, 5
    %v2562 = vsel %vm1395, %v2557, %v2561
    %v2564 = vshrl.u32 %v2411, 16
    %v2566 = vrot.slane %v2564, 4
    %v2567 = vshll.u32 %v2411, 16
    %v2569 = vrot.slane %v2567, 5
    %v2570 = vor.u32 %v2566, %v2569
    %v2571 = vrot.slane %v2570, 4
    %v2573 = vshll.u32 %v2412, 16
    %v2575 = vrot.slane %v2573, 5
    %v2576 = vsel %vm1395, %v2571, %v2575
    %v2578 = vshrl.u32 %v2413, 16
    %v2580 = vrot.slane %v2578, 4
    %v2581 = vshll.u32 %v2413, 16
    %v2583 = vrot.slane %v2581, 5
    %v2584 = vor.u32 %v2580, %v2583
    %v2585 = vrot.slane %v2584, 4
    %v2587 = vshll.u32 %v2414, 16
    %v2589 = vrot.slane %v2587, 5
    %v2590 = vsel %vm1395, %v2585, %v2589
    %v2592 = vshrl.u32 %v2415, 16
    %v2594 = vrot.slane %v2592, 4
    %v2595 = vshll.u32 %v2415, 16
    %v2597 = vrot.slane %v2595, 5
    %v2598 = vor.u32 %v2594, %v2597
    %v2599 = vrot.slane %v2598, 4
    %v2601 = vshll.u32 %v2416, 16
    %v2603 = vrot.slane %v2601, 5
    %v2604 = vsel %vm1395, %v2599, %v2603
    %v2606 = vshrl.u32 %v2417, 16
    %v2608 = vrot.slane %v2606, 4
    %v2609 = vshll.u32 %v2417, 16
    %v2611 = vrot.slane %v2609, 5
    %v2612 = vor.u32 %v2608, %v2611
    %v2613 = vrot.slane %v2612, 4
    %v2615 = vshll.u32 %v2418, 16
    %v2617 = vrot.slane %v2615, 5
    %v2618 = vsel %vm1395, %v2613, %v2617
    %v2620 = vshrl.u32 %v2419, 16
    %v2622 = vrot.slane %v2620, 4
    %v2623 = vshll.u32 %v2419, 16
    %v2625 = vrot.slane %v2623, 5
    %v2626 = vor.u32 %v2622, %v2625
    %v2627 = vrot.slane %v2626, 4
    %v2629 = vshll.u32 %v2420, 16
    %v2631 = vrot.slane %v2629, 5
    %v2632 = vsel %vm1395, %v2627, %v2631
    %v2634 = vshrl.u32 %v2421, 16
    %v2636 = vrot.slane %v2634, 4
    %v2637 = vshll.u32 %v2421, 16
    %v2639 = vrot.slane %v2637, 5
    %v2640 = vor.u32 %v2636, %v2639
    %v2641 = vrot.slane %v2640, 4
    %v2643 = vshll.u32 %v2422, 16
    %v2645 = vrot.slane %v2643, 5
    %v2646 = vsel %vm1395, %v2641, %v2645
    %v2647 = vld [vmem:[%s2373 + $0x4] sm:$0x1]
    %v2648 = vld [vmem:[%s2373 + $0xc] sm:$0x1]
    %v2649 = vld [vmem:[%s2373 + $0x14] sm:$0x1]
    %v2650 = vld [vmem:[%s2373 + $0x1c] sm:$0x1]
    %v2651 = vld [vmem:[%s2373 + $0x24] sm:$0x1]
    %v2652 = vld [vmem:[%s2373 + $0x2c] sm:$0x1]
    %v2653 = vld [vmem:[%s2373 + $0x34] sm:$0x1]
    %v2654 = vld [vmem:[%s2373 + $0x3c] sm:$0x1]
    %v2655 = vld [vmem:[%s2373 + $0x54] sm:$0x1]
    %v2656 = vld [vmem:[%s2373 + $0x5c] sm:$0x1]
    %v2657 = vld [vmem:[%s2373 + $0x64] sm:$0x1]
    %v2658 = vld [vmem:[%s2373 + $0x6c] sm:$0x1]
    %v2659 = vld [vmem:[%s2373 + $0x74] sm:$0x1]
    %v2660 = vld [vmem:[%s2373 + $0x7c] sm:$0x1]
    %v2661 = vld [vmem:[%s2373 + $0x84] sm:$0x1]
    %v2662 = vld [vmem:[%s2373 + $0x8c] sm:$0x1]
    %v2664 = vshrl.u32 %v2374, 16
    %v2666 = vrot.slane %v2664, 4
    %v2667 = vshll.u32 %v2374, 16
    %v2669 = vrot.slane %v2667, 5
    %v2670 = vor.u32 %v2666, %v2669
    %v2671 = vrot.slane %v2670, 4
    %v2673 = vshll.u32 %v2647, 16
    %v2675 = vrot.slane %v2673, 5
    %v2676 = vsel %vm1395, %v2671, %v2675
    %v2678 = vshrl.u32 %v2375, 16
    %v2680 = vrot.slane %v2678, 4
    %v2681 = vshll.u32 %v2375, 16
    %v2683 = vrot.slane %v2681, 5
    %v2684 = vor.u32 %v2680, %v2683
    %v2685 = vrot.slane %v2684, 4
    %v2687 = vshll.u32 %v2648, 16
    %v2689 = vrot.slane %v2687, 5
    %v2690 = vsel %vm1395, %v2685, %v2689
    %v2692 = vshrl.u32 %v2376, 16
    %v2694 = vrot.slane %v2692, 4
    %v2695 = vshll.u32 %v2376, 16
    %v2697 = vrot.slane %v2695, 5
    %v2698 = vor.u32 %v2694, %v2697
    %v2699 = vrot.slane %v2698, 4
    %v2701 = vshll.u32 %v2649, 16
    %v2703 = vrot.slane %v2701, 5
    %v2704 = vsel %vm1395, %v2699, %v2703
    %v2706 = vshrl.u32 %v2377, 16
    %v2708 = vrot.slane %v2706, 4
    %v2709 = vshll.u32 %v2377, 16
    %v2711 = vrot.slane %v2709, 5
    %v2712 = vor.u32 %v2708, %v2711
    %v2713 = vrot.slane %v2712, 4
    %v2715 = vshll.u32 %v2650, 16
    %v2717 = vrot.slane %v2715, 5
    %v2718 = vsel %vm1395, %v2713, %v2717
    %v2720 = vshrl.u32 %v2378, 16
    %v2722 = vrot.slane %v2720, 4
    %v2723 = vshll.u32 %v2378, 16
    %v2725 = vrot.slane %v2723, 5
    %v2726 = vor.u32 %v2722, %v2725
    %v2727 = vrot.slane %v2726, 4
    %v2729 = vshll.u32 %v2651, 16
    %v2731 = vrot.slane %v2729, 5
    %v2732 = vsel %vm1395, %v2727, %v2731
    %v2734 = vshrl.u32 %v2379, 16
    %v2736 = vrot.slane %v2734, 4
    %v2737 = vshll.u32 %v2379, 16
    %v2739 = vrot.slane %v2737, 5
    %v2740 = vor.u32 %v2736, %v2739
    %v2741 = vrot.slane %v2740, 4
    %v2743 = vshll.u32 %v2652, 16
    %v2745 = vrot.slane %v2743, 5
    %v2746 = vsel %vm1395, %v2741, %v2745
    %v2748 = vshrl.u32 %v2380, 16
    %v2750 = vrot.slane %v2748, 4
    %v2751 = vshll.u32 %v2380, 16
    %v2753 = vrot.slane %v2751, 5
    %v2754 = vor.u32 %v2750, %v2753
    %v2755 = vrot.slane %v2754, 4
    %v2757 = vshll.u32 %v2653, 16
    %v2759 = vrot.slane %v2757, 5
    %v2760 = vsel %vm1395, %v2755, %v2759
    %v2762 = vshrl.u32 %v2381, 16
    %v2764 = vrot.slane %v2762, 4
    %v2765 = vshll.u32 %v2381, 16
    %v2767 = vrot.slane %v2765, 5
    %v2768 = vor.u32 %v2764, %v2767
    %v2769 = vrot.slane %v2768, 4
    %v2771 = vshll.u32 %v2654, 16
    %v2773 = vrot.slane %v2771, 5
    %v2774 = vsel %vm1395, %v2769, %v2773
    %v2776 = vshrl.u32 %v2382, 16
    %v2778 = vrot.slane %v2776, 4
    %v2779 = vshll.u32 %v2382, 16
    %v2781 = vrot.slane %v2779, 5
    %v2782 = vor.u32 %v2778, %v2781
    %v2783 = vrot.slane %v2782, 4
    %v2785 = vshll.u32 %v2655, 16
    %v2787 = vrot.slane %v2785, 5
    %v2788 = vsel %vm1395, %v2783, %v2787
    %v2790 = vshrl.u32 %v2383, 16
    %v2792 = vrot.slane %v2790, 4
    %v2793 = vshll.u32 %v2383, 16
    %v2795 = vrot.slane %v2793, 5
    %v2796 = vor.u32 %v2792, %v2795
    %v2797 = vrot.slane %v2796, 4
    %v2799 = vshll.u32 %v2656, 16
    %v2801 = vrot.slane %v2799, 5
    %v2802 = vsel %vm1395, %v2797, %v2801
    %v2804 = vshrl.u32 %v2384, 16
    %v2806 = vrot.slane %v2804, 4
    %v2807 = vshll.u32 %v2384, 16
    %v2809 = vrot.slane %v2807, 5
    %v2810 = vor.u32 %v2806, %v2809
    %v2811 = vrot.slane %v2810, 4
    %v2813 = vshll.u32 %v2657, 16
    %v2815 = vrot.slane %v2813, 5
    %v2816 = vsel %vm1395, %v2811, %v2815
    %v2818 = vshrl.u32 %v2385, 16
    %v2820 = vrot.slane %v2818, 4
    %v2821 = vshll.u32 %v2385, 16
    %v2823 = vrot.slane %v2821, 5
    %v2824 = vor.u32 %v2820, %v2823
    %v2825 = vrot.slane %v2824, 4
    %v2827 = vshll.u32 %v2658, 16
    %v2829 = vrot.slane %v2827, 5
    %v2830 = vsel %vm1395, %v2825, %v2829
    %v2832 = vshrl.u32 %v2386, 16
    %v2834 = vrot.slane %v2832, 4
    %v2835 = vshll.u32 %v2386, 16
    %v2837 = vrot.slane %v2835, 5
    %v2838 = vor.u32 %v2834, %v2837
    %v2839 = vrot.slane %v2838, 4
    %v2841 = vshll.u32 %v2659, 16
    %v2843 = vrot.slane %v2841, 5
    %v2844 = vsel %vm1395, %v2839, %v2843
    %v2846 = vshrl.u32 %v2387, 16
    %v2848 = vrot.slane %v2846, 4
    %v2849 = vshll.u32 %v2387, 16
    %v2851 = vrot.slane %v2849, 5
    %v2852 = vor.u32 %v2848, %v2851
    %v2853 = vrot.slane %v2852, 4
    %v2855 = vshll.u32 %v2660, 16
    %v2857 = vrot.slane %v2855, 5
    %v2858 = vsel %vm1395, %v2853, %v2857
    %v2860 = vshrl.u32 %v2388, 16
    %v2862 = vrot.slane %v2860, 4
    %v2863 = vshll.u32 %v2388, 16
    %v2865 = vrot.slane %v2863, 5
    %v2866 = vor.u32 %v2862, %v2865
    %v2867 = vrot.slane %v2866, 4
    %v2869 = vshll.u32 %v2661, 16
    %v2871 = vrot.slane %v2869, 5
    %v2872 = vsel %vm1395, %v2867, %v2871
    %v2874 = vshrl.u32 %v2389, 16
    %v2876 = vrot.slane %v2874, 4
    %v2877 = vshll.u32 %v2389, 16
    %v2879 = vrot.slane %v2877, 5
    %v2880 = vor.u32 %v2876, %v2879
    %v2881 = vrot.slane %v2880, 4
    %v2883 = vshll.u32 %v2662, 16
    %v2885 = vrot.slane %v2883, 5
    %v2886 = vsel %vm1395, %v2881, %v2885
    %v2903 = vunpack.c.l.b16 %v1344
    %v2904 = vunpack.c.l.b16 %v1345
    %v2905 = vunpack.c.l.b16 %v1346
    %v2906 = vunpack.c.l.b16 %v1347
    %v2907 = vunpack.c.l.b16 %v1348
    %v2908 = vunpack.c.l.b16 %v1349
    %v2909 = vunpack.c.l.b16 %v1350
    %v2910 = vunpack.c.l.b16 %v1351
    %v2911 = vunpack.c.l.b16 %v1352
    %v2912 = vunpack.c.l.b16 %v1353
    %v2913 = vunpack.c.l.b16 %v1354
    %v2914 = vunpack.c.l.b16 %v1355
    %v2915 = vunpack.c.l.b16 %v1356
    %v2916 = vunpack.c.l.b16 %v1357
    %v2917 = vunpack.c.l.b16 %v1358
    %v2918 = vunpack.c.l.b16 %v1359
    %v2919 = vpack.c.b16 %v2904, %v2903
    %v2920 = vpack.c.b16 %v2906, %v2905
    %v2921 = vpack.c.b16 %v2908, %v2907
    %v2922 = vpack.c.b16 %v2910, %v2909
    %v2923 = vpack.c.b16 %v2912, %v2911
    %v2924 = vpack.c.b16 %v2914, %v2913
    %v2925 = vpack.c.b16 %v2916, %v2915
    %v2926 = vpack.c.b16 %v2918, %v2917
    %v2927 = vunpack.c.l.b16 %v1409
    %v2928 = vunpack.c.l.b16 %v1423
    %v2929 = vunpack.c.l.b16 %v1437
    %v2930 = vunpack.c.l.b16 %v1451
    %v2931 = vunpack.c.l.b16 %v1465
    %v2932 = vunpack.c.l.b16 %v1479
    %v2933 = vunpack.c.l.b16 %v1493
    %v2934 = vunpack.c.l.b16 %v1507
    %v2935 = vunpack.c.l.b16 %v1521
    %v2936 = vunpack.c.l.b16 %v1535
    %v2937 = vunpack.c.l.b16 %v1549
    %v2938 = vunpack.c.l.b16 %v1563
    %v2939 = vunpack.c.l.b16 %v1577
    %v2940 = vunpack.c.l.b16 %v1591
    %v2941 = vunpack.c.l.b16 %v1605
    %v2942 = vunpack.c.l.b16 %v1619
    %v2943 = vpack.c.b16 %v2928, %v2927
    %v2944 = vpack.c.b16 %v2930, %v2929
    %v2945 = vpack.c.b16 %v2932, %v2931
    %v2946 = vpack.c.b16 %v2934, %v2933
    %v2947 = vpack.c.b16 %v2936, %v2935
    %v2948 = vpack.c.b16 %v2938, %v2937
    %v2949 = vpack.c.b16 %v2940, %v2939
    %v2950 = vpack.c.b16 %v2942, %v2941
    %2951 = vrot.lane.b32.xlu0 %v2943, 4
    %v2952 = vpop.permute.xlu0 %2951
    %2953 = vrot.lane.b32.xlu0 %v2944, 4
    %v2954 = vpop.permute.xlu0 %2953
    %2955 = vrot.lane.b32.xlu0 %v2945, 4
    %v2956 = vpop.permute.xlu0 %2955
    %2957 = vrot.lane.b32.xlu0 %v2946, 4
    %v2958 = vpop.permute.xlu0 %2957
    %2959 = vrot.lane.b32.xlu0 %v2947, 4
    %v2960 = vpop.permute.xlu0 %2959
    %2961 = vrot.lane.b32.xlu0 %v2948, 4
    %v2962 = vpop.permute.xlu0 %2961
    %2963 = vrot.lane.b32.xlu0 %v2949, 4
    %v2964 = vpop.permute.xlu0 %2963
    %2965 = vrot.lane.b32.xlu0 %v2950, 4
    %v2966 = vpop.permute.xlu0 %2965
    %v2967 = vunpack.c.l.b16 %v1649
    %v2968 = vunpack.c.l.b16 %v1663
    %v2969 = vunpack.c.l.b16 %v1677
    %v2970 = vunpack.c.l.b16 %v1691
    %v2971 = vunpack.c.l.b16 %v1705
    %v2972 = vunpack.c.l.b16 %v1719
    %v2973 = vunpack.c.l.b16 %v1733
    %v2974 = vunpack.c.l.b16 %v1747
    %v2975 = vunpack.c.l.b16 %v1761
    %v2976 = vunpack.c.l.b16 %v1775
    %v2977 = vunpack.c.l.b16 %v1789
    %v2978 = vunpack.c.l.b16 %v1803
    %v2979 = vunpack.c.l.b16 %v1817
    %v2980 = vunpack.c.l.b16 %v1831
    %v2981 = vunpack.c.l.b16 %v1845
    %v2982 = vunpack.c.l.b16 %v1859
    %v2983 = vpack.c.b16 %v2968, %v2967
    %v2984 = vpack.c.b16 %v2970, %v2969
    %v2985 = vpack.c.b16 %v2972, %v2971
    %v2986 = vpack.c.b16 %v2974, %v2973
    %v2987 = vpack.c.b16 %v2976, %v2975
    %v2988 = vpack.c.b16 %v2978, %v2977
    %v2989 = vpack.c.b16 %v2980, %v2979
    %v2990 = vpack.c.b16 %v2982, %v2981
    %2991 = vrot.lane.b32.xlu0 %v2983, 8
    %v2992 = vpop.permute.xlu0 %2991
    %2993 = vrot.lane.b32.xlu0 %v2984, 8
    %v2994 = vpop.permute.xlu0 %2993
    %2995 = vrot.lane.b32.xlu0 %v2985, 8
    %v2996 = vpop.permute.xlu0 %2995
    %2997 = vrot.lane.b32.xlu0 %v2986, 8
    %v2998 = vpop.permute.xlu0 %2997
    %2999 = vrot.lane.b32.xlu0 %v2987, 8
    %v3000 = vpop.permute.xlu0 %2999
    %3001 = vrot.lane.b32.xlu0 %v2988, 8
    %v3002 = vpop.permute.xlu0 %3001
    %3003 = vrot.lane.b32.xlu0 %v2989, 8
    %v3004 = vpop.permute.xlu0 %3003
    %3005 = vrot.lane.b32.xlu0 %v2990, 8
    %v3006 = vpop.permute.xlu0 %3005
    %v3023 = vunpack.c.l.b16 %v1861
    %v3024 = vunpack.c.l.b16 %v1862
    %v3025 = vunpack.c.l.b16 %v1863
    %v3026 = vunpack.c.l.b16 %v1864
    %v3027 = vunpack.c.l.b16 %v1865
    %v3028 = vunpack.c.l.b16 %v1866
    %v3029 = vunpack.c.l.b16 %v1867
    %v3030 = vunpack.c.l.b16 %v1868
    %v3031 = vunpack.c.l.b16 %v1869
    %v3032 = vunpack.c.l.b16 %v1870
    %v3033 = vunpack.c.l.b16 %v1871
    %v3034 = vunpack.c.l.b16 %v1872
    %v3035 = vunpack.c.l.b16 %v1873
    %v3036 = vunpack.c.l.b16 %v1874
    %v3037 = vunpack.c.l.b16 %v1875
    %v3038 = vunpack.c.l.b16 %v1876
    %v3039 = vpack.c.b16 %v3024, %v3023
    %v3040 = vpack.c.b16 %v3026, %v3025
    %v3041 = vpack.c.b16 %v3028, %v3027
    %v3042 = vpack.c.b16 %v3030, %v3029
    %v3043 = vpack.c.b16 %v3032, %v3031
    %v3044 = vpack.c.b16 %v3034, %v3033
    %v3045 = vpack.c.b16 %v3036, %v3035
    %v3046 = vpack.c.b16 %v3038, %v3037
    %3047 = vrot.lane.b32.xlu0 %v3039, 12
    %v3048 = vpop.permute.xlu0 %3047
    %3049 = vrot.lane.b32.xlu0 %v3040, 12
    %v3050 = vpop.permute.xlu0 %3049
    %3051 = vrot.lane.b32.xlu0 %v3041, 12
    %v3052 = vpop.permute.xlu0 %3051
    %3053 = vrot.lane.b32.xlu0 %v3042, 12
    %v3054 = vpop.permute.xlu0 %3053
    %3055 = vrot.lane.b32.xlu0 %v3043, 12
    %v3056 = vpop.permute.xlu0 %3055
    %3057 = vrot.lane.b32.xlu0 %v3044, 12
    %v3058 = vpop.permute.xlu0 %3057
    %3059 = vrot.lane.b32.xlu0 %v3045, 12
    %v3060 = vpop.permute.xlu0 %3059
    %3061 = vrot.lane.b32.xlu0 %v3046, 12
    %v3062 = vpop.permute.xlu0 %3061
    %v3063 = vunpack.c.l.b16 %v1922
    %v3064 = vunpack.c.l.b16 %v1936
    %v3065 = vunpack.c.l.b16 %v1950
    %v3066 = vunpack.c.l.b16 %v1964
    %v3067 = vunpack.c.l.b16 %v1978
    %v3068 = vunpack.c.l.b16 %v1992
    %v3069 = vunpack.c.l.b16 %v2006
    %v3070 = vunpack.c.l.b16 %v2020
    %v3071 = vunpack.c.l.b16 %v2034
    %v3072 = vunpack.c.l.b16 %v2048
    %v3073 = vunpack.c.l.b16 %v2062
    %v3074 = vunpack.c.l.b16 %v2076
    %v3075 = vunpack.c.l.b16 %v2090
    %v3076 = vunpack.c.l.b16 %v2104
    %v3077 = vunpack.c.l.b16 %v2118
    %v3078 = vunpack.c.l.b16 %v2132
    %v3079 = vpack.c.b16 %v3064, %v3063
    %v3080 = vpack.c.b16 %v3066, %v3065
    %v3081 = vpack.c.b16 %v3068, %v3067
    %v3082 = vpack.c.b16 %v3070, %v3069
    %v3083 = vpack.c.b16 %v3072, %v3071
    %v3084 = vpack.c.b16 %v3074, %v3073
    %v3085 = vpack.c.b16 %v3076, %v3075
    %v3086 = vpack.c.b16 %v3078, %v3077
    %3087 = vrot.lane.b32.xlu0 %v3079, 16
    %v3088 = vpop.permute.xlu0 %3087
    %3089 = vrot.lane.b32.xlu0 %v3080, 16
    %v3090 = vpop.permute.xlu0 %3089
    %3091 = vrot.lane.b32.xlu0 %v3081, 16
    %v3092 = vpop.permute.xlu0 %3091
    %3093 = vrot.lane.b32.xlu0 %v3082, 16
    %v3094 = vpop.permute.xlu0 %3093
    %3095 = vrot.lane.b32.xlu0 %v3083, 16
    %v3096 = vpop.permute.xlu0 %3095
    %3097 = vrot.lane.b32.xlu0 %v3084, 16
    %v3098 = vpop.permute.xlu0 %3097
    %3099 = vrot.lane.b32.xlu0 %v3085, 16
    %v3100 = vpop.permute.xlu0 %3099
    %3101 = vrot.lane.b32.xlu0 %v3086, 16
    %v3102 = vpop.permute.xlu0 %3101
    %v3103 = vunpack.c.l.b16 %v2162
    %v3104 = vunpack.c.l.b16 %v2176
    %v3105 = vunpack.c.l.b16 %v2190
    %v3106 = vunpack.c.l.b16 %v2204
    %v3107 = vunpack.c.l.b16 %v2218
    %v3108 = vunpack.c.l.b16 %v2232
    %v3109 = vunpack.c.l.b16 %v2246
    %v3110 = vunpack.c.l.b16 %v2260
    %v3111 = vunpack.c.l.b16 %v2274
    %v3112 = vunpack.c.l.b16 %v2288
    %v3113 = vunpack.c.l.b16 %v2302
    %v3114 = vunpack.c.l.b16 %v2316
    %v3115 = vunpack.c.l.b16 %v2330
    %v3116 = vunpack.c.l.b16 %v2344
    %v3117 = vunpack.c.l.b16 %v2358
    %v3118 = vunpack.c.l.b16 %v2372
    %v3119 = vpack.c.b16 %v3104, %v3103
    %v3120 = vpack.c.b16 %v3106, %v3105
    %v3121 = vpack.c.b16 %v3108, %v3107
    %v3122 = vpack.c.b16 %v3110, %v3109
    %v3123 = vpack.c.b16 %v3112, %v3111
    %v3124 = vpack.c.b16 %v3114, %v3113
    %v3125 = vpack.c.b16 %v3116, %v3115
    %v3126 = vpack.c.b16 %v3118, %v3117
    %3127 = vrot.lane.b32.xlu0 %v3119, 20
    %v3128 = vpop.permute.xlu0 %3127
    %3129 = vrot.lane.b32.xlu0 %v3120, 20
    %v3130 = vpop.permute.xlu0 %3129
    %3131 = vrot.lane.b32.xlu0 %v3121, 20
    %v3132 = vpop.permute.xlu0 %3131
    %3133 = vrot.lane.b32.xlu0 %v3122, 20
    %v3134 = vpop.permute.xlu0 %3133
    %3135 = vrot.lane.b32.xlu0 %v3123, 20
    %v3136 = vpop.permute.xlu0 %3135
    %3137 = vrot.lane.b32.xlu0 %v3124, 20
    %v3138 = vpop.permute.xlu0 %3137
    %3139 = vrot.lane.b32.xlu0 %v3125, 20
    %v3140 = vpop.permute.xlu0 %3139
    %3141 = vrot.lane.b32.xlu0 %v3126, 20
    %v3142 = vpop.permute.xlu0 %3141
    %v3159 = vunpack.c.l.b16 %v2374
    %v3160 = vunpack.c.l.b16 %v2375
    %v3161 = vunpack.c.l.b16 %v2376
    %v3162 = vunpack.c.l.b16 %v2377
    %v3163 = vunpack.c.l.b16 %v2378
    %v3164 = vunpack.c.l.b16 %v2379
    %v3165 = vunpack.c.l.b16 %v2380
    %v3166 = vunpack.c.l.b16 %v2381
    %v3167 = vunpack.c.l.b16 %v2382
    %v3168 = vunpack.c.l.b16 %v2383
    %v3169 = vunpack.c.l.b16 %v2384
    %v3170 = vunpack.c.l.b16 %v2385
    %v3171 = vunpack.c.l.b16 %v2386
    %v3172 = vunpack.c.l.b16 %v2387
    %v3173 = vunpack.c.l.b16 %v2388
    %v3174 = vunpack.c.l.b16 %v2389
    %v3175 = vpack.c.b16 %v3160, %v3159
    %v3176 = vpack.c.b16 %v3162, %v3161
    %v3177 = vpack.c.b16 %v3164, %v3163
    %v3178 = vpack.c.b16 %v3166, %v3165
    %v3179 = vpack.c.b16 %v3168, %v3167
    %v3180 = vpack.c.b16 %v3170, %v3169
    %v3181 = vpack.c.b16 %v3172, %v3171
    %v3182 = vpack.c.b16 %v3174, %v3173
    %3183 = vrot.lane.b32.xlu0 %v3175, 24
    %v3184 = vpop.permute.xlu0 %3183
    %3185 = vrot.lane.b32.xlu0 %v3176, 24
    %v3186 = vpop.permute.xlu0 %3185
    %3187 = vrot.lane.b32.xlu0 %v3177, 24
    %v3188 = vpop.permute.xlu0 %3187
    %3189 = vrot.lane.b32.xlu0 %v3178, 24
    %v3190 = vpop.permute.xlu0 %3189
    %3191 = vrot.lane.b32.xlu0 %v3179, 24
    %v3192 = vpop.permute.xlu0 %3191
    %3193 = vrot.lane.b32.xlu0 %v3180, 24
    %v3194 = vpop.permute.xlu0 %3193
    %3195 = vrot.lane.b32.xlu0 %v3181, 24
    %v3196 = vpop.permute.xlu0 %3195
    %3197 = vrot.lane.b32.xlu0 %v3182, 24
    %v3198 = vpop.permute.xlu0 %3197
    %v3199 = vunpack.c.l.b16 %v2436
    %v3200 = vunpack.c.l.b16 %v2450
    %v3201 = vunpack.c.l.b16 %v2464
    %v3202 = vunpack.c.l.b16 %v2478
    %v3203 = vunpack.c.l.b16 %v2492
    %v3204 = vunpack.c.l.b16 %v2506
    %v3205 = vunpack.c.l.b16 %v2520
    %v3206 = vunpack.c.l.b16 %v2534
    %v3207 = vunpack.c.l.b16 %v2548
    %v3208 = vunpack.c.l.b16 %v2562
    %v3209 = vunpack.c.l.b16 %v2576
    %v3210 = vunpack.c.l.b16 %v2590
    %v3211 = vunpack.c.l.b16 %v2604
    %v3212 = vunpack.c.l.b16 %v2618
    %v3213 = vunpack.c.l.b16 %v2632
    %v3214 = vunpack.c.l.b16 %v2646
    %v3215 = vpack.c.b16 %v3200, %v3199
    %v3216 = vpack.c.b16 %v3202, %v3201
    %v3217 = vpack.c.b16 %v3204, %v3203
    %v3218 = vpack.c.b16 %v3206, %v3205
    %v3219 = vpack.c.b16 %v3208, %v3207
    %v3220 = vpack.c.b16 %v3210, %v3209
    %v3221 = vpack.c.b16 %v3212, %v3211
    %v3222 = vpack.c.b16 %v3214, %v3213
    %3223 = vrot.lane.b32.xlu0 %v3215, 28
    %v3224 = vpop.permute.xlu0 %3223
    %3225 = vrot.lane.b32.xlu0 %v3216, 28
    %v3226 = vpop.permute.xlu0 %3225
    %3227 = vrot.lane.b32.xlu0 %v3217, 28
    %v3228 = vpop.permute.xlu0 %3227
    %3229 = vrot.lane.b32.xlu0 %v3218, 28
    %v3230 = vpop.permute.xlu0 %3229
    %3231 = vrot.lane.b32.xlu0 %v3219, 28
    %v3232 = vpop.permute.xlu0 %3231
    %3233 = vrot.lane.b32.xlu0 %v3220, 28
    %v3234 = vpop.permute.xlu0 %3233
    %3235 = vrot.lane.b32.xlu0 %v3221, 28
    %v3236 = vpop.permute.xlu0 %3235
    %3237 = vrot.lane.b32.xlu0 %v3222, 28
    %v3238 = vpop.permute.xlu0 %3237
    %v3239 = vunpack.c.l.b16 %v2676
    %v3240 = vunpack.c.l.b16 %v2690
    %v3241 = vunpack.c.l.b16 %v2704
    %v3242 = vunpack.c.l.b16 %v2718
    %v3243 = vunpack.c.l.b16 %v2732
    %v3244 = vunpack.c.l.b16 %v2746
    %v3245 = vunpack.c.l.b16 %v2760
    %v3246 = vunpack.c.l.b16 %v2774
    %v3247 = vunpack.c.l.b16 %v2788
    %v3248 = vunpack.c.l.b16 %v2802
    %v3249 = vunpack.c.l.b16 %v2816
    %v3250 = vunpack.c.l.b16 %v2830
    %v3251 = vunpack.c.l.b16 %v2844
    %v3252 = vunpack.c.l.b16 %v2858
    %v3253 = vunpack.c.l.b16 %v2872
    %v3254 = vunpack.c.l.b16 %v2886
    %v3255 = vpack.c.b16 %v3240, %v3239
    %v3256 = vpack.c.b16 %v3242, %v3241
    %v3257 = vpack.c.b16 %v3244, %v3243
    %v3258 = vpack.c.b16 %v3246, %v3245
    %v3259 = vpack.c.b16 %v3248, %v3247
    %v3260 = vpack.c.b16 %v3250, %v3249
    %v3261 = vpack.c.b16 %v3252, %v3251
    %v3262 = vpack.c.b16 %v3254, %v3253
    %3263 = vrot.lane.b32.xlu0 %v3255, 32
    %v3264 = vpop.permute.xlu0 %3263
    %3265 = vrot.lane.b32.xlu0 %v3256, 32
    %v3266 = vpop.permute.xlu0 %3265
    %3267 = vrot.lane.b32.xlu0 %v3257, 32
    %v3268 = vpop.permute.xlu0 %3267
    %3269 = vrot.lane.b32.xlu0 %v3258, 32
    %v3270 = vpop.permute.xlu0 %3269
    %3271 = vrot.lane.b32.xlu0 %v3259, 32
    %v3272 = vpop.permute.xlu0 %3271
    %3273 = vrot.lane.b32.xlu0 %v3260, 32
    %v3274 = vpop.permute.xlu0 %3273
    %3275 = vrot.lane.b32.xlu0 %v3261, 32
    %v3276 = vpop.permute.xlu0 %3275
    %3277 = vrot.lane.b32.xlu0 %v3262, 32
    %v3278 = vpop.permute.xlu0 %3277
    %vm3279 = vcmask 31744
    %v3282 = vsel %vm3279, %v2919, %v2952
    %v3285 = vsel %vm3279, %v2920, %v2954
    %v3288 = vsel %vm3279, %v2921, %v2956
    %v3291 = vsel %vm3279, %v2922, %v2958
    %v3294 = vsel %vm3279, %v2923, %v2960
    %v3297 = vsel %vm3279, %v2924, %v2962
    %v3300 = vsel %vm3279, %v2925, %v2964
    %v3303 = vsel %vm3279, %v2926, %v2966
    %vm3304 = vcmask 64512
    %v3306 = vsel %vm3304, %v3282, %v2992
    %v3308 = vsel %vm3304, %v3285, %v2994
    %v3310 = vsel %vm3304, %v3288, %v2996
    %v3312 = vsel %vm3304, %v3291, %v2998
    %v3314 = vsel %vm3304, %v3294, %v3000
    %v3316 = vsel %vm3304, %v3297, %v3002
    %v3318 = vsel %vm3304, %v3300, %v3004
    %v3320 = vsel %vm3304, %v3303, %v3006
    %vm3321 = vcmask 97280
    %v3323 = vsel %vm3321, %v3306, %v3048
    %v3325 = vsel %vm3321, %v3308, %v3050
    %v3327 = vsel %vm3321, %v3310, %v3052
    %v3329 = vsel %vm3321, %v3312, %v3054
    %v3331 = vsel %vm3321, %v3314, %v3056
    %v3333 = vsel %vm3321, %v3316, %v3058
    %v3335 = vsel %vm3321, %v3318, %v3060
    %v3337 = vsel %vm3321, %v3320, %v3062
    %vm3338 = vcmask 130048
    %v3340 = vsel %vm3338, %v3323, %v3088
    %v3342 = vsel %vm3338, %v3325, %v3090
    %v3344 = vsel %vm3338, %v3327, %v3092
    %v3346 = vsel %vm3338, %v3329, %v3094
    %v3348 = vsel %vm3338, %v3331, %v3096
    %v3350 = vsel %vm3338, %v3333, %v3098
    %v3352 = vsel %vm3338, %v3335, %v3100
    %v3354 = vsel %vm3338, %v3337, %v3102
    %vm3355 = vcmask 162816
    %v3357 = vsel %vm3355, %v3340, %v3128
    %v3359 = vsel %vm3355, %v3342, %v3130
    %v3361 = vsel %vm3355, %v3344, %v3132
    %v3363 = vsel %vm3355, %v3346, %v3134
    %v3365 = vsel %vm3355, %v3348, %v3136
    %v3367 = vsel %vm3355, %v3350, %v3138
    %v3369 = vsel %vm3355, %v3352, %v3140
    %v3371 = vsel %vm3355, %v3354, %v3142
    %vm3372 = vcmask 195584
    %v3374 = vsel %vm3372, %v3357, %v3184
    %v3376 = vsel %vm3372, %v3359, %v3186
    %v3378 = vsel %vm3372, %v3361, %v3188
    %v3380 = vsel %vm3372, %v3363, %v3190
    %v3382 = vsel %vm3372, %v3365, %v3192
    %v3384 = vsel %vm3372, %v3367, %v3194
    %v3386 = vsel %vm3372, %v3369, %v3196
    %v3388 = vsel %vm3372, %v3371, %v3198
    %vm3389 = vcmask 228352
    %v3391 = vsel %vm3389, %v3374, %v3224
    %v3393 = vsel %vm3389, %v3376, %v3226
    %v3395 = vsel %vm3389, %v3378, %v3228
    %v3397 = vsel %vm3389, %v3380, %v3230
    %v3399 = vsel %vm3389, %v3382, %v3232
    %v3401 = vsel %vm3389, %v3384, %v3234
    %v3403 = vsel %vm3389, %v3386, %v3236
    %v3405 = vsel %vm3389, %v3388, %v3238
    %vm3406 = vcmask 261120
    %v3408 = vsel %vm3406, %v3391, %v3264
    %v3410 = vsel %vm3406, %v3393, %v3266
    %v3412 = vsel %vm3406, %v3395, %v3268
    %v3414 = vsel %vm3406, %v3397, %v3270
    %v3416 = vsel %vm3406, %v3399, %v3272
    %v3418 = vsel %vm3406, %v3401, %v3274
    %v3420 = vsel %vm3406, %v3403, %v3276
    %v3422 = vsel %vm3406, %v3405, %v3278
    %v3423 = vld [vmem:[%s1360] sm:$0xe]
    %v3424 = vld [vmem:[%s1360 + $0x8] sm:$0xe]
    %v3425 = vld [vmem:[%s1360 + $0x10] sm:$0xe]
    %v3426 = vld [vmem:[%s1360 + $0x18] sm:$0xe]
    %v3427 = vld [vmem:[%s1360 + $0x20] sm:$0xe]
    %v3428 = vld [vmem:[%s1360 + $0x28] sm:$0xe]
    %v3429 = vld [vmem:[%s1360 + $0x30] sm:$0xe]
    %v3430 = vld [vmem:[%s1360 + $0x38] sm:$0xe]
    %v3431 = vld [vmem:[%s1360 + $0x50] sm:$0xe]
    %v3432 = vld [vmem:[%s1360 + $0x58] sm:$0xe]
    %v3433 = vld [vmem:[%s1360 + $0x60] sm:$0xe]
    %v3434 = vld [vmem:[%s1360 + $0x68] sm:$0xe]
    %v3435 = vld [vmem:[%s1360 + $0x70] sm:$0xe]
    %v3436 = vld [vmem:[%s1360 + $0x78] sm:$0xe]
    %v3437 = vld [vmem:[%s1360 + $0x80] sm:$0xe]
    %v3438 = vld [vmem:[%s1360 + $0x88] sm:$0xe]
    %vm3471 = vcmask 1042432
    %vm3472 = vcmask 1046532
    %vm3473 = vmor %vm3471, %vm3472
    %v3474 = vrot.slane %v3423, 5
    %v3475 = vrot.slane %v3474, 4
    %v3476 = vrot.slane %v1362, 5
    %v3477 = vsel %vm3473, %v3475, %v3476
    %v3478 = vrot.slane %v3424, 5
    %v3479 = vrot.slane %v3478, 4
    %v3480 = vrot.slane %v1364, 5
    %v3481 = vsel %vm3473, %v3479, %v3480
    %v3482 = vrot.slane %v3425, 5
    %v3483 = vrot.slane %v3482, 4
    %v3484 = vrot.slane %v1366, 5
    %v3485 = vsel %vm3473, %v3483, %v3484
    %v3486 = vrot.slane %v3426, 5
    %v3487 = vrot.slane %v3486, 4
    %v3488 = vrot.slane %v1368, 5
    %v3489 = vsel %vm3473, %v3487, %v3488
    %v3490 = vrot.slane %v3427, 5
    %v3491 = vrot.slane %v3490, 4
    %v3492 = vrot.slane %v1370, 5
    %v3493 = vsel %vm3473, %v3491, %v3492
    %v3494 = vrot.slane %v3428, 5
    %v3495 = vrot.slane %v3494, 4
    %v3496 = vrot.slane %v1372, 5
    %v3497 = vsel %vm3473, %v3495, %v3496
    %v3498 = vrot.slane %v3429, 5
    %v3499 = vrot.slane %v3498, 4
    %v3500 = vrot.slane %v1374, 5
    %v3501 = vsel %vm3473, %v3499, %v3500
    %v3502 = vrot.slane %v3430, 5
    %v3503 = vrot.slane %v3502, 4
    %v3504 = vrot.slane %v1376, 5
    %v3505 = vsel %vm3473, %v3503, %v3504
    %v3506 = vrot.slane %v3431, 5
    %v3507 = vrot.slane %v3506, 4
    %v3508 = vrot.slane %v1378, 5
    %v3509 = vsel %vm3473, %v3507, %v3508
    %v3510 = vrot.slane %v3432, 5
    %v3511 = vrot.slane %v3510, 4
    %v3512 = vrot.slane %v1380, 5
    %v3513 = vsel %vm3473, %v3511, %v3512
    %v3514 = vrot.slane %v3433, 5
    %v3515 = vrot.slane %v3514, 4
    %v3516 = vrot.slane %v1382, 5
    %v3517 = vsel %vm3473, %v3515, %v3516
    %v3518 = vrot.slane %v3434, 5
    %v3519 = vrot.slane %v3518, 4
    %v3520 = vrot.slane %v1384, 5
    %v3521 = vsel %vm3473, %v3519, %v3520
    %v3522 = vrot.slane %v3435, 5
    %v3523 = vrot.slane %v3522, 4
    %v3524 = vrot.slane %v1386, 5
    %v3525 = vsel %vm3473, %v3523, %v3524
    %v3526 = vrot.slane %v3436, 5
    %v3527 = vrot.slane %v3526, 4
    %v3528 = vrot.slane %v1388, 5
    %v3529 = vsel %vm3473, %v3527, %v3528
    %v3530 = vrot.slane %v3437, 5
    %v3531 = vrot.slane %v3530, 4
    %v3532 = vrot.slane %v1390, 5
    %v3533 = vsel %vm3473, %v3531, %v3532
    %v3534 = vrot.slane %v3438, 5
    %v3535 = vrot.slane %v3534, 4
    %v3536 = vrot.slane %v1392, 5
    %v3537 = vsel %vm3473, %v3535, %v3536
    %v3538 = vld [vmem:[%s952] sm:$0xe]
    %v3539 = vld [vmem:[%s952 + $0x8] sm:$0xe]
    %v3540 = vld [vmem:[%s952 + $0x10] sm:$0xe]
    %v3541 = vld [vmem:[%s952 + $0x18] sm:$0xe]
    %v3542 = vld [vmem:[%s952 + $0x20] sm:$0xe]
    %v3543 = vld [vmem:[%s952 + $0x28] sm:$0xe]
    %v3544 = vld [vmem:[%s952 + $0x30] sm:$0xe]
    %v3545 = vld [vmem:[%s952 + $0x38] sm:$0xe]
    %v3546 = vld [vmem:[%s952 + $0x50] sm:$0xe]
    %v3547 = vld [vmem:[%s952 + $0x58] sm:$0xe]
    %v3548 = vld [vmem:[%s952 + $0x60] sm:$0xe]
    %v3549 = vld [vmem:[%s952 + $0x68] sm:$0xe]
    %v3550 = vld [vmem:[%s952 + $0x70] sm:$0xe]
    %v3551 = vld [vmem:[%s952 + $0x78] sm:$0xe]
    %v3552 = vld [vmem:[%s952 + $0x80] sm:$0xe]
    %v3553 = vld [vmem:[%s952 + $0x88] sm:$0xe]
    %v3586 = vrot.slane %v3538, 5
    %v3587 = vrot.slane %v3586, 4
    %v3588 = vrot.slane %v1878, 5
    %v3589 = vsel %vm3473, %v3587, %v3588
    %v3590 = vrot.slane %v3539, 5
    %v3591 = vrot.slane %v3590, 4
    %v3592 = vrot.slane %v1880, 5
    %v3593 = vsel %vm3473, %v3591, %v3592
    %v3594 = vrot.slane %v3540, 5
    %v3595 = vrot.slane %v3594, 4
    %v3596 = vrot.slane %v1882, 5
    %v3597 = vsel %vm3473, %v3595, %v3596
    %v3598 = vrot.slane %v3541, 5
    %v3599 = vrot.slane %v3598, 4
    %v3600 = vrot.slane %v1884, 5
    %v3601 = vsel %vm3473, %v3599, %v3600
    %v3602 = vrot.slane %v3542, 5
    %v3603 = vrot.slane %v3602, 4
    %v3604 = vrot.slane %v1886, 5
    %v3605 = vsel %vm3473, %v3603, %v3604
    %v3606 = vrot.slane %v3543, 5
    %v3607 = vrot.slane %v3606, 4
    %v3608 = vrot.slane %v1888, 5
    %v3609 = vsel %vm3473, %v3607, %v3608
    %v3610 = vrot.slane %v3544, 5
    %v3611 = vrot.slane %v3610, 4
    %v3612 = vrot.slane %v1890, 5
    %v3613 = vsel %vm3473, %v3611, %v3612
    %v3614 = vrot.slane %v3545, 5
    %v3615 = vrot.slane %v3614, 4
    %v3616 = vrot.slane %v1892, 5
    %v3617 = vsel %vm3473, %v3615, %v3616
    %v3618 = vrot.slane %v3546, 5
    %v3619 = vrot.slane %v3618, 4
    %v3620 = vrot.slane %v1894, 5
    %v3621 = vsel %vm3473, %v3619, %v3620
    %v3622 = vrot.slane %v3547, 5
    %v3623 = vrot.slane %v3622, 4
    %v3624 = vrot.slane %v1896, 5
    %v3625 = vsel %vm3473, %v3623, %v3624
    %v3626 = vrot.slane %v3548, 5
    %v3627 = vrot.slane %v3626, 4
    %v3628 = vrot.slane %v1898, 5
    %v3629 = vsel %vm3473, %v3627, %v3628
    %v3630 = vrot.slane %v3549, 5
    %v3631 = vrot.slane %v3630, 4
    %v3632 = vrot.slane %v1900, 5
    %v3633 = vsel %vm3473, %v3631, %v3632
    %v3634 = vrot.slane %v3550, 5
    %v3635 = vrot.slane %v3634, 4
    %v3636 = vrot.slane %v1902, 5
    %v3637 = vsel %vm3473, %v3635, %v3636
    %v3638 = vrot.slane %v3551, 5
    %v3639 = vrot.slane %v3638, 4
    %v3640 = vrot.slane %v1904, 5
    %v3641 = vsel %vm3473, %v3639, %v3640
    %v3642 = vrot.slane %v3552, 5
    %v3643 = vrot.slane %v3642, 4
    %v3644 = vrot.slane %v1906, 5
    %v3645 = vsel %vm3473, %v3643, %v3644
    %v3646 = vrot.slane %v3553, 5
    %v3647 = vrot.slane %v3646, 4
    %v3648 = vrot.slane %v1908, 5
    %v3649 = vsel %vm3473, %v3647, %v3648
    %v3650 = vld [vmem:[%s2390] sm:$0xe]
    %v3651 = vld [vmem:[%s2390 + $0x8] sm:$0xe]
    %v3652 = vld [vmem:[%s2390 + $0x10] sm:$0xe]
    %v3653 = vld [vmem:[%s2390 + $0x18] sm:$0xe]
    %v3654 = vld [vmem:[%s2390 + $0x20] sm:$0xe]
    %v3655 = vld [vmem:[%s2390 + $0x28] sm:$0xe]
    %v3656 = vld [vmem:[%s2390 + $0x30] sm:$0xe]
    %v3657 = vld [vmem:[%s2390 + $0x38] sm:$0xe]
    %v3658 = vld [vmem:[%s2390 + $0x50] sm:$0xe]
    %v3659 = vld [vmem:[%s2390 + $0x58] sm:$0xe]
    %v3660 = vld [vmem:[%s2390 + $0x60] sm:$0xe]
    %v3661 = vld [vmem:[%s2390 + $0x68] sm:$0xe]
    %v3662 = vld [vmem:[%s2390 + $0x70] sm:$0xe]
    %v3663 = vld [vmem:[%s2390 + $0x78] sm:$0xe]
    %v3664 = vld [vmem:[%s2390 + $0x80] sm:$0xe]
    %v3665 = vld [vmem:[%s2390 + $0x88] sm:$0xe]
    %v3698 = vrot.slane %v3650, 5
    %v3699 = vrot.slane %v3698, 4
    %v3700 = vrot.slane %v2392, 5
    %v3701 = vsel %vm3473, %v3699, %v3700
    %v3702 = vrot.slane %v3651, 5
    %v3703 = vrot.slane %v3702, 4
    %v3704 = vrot.slane %v2394, 5
    %v3705 = vsel %vm3473, %v3703, %v3704
    %v3706 = vrot.slane %v3652, 5
    %v3707 = vrot.slane %v3706, 4
    %v3708 = vrot.slane %v2396, 5
    %v3709 = vsel %vm3473, %v3707, %v3708
    %v3710 = vrot.slane %v3653, 5
    %v3711 = vrot.slane %v3710, 4
    %v3712 = vrot.slane %v2398, 5
    %v3713 = vsel %vm3473, %v3711, %v3712
    %v3714 = vrot.slane %v3654, 5
    %v3715 = vrot.slane %v3714, 4
    %v3716 = vrot.slane %v2400, 5
    %v3717 = vsel %vm3473, %v3715, %v3716
    %v3718 = vrot.slane %v3655, 5
    %v3719 = vrot.slane %v3718, 4
    %v3720 = vrot.slane %v2402, 5
    %v3721 = vsel %vm3473, %v3719, %v3720
    %v3722 = vrot.slane %v3656, 5
    %v3723 = vrot.slane %v3722, 4
    %v3724 = vrot.slane %v2404, 5
    %v3725 = vsel %vm3473, %v3723, %v3724
    %v3726 = vrot.slane %v3657, 5
    %v3727 = vrot.slane %v3726, 4
    %v3728 = vrot.slane %v2406, 5
    %v3729 = vsel %vm3473, %v3727, %v3728
    %v3730 = vrot.slane %v3658, 5
    %v3731 = vrot.slane %v3730, 4
    %v3732 = vrot.slane %v2408, 5
    %v3733 = vsel %vm3473, %v3731, %v3732
    %v3734 = vrot.slane %v3659, 5
    %v3735 = vrot.slane %v3734, 4
    %v3736 = vrot.slane %v2410, 5
    %v3737 = vsel %vm3473, %v3735, %v3736
    %v3738 = vrot.slane %v3660, 5
    %v3739 = vrot.slane %v3738, 4
    %v3740 = vrot.slane %v2412, 5
    %v3741 = vsel %vm3473, %v3739, %v3740
    %v3742 = vrot.slane %v3661, 5
    %v3743 = vrot.slane %v3742, 4
    %v3744 = vrot.slane %v2414, 5
    %v3745 = vsel %vm3473, %v3743, %v3744
    %v3746 = vrot.slane %v3662, 5
    %v3747 = vrot.slane %v3746, 4
    %v3748 = vrot.slane %v2416, 5
    %v3749 = vsel %vm3473, %v3747, %v3748
    %v3750 = vrot.slane %v3663, 5
    %v3751 = vrot.slane %v3750, 4
    %v3752 = vrot.slane %v2418, 5
    %v3753 = vsel %vm3473, %v3751, %v3752
    %v3754 = vrot.slane %v3664, 5
    %v3755 = vrot.slane %v3754, 4
    %v3756 = vrot.slane %v2420, 5
    %v3757 = vsel %vm3473, %v3755, %v3756
    %v3758 = vrot.slane %v3665, 5
    %v3759 = vrot.slane %v3758, 4
    %v3760 = vrot.slane %v2422, 5
    %v3761 = vsel %vm3473, %v3759, %v3760
    %3762 = vrot.lane.b32.xlu0 %v2983, 4
    %v3763 = vpop.permute.xlu0 %3762
    %3764 = vrot.lane.b32.xlu0 %v2984, 4
    %v3765 = vpop.permute.xlu0 %3764
    %3766 = vrot.lane.b32.xlu0 %v2985, 4
    %v3767 = vpop.permute.xlu0 %3766
    %3768 = vrot.lane.b32.xlu0 %v2986, 4
    %v3769 = vpop.permute.xlu0 %3768
    %3770 = vrot.lane.b32.xlu0 %v2987, 4
    %v3771 = vpop.permute.xlu0 %3770
    %3772 = vrot.lane.b32.xlu0 %v2988, 4
    %v3773 = vpop.permute.xlu0 %3772
    %3774 = vrot.lane.b32.xlu0 %v2989, 4
    %v3775 = vpop.permute.xlu0 %3774
    %3776 = vrot.lane.b32.xlu0 %v2990, 4
    %v3777 = vpop.permute.xlu0 %3776
    %v3778 = vunpack.c.l.b16 %v3477
    %v3779 = vunpack.c.l.b16 %v3481
    %v3780 = vunpack.c.l.b16 %v3485
    %v3781 = vunpack.c.l.b16 %v3489
    %v3782 = vunpack.c.l.b16 %v3493
    %v3783 = vunpack.c.l.b16 %v3497
    %v3784 = vunpack.c.l.b16 %v3501
    %v3785 = vunpack.c.l.b16 %v3505
    %v3786 = vunpack.c.l.b16 %v3509
    %v3787 = vunpack.c.l.b16 %v3513
    %v3788 = vunpack.c.l.b16 %v3517
    %v3789 = vunpack.c.l.b16 %v3521
    %v3790 = vunpack.c.l.b16 %v3525
    %v3791 = vunpack.c.l.b16 %v3529
    %v3792 = vunpack.c.l.b16 %v3533
    %v3793 = vunpack.c.l.b16 %v3537
    %v3794 = vpack.c.b16 %v3779, %v3778
    %v3795 = vpack.c.b16 %v3781, %v3780
    %v3796 = vpack.c.b16 %v3783, %v3782
    %v3797 = vpack.c.b16 %v3785, %v3784
    %v3798 = vpack.c.b16 %v3787, %v3786
    %v3799 = vpack.c.b16 %v3789, %v3788
    %v3800 = vpack.c.b16 %v3791, %v3790
    %v3801 = vpack.c.b16 %v3793, %v3792
    %3802 = vrot.lane.b32.xlu0 %v3794, 8
    %v3803 = vpop.permute.xlu0 %3802
    %3804 = vrot.lane.b32.xlu0 %v3795, 8
    %v3805 = vpop.permute.xlu0 %3804
    %3806 = vrot.lane.b32.xlu0 %v3796, 8
    %v3807 = vpop.permute.xlu0 %3806
    %3808 = vrot.lane.b32.xlu0 %v3797, 8
    %v3809 = vpop.permute.xlu0 %3808
    %3810 = vrot.lane.b32.xlu0 %v3798, 8
    %v3811 = vpop.permute.xlu0 %3810
    %3812 = vrot.lane.b32.xlu0 %v3799, 8
    %v3813 = vpop.permute.xlu0 %3812
    %3814 = vrot.lane.b32.xlu0 %v3800, 8
    %v3815 = vpop.permute.xlu0 %3814
    %3816 = vrot.lane.b32.xlu0 %v3801, 8
    %v3817 = vpop.permute.xlu0 %3816
    %3818 = vrot.lane.b32.xlu0 %v3079, 12
    %v3819 = vpop.permute.xlu0 %3818
    %3820 = vrot.lane.b32.xlu0 %v3080, 12
    %v3821 = vpop.permute.xlu0 %3820
    %3822 = vrot.lane.b32.xlu0 %v3081, 12
    %v3823 = vpop.permute.xlu0 %3822
    %3824 = vrot.lane.b32.xlu0 %v3082, 12
    %v3825 = vpop.permute.xlu0 %3824
    %3826 = vrot.lane.b32.xlu0 %v3083, 12
    %v3827 = vpop.permute.xlu0 %3826
    %3828 = vrot.lane.b32.xlu0 %v3084, 12
    %v3829 = vpop.permute.xlu0 %3828
    %3830 = vrot.lane.b32.xlu0 %v3085, 12
    %v3831 = vpop.permute.xlu0 %3830
    %3832 = vrot.lane.b32.xlu0 %v3086, 12
    %v3833 = vpop.permute.xlu0 %3832
    %3834 = vrot.lane.b32.xlu0 %v3119, 16
    %v3835 = vpop.permute.xlu0 %3834
    %3836 = vrot.lane.b32.xlu0 %v3120, 16
    %v3837 = vpop.permute.xlu0 %3836
    %3838 = vrot.lane.b32.xlu0 %v3121, 16
    %v3839 = vpop.permute.xlu0 %3838
    %3840 = vrot.lane.b32.xlu0 %v3122, 16
    %v3841 = vpop.permute.xlu0 %3840
    %3842 = vrot.lane.b32.xlu0 %v3123, 16
    %v3843 = vpop.permute.xlu0 %3842
    %3844 = vrot.lane.b32.xlu0 %v3124, 16
    %v3845 = vpop.permute.xlu0 %3844
    %3846 = vrot.lane.b32.xlu0 %v3125, 16
    %v3847 = vpop.permute.xlu0 %3846
    %3848 = vrot.lane.b32.xlu0 %v3126, 16
    %v3849 = vpop.permute.xlu0 %3848
    %v3850 = vunpack.c.l.b16 %v3589
    %v3851 = vunpack.c.l.b16 %v3593
    %v3852 = vunpack.c.l.b16 %v3597
    %v3853 = vunpack.c.l.b16 %v3601
    %v3854 = vunpack.c.l.b16 %v3605
    %v3855 = vunpack.c.l.b16 %v3609
    %v3856 = vunpack.c.l.b16 %v3613
    %v3857 = vunpack.c.l.b16 %v3617
    %v3858 = vunpack.c.l.b16 %v3621
    %v3859 = vunpack.c.l.b16 %v3625
    %v3860 = vunpack.c.l.b16 %v3629
    %v3861 = vunpack.c.l.b16 %v3633
    %v3862 = vunpack.c.l.b16 %v3637
    %v3863 = vunpack.c.l.b16 %v3641
    %v3864 = vunpack.c.l.b16 %v3645
    %v3865 = vunpack.c.l.b16 %v3649
    %v3866 = vpack.c.b16 %v3851, %v3850
    %v3867 = vpack.c.b16 %v3853, %v3852
    %v3868 = vpack.c.b16 %v3855, %v3854
    %v3869 = vpack.c.b16 %v3857, %v3856
    %v3870 = vpack.c.b16 %v3859, %v3858
    %v3871 = vpack.c.b16 %v3861, %v3860
    %v3872 = vpack.c.b16 %v3863, %v3862
    %v3873 = vpack.c.b16 %v3865, %v3864
    %3874 = vrot.lane.b32.xlu0 %v3866, 20
    %v3875 = vpop.permute.xlu0 %3874
    %3876 = vrot.lane.b32.xlu0 %v3867, 20
    %v3877 = vpop.permute.xlu0 %3876
    %3878 = vrot.lane.b32.xlu0 %v3868, 20
    %v3879 = vpop.permute.xlu0 %3878
    %3880 = vrot.lane.b32.xlu0 %v3869, 20
    %v3881 = vpop.permute.xlu0 %3880
    %3882 = vrot.lane.b32.xlu0 %v3870, 20
    %v3883 = vpop.permute.xlu0 %3882
    %3884 = vrot.lane.b32.xlu0 %v3871, 20
    %v3885 = vpop.permute.xlu0 %3884
    %3886 = vrot.lane.b32.xlu0 %v3872, 20
    %v3887 = vpop.permute.xlu0 %3886
    %3888 = vrot.lane.b32.xlu0 %v3873, 20
    %v3889 = vpop.permute.xlu0 %3888
    %3890 = vrot.lane.b32.xlu0 %v3215, 24
    %v3891 = vpop.permute.xlu0 %3890
    %3892 = vrot.lane.b32.xlu0 %v3216, 24
    %v3893 = vpop.permute.xlu0 %3892
    %3894 = vrot.lane.b32.xlu0 %v3217, 24
    %v3895 = vpop.permute.xlu0 %3894
    %3896 = vrot.lane.b32.xlu0 %v3218, 24
    %v3897 = vpop.permute.xlu0 %3896
    %3898 = vrot.lane.b32.xlu0 %v3219, 24
    %v3899 = vpop.permute.xlu0 %3898
    %3900 = vrot.lane.b32.xlu0 %v3220, 24
    %v3901 = vpop.permute.xlu0 %3900
    %3902 = vrot.lane.b32.xlu0 %v3221, 24
    %v3903 = vpop.permute.xlu0 %3902
    %3904 = vrot.lane.b32.xlu0 %v3222, 24
    %v3905 = vpop.permute.xlu0 %3904
    %3906 = vrot.lane.b32.xlu0 %v3255, 28
    %v3907 = vpop.permute.xlu0 %3906
    %3908 = vrot.lane.b32.xlu0 %v3256, 28
    %v3909 = vpop.permute.xlu0 %3908
    %3910 = vrot.lane.b32.xlu0 %v3257, 28
    %v3911 = vpop.permute.xlu0 %3910
    %3912 = vrot.lane.b32.xlu0 %v3258, 28
    %v3913 = vpop.permute.xlu0 %3912
    %3914 = vrot.lane.b32.xlu0 %v3259, 28
    %v3915 = vpop.permute.xlu0 %3914
    %3916 = vrot.lane.b32.xlu0 %v3260, 28
    %v3917 = vpop.permute.xlu0 %3916
    %3918 = vrot.lane.b32.xlu0 %v3261, 28
    %v3919 = vpop.permute.xlu0 %3918
    %3920 = vrot.lane.b32.xlu0 %v3262, 28
    %v3921 = vpop.permute.xlu0 %3920
    %v3922 = vunpack.c.l.b16 %v3701
    %v3923 = vunpack.c.l.b16 %v3705
    %v3924 = vunpack.c.l.b16 %v3709
    %v3925 = vunpack.c.l.b16 %v3713
    %v3926 = vunpack.c.l.b16 %v3717
    %v3927 = vunpack.c.l.b16 %v3721
    %v3928 = vunpack.c.l.b16 %v3725
    %v3929 = vunpack.c.l.b16 %v3729
    %v3930 = vunpack.c.l.b16 %v3733
    %v3931 = vunpack.c.l.b16 %v3737
    %v3932 = vunpack.c.l.b16 %v3741
    %v3933 = vunpack.c.l.b16 %v3745
    %v3934 = vunpack.c.l.b16 %v3749
    %v3935 = vunpack.c.l.b16 %v3753
    %v3936 = vunpack.c.l.b16 %v3757
    %v3937 = vunpack.c.l.b16 %v3761
    %v3938 = vpack.c.b16 %v3923, %v3922
    %v3939 = vpack.c.b16 %v3925, %v3924
    %v3940 = vpack.c.b16 %v3927, %v3926
    %v3941 = vpack.c.b16 %v3929, %v3928
    %v3942 = vpack.c.b16 %v3931, %v3930
    %v3943 = vpack.c.b16 %v3933, %v3932
    %v3944 = vpack.c.b16 %v3935, %v3934
    %v3945 = vpack.c.b16 %v3937, %v3936
    %3946 = vrot.lane.b32.xlu0 %v3938, 32
    %v3947 = vpop.permute.xlu0 %3946
    %3948 = vrot.lane.b32.xlu0 %v3939, 32
    %v3949 = vpop.permute.xlu0 %3948
    %3950 = vrot.lane.b32.xlu0 %v3940, 32
    %v3951 = vpop.permute.xlu0 %3950
    %3952 = vrot.lane.b32.xlu0 %v3941, 32
    %v3953 = vpop.permute.xlu0 %3952
    %3954 = vrot.lane.b32.xlu0 %v3942, 32
    %v3955 = vpop.permute.xlu0 %3954
    %3956 = vrot.lane.b32.xlu0 %v3943, 32
    %v3957 = vpop.permute.xlu0 %3956
    %3958 = vrot.lane.b32.xlu0 %v3944, 32
    %v3959 = vpop.permute.xlu0 %3958
    %3960 = vrot.lane.b32.xlu0 %v3945, 32
    %v3961 = vpop.permute.xlu0 %3960
    %v3964 = vsel %vm3279, %v2943, %v3763
    %v3967 = vsel %vm3279, %v2944, %v3765
    %v3970 = vsel %vm3279, %v2945, %v3767
    %v3973 = vsel %vm3279, %v2946, %v3769
    %v3976 = vsel %vm3279, %v2947, %v3771
    %v3979 = vsel %vm3279, %v2948, %v3773
    %v3982 = vsel %vm3279, %v2949, %v3775
    %v3985 = vsel %vm3279, %v2950, %v3777
    %v3987 = vsel %vm3304, %v3964, %v3803
    %v3989 = vsel %vm3304, %v3967, %v3805
    %v3991 = vsel %vm3304, %v3970, %v3807
    %v3993 = vsel %vm3304, %v3973, %v3809
    %v3995 = vsel %vm3304, %v3976, %v3811
    %v3997 = vsel %vm3304, %v3979, %v3813
    %v3999 = vsel %vm3304, %v3982, %v3815
    %v4001 = vsel %vm3304, %v3985, %v3817
    %v4003 = vsel %vm3321, %v3987, %v3819
    %v4005 = vsel %vm3321, %v3989, %v3821
    %v4007 = vsel %vm3321, %v3991, %v3823
    %v4009 = vsel %vm3321, %v3993, %v3825
    %v4011 = vsel %vm3321, %v3995, %v3827
    %v4013 = vsel %vm3321, %v3997, %v3829
    %v4015 = vsel %vm3321, %v3999, %v3831
    %v4017 = vsel %vm3321, %v4001, %v3833
    %v4019 = vsel %vm3338, %v4003, %v3835
    %v4021 = vsel %vm3338, %v4005, %v3837
    %v4023 = vsel %vm3338, %v4007, %v3839
    %v4025 = vsel %vm3338, %v4009, %v3841
    %v4027 = vsel %vm3338, %v4011, %v3843
    %v4029 = vsel %vm3338, %v4013, %v3845
    %v4031 = vsel %vm3338, %v4015, %v3847
    %v4033 = vsel %vm3338, %v4017, %v3849
    %v4035 = vsel %vm3355, %v4019, %v3875
    %v4037 = vsel %vm3355, %v4021, %v3877
    %v4039 = vsel %vm3355, %v4023, %v3879
    %v4041 = vsel %vm3355, %v4025, %v3881
    %v4043 = vsel %vm3355, %v4027, %v3883
    %v4045 = vsel %vm3355, %v4029, %v3885
    %v4047 = vsel %vm3355, %v4031, %v3887
    %v4049 = vsel %vm3355, %v4033, %v3889
    %v4051 = vsel %vm3372, %v4035, %v3891
    %v4053 = vsel %vm3372, %v4037, %v3893
    %v4055 = vsel %vm3372, %v4039, %v3895
    %v4057 = vsel %vm3372, %v4041, %v3897
    %v4059 = vsel %vm3372, %v4043, %v3899
    %v4061 = vsel %vm3372, %v4045, %v3901
    %v4063 = vsel %vm3372, %v4047, %v3903
    %v4065 = vsel %vm3372, %v4049, %v3905
    %v4067 = vsel %vm3389, %v4051, %v3907
    %v4069 = vsel %vm3389, %v4053, %v3909
    %v4071 = vsel %vm3389, %v4055, %v3911
    %v4073 = vsel %vm3389, %v4057, %v3913
    %v4075 = vsel %vm3389, %v4059, %v3915
    %v4077 = vsel %vm3389, %v4061, %v3917
    %v4079 = vsel %vm3389, %v4063, %v3919
    %v4081 = vsel %vm3389, %v4065, %v3921
    %v4083 = vsel %vm3406, %v4067, %v3947
    %v4085 = vsel %vm3406, %v4069, %v3949
    %v4087 = vsel %vm3406, %v4071, %v3951
    %v4089 = vsel %vm3406, %v4073, %v3953
    %v4091 = vsel %vm3406, %v4075, %v3955
    %v4093 = vsel %vm3406, %v4077, %v3957
    %v4095 = vsel %vm3406, %v4079, %v3959
    %v4097 = vsel %vm3406, %v4081, %v3961
    %s4098 = scalar_lea.vmem [#allocation2], 176
    %v4099 = vld [vmem:[%s4098] sm:$0xf]
    %v4100 = vld [vmem:[%s4098 + $0x8] sm:$0xf]
    %v4101 = vld [vmem:[%s4098 + $0x10] sm:$0xf]
    %v4102 = vld [vmem:[%s4098 + $0x18] sm:$0xf]
    %v4103 = vld [vmem:[%s4098 + $0x20] sm:$0xf]
    %v4104 = vld [vmem:[%s4098 + $0x28] sm:$0xf]
    %v4105 = vld [vmem:[%s4098 + $0x30] sm:$0xf]
    %v4106 = vld [vmem:[%s4098 + $0x38] sm:$0xf]
    %v4107 = vld [vmem:[%s4098 + $0x50] sm:$0xf]
    %v4108 = vld [vmem:[%s4098 + $0x58] sm:$0xf]
    %v4109 = vld [vmem:[%s4098 + $0x60] sm:$0xf]
    %v4110 = vld [vmem:[%s4098 + $0x68] sm:$0xf]
    %v4111 = vld [vmem:[%s4098 + $0x70] sm:$0xf]
    %v4112 = vld [vmem:[%s4098 + $0x78] sm:$0xf]
    %v4113 = vld [vmem:[%s4098 + $0x80] sm:$0xf]
    %v4114 = vld [vmem:[%s4098 + $0x88] sm:$0xf]
    %s4115 = scalar_lea.vmem [#allocation2], 16
    %v4116 = vld [vmem:[%s4115] sm:$0xf]
    %v4117 = vld [vmem:[%s4115 + $0x4] sm:$0x1]
    %v4118 = vld [vmem:[%s4115 + $0x8] sm:$0xf]
    %v4119 = vld [vmem:[%s4115 + $0xc] sm:$0x1]
    %v4120 = vld [vmem:[%s4115 + $0x10] sm:$0xf]
    %v4121 = vld [vmem:[%s4115 + $0x14] sm:$0x1]
    %v4122 = vld [vmem:[%s4115 + $0x18] sm:$0xf]
    %v4123 = vld [vmem:[%s4115 + $0x1c] sm:$0x1]
    %v4124 = vld [vmem:[%s4115 + $0x20] sm:$0xf]
    %v4125 = vld [vmem:[%s4115 + $0x24] sm:$0x1]
    %v4126 = vld [vmem:[%s4115 + $0x28] sm:$0xf]
    %v4127 = vld [vmem:[%s4115 + $0x2c] sm:$0x1]
    %v4128 = vld [vmem:[%s4115 + $0x30] sm:$0xf]
    %v4129 = vld [vmem:[%s4115 + $0x34] sm:$0x1]
    %v4130 = vld [vmem:[%s4115 + $0x38] sm:$0xf]
    %v4131 = vld [vmem:[%s4115 + $0x3c] sm:$0x1]
    %v4132 = vld [vmem:[%s4115 + $0x50] sm:$0xf]
    %v4133 = vld [vmem:[%s4115 + $0x54] sm:$0x1]
    %v4134 = vld [vmem:[%s4115 + $0x58] sm:$0xf]
    %v4135 = vld [vmem:[%s4115 + $0x5c] sm:$0x1]
    %v4136 = vld [vmem:[%s4115 + $0x60] sm:$0xf]
    %v4137 = vld [vmem:[%s4115 + $0x64] sm:$0x1]
    %v4138 = vld [vmem:[%s4115 + $0x68] sm:$0xf]
    %v4139 = vld [vmem:[%s4115 + $0x6c] sm:$0x1]
    %v4140 = vld [vmem:[%s4115 + $0x70] sm:$0xf]
    %v4141 = vld [vmem:[%s4115 + $0x74] sm:$0x1]
    %v4142 = vld [vmem:[%s4115 + $0x78] sm:$0xf]
    %v4143 = vld [vmem:[%s4115 + $0x7c] sm:$0x1]
    %v4144 = vld [vmem:[%s4115 + $0x80] sm:$0xf]
    %v4145 = vld [vmem:[%s4115 + $0x84] sm:$0x1]
    %v4146 = vld [vmem:[%s4115 + $0x88] sm:$0xf]
    %v4147 = vld [vmem:[%s4115 + $0x8c] sm:$0x1]
    %v4149 = vshrl.u32 %v4116, 16
    %v4151 = vrot.slane %v4149, 4
    %v4152 = vshll.u32 %v4116, 16
    %v4154 = vrot.slane %v4152, 5
    %v4155 = vor.u32 %v4151, %v4154
    %v4156 = vrot.slane %v4155, 4
    %v4158 = vshll.u32 %v4117, 16
    %v4160 = vrot.slane %v4158, 5
    %v4161 = vsel %vm1395, %v4156, %v4160
    %v4163 = vshrl.u32 %v4118, 16
    %v4165 = vrot.slane %v4163, 4
    %v4166 = vshll.u32 %v4118, 16
    %v4168 = vrot.slane %v4166, 5
    %v4169 = vor.u32 %v4165, %v4168
    %v4170 = vrot.slane %v4169, 4
    %v4172 = vshll.u32 %v4119, 16
    %v4174 = vrot.slane %v4172, 5
    %v4175 = vsel %vm1395, %v4170, %v4174
    %v4177 = vshrl.u32 %v4120, 16
    %v4179 = vrot.slane %v4177, 4
    %v4180 = vshll.u32 %v4120, 16
    %v4182 = vrot.slane %v4180, 5
    %v4183 = vor.u32 %v4179, %v4182
    %v4184 = vrot.slane %v4183, 4
    %v4186 = vshll.u32 %v4121, 16
    %v4188 = vrot.slane %v4186, 5
    %v4189 = vsel %vm1395, %v4184, %v4188
    %v4191 = vshrl.u32 %v4122, 16
    %v4193 = vrot.slane %v4191, 4
    %v4194 = vshll.u32 %v4122, 16
    %v4196 = vrot.slane %v4194, 5
    %v4197 = vor.u32 %v4193, %v4196
    %v4198 = vrot.slane %v4197, 4
    %v4200 = vshll.u32 %v4123, 16
    %v4202 = vrot.slane %v4200, 5
    %v4203 = vsel %vm1395, %v4198, %v4202
    %v4205 = vshrl.u32 %v4124, 16
    %v4207 = vrot.slane %v4205, 4
    %v4208 = vshll.u32 %v4124, 16
    %v4210 = vrot.slane %v4208, 5
    %v4211 = vor.u32 %v4207, %v4210
    %v4212 = vrot.slane %v4211, 4
    %v4214 = vshll.u32 %v4125, 16
    %v4216 = vrot.slane %v4214, 5
    %v4217 = vsel %vm1395, %v4212, %v4216
    %v4219 = vshrl.u32 %v4126, 16
    %v4221 = vrot.slane %v4219, 4
    %v4222 = vshll.u32 %v4126, 16
    %v4224 = vrot.slane %v4222, 5
    %v4225 = vor.u32 %v4221, %v4224
    %v4226 = vrot.slane %v4225, 4
    %v4228 = vshll.u32 %v4127, 16
    %v4230 = vrot.slane %v4228, 5
    %v4231 = vsel %vm1395, %v4226, %v4230
    %v4233 = vshrl.u32 %v4128, 16
    %v4235 = vrot.slane %v4233, 4
    %v4236 = vshll.u32 %v4128, 16
    %v4238 = vrot.slane %v4236, 5
    %v4239 = vor.u32 %v4235, %v4238
    %v4240 = vrot.slane %v4239, 4
    %v4242 = vshll.u32 %v4129, 16
    %v4244 = vrot.slane %v4242, 5
    %v4245 = vsel %vm1395, %v4240, %v4244
    %v4247 = vshrl.u32 %v4130, 16
    %v4249 = vrot.slane %v4247, 4
    %v4250 = vshll.u32 %v4130, 16
    %v4252 = vrot.slane %v4250, 5
    %v4253 = vor.u32 %v4249, %v4252
    %v4254 = vrot.slane %v4253, 4
    %v4256 = vshll.u32 %v4131, 16
    %v4258 = vrot.slane %v4256, 5
    %v4259 = vsel %vm1395, %v4254, %v4258
    %v4261 = vshrl.u32 %v4132, 16
    %v4263 = vrot.slane %v4261, 4
    %v4264 = vshll.u32 %v4132, 16
    %v4266 = vrot.slane %v4264, 5
    %v4267 = vor.u32 %v4263, %v4266
    %v4268 = vrot.slane %v4267, 4
    %v4270 = vshll.u32 %v4133, 16
    %v4272 = vrot.slane %v4270, 5
    %v4273 = vsel %vm1395, %v4268, %v4272
    %v4275 = vshrl.u32 %v4134, 16
    %v4277 = vrot.slane %v4275, 4
    %v4278 = vshll.u32 %v4134, 16
    %v4280 = vrot.slane %v4278, 5
    %v4281 = vor.u32 %v4277, %v4280
    %v4282 = vrot.slane %v4281, 4
    %v4284 = vshll.u32 %v4135, 16
    %v4286 = vrot.slane %v4284, 5
    %v4287 = vsel %vm1395, %v4282, %v4286
    %v4289 = vshrl.u32 %v4136, 16
    %v4291 = vrot.slane %v4289, 4
    %v4292 = vshll.u32 %v4136, 16
    %v4294 = vrot.slane %v4292, 5
    %v4295 = vor.u32 %v4291, %v4294
    %v4296 = vrot.slane %v4295, 4
    %v4298 = vshll.u32 %v4137, 16
    %v4300 = vrot.slane %v4298, 5
    %v4301 = vsel %vm1395, %v4296, %v4300
    %v4303 = vshrl.u32 %v4138, 16
    %v4305 = vrot.slane %v4303, 4
    %v4306 = vshll.u32 %v4138, 16
    %v4308 = vrot.slane %v4306, 5
    %v4309 = vor.u32 %v4305, %v4308
    %v4310 = vrot.slane %v4309, 4
    %v4312 = vshll.u32 %v4139, 16
    %v4314 = vrot.slane %v4312, 5
    %v4315 = vsel %vm1395, %v4310, %v4314
    %v4317 = vshrl.u32 %v4140, 16
    %v4319 = vrot.slane %v4317, 4
    %v4320 = vshll.u32 %v4140, 16
    %v4322 = vrot.slane %v4320, 5
    %v4323 = vor.u32 %v4319, %v4322
    %v4324 = vrot.slane %v4323, 4
    %v4326 = vshll.u32 %v4141, 16
    %v4328 = vrot.slane %v4326, 5
    %v4329 = vsel %vm1395, %v4324, %v4328
    %v4331 = vshrl.u32 %v4142, 16
    %v4333 = vrot.slane %v4331, 4
    %v4334 = vshll.u32 %v4142, 16
    %v4336 = vrot.slane %v4334, 5
    %v4337 = vor.u32 %v4333, %v4336
    %v4338 = vrot.slane %v4337, 4
    %v4340 = vshll.u32 %v4143, 16
    %v4342 = vrot.slane %v4340, 5
    %v4343 = vsel %vm1395, %v4338, %v4342
    %v4345 = vshrl.u32 %v4144, 16
    %v4347 = vrot.slane %v4345, 4
    %v4348 = vshll.u32 %v4144, 16
    %v4350 = vrot.slane %v4348, 5
    %v4351 = vor.u32 %v4347, %v4350
    %v4352 = vrot.slane %v4351, 4
    %v4354 = vshll.u32 %v4145, 16
    %v4356 = vrot.slane %v4354, 5
    %v4357 = vsel %vm1395, %v4352, %v4356
    %v4359 = vshrl.u32 %v4146, 16
    %v4361 = vrot.slane %v4359, 4
    %v4362 = vshll.u32 %v4146, 16
    %v4364 = vrot.slane %v4362, 5
    %v4365 = vor.u32 %v4361, %v4364
    %v4366 = vrot.slane %v4365, 4
    %v4368 = vshll.u32 %v4147, 16
    %v4370 = vrot.slane %v4368, 5
    %v4371 = vsel %vm1395, %v4366, %v4370
    %v4372 = vld [vmem:[%s4098 + $0x4] sm:$0x1]
    %v4373 = vld [vmem:[%s4098 + $0xc] sm:$0x1]
    %v4374 = vld [vmem:[%s4098 + $0x14] sm:$0x1]
    %v4375 = vld [vmem:[%s4098 + $0x1c] sm:$0x1]
    %v4376 = vld [vmem:[%s4098 + $0x24] sm:$0x1]
    %v4377 = vld [vmem:[%s4098 + $0x2c] sm:$0x1]
    %v4378 = vld [vmem:[%s4098 + $0x34] sm:$0x1]
    %v4379 = vld [vmem:[%s4098 + $0x3c] sm:$0x1]
    %v4380 = vld [vmem:[%s4098 + $0x54] sm:$0x1]
    %v4381 = vld [vmem:[%s4098 + $0x5c] sm:$0x1]
    %v4382 = vld [vmem:[%s4098 + $0x64] sm:$0x1]
    %v4383 = vld [vmem:[%s4098 + $0x6c] sm:$0x1]
    %v4384 = vld [vmem:[%s4098 + $0x74] sm:$0x1]
    %v4385 = vld [vmem:[%s4098 + $0x7c] sm:$0x1]
    %v4386 = vld [vmem:[%s4098 + $0x84] sm:$0x1]
    %v4387 = vld [vmem:[%s4098 + $0x8c] sm:$0x1]
    %v4389 = vshrl.u32 %v4099, 16
    %v4391 = vrot.slane %v4389, 4
    %v4392 = vshll.u32 %v4099, 16
    %v4394 = vrot.slane %v4392, 5
    %v4395 = vor.u32 %v4391, %v4394
    %v4396 = vrot.slane %v4395, 4
    %v4398 = vshll.u32 %v4372, 16
    %v4400 = vrot.slane %v4398, 5
    %v4401 = vsel %vm1395, %v4396, %v4400
    %v4403 = vshrl.u32 %v4100, 16
    %v4405 = vrot.slane %v4403, 4
    %v4406 = vshll.u32 %v4100, 16
    %v4408 = vrot.slane %v4406, 5
    %v4409 = vor.u32 %v4405, %v4408
    %v4410 = vrot.slane %v4409, 4
    %v4412 = vshll.u32 %v4373, 16
    %v4414 = vrot.slane %v4412, 5
    %v4415 = vsel %vm1395, %v4410, %v4414
    %v4417 = vshrl.u32 %v4101, 16
    %v4419 = vrot.slane %v4417, 4
    %v4420 = vshll.u32 %v4101, 16
    %v4422 = vrot.slane %v4420, 5
    %v4423 = vor.u32 %v4419, %v4422
    %v4424 = vrot.slane %v4423, 4
    %v4426 = vshll.u32 %v4374, 16
    %v4428 = vrot.slane %v4426, 5
    %v4429 = vsel %vm1395, %v4424, %v4428
    %v4431 = vshrl.u32 %v4102, 16
    %v4433 = vrot.slane %v4431, 4
    %v4434 = vshll.u32 %v4102, 16
    %v4436 = vrot.slane %v4434, 5
    %v4437 = vor.u32 %v4433, %v4436
    %v4438 = vrot.slane %v4437, 4
    %v4440 = vshll.u32 %v4375, 16
    %v4442 = vrot.slane %v4440, 5
    %v4443 = vsel %vm1395, %v4438, %v4442
    %v4445 = vshrl.u32 %v4103, 16
    %v4447 = vrot.slane %v4445, 4
    %v4448 = vshll.u32 %v4103, 16
    %v4450 = vrot.slane %v4448, 5
    %v4451 = vor.u32 %v4447, %v4450
    %v4452 = vrot.slane %v4451, 4
    %v4454 = vshll.u32 %v4376, 16
    %v4456 = vrot.slane %v4454, 5
    %v4457 = vsel %vm1395, %v4452, %v4456
    %v4459 = vshrl.u32 %v4104, 16
    %v4461 = vrot.slane %v4459, 4
    %v4462 = vshll.u32 %v4104, 16
    %v4464 = vrot.slane %v4462, 5
    %v4465 = vor.u32 %v4461, %v4464
    %v4466 = vrot.slane %v4465, 4
    %v4468 = vshll.u32 %v4377, 16
    %v4470 = vrot.slane %v4468, 5
    %v4471 = vsel %vm1395, %v4466, %v4470
    %v4473 = vshrl.u32 %v4105, 16
    %v4475 = vrot.slane %v4473, 4
    %v4476 = vshll.u32 %v4105, 16
    %v4478 = vrot.slane %v4476, 5
    %v4479 = vor.u32 %v4475, %v4478
    %v4480 = vrot.slane %v4479, 4
    %v4482 = vshll.u32 %v4378, 16
    %v4484 = vrot.slane %v4482, 5
    %v4485 = vsel %vm1395, %v4480, %v4484
    %v4487 = vshrl.u32 %v4106, 16
    %v4489 = vrot.slane %v4487, 4
    %v4490 = vshll.u32 %v4106, 16
    %v4492 = vrot.slane %v4490, 5
    %v4493 = vor.u32 %v4489, %v4492
    %v4494 = vrot.slane %v4493, 4
    %v4496 = vshll.u32 %v4379, 16
    %v4498 = vrot.slane %v4496, 5
    %v4499 = vsel %vm1395, %v4494, %v4498
    %v4501 = vshrl.u32 %v4107, 16
    %v4503 = vrot.slane %v4501, 4
    %v4504 = vshll.u32 %v4107, 16
    %v4506 = vrot.slane %v4504, 5
    %v4507 = vor.u32 %v4503, %v4506
    %v4508 = vrot.slane %v4507, 4
    %v4510 = vshll.u32 %v4380, 16
    %v4512 = vrot.slane %v4510, 5
    %v4513 = vsel %vm1395, %v4508, %v4512
    %v4515 = vshrl.u32 %v4108, 16
    %v4517 = vrot.slane %v4515, 4
    %v4518 = vshll.u32 %v4108, 16
    %v4520 = vrot.slane %v4518, 5
    %v4521 = vor.u32 %v4517, %v4520
    %v4522 = vrot.slane %v4521, 4
    %v4524 = vshll.u32 %v4381, 16
    %v4526 = vrot.slane %v4524, 5
    %v4527 = vsel %vm1395, %v4522, %v4526
    %v4529 = vshrl.u32 %v4109, 16
    %v4531 = vrot.slane %v4529, 4
    %v4532 = vshll.u32 %v4109, 16
    %v4534 = vrot.slane %v4532, 5
    %v4535 = vor.u32 %v4531, %v4534
    %v4536 = vrot.slane %v4535, 4
    %v4538 = vshll.u32 %v4382, 16
    %v4540 = vrot.slane %v4538, 5
    %v4541 = vsel %vm1395, %v4536, %v4540
    %v4543 = vshrl.u32 %v4110, 16
    %v4545 = vrot.slane %v4543, 4
    %v4546 = vshll.u32 %v4110, 16
    %v4548 = vrot.slane %v4546, 5
    %v4549 = vor.u32 %v4545, %v4548
    %v4550 = vrot.slane %v4549, 4
    %v4552 = vshll.u32 %v4383, 16
    %v4554 = vrot.slane %v4552, 5
    %v4555 = vsel %vm1395, %v4550, %v4554
    %v4557 = vshrl.u32 %v4111, 16
    %v4559 = vrot.slane %v4557, 4
    %v4560 = vshll.u32 %v4111, 16
    %v4562 = vrot.slane %v4560, 5
    %v4563 = vor.u32 %v4559, %v4562
    %v4564 = vrot.slane %v4563, 4
    %v4566 = vshll.u32 %v4384, 16
    %v4568 = vrot.slane %v4566, 5
    %v4569 = vsel %vm1395, %v4564, %v4568
    %v4571 = vshrl.u32 %v4112, 16
    %v4573 = vrot.slane %v4571, 4
    %v4574 = vshll.u32 %v4112, 16
    %v4576 = vrot.slane %v4574, 5
    %v4577 = vor.u32 %v4573, %v4576
    %v4578 = vrot.slane %v4577, 4
    %v4580 = vshll.u32 %v4385, 16
    %v4582 = vrot.slane %v4580, 5
    %v4583 = vsel %vm1395, %v4578, %v4582
    %v4585 = vshrl.u32 %v4113, 16
    %v4587 = vrot.slane %v4585, 4
    %v4588 = vshll.u32 %v4113, 16
    %v4590 = vrot.slane %v4588, 5
    %v4591 = vor.u32 %v4587, %v4590
    %v4592 = vrot.slane %v4591, 4
    %v4594 = vshll.u32 %v4386, 16
    %v4596 = vrot.slane %v4594, 5
    %v4597 = vsel %vm1395, %v4592, %v4596
    %v4599 = vshrl.u32 %v4114, 16
    %v4601 = vrot.slane %v4599, 4
    %v4602 = vshll.u32 %v4114, 16
    %v4604 = vrot.slane %v4602, 5
    %v4605 = vor.u32 %v4601, %v4604
    %v4606 = vrot.slane %v4605, 4
    %v4608 = vshll.u32 %v4387, 16
    %v4610 = vrot.slane %v4608, 5
    %v4611 = vsel %vm1395, %v4606, %v4610
    %4612 = vrot.lane.b32.xlu0 %v3079, 4
    %v4613 = vpop.permute.xlu0 %4612
    %4614 = vrot.lane.b32.xlu0 %v3080, 4
    %v4615 = vpop.permute.xlu0 %4614
    %4616 = vrot.lane.b32.xlu0 %v3081, 4
    %v4617 = vpop.permute.xlu0 %4616
    %4618 = vrot.lane.b32.xlu0 %v3082, 4
    %v4619 = vpop.permute.xlu0 %4618
    %4620 = vrot.lane.b32.xlu0 %v3083, 4
    %v4621 = vpop.permute.xlu0 %4620
    %4622 = vrot.lane.b32.xlu0 %v3084, 4
    %v4623 = vpop.permute.xlu0 %4622
    %4624 = vrot.lane.b32.xlu0 %v3085, 4
    %v4625 = vpop.permute.xlu0 %4624
    %4626 = vrot.lane.b32.xlu0 %v3086, 4
    %v4627 = vpop.permute.xlu0 %4626
    %4628 = vrot.lane.b32.xlu0 %v3119, 8
    %v4629 = vpop.permute.xlu0 %4628
    %4630 = vrot.lane.b32.xlu0 %v3120, 8
    %v4631 = vpop.permute.xlu0 %4630
    %4632 = vrot.lane.b32.xlu0 %v3121, 8
    %v4633 = vpop.permute.xlu0 %4632
    %4634 = vrot.lane.b32.xlu0 %v3122, 8
    %v4635 = vpop.permute.xlu0 %4634
    %4636 = vrot.lane.b32.xlu0 %v3123, 8
    %v4637 = vpop.permute.xlu0 %4636
    %4638 = vrot.lane.b32.xlu0 %v3124, 8
    %v4639 = vpop.permute.xlu0 %4638
    %4640 = vrot.lane.b32.xlu0 %v3125, 8
    %v4641 = vpop.permute.xlu0 %4640
    %4642 = vrot.lane.b32.xlu0 %v3126, 8
    %v4643 = vpop.permute.xlu0 %4642
    %4644 = vrot.lane.b32.xlu0 %v3175, 12
    %v4645 = vpop.permute.xlu0 %4644
    %4646 = vrot.lane.b32.xlu0 %v3176, 12
    %v4647 = vpop.permute.xlu0 %4646
    %4648 = vrot.lane.b32.xlu0 %v3177, 12
    %v4649 = vpop.permute.xlu0 %4648
    %4650 = vrot.lane.b32.xlu0 %v3178, 12
    %v4651 = vpop.permute.xlu0 %4650
    %4652 = vrot.lane.b32.xlu0 %v3179, 12
    %v4653 = vpop.permute.xlu0 %4652
    %4654 = vrot.lane.b32.xlu0 %v3180, 12
    %v4655 = vpop.permute.xlu0 %4654
    %4656 = vrot.lane.b32.xlu0 %v3181, 12
    %v4657 = vpop.permute.xlu0 %4656
    %4658 = vrot.lane.b32.xlu0 %v3182, 12
    %v4659 = vpop.permute.xlu0 %4658
    %4660 = vrot.lane.b32.xlu0 %v3215, 16
    %v4661 = vpop.permute.xlu0 %4660
    %4662 = vrot.lane.b32.xlu0 %v3216, 16
    %v4663 = vpop.permute.xlu0 %4662
    %4664 = vrot.lane.b32.xlu0 %v3217, 16
    %v4665 = vpop.permute.xlu0 %4664
    %4666 = vrot.lane.b32.xlu0 %v3218, 16
    %v4667 = vpop.permute.xlu0 %4666
    %4668 = vrot.lane.b32.xlu0 %v3219, 16
    %v4669 = vpop.permute.xlu0 %4668
    %4670 = vrot.lane.b32.xlu0 %v3220, 16
    %v4671 = vpop.permute.xlu0 %4670
    %4672 = vrot.lane.b32.xlu0 %v3221, 16
    %v4673 = vpop.permute.xlu0 %4672
    %4674 = vrot.lane.b32.xlu0 %v3222, 16
    %v4675 = vpop.permute.xlu0 %4674
    %4676 = vrot.lane.b32.xlu0 %v3255, 20
    %v4677 = vpop.permute.xlu0 %4676
    %4678 = vrot.lane.b32.xlu0 %v3256, 20
    %v4679 = vpop.permute.xlu0 %4678
    %4680 = vrot.lane.b32.xlu0 %v3257, 20
    %v4681 = vpop.permute.xlu0 %4680
    %4682 = vrot.lane.b32.xlu0 %v3258, 20
    %v4683 = vpop.permute.xlu0 %4682
    %4684 = vrot.lane.b32.xlu0 %v3259, 20
    %v4685 = vpop.permute.xlu0 %4684
    %4686 = vrot.lane.b32.xlu0 %v3260, 20
    %v4687 = vpop.permute.xlu0 %4686
    %4688 = vrot.lane.b32.xlu0 %v3261, 20
    %v4689 = vpop.permute.xlu0 %4688
    %4690 = vrot.lane.b32.xlu0 %v3262, 20
    %v4691 = vpop.permute.xlu0 %4690
    %v4708 = vunpack.c.l.b16 %v4099
    %v4709 = vunpack.c.l.b16 %v4100
    %v4710 = vunpack.c.l.b16 %v4101
    %v4711 = vunpack.c.l.b16 %v4102
    %v4712 = vunpack.c.l.b16 %v4103
    %v4713 = vunpack.c.l.b16 %v4104
    %v4714 = vunpack.c.l.b16 %v4105
    %v4715 = vunpack.c.l.b16 %v4106
    %v4716 = vunpack.c.l.b16 %v4107
    %v4717 = vunpack.c.l.b16 %v4108
    %v4718 = vunpack.c.l.b16 %v4109
    %v4719 = vunpack.c.l.b16 %v4110
    %v4720 = vunpack.c.l.b16 %v4111
    %v4721 = vunpack.c.l.b16 %v4112
    %v4722 = vunpack.c.l.b16 %v4113
    %v4723 = vunpack.c.l.b16 %v4114
    %v4724 = vpack.c.b16 %v4709, %v4708
    %v4725 = vpack.c.b16 %v4711, %v4710
    %v4726 = vpack.c.b16 %v4713, %v4712
    %v4727 = vpack.c.b16 %v4715, %v4714
    %v4728 = vpack.c.b16 %v4717, %v4716
    %v4729 = vpack.c.b16 %v4719, %v4718
    %v4730 = vpack.c.b16 %v4721, %v4720
    %v4731 = vpack.c.b16 %v4723, %v4722
    %4732 = vrot.lane.b32.xlu0 %v4724, 24
    %v4733 = vpop.permute.xlu0 %4732
    %4734 = vrot.lane.b32.xlu0 %v4725, 24
    %v4735 = vpop.permute.xlu0 %4734
    %4736 = vrot.lane.b32.xlu0 %v4726, 24
    %v4737 = vpop.permute.xlu0 %4736
    %4738 = vrot.lane.b32.xlu0 %v4727, 24
    %v4739 = vpop.permute.xlu0 %4738
    %4740 = vrot.lane.b32.xlu0 %v4728, 24
    %v4741 = vpop.permute.xlu0 %4740
    %4742 = vrot.lane.b32.xlu0 %v4729, 24
    %v4743 = vpop.permute.xlu0 %4742
    %4744 = vrot.lane.b32.xlu0 %v4730, 24
    %v4745 = vpop.permute.xlu0 %4744
    %4746 = vrot.lane.b32.xlu0 %v4731, 24
    %v4747 = vpop.permute.xlu0 %4746
    %v4748 = vunpack.c.l.b16 %v4161
    %v4749 = vunpack.c.l.b16 %v4175
    %v4750 = vunpack.c.l.b16 %v4189
    %v4751 = vunpack.c.l.b16 %v4203
    %v4752 = vunpack.c.l.b16 %v4217
    %v4753 = vunpack.c.l.b16 %v4231
    %v4754 = vunpack.c.l.b16 %v4245
    %v4755 = vunpack.c.l.b16 %v4259
    %v4756 = vunpack.c.l.b16 %v4273
    %v4757 = vunpack.c.l.b16 %v4287
    %v4758 = vunpack.c.l.b16 %v4301
    %v4759 = vunpack.c.l.b16 %v4315
    %v4760 = vunpack.c.l.b16 %v4329
    %v4761 = vunpack.c.l.b16 %v4343
    %v4762 = vunpack.c.l.b16 %v4357
    %v4763 = vunpack.c.l.b16 %v4371
    %v4764 = vpack.c.b16 %v4749, %v4748
    %v4765 = vpack.c.b16 %v4751, %v4750
    %v4766 = vpack.c.b16 %v4753, %v4752
    %v4767 = vpack.c.b16 %v4755, %v4754
    %v4768 = vpack.c.b16 %v4757, %v4756
    %v4769 = vpack.c.b16 %v4759, %v4758
    %v4770 = vpack.c.b16 %v4761, %v4760
    %v4771 = vpack.c.b16 %v4763, %v4762
    %4772 = vrot.lane.b32.xlu0 %v4764, 28
    %v4773 = vpop.permute.xlu0 %4772
    %4774 = vrot.lane.b32.xlu0 %v4765, 28
    %v4775 = vpop.permute.xlu0 %4774
    %4776 = vrot.lane.b32.xlu0 %v4766, 28
    %v4777 = vpop.permute.xlu0 %4776
    %4778 = vrot.lane.b32.xlu0 %v4767, 28
    %v4779 = vpop.permute.xlu0 %4778
    %4780 = vrot.lane.b32.xlu0 %v4768, 28
    %v4781 = vpop.permute.xlu0 %4780
    %4782 = vrot.lane.b32.xlu0 %v4769, 28
    %v4783 = vpop.permute.xlu0 %4782
    %4784 = vrot.lane.b32.xlu0 %v4770, 28
    %v4785 = vpop.permute.xlu0 %4784
    %4786 = vrot.lane.b32.xlu0 %v4771, 28
    %v4787 = vpop.permute.xlu0 %4786
    %v4788 = vunpack.c.l.b16 %v4401
    %v4789 = vunpack.c.l.b16 %v4415
    %v4790 = vunpack.c.l.b16 %v4429
    %v4791 = vunpack.c.l.b16 %v4443
    %v4792 = vunpack.c.l.b16 %v4457
    %v4793 = vunpack.c.l.b16 %v4471
    %v4794 = vunpack.c.l.b16 %v4485
    %v4795 = vunpack.c.l.b16 %v4499
    %v4796 = vunpack.c.l.b16 %v4513
    %v4797 = vunpack.c.l.b16 %v4527
    %v4798 = vunpack.c.l.b16 %v4541
    %v4799 = vunpack.c.l.b16 %v4555
    %v4800 = vunpack.c.l.b16 %v4569
    %v4801 = vunpack.c.l.b16 %v4583
    %v4802 = vunpack.c.l.b16 %v4597
    %v4803 = vunpack.c.l.b16 %v4611
    %v4804 = vpack.c.b16 %v4789, %v4788
    %v4805 = vpack.c.b16 %v4791, %v4790
    %v4806 = vpack.c.b16 %v4793, %v4792
    %v4807 = vpack.c.b16 %v4795, %v4794
    %v4808 = vpack.c.b16 %v4797, %v4796
    %v4809 = vpack.c.b16 %v4799, %v4798
    %v4810 = vpack.c.b16 %v4801, %v4800
    %v4811 = vpack.c.b16 %v4803, %v4802
    %4812 = vrot.lane.b32.xlu0 %v4804, 32
    %v4813 = vpop.permute.xlu0 %4812
    %4814 = vrot.lane.b32.xlu0 %v4805, 32
    %v4815 = vpop.permute.xlu0 %4814
    %4816 = vrot.lane.b32.xlu0 %v4806, 32
    %v4817 = vpop.permute.xlu0 %4816
    %4818 = vrot.lane.b32.xlu0 %v4807, 32
    %v4819 = vpop.permute.xlu0 %4818
    %4820 = vrot.lane.b32.xlu0 %v4808, 32
    %v4821 = vpop.permute.xlu0 %4820
    %4822 = vrot.lane.b32.xlu0 %v4809, 32
    %v4823 = vpop.permute.xlu0 %4822
    %4824 = vrot.lane.b32.xlu0 %v4810, 32
    %v4825 = vpop.permute.xlu0 %4824
    %4826 = vrot.lane.b32.xlu0 %v4811, 32
    %v4827 = vpop.permute.xlu0 %4826
    %v4830 = vsel %vm3279, %v3039, %v4613
    %v4833 = vsel %vm3279, %v3040, %v4615
    %v4836 = vsel %vm3279, %v3041, %v4617
    %v4839 = vsel %vm3279, %v3042, %v4619
    %v4842 = vsel %vm3279, %v3043, %v4621
    %v4845 = vsel %vm3279, %v3044, %v4623
    %v4848 = vsel %vm3279, %v3045, %v4625
    %v4851 = vsel %vm3279, %v3046, %v4627
    %v4853 = vsel %vm3304, %v4830, %v4629
    %v4855 = vsel %vm3304, %v4833, %v4631
    %v4857 = vsel %vm3304, %v4836, %v4633
    %v4859 = vsel %vm3304, %v4839, %v4635
    %v4861 = vsel %vm3304, %v4842, %v4637
    %v4863 = vsel %vm3304, %v4845, %v4639
    %v4865 = vsel %vm3304, %v4848, %v4641
    %v4867 = vsel %vm3304, %v4851, %v4643
    %v4869 = vsel %vm3321, %v4853, %v4645
    %v4871 = vsel %vm3321, %v4855, %v4647
    %v4873 = vsel %vm3321, %v4857, %v4649
    %v4875 = vsel %vm3321, %v4859, %v4651
    %v4877 = vsel %vm3321, %v4861, %v4653
    %v4879 = vsel %vm3321, %v4863, %v4655
    %v4881 = vsel %vm3321, %v4865, %v4657
    %v4883 = vsel %vm3321, %v4867, %v4659
    %v4885 = vsel %vm3338, %v4869, %v4661
    %v4887 = vsel %vm3338, %v4871, %v4663
    %v4889 = vsel %vm3338, %v4873, %v4665
    %v4891 = vsel %vm3338, %v4875, %v4667
    %v4893 = vsel %vm3338, %v4877, %v4669
    %v4895 = vsel %vm3338, %v4879, %v4671
    %v4897 = vsel %vm3338, %v4881, %v4673
    %v4899 = vsel %vm3338, %v4883, %v4675
    %v4901 = vsel %vm3355, %v4885, %v4677
    %v4903 = vsel %vm3355, %v4887, %v4679
    %v4905 = vsel %vm3355, %v4889, %v4681
    %v4907 = vsel %vm3355, %v4891, %v4683
    %v4909 = vsel %vm3355, %v4893, %v4685
    %v4911 = vsel %vm3355, %v4895, %v4687
    %v4913 = vsel %vm3355, %v4897, %v4689
    %v4915 = vsel %vm3355, %v4899, %v4691
    %v4917 = vsel %vm3372, %v4901, %v4733
    %v4919 = vsel %vm3372, %v4903, %v4735
    %v4921 = vsel %vm3372, %v4905, %v4737
    %v4923 = vsel %vm3372, %v4907, %v4739
    %v4925 = vsel %vm3372, %v4909, %v4741
    %v4927 = vsel %vm3372, %v4911, %v4743
    %v4929 = vsel %vm3372, %v4913, %v4745
    %v4931 = vsel %vm3372, %v4915, %v4747
    %v4933 = vsel %vm3389, %v4917, %v4773
    %v4935 = vsel %vm3389, %v4919, %v4775
    %v4937 = vsel %vm3389, %v4921, %v4777
    %v4939 = vsel %vm3389, %v4923, %v4779
    %v4941 = vsel %vm3389, %v4925, %v4781
    %v4943 = vsel %vm3389, %v4927, %v4783
    %v4945 = vsel %vm3389, %v4929, %v4785
    %v4947 = vsel %vm3389, %v4931, %v4787
    %v4949 = vsel %vm3406, %v4933, %v4813
    %v4951 = vsel %vm3406, %v4935, %v4815
    %v4953 = vsel %vm3406, %v4937, %v4817
    %v4955 = vsel %vm3406, %v4939, %v4819
    %v4957 = vsel %vm3406, %v4941, %v4821
    %v4959 = vsel %vm3406, %v4943, %v4823
    %v4961 = vsel %vm3406, %v4945, %v4825
    %v4963 = vsel %vm3406, %v4947, %v4827
    %v4964 = vld [vmem:[%s4115] sm:$0xe]
    %v4965 = vld [vmem:[%s4115 + $0x8] sm:$0xe]
    %v4966 = vld [vmem:[%s4115 + $0x10] sm:$0xe]
    %v4967 = vld [vmem:[%s4115 + $0x18] sm:$0xe]
    %v4968 = vld [vmem:[%s4115 + $0x20] sm:$0xe]
    %v4969 = vld [vmem:[%s4115 + $0x28] sm:$0xe]
    %v4970 = vld [vmem:[%s4115 + $0x30] sm:$0xe]
    %v4971 = vld [vmem:[%s4115 + $0x38] sm:$0xe]
    %v4972 = vld [vmem:[%s4115 + $0x50] sm:$0xe]
    %v4973 = vld [vmem:[%s4115 + $0x58] sm:$0xe]
    %v4974 = vld [vmem:[%s4115 + $0x60] sm:$0xe]
    %v4975 = vld [vmem:[%s4115 + $0x68] sm:$0xe]
    %v4976 = vld [vmem:[%s4115 + $0x70] sm:$0xe]
    %v4977 = vld [vmem:[%s4115 + $0x78] sm:$0xe]
    %v4978 = vld [vmem:[%s4115 + $0x80] sm:$0xe]
    %v4979 = vld [vmem:[%s4115 + $0x88] sm:$0xe]
    %v5012 = vrot.slane %v4964, 5
    %v5013 = vrot.slane %v5012, 4
    %v5014 = vrot.slane %v4117, 5
    %v5015 = vsel %vm3473, %v5013, %v5014
    %v5016 = vrot.slane %v4965, 5
    %v5017 = vrot.slane %v5016, 4
    %v5018 = vrot.slane %v4119, 5
    %v5019 = vsel %vm3473, %v5017, %v5018
    %v5020 = vrot.slane %v4966, 5
    %v5021 = vrot.slane %v5020, 4
    %v5022 = vrot.slane %v4121, 5
    %v5023 = vsel %vm3473, %v5021, %v5022
    %v5024 = vrot.slane %v4967, 5
    %v5025 = vrot.slane %v5024, 4
    %v5026 = vrot.slane %v4123, 5
    %v5027 = vsel %vm3473, %v5025, %v5026
    %v5028 = vrot.slane %v4968, 5
    %v5029 = vrot.slane %v5028, 4
    %v5030 = vrot.slane %v4125, 5
    %v5031 = vsel %vm3473, %v5029, %v5030
    %v5032 = vrot.slane %v4969, 5
    %v5033 = vrot.slane %v5032, 4
    %v5034 = vrot.slane %v4127, 5
    %v5035 = vsel %vm3473, %v5033, %v5034
    %v5036 = vrot.slane %v4970, 5
    %v5037 = vrot.slane %v5036, 4
    %v5038 = vrot.slane %v4129, 5
    %v5039 = vsel %vm3473, %v5037, %v5038
    %v5040 = vrot.slane %v4971, 5
    %v5041 = vrot.slane %v5040, 4
    %v5042 = vrot.slane %v4131, 5
    %v5043 = vsel %vm3473, %v5041, %v5042
    %v5044 = vrot.slane %v4972, 5
    %v5045 = vrot.slane %v5044, 4
    %v5046 = vrot.slane %v4133, 5
    %v5047 = vsel %vm3473, %v5045, %v5046
    %v5048 = vrot.slane %v4973, 5
    %v5049 = vrot.slane %v5048, 4
    %v5050 = vrot.slane %v4135, 5
    %v5051 = vsel %vm3473, %v5049, %v5050
    %v5052 = vrot.slane %v4974, 5
    %v5053 = vrot.slane %v5052, 4
    %v5054 = vrot.slane %v4137, 5
    %v5055 = vsel %vm3473, %v5053, %v5054
    %v5056 = vrot.slane %v4975, 5
    %v5057 = vrot.slane %v5056, 4
    %v5058 = vrot.slane %v4139, 5
    %v5059 = vsel %vm3473, %v5057, %v5058
    %v5060 = vrot.slane %v4976, 5
    %v5061 = vrot.slane %v5060, 4
    %v5062 = vrot.slane %v4141, 5
    %v5063 = vsel %vm3473, %v5061, %v5062
    %v5064 = vrot.slane %v4977, 5
    %v5065 = vrot.slane %v5064, 4
    %v5066 = vrot.slane %v4143, 5
    %v5067 = vsel %vm3473, %v5065, %v5066
    %v5068 = vrot.slane %v4978, 5
    %v5069 = vrot.slane %v5068, 4
    %v5070 = vrot.slane %v4145, 5
    %v5071 = vsel %vm3473, %v5069, %v5070
    %v5072 = vrot.slane %v4979, 5
    %v5073 = vrot.slane %v5072, 4
    %v5074 = vrot.slane %v4147, 5
    %v5075 = vsel %vm3473, %v5073, %v5074
    %5076 = vrot.lane.b32.xlu0 %v3119, 4
    %v5077 = vpop.permute.xlu0 %5076
    %5078 = vrot.lane.b32.xlu0 %v3120, 4
    %v5079 = vpop.permute.xlu0 %5078
    %5080 = vrot.lane.b32.xlu0 %v3121, 4
    %v5081 = vpop.permute.xlu0 %5080
    %5082 = vrot.lane.b32.xlu0 %v3122, 4
    %v5083 = vpop.permute.xlu0 %5082
    %5084 = vrot.lane.b32.xlu0 %v3123, 4
    %v5085 = vpop.permute.xlu0 %5084
    %5086 = vrot.lane.b32.xlu0 %v3124, 4
    %v5087 = vpop.permute.xlu0 %5086
    %5088 = vrot.lane.b32.xlu0 %v3125, 4
    %v5089 = vpop.permute.xlu0 %5088
    %5090 = vrot.lane.b32.xlu0 %v3126, 4
    %v5091 = vpop.permute.xlu0 %5090
    %5092 = vrot.lane.b32.xlu0 %v3866, 8
    %v5093 = vpop.permute.xlu0 %5092
    %5094 = vrot.lane.b32.xlu0 %v3867, 8
    %v5095 = vpop.permute.xlu0 %5094
    %5096 = vrot.lane.b32.xlu0 %v3868, 8
    %v5097 = vpop.permute.xlu0 %5096
    %5098 = vrot.lane.b32.xlu0 %v3869, 8
    %v5099 = vpop.permute.xlu0 %5098
    %5100 = vrot.lane.b32.xlu0 %v3870, 8
    %v5101 = vpop.permute.xlu0 %5100
    %5102 = vrot.lane.b32.xlu0 %v3871, 8
    %v5103 = vpop.permute.xlu0 %5102
    %5104 = vrot.lane.b32.xlu0 %v3872, 8
    %v5105 = vpop.permute.xlu0 %5104
    %5106 = vrot.lane.b32.xlu0 %v3873, 8
    %v5107 = vpop.permute.xlu0 %5106
    %5108 = vrot.lane.b32.xlu0 %v3215, 12
    %v5109 = vpop.permute.xlu0 %5108
    %5110 = vrot.lane.b32.xlu0 %v3216, 12
    %v5111 = vpop.permute.xlu0 %5110
    %5112 = vrot.lane.b32.xlu0 %v3217, 12
    %v5113 = vpop.permute.xlu0 %5112
    %5114 = vrot.lane.b32.xlu0 %v3218, 12
    %v5115 = vpop.permute.xlu0 %5114
    %5116 = vrot.lane.b32.xlu0 %v3219, 12
    %v5117 = vpop.permute.xlu0 %5116
    %5118 = vrot.lane.b32.xlu0 %v3220, 12
    %v5119 = vpop.permute.xlu0 %5118
    %5120 = vrot.lane.b32.xlu0 %v3221, 12
    %v5121 = vpop.permute.xlu0 %5120
    %5122 = vrot.lane.b32.xlu0 %v3222, 12
    %v5123 = vpop.permute.xlu0 %5122
    %5124 = vrot.lane.b32.xlu0 %v3255, 16
    %v5125 = vpop.permute.xlu0 %5124
    %5126 = vrot.lane.b32.xlu0 %v3256, 16
    %v5127 = vpop.permute.xlu0 %5126
    %5128 = vrot.lane.b32.xlu0 %v3257, 16
    %v5129 = vpop.permute.xlu0 %5128
    %5130 = vrot.lane.b32.xlu0 %v3258, 16
    %v5131 = vpop.permute.xlu0 %5130
    %5132 = vrot.lane.b32.xlu0 %v3259, 16
    %v5133 = vpop.permute.xlu0 %5132
    %5134 = vrot.lane.b32.xlu0 %v3260, 16
    %v5135 = vpop.permute.xlu0 %5134
    %5136 = vrot.lane.b32.xlu0 %v3261, 16
    %v5137 = vpop.permute.xlu0 %5136
    %5138 = vrot.lane.b32.xlu0 %v3262, 16
    %v5139 = vpop.permute.xlu0 %5138
    %5140 = vrot.lane.b32.xlu0 %v3938, 20
    %v5141 = vpop.permute.xlu0 %5140
    %5142 = vrot.lane.b32.xlu0 %v3939, 20
    %v5143 = vpop.permute.xlu0 %5142
    %5144 = vrot.lane.b32.xlu0 %v3940, 20
    %v5145 = vpop.permute.xlu0 %5144
    %5146 = vrot.lane.b32.xlu0 %v3941, 20
    %v5147 = vpop.permute.xlu0 %5146
    %5148 = vrot.lane.b32.xlu0 %v3942, 20
    %v5149 = vpop.permute.xlu0 %5148
    %5150 = vrot.lane.b32.xlu0 %v3943, 20
    %v5151 = vpop.permute.xlu0 %5150
    %5152 = vrot.lane.b32.xlu0 %v3944, 20
    %v5153 = vpop.permute.xlu0 %5152
    %5154 = vrot.lane.b32.xlu0 %v3945, 20
    %v5155 = vpop.permute.xlu0 %5154
    %5156 = vrot.lane.b32.xlu0 %v4764, 24
    %v5157 = vpop.permute.xlu0 %5156
    %5158 = vrot.lane.b32.xlu0 %v4765, 24
    %v5159 = vpop.permute.xlu0 %5158
    %5160 = vrot.lane.b32.xlu0 %v4766, 24
    %v5161 = vpop.permute.xlu0 %5160
    %5162 = vrot.lane.b32.xlu0 %v4767, 24
    %v5163 = vpop.permute.xlu0 %5162
    %5164 = vrot.lane.b32.xlu0 %v4768, 24
    %v5165 = vpop.permute.xlu0 %5164
    %5166 = vrot.lane.b32.xlu0 %v4769, 24
    %v5167 = vpop.permute.xlu0 %5166
    %5168 = vrot.lane.b32.xlu0 %v4770, 24
    %v5169 = vpop.permute.xlu0 %5168
    %5170 = vrot.lane.b32.xlu0 %v4771, 24
    %v5171 = vpop.permute.xlu0 %5170
    %5172 = vrot.lane.b32.xlu0 %v4804, 28
    %v5173 = vpop.permute.xlu0 %5172
    %5174 = vrot.lane.b32.xlu0 %v4805, 28
    %v5175 = vpop.permute.xlu0 %5174
    %5176 = vrot.lane.b32.xlu0 %v4806, 28
    %v5177 = vpop.permute.xlu0 %5176
    %5178 = vrot.lane.b32.xlu0 %v4807, 28
    %v5179 = vpop.permute.xlu0 %5178
    %5180 = vrot.lane.b32.xlu0 %v4808, 28
    %v5181 = vpop.permute.xlu0 %5180
    %5182 = vrot.lane.b32.xlu0 %v4809, 28
    %v5183 = vpop.permute.xlu0 %5182
    %5184 = vrot.lane.b32.xlu0 %v4810, 28
    %v5185 = vpop.permute.xlu0 %5184
    %5186 = vrot.lane.b32.xlu0 %v4811, 28
    %v5187 = vpop.permute.xlu0 %5186
    %v5188 = vunpack.c.l.b16 %v5015
    %v5189 = vunpack.c.l.b16 %v5019
    %v5190 = vunpack.c.l.b16 %v5023
    %v5191 = vunpack.c.l.b16 %v5027
    %v5192 = vunpack.c.l.b16 %v5031
    %v5193 = vunpack.c.l.b16 %v5035
    %v5194 = vunpack.c.l.b16 %v5039
    %v5195 = vunpack.c.l.b16 %v5043
    %v5196 = vunpack.c.l.b16 %v5047
    %v5197 = vunpack.c.l.b16 %v5051
    %v5198 = vunpack.c.l.b16 %v5055
    %v5199 = vunpack.c.l.b16 %v5059
    %v5200 = vunpack.c.l.b16 %v5063
    %v5201 = vunpack.c.l.b16 %v5067
    %v5202 = vunpack.c.l.b16 %v5071
    %v5203 = vunpack.c.l.b16 %v5075
    %v5204 = vpack.c.b16 %v5189, %v5188
    %v5205 = vpack.c.b16 %v5191, %v5190
    %v5206 = vpack.c.b16 %v5193, %v5192
    %v5207 = vpack.c.b16 %v5195, %v5194
    %v5208 = vpack.c.b16 %v5197, %v5196
    %v5209 = vpack.c.b16 %v5199, %v5198
    %v5210 = vpack.c.b16 %v5201, %v5200
    %v5211 = vpack.c.b16 %v5203, %v5202
    %5212 = vrot.lane.b32.xlu0 %v5204, 32
    %v5213 = vpop.permute.xlu0 %5212
    %5214 = vrot.lane.b32.xlu0 %v5205, 32
    %v5215 = vpop.permute.xlu0 %5214
    %5216 = vrot.lane.b32.xlu0 %v5206, 32
    %v5217 = vpop.permute.xlu0 %5216
    %5218 = vrot.lane.b32.xlu0 %v5207, 32
    %v5219 = vpop.permute.xlu0 %5218
    %5220 = vrot.lane.b32.xlu0 %v5208, 32
    %v5221 = vpop.permute.xlu0 %5220
    %5222 = vrot.lane.b32.xlu0 %v5209, 32
    %v5223 = vpop.permute.xlu0 %5222
    %5224 = vrot.lane.b32.xlu0 %v5210, 32
    %v5225 = vpop.permute.xlu0 %5224
    %5226 = vrot.lane.b32.xlu0 %v5211, 32
    %v5227 = vpop.permute.xlu0 %5226
    %v5230 = vsel %vm3279, %v3079, %v5077
    %v5233 = vsel %vm3279, %v3080, %v5079
    %v5236 = vsel %vm3279, %v3081, %v5081
    %v5239 = vsel %vm3279, %v3082, %v5083
    %v5242 = vsel %vm3279, %v3083, %v5085
    %v5245 = vsel %vm3279, %v3084, %v5087
    %v5248 = vsel %vm3279, %v3085, %v5089
    %v5251 = vsel %vm3279, %v3086, %v5091
    %v5253 = vsel %vm3304, %v5230, %v5093
    %v5255 = vsel %vm3304, %v5233, %v5095
    %v5257 = vsel %vm3304, %v5236, %v5097
    %v5259 = vsel %vm3304, %v5239, %v5099
    %v5261 = vsel %vm3304, %v5242, %v5101
    %v5263 = vsel %vm3304, %v5245, %v5103
    %v5265 = vsel %vm3304, %v5248, %v5105
    %v5267 = vsel %vm3304, %v5251, %v5107
    %v5269 = vsel %vm3321, %v5253, %v5109
    %v5271 = vsel %vm3321, %v5255, %v5111
    %v5273 = vsel %vm3321, %v5257, %v5113
    %v5275 = vsel %vm3321, %v5259, %v5115
    %v5277 = vsel %vm3321, %v5261, %v5117
    %v5279 = vsel %vm3321, %v5263, %v5119
    %v5281 = vsel %vm3321, %v5265, %v5121
    %v5283 = vsel %vm3321, %v5267, %v5123
    %v5285 = vsel %vm3338, %v5269, %v5125
    %v5287 = vsel %vm3338, %v5271, %v5127
    %v5289 = vsel %vm3338, %v5273, %v5129
    %v5291 = vsel %vm3338, %v5275, %v5131
    %v5293 = vsel %vm3338, %v5277, %v5133
    %v5295 = vsel %vm3338, %v5279, %v5135
    %v5297 = vsel %vm3338, %v5281, %v5137
    %v5299 = vsel %vm3338, %v5283, %v5139
    %v5301 = vsel %vm3355, %v5285, %v5141
    %v5303 = vsel %vm3355, %v5287, %v5143
    %v5305 = vsel %vm3355, %v5289, %v5145
    %v5307 = vsel %vm3355, %v5291, %v5147
    %v5309 = vsel %vm3355, %v5293, %v5149
    %v5311 = vsel %vm3355, %v5295, %v5151
    %v5313 = vsel %vm3355, %v5297, %v5153
    %v5315 = vsel %vm3355, %v5299, %v5155
    %v5317 = vsel %vm3372, %v5301, %v5157
    %v5319 = vsel %vm3372, %v5303, %v5159
    %v5321 = vsel %vm3372, %v5305, %v5161
    %v5323 = vsel %vm3372, %v5307, %v5163
    %v5325 = vsel %vm3372, %v5309, %v5165
    %v5327 = vsel %vm3372, %v5311, %v5167
    %v5329 = vsel %vm3372, %v5313, %v5169
    %v5331 = vsel %vm3372, %v5315, %v5171
    %v5333 = vsel %vm3389, %v5317, %v5173
    %v5335 = vsel %vm3389, %v5319, %v5175
    %v5337 = vsel %vm3389, %v5321, %v5177
    %v5339 = vsel %vm3389, %v5323, %v5179
    %v5341 = vsel %vm3389, %v5325, %v5181
    %v5343 = vsel %vm3389, %v5327, %v5183
    %v5345 = vsel %vm3389, %v5329, %v5185
    %v5347 = vsel %vm3389, %v5331, %v5187
    %v5349 = vsel %vm3406, %v5333, %v5213
    %v5351 = vsel %vm3406, %v5335, %v5215
    %v5353 = vsel %vm3406, %v5337, %v5217
    %v5355 = vsel %vm3406, %v5339, %v5219
    %v5357 = vsel %vm3406, %v5341, %v5221
    %v5359 = vsel %vm3406, %v5343, %v5223
    %v5361 = vsel %vm3406, %v5345, %v5225
    %v5363 = vsel %vm3406, %v5347, %v5227
    %v5364 = vld [vmem:[#allocation7] sm:$0xf]
    %v5365 = vld [vmem:[#allocation7 + $0x4] sm:$0xf]
    %v5366 = vld [vmem:[#allocation7 + $0x8] sm:$0xf]
    %v5367 = vld [vmem:[#allocation7 + $0xc] sm:$0xf]
    %v5368 = vld [vmem:[#allocation7 + $0x10] sm:$0x3]
    %v5374 = vunpack.c.l.b16 %v5364
    %v5375 = vunpack.c.l.b16 %v5365
    %v5376 = vunpack.c.l.b16 %v5366
    %v5377 = vunpack.c.l.b16 %v5367
    %v5378 = vunpack.c.l.b16 %v5368
    %v5379 = vpack.c.b16 %v5375, %v5374
    %v5380 = vpack.c.b16 %v5377, %v5376
    %v5381 = vpack.c.b16 %v5378, %v5378
    %vm5384 = vcmask 293888
    %v5385 = vsel %vm5384, %v3408, 0
    %v5387 = vsel %vm5384, %v3410, 0
    %v5389 = vsel %vm5384, %v3412, 0
    %v5391 = vsel %vm5384, %v3414, 0
    %v5393 = vsel %vm5384, %v3416, 0
    %v5395 = vsel %vm5384, %v3418, 0
    %v5397 = vsel %vm5384, %v3420, 0
    %v5399 = vsel %vm5384, %v3422, 0
    %v5401 = vsel %vm5384, %v4083, 0
    %v5403 = vsel %vm5384, %v4085, 0
    %v5405 = vsel %vm5384, %v4087, 0
    %v5407 = vsel %vm5384, %v4089, 0
    %v5409 = vsel %vm5384, %v4091, 0
    %v5411 = vsel %vm5384, %v4093, 0
    %v5413 = vsel %vm5384, %v4095, 0
    %v5415 = vsel %vm5384, %v4097, 0
    %v5417 = vsel %vm5384, %v4949, 0
    %v5419 = vsel %vm5384, %v4951, 0
    %v5421 = vsel %vm5384, %v4953, 0
    %v5423 = vsel %vm5384, %v4955, 0
    %v5425 = vsel %vm5384, %v4957, 0
    %v5427 = vsel %vm5384, %v4959, 0
    %v5429 = vsel %vm5384, %v4961, 0
    %v5431 = vsel %vm5384, %v4963, 0
    %v5433 = vsel %vm5384, %v5349, 0
    %v5435 = vsel %vm5384, %v5351, 0
    %v5437 = vsel %vm5384, %v5353, 0
    %v5439 = vsel %vm5384, %v5355, 0
    %v5441 = vsel %vm5384, %v5357, 0
    %v5443 = vsel %vm5384, %v5359, 0
    %v5445 = vsel %vm5384, %v5361, 0
    %v5447 = vsel %vm5384, %v5363, 0
    %vm5449 = vcmask 1041408
    %v5451 = vsel %vm5449, %v5381, 0
    %5453 = vmatprep.subr.bf16.mxu0 0
    %5454 = vmatpush1.bf16.msra.mxu0 %v5379
    %5455 = vmatprep.subr.bf16.mxu0 0
    %5456 = vmatpush1.bf16.msra.mxu0 %v5380
    %5457 = vmatprep.subr.bf16.mxu0 0
    %5458 = vmatpush1.bf16.msra.mxu0 %v5451
    %5459 = vmatprep.subr.bf16.mxu0 0
    %5460 = vmatpush1.bf16.msra.mxu0 0
    %5461 = vmatprep.subr.bf16.mxu0 0
    %5462 = vmatpush1.bf16.msra.mxu0 0
    %5463 = vmatprep.subr.bf16.mxu0 0
    %5464 = vmatpush1.bf16.msra.mxu0 0
    %5465 = vmatprep.subr.bf16.mxu0 0
    %5466 = vmatpush1.bf16.msra.mxu0 0
    %5467 = vmatprep.subr.bf16.mxu0 0
    %5468 = vmatpush1.bf16.msra.mxu0 0
    %5469 = vmatprep.subr.bf16.mxu0 0
    %5470 = vmatpush1.bf16.msra.mxu0 0
    %5471 = vmatprep.subr.bf16.mxu0 0
    %5472 = vmatpush1.bf16.msra.mxu0 0
    %5473 = vmatprep.subr.bf16.mxu0 0
    %5474 = vmatpush1.bf16.msra.mxu0 0
    %5475 = vmatprep.subr.bf16.mxu0 0
    %5476 = vmatpush1.bf16.msra.mxu0 0
    %5477 = vmatprep.subr.bf16.mxu0 0
    %5478 = vmatpush1.bf16.msra.mxu0 0
    %5479 = vmatprep.subr.bf16.mxu0 0
    %5480 = vmatpush1.bf16.msra.mxu0 0
    %5481 = vmatprep.subr.bf16.mxu0 0
    %5482 = vmatpush1.bf16.msra.mxu0 0
    %5483 = vmatprep.subr.bf16.mxu0 0
    %5484 = vmatpush1.bf16.msra.mxu0 0
    %5485 = vmatprep.mubr.bf16.mxu0 0
    %5486 = vmatmul.mubr.bf16.gmra.mrb[0].mxu0 %v5385
    %v5487 = vpop.f32.mrb[0].mxu0
    %v5488 = vadd.f32 0.0, %v5487
    %v5489 = vpop.f32.mrb[0].mxu0
    %v5490 = vpop.f32.mrb[0].mxu0
    %v5491 = vadd.f32 0.0, %v5490
    %v5492 = vpop.f32.mrb[0].mxu0
    %5493 = vmatprep.mubr.bf16.mxu0 0
    %5494 = vmatmul.mubr.bf16.gmra.mrb[0].mxu0 %v5387
    %v5495 = vpop.f32.mrb[0].mxu0
    %v5496 = vadd.f32 0.0, %v5495
    %v5497 = vpop.f32.mrb[0].mxu0
    %v5498 = vpop.f32.mrb[0].mxu0
    %v5499 = vadd.f32 0.0, %v5498
    %v5500 = vpop.f32.mrb[0].mxu0
    %5501 = vmatprep.mubr.bf16.mxu0 0
    %5502 = vmatmul.mubr.bf16.gmra.mrb[0].mxu0 %v5389
    %v5503 = vpop.f32.mrb[0].mxu0
    %v5504 = vadd.f32 0.0, %v5503
    %v5505 = vpop.f32.mrb[0].mxu0
    %v5506 = vpop.f32.mrb[0].mxu0
    %v5507 = vadd.f32 0.0, %v5506
    %v5508 = vpop.f32.mrb[0].mxu0
    %5509 = vmatprep.mubr.bf16.mxu0 0
    %5510 = vmatmul.mubr.bf16.gmra.mrb[0].mxu0 %v5391
    %v5511 = vpop.f32.mrb[0].mxu0
    %v5512 = vadd.f32 0.0, %v5511
    %v5513 = vpop.f32.mrb[0].mxu0
    %v5514 = vpop.f32.mrb[0].mxu0
    %v5515 = vadd.f32 0.0, %v5514
    %v5516 = vpop.f32.mrb[0].mxu0
    %5517 = vmatprep.mubr.bf16.mxu0 0
    %5518 = vmatmul.mubr.bf16.gmra.mrb[0].mxu0 %v5393
    %v5519 = vpop.f32.mrb[0].mxu0
    %v5520 = vadd.f32 0.0, %v5519
    %v5521 = vpop.f32.mrb[0].mxu0
    %v5522 = vpop.f32.mrb[0].mxu0
    %v5523 = vadd.f32 0.0, %v5522
    %v5524 = vpop.f32.mrb[0].mxu0
    %5525 = vmatprep.mubr.bf16.mxu0 0
    %5526 = vmatmul.mubr.bf16.gmra.mrb[0].mxu0 %v5395
    %v5527 = vpop.f32.mrb[0].mxu0
    %v5528 = vadd.f32 0.0, %v5527
    %v5529 = vpop.f32.mrb[0].mxu0
    %v5530 = vpop.f32.mrb[0].mxu0
    %v5531 = vadd.f32 0.0, %v5530
    %v5532 = vpop.f32.mrb[0].mxu0
    %5533 = vmatprep.mubr.bf16.mxu0 0
    %5534 = vmatmul.mubr.bf16.gmra.mrb[0].mxu0 %v5397
    %v5535 = vpop.f32.mrb[0].mxu0
    %v5536 = vadd.f32 0.0, %v5535
    %v5537 = vpop.f32.mrb[0].mxu0
    %v5538 = vpop.f32.mrb[0].mxu0
    %v5539 = vadd.f32 0.0, %v5538
    %v5540 = vpop.f32.mrb[0].mxu0
    %5541 = vmatprep.mubr.bf16.mxu0 0
    %5542 = vmatmul.mubr.bf16.gmra.mrb[0].mxu0 %v5399
    %v5543 = vpop.f32.mrb[0].mxu0
    %v5544 = vadd.f32 0.0, %v5543
    %v5545 = vpop.f32.mrb[0].mxu0
    %v5546 = vpop.f32.mrb[0].mxu0
    %v5547 = vadd.f32 0.0, %v5546
    %v5548 = vpop.f32.mrb[0].mxu0
    %5549 = vmatprep.mubr.bf16.mxu0 0
    %5550 = vmatmul.mubr.bf16.gmra.mrb[0].mxu0 %v5401
    %v5551 = vpop.f32.mrb[0].mxu0
    %v5552 = vadd.f32 0.0, %v5551
    %v5553 = vpop.f32.mrb[0].mxu0
    %v5554 = vpop.f32.mrb[0].mxu0
    %v5555 = vadd.f32 0.0, %v5554
    %v5556 = vpop.f32.mrb[0].mxu0
    %5557 = vmatprep.mubr.bf16.mxu0 0
    %5558 = vmatmul.mubr.bf16.gmra.mrb[0].mxu0 %v5403
    %v5559 = vpop.f32.mrb[0].mxu0
    %v5560 = vadd.f32 0.0, %v5559
    %v5561 = vpop.f32.mrb[0].mxu0
    %v5562 = vpop.f32.mrb[0].mxu0
    %v5563 = vadd.f32 0.0, %v5562
    %v5564 = vpop.f32.mrb[0].mxu0
    %5565 = vmatprep.mubr.bf16.mxu0 0
    %5566 = vmatmul.mubr.bf16.gmra.mrb[0].mxu0 %v5405
    %v5567 = vpop.f32.mrb[0].mxu0
    %v5568 = vadd.f32 0.0, %v5567
    %v5569 = vpop.f32.mrb[0].mxu0
    %v5570 = vpop.f32.mrb[0].mxu0
    %v5571 = vadd.f32 0.0, %v5570
    %v5572 = vpop.f32.mrb[0].mxu0
    %5573 = vmatprep.mubr.bf16.mxu0 0
    %5574 = vmatmul.mubr.bf16.gmra.mrb[0].mxu0 %v5407
    %v5575 = vpop.f32.mrb[0].mxu0
    %v5576 = vadd.f32 0.0, %v5575
    %v5577 = vpop.f32.mrb[0].mxu0
    %v5578 = vpop.f32.mrb[0].mxu0
    %v5579 = vadd.f32 0.0, %v5578
    %v5580 = vpop.f32.mrb[0].mxu0
    %5581 = vmatprep.mubr.bf16.mxu0 0
    %5582 = vmatmul.mubr.bf16.gmra.mrb[0].mxu0 %v5409
    %v5583 = vpop.f32.mrb[0].mxu0
    %v5584 = vadd.f32 0.0, %v5583
    %v5585 = vpop.f32.mrb[0].mxu0
    %v5586 = vpop.f32.mrb[0].mxu0
    %v5587 = vadd.f32 0.0, %v5586
    %v5588 = vpop.f32.mrb[0].mxu0
    %5589 = vmatprep.mubr.bf16.mxu0 0
    %5590 = vmatmul.mubr.bf16.gmra.mrb[0].mxu0 %v5411
    %v5591 = vpop.f32.mrb[0].mxu0
    %v5592 = vadd.f32 0.0, %v5591
    %v5593 = vpop.f32.mrb[0].mxu0
    %v5594 = vpop.f32.mrb[0].mxu0
    %v5595 = vadd.f32 0.0, %v5594
    %v5596 = vpop.f32.mrb[0].mxu0
    %5597 = vmatprep.mubr.bf16.mxu0 0
    %5598 = vmatmul.mubr.bf16.gmra.mrb[0].mxu0 %v5413
    %v5599 = vpop.f32.mrb[0].mxu0
    %v5600 = vadd.f32 0.0, %v5599
    %v5601 = vpop.f32.mrb[0].mxu0
    %v5602 = vpop.f32.mrb[0].mxu0
    %v5603 = vadd.f32 0.0, %v5602
    %v5604 = vpop.f32.mrb[0].mxu0
    %5605 = vmatprep.mubr.bf16.mxu0 0
    %5606 = vmatmul.mubr.bf16.gmra.mrb[0].mxu0 %v5415
    %v5607 = vpop.f32.mrb[0].mxu0
    %v5608 = vadd.f32 0.0, %v5607
    %v5609 = vpop.f32.mrb[0].mxu0
    %v5610 = vpop.f32.mrb[0].mxu0
    %v5611 = vadd.f32 0.0, %v5610
    %v5612 = vpop.f32.mrb[0].mxu0
    %5613 = vmatprep.mubr.bf16.mxu0 0
    %5614 = vmatmul.mubr.bf16.gmra.mrb[0].mxu0 %v5417
    %v5615 = vpop.f32.mrb[0].mxu0
    %v5616 = vadd.f32 0.0, %v5615
    %v5617 = vpop.f32.mrb[0].mxu0
    %v5618 = vpop.f32.mrb[0].mxu0
    %v5619 = vadd.f32 0.0, %v5618
    %v5620 = vpop.f32.mrb[0].mxu0
    %5621 = vmatprep.mubr.bf16.mxu0 0
    %5622 = vmatmul.mubr.bf16.gmra.mrb[0].mxu0 %v5419
    %v5623 = vpop.f32.mrb[0].mxu0
    %v5624 = vadd.f32 0.0, %v5623
    %v5625 = vpop.f32.mrb[0].mxu0
    %v5626 = vpop.f32.mrb[0].mxu0
    %v5627 = vadd.f32 0.0, %v5626
    %v5628 = vpop.f32.mrb[0].mxu0
    %5629 = vmatprep.mubr.bf16.mxu0 0
    %5630 = vmatmul.mubr.bf16.gmra.mrb[0].mxu0 %v5421
    %v5631 = vpop.f32.mrb[0].mxu0
    %v5632 = vadd.f32 0.0, %v5631
    %v5633 = vpop.f32.mrb[0].mxu0
    %v5634 = vpop.f32.mrb[0].mxu0
    %v5635 = vadd.f32 0.0, %v5634
    %v5636 = vpop.f32.mrb[0].mxu0
    %5637 = vmatprep.mubr.bf16.mxu0 0
    %5638 = vmatmul.mubr.bf16.gmra.mrb[0].mxu0 %v5423
    %v5639 = vpop.f32.mrb[0].mxu0
    %v5640 = vadd.f32 0.0, %v5639
    %v5641 = vpop.f32.mrb[0].mxu0
    %v5642 = vpop.f32.mrb[0].mxu0
    %v5643 = vadd.f32 0.0, %v5642
    %v5644 = vpop.f32.mrb[0].mxu0
    %5645 = vmatprep.mubr.bf16.mxu0 0
    %5646 = vmatmul.mubr.bf16.gmra.mrb[0].mxu0 %v5425
    %v5647 = vpop.f32.mrb[0].mxu0
    %v5648 = vadd.f32 0.0, %v5647
    %v5649 = vpop.f32.mrb[0].mxu0
    %v5650 = vpop.f32.mrb[0].mxu0
    %v5651 = vadd.f32 0.0, %v5650
    %v5652 = vpop.f32.mrb[0].mxu0
    %5653 = vmatprep.mubr.bf16.mxu0 0
    %5654 = vmatmul.mubr.bf16.gmra.mrb[0].mxu0 %v5427
    %v5655 = vpop.f32.mrb[0].mxu0
    %v5656 = vadd.f32 0.0, %v5655
    %v5657 = vpop.f32.mrb[0].mxu0
    %v5658 = vpop.f32.mrb[0].mxu0
    %v5659 = vadd.f32 0.0, %v5658
    %v5660 = vpop.f32.mrb[0].mxu0
    %5661 = vmatprep.mubr.bf16.mxu0 0
    %5662 = vmatmul.mubr.bf16.gmra.mrb[0].mxu0 %v5429
    %v5663 = vpop.f32.mrb[0].mxu0
    %v5664 = vadd.f32 0.0, %v5663
    %v5665 = vpop.f32.mrb[0].mxu0
    %v5666 = vpop.f32.mrb[0].mxu0
    %v5667 = vadd.f32 0.0, %v5666
    %v5668 = vpop.f32.mrb[0].mxu0
    %5669 = vmatprep.mubr.bf16.mxu0 0
    %5670 = vmatmul.mubr.bf16.gmra.mrb[0].mxu0 %v5431
    %v5671 = vpop.f32.mrb[0].mxu0
    %v5672 = vadd.f32 0.0, %v5671
    %v5673 = vpop.f32.mrb[0].mxu0
    %v5674 = vpop.f32.mrb[0].mxu0
    %v5675 = vadd.f32 0.0, %v5674
    %v5676 = vpop.f32.mrb[0].mxu0
    %5677 = vmatprep.mubr.bf16.mxu0 0
    %5678 = vmatmul.mubr.bf16.gmra.mrb[0].mxu0 %v5433
    %v5679 = vpop.f32.mrb[0].mxu0
    %v5680 = vadd.f32 0.0, %v5679
    %v5681 = vpop.f32.mrb[0].mxu0
    %v5682 = vpop.f32.mrb[0].mxu0
    %v5683 = vadd.f32 0.0, %v5682
    %v5684 = vpop.f32.mrb[0].mxu0
    %5685 = vmatprep.mubr.bf16.mxu0 0
    %5686 = vmatmul.mubr.bf16.gmra.mrb[0].mxu0 %v5435
    %v5687 = vpop.f32.mrb[0].mxu0
    %v5688 = vadd.f32 0.0, %v5687
    %v5689 = vpop.f32.mrb[0].mxu0
    %v5690 = vpop.f32.mrb[0].mxu0
    %v5691 = vadd.f32 0.0, %v5690
    %v5692 = vpop.f32.mrb[0].mxu0
    %5693 = vmatprep.mubr.bf16.mxu0 0
    %5694 = vmatmul.mubr.bf16.gmra.mrb[0].mxu0 %v5437
    %v5695 = vpop.f32.mrb[0].mxu0
    %v5696 = vadd.f32 0.0, %v5695
    %v5697 = vpop.f32.mrb[0].mxu0
    %v5698 = vpop.f32.mrb[0].mxu0
    %v5699 = vadd.f32 0.0, %v5698
    %v5700 = vpop.f32.mrb[0].mxu0
    %5701 = vmatprep.mubr.bf16.mxu0 0
    %5702 = vmatmul.mubr.bf16.gmra.mrb[0].mxu0 %v5439
    %v5703 = vpop.f32.mrb[0].mxu0
    %v5704 = vadd.f32 0.0, %v5703
    %v5705 = vpop.f32.mrb[0].mxu0
    %v5706 = vpop.f32.mrb[0].mxu0
    %v5707 = vadd.f32 0.0, %v5706
    %v5708 = vpop.f32.mrb[0].mxu0
    %5709 = vmatprep.mubr.bf16.mxu0 0
    %5710 = vmatmul.mubr.bf16.gmra.mrb[0].mxu0 %v5441
    %v5711 = vpop.f32.mrb[0].mxu0
    %v5712 = vadd.f32 0.0, %v5711
    %v5713 = vpop.f32.mrb[0].mxu0
    %v5714 = vpop.f32.mrb[0].mxu0
    %v5715 = vadd.f32 0.0, %v5714
    %v5716 = vpop.f32.mrb[0].mxu0
    %5717 = vmatprep.mubr.bf16.mxu0 0
    %5718 = vmatmul.mubr.bf16.gmra.mrb[0].mxu0 %v5443
    %v5719 = vpop.f32.mrb[0].mxu0
    %v5720 = vadd.f32 0.0, %v5719
    %v5721 = vpop.f32.mrb[0].mxu0
    %v5722 = vpop.f32.mrb[0].mxu0
    %v5723 = vadd.f32 0.0, %v5722
    %v5724 = vpop.f32.mrb[0].mxu0
    %5725 = vmatprep.mubr.bf16.mxu0 0
    %5726 = vmatmul.mubr.bf16.gmra.mrb[0].mxu0 %v5445
    %v5727 = vpop.f32.mrb[0].mxu0
    %v5728 = vadd.f32 0.0, %v5727
    %v5729 = vpop.f32.mrb[0].mxu0
    %v5730 = vpop.f32.mrb[0].mxu0
    %v5731 = vadd.f32 0.0, %v5730
    %v5732 = vpop.f32.mrb[0].mxu0
    %5733 = vmatprep.mubr.bf16.mxu0 0
    %5734 = vmatmul.mubr.bf16.gmra.mrb[0].mxu0 %v5447
    %v5735 = vpop.f32.mrb[0].mxu0
    %v5736 = vadd.f32 0.0, %v5735
    %v5737 = vpop.f32.mrb[0].mxu0
    %v5738 = vpop.f32.mrb[0].mxu0
    %v5739 = vadd.f32 0.0, %v5738
    %v5740 = vpop.f32.mrb[0].mxu0
    %5741 = vdwg.mxu0
    %v5742 = vadd.f32 %v5488, %v5491
    %v5743 = vadd.f32 %v5742, %v5496
    %v5744 = vadd.f32 %v5743, %v5499
    %v5745 = vadd.f32 %v5744, %v5504
    %v5746 = vadd.f32 %v5745, %v5507
    %v5747 = vadd.f32 %v5746, %v5512
    %v5748 = vadd.f32 %v5747, %v5515
    %v5749 = vadd.f32 %v5748, %v5520
    %v5750 = vadd.f32 %v5749, %v5523
    %v5751 = vadd.f32 %v5750, %v5528
    %v5752 = vadd.f32 %v5751, %v5531
    %v5753 = vadd.f32 %v5752, %v5536
    %v5754 = vadd.f32 %v5753, %v5539
    %v5755 = vadd.f32 %v5754, %v5544
    %v5756 = vadd.f32 %v5755, %v5547
    %v5757 = vadd.f32 %v5756, %v5552
    %v5758 = vadd.f32 %v5757, %v5555
    %v5759 = vadd.f32 %v5758, %v5560
    %v5760 = vadd.f32 %v5759, %v5563
    %v5761 = vadd.f32 %v5760, %v5568
    %v5762 = vadd.f32 %v5761, %v5571
    %v5763 = vadd.f32 %v5762, %v5576
    %v5764 = vadd.f32 %v5763, %v5579
    %v5765 = vadd.f32 %v5764, %v5584
    %v5766 = vadd.f32 %v5765, %v5587
    %v5767 = vadd.f32 %v5766, %v5592
    %v5768 = vadd.f32 %v5767, %v5595
    %v5769 = vadd.f32 %v5768, %v5600
    %v5770 = vadd.f32 %v5769, %v5603
    %v5771 = vadd.f32 %v5770, %v5608
    %v5772 = vadd.f32 %v5771, %v5611
    %v5773 = vadd.f32 %v5772, %v5616
    %v5774 = vadd.f32 %v5773, %v5619
    %v5775 = vadd.f32 %v5774, %v5624
    %v5776 = vadd.f32 %v5775, %v5627
    %v5777 = vadd.f32 %v5776, %v5632
    %v5778 = vadd.f32 %v5777, %v5635
    %v5779 = vadd.f32 %v5778, %v5640
    %v5780 = vadd.f32 %v5779, %v5643
    %v5781 = vadd.f32 %v5780, %v5648
    %v5782 = vadd.f32 %v5781, %v5651
    %v5783 = vadd.f32 %v5782, %v5656
    %v5784 = vadd.f32 %v5783, %v5659
    %v5785 = vadd.f32 %v5784, %v5664
    %v5786 = vadd.f32 %v5785, %v5667
    %v5787 = vadd.f32 %v5786, %v5672
    %v5788 = vadd.f32 %v5787, %v5675
    %v5789 = vadd.f32 %v5788, %v5680
    %v5790 = vadd.f32 %v5789, %v5683
    %v5791 = vadd.f32 %v5790, %v5688
    %v5792 = vadd.f32 %v5791, %v5691
    %v5793 = vadd.f32 %v5792, %v5696
    %v5794 = vadd.f32 %v5793, %v5699
    %v5795 = vadd.f32 %v5794, %v5704
    %v5796 = vadd.f32 %v5795, %v5707
    %v5797 = vadd.f32 %v5796, %v5712
    %v5798 = vadd.f32 %v5797, %v5715
    %v5799 = vadd.f32 %v5798, %v5720
    %v5800 = vadd.f32 %v5799, %v5723
    %v5801 = vadd.f32 %v5800, %v5728
    %v5802 = vadd.f32 %v5801, %v5731
    %v5803 = vadd.f32 %v5802, %v5736
    %v5804 = vadd.f32 %v5803, %v5739
    %v5805 = vrot.slane %v5804, 4
    %v5806 = vadd.f32 %v5804, %v5805
    %v5807 = vrot.slane %v5806, 2
    %v5808 = vadd.f32 %v5806, %v5807
    %v5809 = vrot.slane %v5808, 1
    %v5810 = vadd.f32 %v5808, %v5809
    %v5811 = vmul.f32 %v5810, 0.001953125
    %v5812 = vmul.f32 %v5488, %v5488
    %v5813 = vmul.f32 %v5491, %v5491
    %v5814 = vmul.f32 %v5496, %v5496
    %v5815 = vmul.f32 %v5499, %v5499
    %v5816 = vmul.f32 %v5504, %v5504
    %v5817 = vmul.f32 %v5507, %v5507
    %v5818 = vmul.f32 %v5512, %v5512
    %v5819 = vmul.f32 %v5515, %v5515
    %v5820 = vmul.f32 %v5520, %v5520
    %v5821 = vmul.f32 %v5523, %v5523
    %v5822 = vmul.f32 %v5528, %v5528
    %v5823 = vmul.f32 %v5531, %v5531
    %v5824 = vmul.f32 %v5536, %v5536
    %v5825 = vmul.f32 %v5539, %v5539
    %v5826 = vmul.f32 %v5544, %v5544
    %v5827 = vmul.f32 %v5547, %v5547
    %v5828 = vmul.f32 %v5552, %v5552
    %v5829 = vmul.f32 %v5555, %v5555
    %v5830 = vmul.f32 %v5560, %v5560
    %v5831 = vmul.f32 %v5563, %v5563
    %v5832 = vmul.f32 %v5568, %v5568
    %v5833 = vmul.f32 %v5571, %v5571
    %v5834 = vmul.f32 %v5576, %v5576
    %v5835 = vmul.f32 %v5579, %v5579
    %v5836 = vmul.f32 %v5584, %v5584
    %v5837 = vmul.f32 %v5587, %v5587
    %v5838 = vmul.f32 %v5592, %v5592
    %v5839 = vmul.f32 %v5595, %v5595
    %v5840 = vmul.f32 %v5600, %v5600
    %v5841 = vmul.f32 %v5603, %v5603
    %v5842 = vmul.f32 %v5608, %v5608
    %v5843 = vmul.f32 %v5611, %v5611
    %v5844 = vmul.f32 %v5616, %v5616
    %v5845 = vmul.f32 %v5619, %v5619
    %v5846 = vmul.f32 %v5624, %v5624
    %v5847 = vmul.f32 %v5627, %v5627
    %v5848 = vmul.f32 %v5632, %v5632
    %v5849 = vmul.f32 %v5635, %v5635
    %v5850 = vmul.f32 %v5640, %v5640
    %v5851 = vmul.f32 %v5643, %v5643
    %v5852 = vmul.f32 %v5648, %v5648
    %v5853 = vmul.f32 %v5651, %v5651
    %v5854 = vmul.f32 %v5656, %v5656
    %v5855 = vmul.f32 %v5659, %v5659
    %v5856 = vmul.f32 %v5664, %v5664
    %v5857 = vmul.f32 %v5667, %v5667
    %v5858 = vmul.f32 %v5672, %v5672
    %v5859 = vmul.f32 %v5675, %v5675
    %v5860 = vmul.f32 %v5680, %v5680
    %v5861 = vmul.f32 %v5683, %v5683
    %v5862 = vmul.f32 %v5688, %v5688
    %v5863 = vmul.f32 %v5691, %v5691
    %v5864 = vmul.f32 %v5696, %v5696
    %v5865 = vmul.f32 %v5699, %v5699
    %v5866 = vmul.f32 %v5704, %v5704
    %v5867 = vmul.f32 %v5707, %v5707
    %v5868 = vmul.f32 %v5712, %v5712
    %v5869 = vmul.f32 %v5715, %v5715
    %v5870 = vmul.f32 %v5720, %v5720
    %v5871 = vmul.f32 %v5723, %v5723
    %v5872 = vmul.f32 %v5728, %v5728
    %v5873 = vmul.f32 %v5731, %v5731
    %v5874 = vmul.f32 %v5736, %v5736
    %v5875 = vmul.f32 %v5739, %v5739
    %v5876 = vadd.f32 %v5812, %v5813
    %v5877 = vadd.f32 %v5876, %v5814
    %v5878 = vadd.f32 %v5877, %v5815
    %v5879 = vadd.f32 %v5878, %v5816
    %v5880 = vadd.f32 %v5879, %v5817
    %v5881 = vadd.f32 %v5880, %v5818
    %v5882 = vadd.f32 %v5881, %v5819
    %v5883 = vadd.f32 %v5882, %v5820
    %v5884 = vadd.f32 %v5883, %v5821
    %v5885 = vadd.f32 %v5884, %v5822
    %v5886 = vadd.f32 %v5885, %v5823
    %v5887 = vadd.f32 %v5886, %v5824
    %v5888 = vadd.f32 %v5887, %v5825
    %v5889 = vadd.f32 %v5888, %v5826
    %v5890 = vadd.f32 %v5889, %v5827
    %v5891 = vadd.f32 %v5890, %v5828
    %v5892 = vadd.f32 %v5891, %v5829
    %v5893 = vadd.f32 %v5892, %v5830
    %v5894 = vadd.f32 %v5893, %v5831
    %v5895 = vadd.f32 %v5894, %v5832
    %v5896 = vadd.f32 %v5895, %v5833
    %v5897 = vadd.f32 %v5896, %v5834
    %v5898 = vadd.f32 %v5897, %v5835
    %v5899 = vadd.f32 %v5898, %v5836
    %v5900 = vadd.f32 %v5899, %v5837
    %v5901 = vadd.f32 %v5900, %v5838
    %v5902 = vadd.f32 %v5901, %v5839
    %v5903 = vadd.f32 %v5902, %v5840
    %v5904 = vadd.f32 %v5903, %v5841
    %v5905 = vadd.f32 %v5904, %v5842
    %v5906 = vadd.f32 %v5905, %v5843
    %v5907 = vadd.f32 %v5906, %v5844
    %v5908 = vadd.f32 %v5907, %v5845
    %v5909 = vadd.f32 %v5908, %v5846
    %v5910 = vadd.f32 %v5909, %v5847
    %v5911 = vadd.f32 %v5910, %v5848
    %v5912 = vadd.f32 %v5911, %v5849
    %v5913 = vadd.f32 %v5912, %v5850
    %v5914 = vadd.f32 %v5913, %v5851
    %v5915 = vadd.f32 %v5914, %v5852
    %v5916 = vadd.f32 %v5915, %v5853
    %v5917 = vadd.f32 %v5916, %v5854
    %v5918 = vadd.f32 %v5917, %v5855
    %v5919 = vadd.f32 %v5918, %v5856
    %v5920 = vadd.f32 %v5919, %v5857
    %v5921 = vadd.f32 %v5920, %v5858
    %v5922 = vadd.f32 %v5921, %v5859
    %v5923 = vadd.f32 %v5922, %v5860
    %v5924 = vadd.f32 %v5923, %v5861
    %v5925 = vadd.f32 %v5924, %v5862
    %v5926 = vadd.f32 %v5925, %v5863
    %v5927 = vadd.f32 %v5926, %v5864
    %v5928 = vadd.f32 %v5927, %v5865
    %v5929 = vadd.f32 %v5928, %v5866
    %v5930 = vadd.f32 %v5929, %v5867
    %v5931 = vadd.f32 %v5930, %v5868
    %v5932 = vadd.f32 %v5931, %v5869
    %v5933 = vadd.f32 %v5932, %v5870
    %v5934 = vadd.f32 %v5933, %v5871
    %v5935 = vadd.f32 %v5934, %v5872
    %v5936 = vadd.f32 %v5935, %v5873
    %v5937 = vadd.f32 %v5936, %v5874
    %v5938 = vadd.f32 %v5937, %v5875
    %v5939 = vrot.slane %v5938, 4
    %v5940 = vadd.f32 %v5938, %v5939
    %v5941 = vrot.slane %v5940, 2
    %v5942 = vadd.f32 %v5940, %v5941
    %v5943 = vrot.slane %v5942, 1
    %v5944 = vadd.f32 %v5942, %v5943
    %v5945 = vmul.f32 %v5944, 0.001953125
    %v5946 = vmul.f32 %v5811, %v5811
    %v5947 = vsub.f32 %v5945, %v5946
    %v5948 = vld [vmem:[#allocation10] sm:$0x1]
    %v5949 = vadd.f32 %v5947, 1e-05
    %v5950 = vrsqrt.pop %v5949
    %v5951 = vmul.f32 %v5948, %v5950
    %v5952 = vld [vmem:[#allocation12] sm:$0x1]
    %v5953 = vmul.f32 %v5811, %v5951
    %v5954 = vsub.f32 %v5952, %v5953
    %v5956 = vlaneseq
    %v5957 = vshrl.u32 %v5956, 7
    %v5958 = vsub.s32 0, %v5957
    %v5959 = vrot.slane %v5951, %v5958
    %v5961 = vmul.f32 %v5488, %v5959
    %v5962 = vmul.f32 %v5491, %v5959
    %v5963 = vmul.f32 %v5496, %v5959
    %v5964 = vmul.f32 %v5499, %v5959
    %v5965 = vmul.f32 %v5504, %v5959
    %v5966 = vmul.f32 %v5507, %v5959
    %v5967 = vmul.f32 %v5512, %v5959
    %v5968 = vmul.f32 %v5515, %v5959
    %v5969 = vmul.f32 %v5520, %v5959
    %v5970 = vmul.f32 %v5523, %v5959
    %v5971 = vmul.f32 %v5528, %v5959
    %v5972 = vmul.f32 %v5531, %v5959
    %v5973 = vmul.f32 %v5536, %v5959
    %v5974 = vmul.f32 %v5539, %v5959
    %v5975 = vmul.f32 %v5544, %v5959
    %v5976 = vmul.f32 %v5547, %v5959
    %v5977 = vmul.f32 %v5552, %v5959
    %v5978 = vmul.f32 %v5555, %v5959
    %v5979 = vmul.f32 %v5560, %v5959
    %v5980 = vmul.f32 %v5563, %v5959
    %v5981 = vmul.f32 %v5568, %v5959
    %v5982 = vmul.f32 %v5571, %v5959
    %v5983 = vmul.f32 %v5576, %v5959
    %v5984 = vmul.f32 %v5579, %v5959
    %v5985 = vmul.f32 %v5584, %v5959
    %v5986 = vmul.f32 %v5587, %v5959
    %v5987 = vmul.f32 %v5592, %v5959
    %v5988 = vmul.f32 %v5595, %v5959
    %v5989 = vmul.f32 %v5600, %v5959
    %v5990 = vmul.f32 %v5603, %v5959
    %v5991 = vmul.f32 %v5608, %v5959
    %v5992 = vmul.f32 %v5611, %v5959
    %v5993 = vmul.f32 %v5616, %v5959
    %v5994 = vmul.f32 %v5619, %v5959
    %v5995 = vmul.f32 %v5624, %v5959
    %v5996 = vmul.f32 %v5627, %v5959
    %v5997 = vmul.f32 %v5632, %v5959
    %v5998 = vmul.f32 %v5635, %v5959
    %v5999 = vmul.f32 %v5640, %v5959
    %v6000 = vmul.f32 %v5643, %v5959
    %v6001 = vmul.f32 %v5648, %v5959
    %v6002 = vmul.f32 %v5651, %v5959
    %v6003 = vmul.f32 %v5656, %v5959
    %v6004 = vmul.f32 %v5659, %v5959
    %v6005 = vmul.f32 %v5664, %v5959
    %v6006 = vmul.f32 %v5667, %v5959
    %v6007 = vmul.f32 %v5672, %v5959
    %v6008 = vmul.f32 %v5675, %v5959
    %v6009 = vmul.f32 %v5680, %v5959
    %v6010 = vmul.f32 %v5683, %v5959
    %v6011 = vmul.f32 %v5688, %v5959
    %v6012 = vmul.f32 %v5691, %v5959
    %v6013 = vmul.f32 %v5696, %v5959
    %v6014 = vmul.f32 %v5699, %v5959
    %v6015 = vmul.f32 %v5704, %v5959
    %v6016 = vmul.f32 %v5707, %v5959
    %v6017 = vmul.f32 %v5712, %v5959
    %v6018 = vmul.f32 %v5715, %v5959
    %v6019 = vmul.f32 %v5720, %v5959
    %v6020 = vmul.f32 %v5723, %v5959
    %v6021 = vmul.f32 %v5728, %v5959
    %v6022 = vmul.f32 %v5731, %v5959
    %v6023 = vmul.f32 %v5736, %v5959
    %v6024 = vmul.f32 %v5739, %v5959
    %v6026 = vlaneseq
    %v6027 = vshrl.u32 %v6026, 7
    %v6028 = vsub.s32 0, %v6027
    %v6029 = vrot.slane %v5954, %v6028
    %v6031 = vadd.f32 %v5961, %v6029
    %v6032 = vadd.f32 %v5962, %v6029
    %v6033 = vadd.f32 %v5963, %v6029
    %v6034 = vadd.f32 %v5964, %v6029
    %v6035 = vadd.f32 %v5965, %v6029
    %v6036 = vadd.f32 %v5966, %v6029
    %v6037 = vadd.f32 %v5967, %v6029
    %v6038 = vadd.f32 %v5968, %v6029
    %v6039 = vadd.f32 %v5969, %v6029
    %v6040 = vadd.f32 %v5970, %v6029
    %v6041 = vadd.f32 %v5971, %v6029
    %v6042 = vadd.f32 %v5972, %v6029
    %v6043 = vadd.f32 %v5973, %v6029
    %v6044 = vadd.f32 %v5974, %v6029
    %v6045 = vadd.f32 %v5975, %v6029
    %v6046 = vadd.f32 %v5976, %v6029
    %v6047 = vadd.f32 %v5977, %v6029
    %v6048 = vadd.f32 %v5978, %v6029
    %v6049 = vadd.f32 %v5979, %v6029
    %v6050 = vadd.f32 %v5980, %v6029
    %v6051 = vadd.f32 %v5981, %v6029
    %v6052 = vadd.f32 %v5982, %v6029
    %v6053 = vadd.f32 %v5983, %v6029
    %v6054 = vadd.f32 %v5984, %v6029
    %v6055 = vadd.f32 %v5985, %v6029
    %v6056 = vadd.f32 %v5986, %v6029
    %v6057 = vadd.f32 %v5987, %v6029
    %v6058 = vadd.f32 %v5988, %v6029
    %v6059 = vadd.f32 %v5989, %v6029
    %v6060 = vadd.f32 %v5990, %v6029
    %v6061 = vadd.f32 %v5991, %v6029
    %v6062 = vadd.f32 %v5992, %v6029
    %v6063 = vadd.f32 %v5993, %v6029
    %v6064 = vadd.f32 %v5994, %v6029
    %v6065 = vadd.f32 %v5995, %v6029
    %v6066 = vadd.f32 %v5996, %v6029
    %v6067 = vadd.f32 %v5997, %v6029
    %v6068 = vadd.f32 %v5998, %v6029
    %v6069 = vadd.f32 %v5999, %v6029
    %v6070 = vadd.f32 %v6000, %v6029
    %v6071 = vadd.f32 %v6001, %v6029
    %v6072 = vadd.f32 %v6002, %v6029
    %v6073 = vadd.f32 %v6003, %v6029
    %v6074 = vadd.f32 %v6004, %v6029
    %v6075 = vadd.f32 %v6005, %v6029
    %v6076 = vadd.f32 %v6006, %v6029
    %v6077 = vadd.f32 %v6007, %v6029
    %v6078 = vadd.f32 %v6008, %v6029
    %v6079 = vadd.f32 %v6009, %v6029
    %v6080 = vadd.f32 %v6010, %v6029
    %v6081 = vadd.f32 %v6011, %v6029
    %v6082 = vadd.f32 %v6012, %v6029
    %v6083 = vadd.f32 %v6013, %v6029
    %v6084 = vadd.f32 %v6014, %v6029
    %v6085 = vadd.f32 %v6015, %v6029
    %v6086 = vadd.f32 %v6016, %v6029
    %v6087 = vadd.f32 %v6017, %v6029
    %v6088 = vadd.f32 %v6018, %v6029
    %v6089 = vadd.f32 %v6019, %v6029
    %v6090 = vadd.f32 %v6020, %v6029
    %v6091 = vadd.f32 %v6021, %v6029
    %v6092 = vadd.f32 %v6022, %v6029
    %v6093 = vadd.f32 %v6023, %v6029
    %v6094 = vadd.f32 %v6024, %v6029
    %v6095 = vmax.f32 %v6031, 0.0
    %v6096 = vmax.f32 %v6032, 0.0
    %v6097 = vmax.f32 %v6033, 0.0
    %v6098 = vmax.f32 %v6034, 0.0
    %v6099 = vmax.f32 %v6035, 0.0
    %v6100 = vmax.f32 %v6036, 0.0
    %v6101 = vmax.f32 %v6037, 0.0
    %v6102 = vmax.f32 %v6038, 0.0
    %v6103 = vmax.f32 %v6039, 0.0
    %v6104 = vmax.f32 %v6040, 0.0
    %v6105 = vmax.f32 %v6041, 0.0
    %v6106 = vmax.f32 %v6042, 0.0
    %v6107 = vmax.f32 %v6043, 0.0
    %v6108 = vmax.f32 %v6044, 0.0
    %v6109 = vmax.f32 %v6045, 0.0
    %v6110 = vmax.f32 %v6046, 0.0
    %v6111 = vmax.f32 %v6047, 0.0
    %v6112 = vmax.f32 %v6048, 0.0
    %v6113 = vmax.f32 %v6049, 0.0
    %v6114 = vmax.f32 %v6050, 0.0
    %v6115 = vmax.f32 %v6051, 0.0
    %v6116 = vmax.f32 %v6052, 0.0
    %v6117 = vmax.f32 %v6053, 0.0
    %v6118 = vmax.f32 %v6054, 0.0
    %v6119 = vmax.f32 %v6055, 0.0
    %v6120 = vmax.f32 %v6056, 0.0
    %v6121 = vmax.f32 %v6057, 0.0
    %v6122 = vmax.f32 %v6058, 0.0
    %v6123 = vmax.f32 %v6059, 0.0
    %v6124 = vmax.f32 %v6060, 0.0
    %v6125 = vmax.f32 %v6061, 0.0
    %v6126 = vmax.f32 %v6062, 0.0
    %v6127 = vmax.f32 %v6063, 0.0
    %v6128 = vmax.f32 %v6064, 0.0
    %v6129 = vmax.f32 %v6065, 0.0
    %v6130 = vmax.f32 %v6066, 0.0
    %v6131 = vmax.f32 %v6067, 0.0
    %v6132 = vmax.f32 %v6068, 0.0
    %v6133 = vmax.f32 %v6069, 0.0
    %v6134 = vmax.f32 %v6070, 0.0
    %v6135 = vmax.f32 %v6071, 0.0
    %v6136 = vmax.f32 %v6072, 0.0
    %v6137 = vmax.f32 %v6073, 0.0
    %v6138 = vmax.f32 %v6074, 0.0
    %v6139 = vmax.f32 %v6075, 0.0
    %v6140 = vmax.f32 %v6076, 0.0
    %v6141 = vmax.f32 %v6077, 0.0
    %v6142 = vmax.f32 %v6078, 0.0
    %v6143 = vmax.f32 %v6079, 0.0
    %v6144 = vmax.f32 %v6080, 0.0
    %v6145 = vmax.f32 %v6081, 0.0
    %v6146 = vmax.f32 %v6082, 0.0
    %v6147 = vmax.f32 %v6083, 0.0
    %v6148 = vmax.f32 %v6084, 0.0
    %v6149 = vmax.f32 %v6085, 0.0
    %v6150 = vmax.f32 %v6086, 0.0
    %v6151 = vmax.f32 %v6087, 0.0
    %v6152 = vmax.f32 %v6088, 0.0
    %v6153 = vmax.f32 %v6089, 0.0
    %v6154 = vmax.f32 %v6090, 0.0
    %v6155 = vmax.f32 %v6091, 0.0
    %v6156 = vmax.f32 %v6092, 0.0
    %v6157 = vmax.f32 %v6093, 0.0
    %v6158 = vmax.f32 %v6094, 0.0
    %6159 = vst [vmem:[#allocation3] sm:$0xf] 0
    %6160 = vst [vmem:[#allocation3 + $0x4] sm:$0x1] 0
    %6161 = vst [vmem:[#allocation3 + $0x8] sm:$0xf] 0
    %6162 = vst [vmem:[#allocation3 + $0xc] sm:$0x1] 0
    %6163 = vst [vmem:[#allocation3 + $0x10] sm:$0xf] 0
    %6164 = vst [vmem:[#allocation3 + $0x14] sm:$0x1] 0
    %6165 = vst [vmem:[#allocation3 + $0x18] sm:$0xf] 0
    %6166 = vst [vmem:[#allocation3 + $0x1c] sm:$0x1] 0
    %6167 = vst [vmem:[#allocation3 + $0x20] sm:$0xf] 0
    %6168 = vst [vmem:[#allocation3 + $0x24] sm:$0x1] 0
    %6169 = vst [vmem:[#allocation3 + $0x28] sm:$0xf] 0
    %6170 = vst [vmem:[#allocation3 + $0x2c] sm:$0x1] 0
    %6171 = vst [vmem:[#allocation3 + $0x30] sm:$0xf] 0
    %6172 = vst [vmem:[#allocation3 + $0x34] sm:$0x1] 0
    %6173 = vst [vmem:[#allocation3 + $0x38] sm:$0xf] 0
    %6174 = vst [vmem:[#allocation3 + $0x3c] sm:$0x1] 0
    %6175 = vst [vmem:[#allocation3 + $0x40] sm:$0xf] 0
    %6176 = vst [vmem:[#allocation3 + $0x44] sm:$0x1] 0
    %6177 = vst [vmem:[#allocation3 + $0x48] sm:$0xf] 0
    %6178 = vst [vmem:[#allocation3 + $0x4c] sm:$0x1] 0
    %6179 = vst [vmem:[#allocation3 + $0x50] sm:$0xf] 0
    %6180 = vst [vmem:[#allocation3 + $0x54] sm:$0x1] 0
    %6181 = vst [vmem:[#allocation3 + $0x58] sm:$0xf] 0
    %6182 = vst [vmem:[#allocation3 + $0x5c] sm:$0x1] 0
    %6183 = vst [vmem:[#allocation3 + $0x60] sm:$0xf] 0
    %6184 = vst [vmem:[#allocation3 + $0x64] sm:$0x1] 0
    %6185 = vst [vmem:[#allocation3 + $0x68] sm:$0xf] 0
    %6186 = vst [vmem:[#allocation3 + $0x6c] sm:$0x1] 0
    %6187 = vst [vmem:[#allocation3 + $0x70] sm:$0xf] 0
    %6188 = vst [vmem:[#allocation3 + $0x74] sm:$0x1] 0
    %6189 = vst [vmem:[#allocation3 + $0x78] sm:$0xf] 0
    %6190 = vst [vmem:[#allocation3 + $0x7c] sm:$0x1] 0
    %6191 = vst [vmem:[#allocation3 + $0x80] sm:$0xf] 0
    %6192 = vst [vmem:[#allocation3 + $0x84] sm:$0x1] 0
    %6193 = vst [vmem:[#allocation3 + $0x88] sm:$0xf] 0
    %6194 = vst [vmem:[#allocation3 + $0x8c] sm:$0x1] 0
    %6195 = vst [vmem:[#allocation3 + $0x90] sm:$0xf] 0
    %6196 = vst [vmem:[#allocation3 + $0x94] sm:$0x1] 0
    %6197 = vst [vmem:[#allocation3 + $0x98] sm:$0xf] 0
    %6198 = vst [vmem:[#allocation3 + $0x9c] sm:$0x1] 0
    %6199 = vst [vmem:[#allocation3 + $0xa0] sm:$0xf] 0
    %6200 = vst [vmem:[#allocation3 + $0xa4] sm:$0x1] 0
    %6201 = vst [vmem:[#allocation3 + $0xa8] sm:$0xf] 0
    %6202 = vst [vmem:[#allocation3 + $0xac] sm:$0x1] 0
    %6203 = vst [vmem:[#allocation3 + $0xb0] sm:$0xf] 0
    %6204 = vst [vmem:[#allocation3 + $0xb4] sm:$0x1] 0
    %6205 = vst [vmem:[#allocation3 + $0xb8] sm:$0xf] 0
    %6206 = vst [vmem:[#allocation3 + $0xbc] sm:$0x1] 0
    %6207 = vst [vmem:[#allocation3 + $0xc0] sm:$0xf] 0
    %6208 = vst [vmem:[#allocation3 + $0xc4] sm:$0x1] 0
    %6209 = vst [vmem:[#allocation3 + $0xc8] sm:$0xf] 0
    %6210 = vst [vmem:[#allocation3 + $0xcc] sm:$0x1] 0
    %6211 = vst [vmem:[#allocation3 + $0xd0] sm:$0xf] 0
    %6212 = vst [vmem:[#allocation3 + $0xd4] sm:$0x1] 0
    %6213 = vst [vmem:[#allocation3 + $0xd8] sm:$0xf] 0
    %6214 = vst [vmem:[#allocation3 + $0xdc] sm:$0x1] 0
    %6215 = vst [vmem:[#allocation3 + $0xe0] sm:$0xf] 0
    %6216 = vst [vmem:[#allocation3 + $0xe4] sm:$0x1] 0
    %6217 = vst [vmem:[#allocation3 + $0xe8] sm:$0xf] 0
    %6218 = vst [vmem:[#allocation3 + $0xec] sm:$0x1] 0
    %6219 = vst [vmem:[#allocation3 + $0xf0] sm:$0xf] 0
    %6220 = vst [vmem:[#allocation3 + $0xf4] sm:$0x1] 0
    %6221 = vst [vmem:[#allocation3 + $0xf8] sm:$0xf] 0
    %6222 = vst [vmem:[#allocation3 + $0xfc] sm:$0x1] 0
    %6223 = vst [vmem:[#allocation3 + $0x100] sm:$0xf] 0
    %6224 = vst [vmem:[#allocation3 + $0x104] sm:$0x1] 0
    %6225 = vst [vmem:[#allocation3 + $0x108] sm:$0xf] 0
    %6226 = vst [vmem:[#allocation3 + $0x10c] sm:$0x1] 0
    %6227 = vst [vmem:[#allocation3 + $0x110] sm:$0xf] 0
    %6228 = vst [vmem:[#allocation3 + $0x114] sm:$0x1] 0
    %6229 = vst [vmem:[#allocation3 + $0x118] sm:$0xf] 0
    %6230 = vst [vmem:[#allocation3 + $0x11c] sm:$0x1] 0
    %6231 = vst [vmem:[#allocation3 + $0x120] sm:$0xf] 0
    %6232 = vst [vmem:[#allocation3 + $0x124] sm:$0x1] 0
    %6233 = vst [vmem:[#allocation3 + $0x128] sm:$0xf] 0
    %6234 = vst [vmem:[#allocation3 + $0x12c] sm:$0x1] 0
    %6235 = vst [vmem:[#allocation3 + $0x130] sm:$0xf] 0
    %6236 = vst [vmem:[#allocation3 + $0x134] sm:$0x1] 0
    %6237 = vst [vmem:[#allocation3 + $0x138] sm:$0xf] 0
    %6238 = vst [vmem:[#allocation3 + $0x13c] sm:$0x1] 0
    %6239 = vst [vmem:[#allocation3 + $0x140] sm:$0xf] 0
    %6240 = vst [vmem:[#allocation3 + $0x144] sm:$0x1] 0
    %6241 = vst [vmem:[#allocation3 + $0x148] sm:$0xf] 0
    %6242 = vst [vmem:[#allocation3 + $0x14c] sm:$0x1] 0
    %6243 = vst [vmem:[#allocation3 + $0x150] sm:$0xf] 0
    %6244 = vst [vmem:[#allocation3 + $0x154] sm:$0x1] 0
    %6245 = vst [vmem:[#allocation3 + $0x158] sm:$0xf] 0
    %6246 = vst [vmem:[#allocation3 + $0x15c] sm:$0x1] 0
    %6247 = vst [vmem:[#allocation3 + $0x160] sm:$0xf] 0
    %6248 = vst [vmem:[#allocation3 + $0x164] sm:$0x1] 0
    %6249 = vst [vmem:[#allocation3 + $0x168] sm:$0xf] 0
    %6250 = vst [vmem:[#allocation3 + $0x16c] sm:$0x1] 0
    %6251 = vst [vmem:[#allocation3 + $0x170] sm:$0xf] 0
    %6252 = vst [vmem:[#allocation3 + $0x174] sm:$0x1] 0
    %6253 = vst [vmem:[#allocation3 + $0x178] sm:$0xf] 0
    %6254 = vst [vmem:[#allocation3 + $0x17c] sm:$0x1] 0
    %6255 = vst [vmem:[#allocation3 + $0x180] sm:$0xf] 0
    %6256 = vst [vmem:[#allocation3 + $0x184] sm:$0x1] 0
    %6257 = vst [vmem:[#allocation3 + $0x188] sm:$0xf] 0
    %6258 = vst [vmem:[#allocation3 + $0x18c] sm:$0x1] 0
    %6259 = vst [vmem:[#allocation3 + $0x190] sm:$0xf] 0
    %6260 = vst [vmem:[#allocation3 + $0x194] sm:$0x1] 0
    %6261 = vst [vmem:[#allocation3 + $0x198] sm:$0xf] 0
    %6262 = vst [vmem:[#allocation3 + $0x19c] sm:$0x1] 0
    %6263 = vst [vmem:[#allocation3 + $0x1a0] sm:$0xf] 0
    %6264 = vst [vmem:[#allocation3 + $0x1a4] sm:$0x1] 0
    %6265 = vst [vmem:[#allocation3 + $0x1a8] sm:$0xf] 0
    %6266 = vst [vmem:[#allocation3 + $0x1ac] sm:$0x1] 0
    %6267 = vst [vmem:[#allocation3 + $0x1b0] sm:$0xf] 0
    %6268 = vst [vmem:[#allocation3 + $0x1b4] sm:$0x1] 0
    %6269 = vst [vmem:[#allocation3 + $0x1b8] sm:$0xf] 0
    %6270 = vst [vmem:[#allocation3 + $0x1bc] sm:$0x1] 0
    %6271 = vst [vmem:[#allocation3 + $0x1c0] sm:$0xf] 0
    %6272 = vst [vmem:[#allocation3 + $0x1c4] sm:$0x1] 0
    %6273 = vst [vmem:[#allocation3 + $0x1c8] sm:$0xf] 0
    %6274 = vst [vmem:[#allocation3 + $0x1cc] sm:$0x1] 0
    %6275 = vst [vmem:[#allocation3 + $0x1d0] sm:$0xf] 0
    %6276 = vst [vmem:[#allocation3 + $0x1d4] sm:$0x1] 0
    %6277 = vst [vmem:[#allocation3 + $0x1d8] sm:$0xf] 0
    %6278 = vst [vmem:[#allocation3 + $0x1dc] sm:$0x1] 0
    %6279 = vst [vmem:[#allocation3 + $0x1e0] sm:$0xf] 0
    %6280 = vst [vmem:[#allocation3 + $0x1e4] sm:$0x1] 0
    %6281 = vst [vmem:[#allocation3 + $0x1e8] sm:$0xf] 0
    %6282 = vst [vmem:[#allocation3 + $0x1ec] sm:$0x1] 0
    %6283 = vst [vmem:[#allocation3 + $0x1f0] sm:$0xf] 0
    %6284 = vst [vmem:[#allocation3 + $0x1f4] sm:$0x1] 0
    %6285 = vst [vmem:[#allocation3 + $0x1f8] sm:$0xf] 0
    %6286 = vst [vmem:[#allocation3 + $0x1fc] sm:$0x1] 0
    %6287 = vst [vmem:[#allocation3 + $0x200] sm:$0xf] 0
    %6288 = vst [vmem:[#allocation3 + $0x204] sm:$0x1] 0
    %6289 = vst [vmem:[#allocation3 + $0x208] sm:$0xf] 0
    %6290 = vst [vmem:[#allocation3 + $0x20c] sm:$0x1] 0
    %6291 = vst [vmem:[#allocation3 + $0x210] sm:$0xf] 0
    %6292 = vst [vmem:[#allocation3 + $0x214] sm:$0x1] 0
    %6293 = vst [vmem:[#allocation3 + $0x218] sm:$0xf] 0
    %6294 = vst [vmem:[#allocation3 + $0x21c] sm:$0x1] 0
    %6295 = vst [vmem:[#allocation3 + $0x220] sm:$0xf] 0
    %6296 = vst [vmem:[#allocation3 + $0x224] sm:$0x1] 0
    %6297 = vst [vmem:[#allocation3 + $0x228] sm:$0xf] 0
    %6298 = vst [vmem:[#allocation3 + $0x22c] sm:$0x1] 0
    %6299 = vst [vmem:[#allocation3 + $0x230] sm:$0xf] 0
    %6300 = vst [vmem:[#allocation3 + $0x234] sm:$0x1] 0
    %6301 = vst [vmem:[#allocation3 + $0x238] sm:$0xf] 0
    %6302 = vst [vmem:[#allocation3 + $0x23c] sm:$0x1] 0
    %6303 = vst [vmem:[#allocation3 + $0x240] sm:$0xf] 0
    %6304 = vst [vmem:[#allocation3 + $0x244] sm:$0x1] 0
    %6305 = vst [vmem:[#allocation3 + $0x248] sm:$0xf] 0
    %6306 = vst [vmem:[#allocation3 + $0x24c] sm:$0x1] 0
    %6307 = vst [vmem:[#allocation3 + $0x250] sm:$0xf] 0
    %6308 = vst [vmem:[#allocation3 + $0x254] sm:$0x1] 0
    %6309 = vst [vmem:[#allocation3 + $0x258] sm:$0xf] 0
    %6310 = vst [vmem:[#allocation3 + $0x25c] sm:$0x1] 0
    %6311 = vst [vmem:[#allocation3 + $0x260] sm:$0xf] 0
    %6312 = vst [vmem:[#allocation3 + $0x264] sm:$0x1] 0
    %6313 = vst [vmem:[#allocation3 + $0x268] sm:$0xf] 0
    %6314 = vst [vmem:[#allocation3 + $0x26c] sm:$0x1] 0
    %6315 = vst [vmem:[#allocation3 + $0x270] sm:$0xf] 0
    %6316 = vst [vmem:[#allocation3 + $0x274] sm:$0x1] 0
    %6317 = vst [vmem:[#allocation3 + $0x278] sm:$0xf] 0
    %6318 = vst [vmem:[#allocation3 + $0x27c] sm:$0x1] 0
    %v6319 = vpack.c.bf16 %v6096, %v6095
    %v6320 = vpack.c.bf16 %v6098, %v6097
    %v6321 = vpack.c.bf16 %v6100, %v6099
    %v6322 = vpack.c.bf16 %v6102, %v6101
    %v6323 = vpack.c.bf16 %v6104, %v6103
    %v6324 = vpack.c.bf16 %v6106, %v6105
    %v6325 = vpack.c.bf16 %v6108, %v6107
    %v6326 = vpack.c.bf16 %v6110, %v6109
    %v6327 = vpack.c.bf16 %v6112, %v6111
    %v6328 = vpack.c.bf16 %v6114, %v6113
    %v6329 = vpack.c.bf16 %v6116, %v6115
    %v6330 = vpack.c.bf16 %v6118, %v6117
    %v6331 = vpack.c.bf16 %v6120, %v6119
    %v6332 = vpack.c.bf16 %v6122, %v6121
    %v6333 = vpack.c.bf16 %v6124, %v6123
    %v6334 = vpack.c.bf16 %v6126, %v6125
    %v6335 = vpack.c.bf16 %v6128, %v6127
    %v6336 = vpack.c.bf16 %v6130, %v6129
    %v6337 = vpack.c.bf16 %v6132, %v6131
    %v6338 = vpack.c.bf16 %v6134, %v6133
    %v6339 = vpack.c.bf16 %v6136, %v6135
    %v6340 = vpack.c.bf16 %v6138, %v6137
    %v6341 = vpack.c.bf16 %v6140, %v6139
    %v6342 = vpack.c.bf16 %v6142, %v6141
    %v6343 = vpack.c.bf16 %v6144, %v6143
    %v6344 = vpack.c.bf16 %v6146, %v6145
    %v6345 = vpack.c.bf16 %v6148, %v6147
    %v6346 = vpack.c.bf16 %v6150, %v6149
    %v6347 = vpack.c.bf16 %v6152, %v6151
    %v6348 = vpack.c.bf16 %v6154, %v6153
    %v6349 = vpack.c.bf16 %v6156, %v6155
    %v6350 = vpack.c.bf16 %v6158, %v6157
    %v6383 = vunpack.c.l.b16 %v6319
    %v6384 = vunpack.c.h.b16 %v6319
    %v6385 = vunpack.c.l.b16 %v6320
    %v6386 = vunpack.c.h.b16 %v6320
    %v6387 = vunpack.c.l.b16 %v6321
    %v6388 = vunpack.c.h.b16 %v6321
    %v6389 = vunpack.c.l.b16 %v6322
    %v6390 = vunpack.c.h.b16 %v6322
    %v6391 = vunpack.c.l.b16 %v6323
    %v6392 = vunpack.c.h.b16 %v6323
    %v6393 = vunpack.c.l.b16 %v6324
    %v6394 = vunpack.c.h.b16 %v6324
    %v6395 = vunpack.c.l.b16 %v6325
    %v6396 = vunpack.c.h.b16 %v6325
    %v6397 = vunpack.c.l.b16 %v6326
    %v6398 = vunpack.c.h.b16 %v6326
    %v6399 = vunpack.c.l.b16 %v6327
    %v6400 = vunpack.c.h.b16 %v6327
    %v6401 = vunpack.c.l.b16 %v6328
    %v6402 = vunpack.c.h.b16 %v6328
    %v6403 = vunpack.c.l.b16 %v6329
    %v6404 = vunpack.c.h.b16 %v6329
    %v6405 = vunpack.c.l.b16 %v6330
    %v6406 = vunpack.c.h.b16 %v6330
    %v6407 = vunpack.c.l.b16 %v6331
    %v6408 = vunpack.c.h.b16 %v6331
    %v6409 = vunpack.c.l.b16 %v6332
    %v6410 = vunpack.c.h.b16 %v6332
    %v6411 = vunpack.c.l.b16 %v6333
    %v6412 = vunpack.c.h.b16 %v6333
    %v6413 = vunpack.c.l.b16 %v6334
    %v6414 = vunpack.c.h.b16 %v6334
    %v6415 = vunpack.c.l.b16 %v6335
    %v6416 = vunpack.c.h.b16 %v6335
    %v6417 = vunpack.c.l.b16 %v6336
    %v6418 = vunpack.c.h.b16 %v6336
    %v6419 = vunpack.c.l.b16 %v6337
    %v6420 = vunpack.c.h.b16 %v6337
    %v6421 = vunpack.c.l.b16 %v6338
    %v6422 = vunpack.c.h.b16 %v6338
    %v6423 = vunpack.c.l.b16 %v6339
    %v6424 = vunpack.c.h.b16 %v6339
    %v6425 = vunpack.c.l.b16 %v6340
    %v6426 = vunpack.c.h.b16 %v6340
    %v6427 = vunpack.c.l.b16 %v6341
    %v6428 = vunpack.c.h.b16 %v6341
    %v6429 = vunpack.c.l.b16 %v6342
    %v6430 = vunpack.c.h.b16 %v6342
    %v6431 = vunpack.c.l.b16 %v6343
    %v6432 = vunpack.c.h.b16 %v6343
    %v6433 = vunpack.c.l.b16 %v6344
    %v6434 = vunpack.c.h.b16 %v6344
    %v6435 = vunpack.c.l.b16 %v6345
    %v6436 = vunpack.c.h.b16 %v6345
    %v6437 = vunpack.c.l.b16 %v6346
    %v6438 = vunpack.c.h.b16 %v6346
    %v6439 = vunpack.c.l.b16 %v6347
    %v6440 = vunpack.c.h.b16 %v6347
    %v6441 = vunpack.c.l.b16 %v6348
    %v6442 = vunpack.c.h.b16 %v6348
    %v6443 = vunpack.c.l.b16 %v6349
    %v6444 = vunpack.c.h.b16 %v6349
    %v6445 = vunpack.c.l.b16 %v6350
    %v6446 = vunpack.c.h.b16 %v6350
    %v6447 = vpack.c.b16 %v6383, %v6383
    %v6448 = vpack.c.b16 %v6384, %v6384
    %v6449 = vpack.c.b16 %v6385, %v6385
    %v6450 = vpack.c.b16 %v6386, %v6386
    %v6451 = vpack.c.b16 %v6387, %v6387
    %v6452 = vpack.c.b16 %v6388, %v6388
    %v6453 = vpack.c.b16 %v6389, %v6389
    %v6454 = vpack.c.b16 %v6390, %v6390
    %v6455 = vpack.c.b16 %v6391, %v6391
    %v6456 = vpack.c.b16 %v6392, %v6392
    %v6457 = vpack.c.b16 %v6393, %v6393
    %v6458 = vpack.c.b16 %v6394, %v6394
    %v6459 = vpack.c.b16 %v6395, %v6395
    %v6460 = vpack.c.b16 %v6396, %v6396
    %v6461 = vpack.c.b16 %v6397, %v6397
    %v6462 = vpack.c.b16 %v6398, %v6398
    %v6463 = vpack.c.b16 %v6399, %v6399
    %v6464 = vpack.c.b16 %v6400, %v6400
    %v6465 = vpack.c.b16 %v6401, %v6401
    %v6466 = vpack.c.b16 %v6402, %v6402
    %v6467 = vpack.c.b16 %v6403, %v6403
    %v6468 = vpack.c.b16 %v6404, %v6404
    %v6469 = vpack.c.b16 %v6405, %v6405
    %v6470 = vpack.c.b16 %v6406, %v6406
    %v6471 = vpack.c.b16 %v6407, %v6407
    %v6472 = vpack.c.b16 %v6408, %v6408
    %v6473 = vpack.c.b16 %v6409, %v6409
    %v6474 = vpack.c.b16 %v6410, %v6410
    %v6475 = vpack.c.b16 %v6411, %v6411
    %v6476 = vpack.c.b16 %v6412, %v6412
    %v6477 = vpack.c.b16 %v6413, %v6413
    %v6478 = vpack.c.b16 %v6414, %v6414
    %v6479 = vpack.c.b16 %v6415, %v6415
    %v6480 = vpack.c.b16 %v6416, %v6416
    %v6481 = vpack.c.b16 %v6417, %v6417
    %v6482 = vpack.c.b16 %v6418, %v6418
    %v6483 = vpack.c.b16 %v6419, %v6419
    %v6484 = vpack.c.b16 %v6420, %v6420
    %v6485 = vpack.c.b16 %v6421, %v6421
    %v6486 = vpack.c.b16 %v6422, %v6422
    %v6487 = vpack.c.b16 %v6423, %v6423
    %v6488 = vpack.c.b16 %v6424, %v6424
    %v6489 = vpack.c.b16 %v6425, %v6425
    %v6490 = vpack.c.b16 %v6426, %v6426
    %v6491 = vpack.c.b16 %v6427, %v6427
    %v6492 = vpack.c.b16 %v6428, %v6428
    %v6493 = vpack.c.b16 %v6429, %v6429
    %v6494 = vpack.c.b16 %v6430, %v6430
    %v6495 = vpack.c.b16 %v6431, %v6431
    %v6496 = vpack.c.b16 %v6432, %v6432
    %v6497 = vpack.c.b16 %v6433, %v6433
    %v6498 = vpack.c.b16 %v6434, %v6434
    %v6499 = vpack.c.b16 %v6435, %v6435
    %v6500 = vpack.c.b16 %v6436, %v6436
    %v6501 = vpack.c.b16 %v6437, %v6437
    %v6502 = vpack.c.b16 %v6438, %v6438
    %v6503 = vpack.c.b16 %v6439, %v6439
    %v6504 = vpack.c.b16 %v6440, %v6440
    %v6505 = vpack.c.b16 %v6441, %v6441
    %v6506 = vpack.c.b16 %v6442, %v6442
    %v6507 = vpack.c.b16 %v6443, %v6443
    %v6508 = vpack.c.b16 %v6444, %v6444
    %v6509 = vpack.c.b16 %v6445, %v6445
    %v6510 = vpack.c.b16 %v6446, %v6446
    %v6512 = vshrl.u32 %v6447, 16
    %v6514 = vrot.slane %v6512, 7
    %v6515 = vshll.u32 %v6447, 16
    %v6517 = vor.u32 %v6514, %v6515
    %v6518 = vrot.slane %v6514, 4
    %v6520 = vshrl.u32 %v6448, 16
    %v6522 = vrot.slane %v6520, 7
    %v6523 = vshll.u32 %v6448, 16
    %v6525 = vor.u32 %v6522, %v6523
    %v6526 = vrot.slane %v6522, 4
    %v6528 = vshrl.u32 %v6449, 16
    %v6530 = vrot.slane %v6528, 7
    %v6531 = vshll.u32 %v6449, 16
    %v6533 = vor.u32 %v6530, %v6531
    %v6534 = vrot.slane %v6530, 4
    %v6536 = vshrl.u32 %v6450, 16
    %v6538 = vrot.slane %v6536, 7
    %v6539 = vshll.u32 %v6450, 16
    %v6541 = vor.u32 %v6538, %v6539
    %v6542 = vrot.slane %v6538, 4
    %v6544 = vshrl.u32 %v6451, 16
    %v6546 = vrot.slane %v6544, 7
    %v6547 = vshll.u32 %v6451, 16
    %v6549 = vor.u32 %v6546, %v6547
    %v6550 = vrot.slane %v6546, 4
    %v6552 = vshrl.u32 %v6452, 16
    %v6554 = vrot.slane %v6552, 7
    %v6555 = vshll.u32 %v6452, 16
    %v6557 = vor.u32 %v6554, %v6555
    %v6558 = vrot.slane %v6554, 4
    %v6560 = vshrl.u32 %v6453, 16
    %v6562 = vrot.slane %v6560, 7
    %v6563 = vshll.u32 %v6453, 16
    %v6565 = vor.u32 %v6562, %v6563
    %v6566 = vrot.slane %v6562, 4
    %v6568 = vshrl.u32 %v6454, 16
    %v6570 = vrot.slane %v6568, 7
    %v6571 = vshll.u32 %v6454, 16
    %v6573 = vor.u32 %v6570, %v6571
    %v6574 = vrot.slane %v6570, 4
    %v6576 = vshrl.u32 %v6455, 16
    %v6578 = vrot.slane %v6576, 7
    %v6579 = vshll.u32 %v6455, 16
    %v6581 = vor.u32 %v6578, %v6579
    %v6582 = vrot.slane %v6578, 4
    %v6584 = vshrl.u32 %v6456, 16
    %v6586 = vrot.slane %v6584, 7
    %v6587 = vshll.u32 %v6456, 16
    %v6589 = vor.u32 %v6586, %v6587
    %v6590 = vrot.slane %v6586, 4
    %v6592 = vshrl.u32 %v6457, 16
    %v6594 = vrot.slane %v6592, 7
    %v6595 = vshll.u32 %v6457, 16
    %v6597 = vor.u32 %v6594, %v6595
    %v6598 = vrot.slane %v6594, 4
    %v6600 = vshrl.u32 %v6458, 16
    %v6602 = vrot.slane %v6600, 7
    %v6603 = vshll.u32 %v6458, 16
    %v6605 = vor.u32 %v6602, %v6603
    %v6606 = vrot.slane %v6602, 4
    %v6608 = vshrl.u32 %v6459, 16
    %v6610 = vrot.slane %v6608, 7
    %v6611 = vshll.u32 %v6459, 16
    %v6613 = vor.u32 %v6610, %v6611
    %v6614 = vrot.slane %v6610, 4
    %v6616 = vshrl.u32 %v6460, 16
    %v6618 = vrot.slane %v6616, 7
    %v6619 = vshll.u32 %v6460, 16
    %v6621 = vor.u32 %v6618, %v6619
    %v6622 = vrot.slane %v6618, 4
    %v6624 = vshrl.u32 %v6461, 16
    %v6626 = vrot.slane %v6624, 7
    %v6627 = vshll.u32 %v6461, 16
    %v6629 = vor.u32 %v6626, %v6627
    %v6630 = vrot.slane %v6626, 4
    %v6632 = vshrl.u32 %v6462, 16
    %v6634 = vrot.slane %v6632, 7
    %v6635 = vshll.u32 %v6462, 16
    %v6637 = vor.u32 %v6634, %v6635
    %v6638 = vrot.slane %v6634, 4
    %v6640 = vshrl.u32 %v6463, 16
    %v6642 = vrot.slane %v6640, 7
    %v6643 = vshll.u32 %v6463, 16
    %v6645 = vor.u32 %v6642, %v6643
    %v6646 = vrot.slane %v6642, 4
    %v6648 = vshrl.u32 %v6464, 16
    %v6650 = vrot.slane %v6648, 7
    %v6651 = vshll.u32 %v6464, 16
    %v6653 = vor.u32 %v6650, %v6651
    %v6654 = vrot.slane %v6650, 4
    %v6656 = vshrl.u32 %v6465, 16
    %v6658 = vrot.slane %v6656, 7
    %v6659 = vshll.u32 %v6465, 16
    %v6661 = vor.u32 %v6658, %v6659
    %v6662 = vrot.slane %v6658, 4
    %v6664 = vshrl.u32 %v6466, 16
    %v6666 = vrot.slane %v6664, 7
    %v6667 = vshll.u32 %v6466, 16
    %v6669 = vor.u32 %v6666, %v6667
    %v6670 = vrot.slane %v6666, 4
    %v6672 = vshrl.u32 %v6467, 16
    %v6674 = vrot.slane %v6672, 7
    %v6675 = vshll.u32 %v6467, 16
    %v6677 = vor.u32 %v6674, %v6675
    %v6678 = vrot.slane %v6674, 4
    %v6680 = vshrl.u32 %v6468, 16
    %v6682 = vrot.slane %v6680, 7
    %v6683 = vshll.u32 %v6468, 16
    %v6685 = vor.u32 %v6682, %v6683
    %v6686 = vrot.slane %v6682, 4
    %v6688 = vshrl.u32 %v6469, 16
    %v6690 = vrot.slane %v6688, 7
    %v6691 = vshll.u32 %v6469, 16
    %v6693 = vor.u32 %v6690, %v6691
    %v6694 = vrot.slane %v6690, 4
    %v6696 = vshrl.u32 %v6470, 16
    %v6698 = vrot.slane %v6696, 7
    %v6699 = vshll.u32 %v6470, 16
    %v6701 = vor.u32 %v6698, %v6699
    %v6702 = vrot.slane %v6698, 4
    %v6704 = vshrl.u32 %v6471, 16
    %v6706 = vrot.slane %v6704, 7
    %v6707 = vshll.u32 %v6471, 16
    %v6709 = vor.u32 %v6706, %v6707
    %v6710 = vrot.slane %v6706, 4
    %v6712 = vshrl.u32 %v6472, 16
    %v6714 = vrot.slane %v6712, 7
    %v6715 = vshll.u32 %v6472, 16
    %v6717 = vor.u32 %v6714, %v6715
    %v6718 = vrot.slane %v6714, 4
    %v6720 = vshrl.u32 %v6473, 16
    %v6722 = vrot.slane %v6720, 7
    %v6723 = vshll.u32 %v6473, 16
    %v6725 = vor.u32 %v6722, %v6723
    %v6726 = vrot.slane %v6722, 4
    %v6728 = vshrl.u32 %v6474, 16
    %v6730 = vrot.slane %v6728, 7
    %v6731 = vshll.u32 %v6474, 16
    %v6733 = vor.u32 %v6730, %v6731
    %v6734 = vrot.slane %v6730, 4
    %v6736 = vshrl.u32 %v6475, 16
    %v6738 = vrot.slane %v6736, 7
    %v6739 = vshll.u32 %v6475, 16
    %v6741 = vor.u32 %v6738, %v6739
    %v6742 = vrot.slane %v6738, 4
    %v6744 = vshrl.u32 %v6476, 16
    %v6746 = vrot.slane %v6744, 7
    %v6747 = vshll.u32 %v6476, 16
    %v6749 = vor.u32 %v6746, %v6747
    %v6750 = vrot.slane %v6746, 4
    %v6752 = vshrl.u32 %v6477, 16
    %v6754 = vrot.slane %v6752, 7
    %v6755 = vshll.u32 %v6477, 16
    %v6757 = vor.u32 %v6754, %v6755
    %v6758 = vrot.slane %v6754, 4
    %v6760 = vshrl.u32 %v6478, 16
    %v6762 = vrot.slane %v6760, 7
    %v6763 = vshll.u32 %v6478, 16
    %v6765 = vor.u32 %v6762, %v6763
    %v6766 = vrot.slane %v6762, 4
    %v6768 = vshrl.u32 %v6479, 16
    %v6770 = vrot.slane %v6768, 7
    %v6771 = vshll.u32 %v6479, 16
    %v6773 = vor.u32 %v6770, %v6771
    %v6774 = vrot.slane %v6770, 4
    %v6776 = vshrl.u32 %v6480, 16
    %v6778 = vrot.slane %v6776, 7
    %v6779 = vshll.u32 %v6480, 16
    %v6781 = vor.u32 %v6778, %v6779
    %v6782 = vrot.slane %v6778, 4
    %v6784 = vshrl.u32 %v6481, 16
    %v6786 = vrot.slane %v6784, 7
    %v6787 = vshll.u32 %v6481, 16
    %v6789 = vor.u32 %v6786, %v6787
    %v6790 = vrot.slane %v6786, 4
    %v6792 = vshrl.u32 %v6482, 16
    %v6794 = vrot.slane %v6792, 7
    %v6795 = vshll.u32 %v6482, 16
    %v6797 = vor.u32 %v6794, %v6795
    %v6798 = vrot.slane %v6794, 4
    %v6800 = vshrl.u32 %v6483, 16
    %v6802 = vrot.slane %v6800, 7
    %v6803 = vshll.u32 %v6483, 16
    %v6805 = vor.u32 %v6802, %v6803
    %v6806 = vrot.slane %v6802, 4
    %v6808 = vshrl.u32 %v6484, 16
    %v6810 = vrot.slane %v6808, 7
    %v6811 = vshll.u32 %v6484, 16
    %v6813 = vor.u32 %v6810, %v6811
    %v6814 = vrot.slane %v6810, 4
    %v6816 = vshrl.u32 %v6485, 16
    %v6818 = vrot.slane %v6816, 7
    %v6819 = vshll.u32 %v6485, 16
    %v6821 = vor.u32 %v6818, %v6819
    %v6822 = vrot.slane %v6818, 4
    %v6824 = vshrl.u32 %v6486, 16
    %v6826 = vrot.slane %v6824, 7
    %v6827 = vshll.u32 %v6486, 16
    %v6829 = vor.u32 %v6826, %v6827
    %v6830 = vrot.slane %v6826, 4
    %v6832 = vshrl.u32 %v6487, 16
    %v6834 = vrot.slane %v6832, 7
    %v6835 = vshll.u32 %v6487, 16
    %v6837 = vor.u32 %v6834, %v6835
    %v6838 = vrot.slane %v6834, 4
    %v6840 = vshrl.u32 %v6488, 16
    %v6842 = vrot.slane %v6840, 7
    %v6843 = vshll.u32 %v6488, 16
    %v6845 = vor.u32 %v6842, %v6843
    %v6846 = vrot.slane %v6842, 4
    %v6848 = vshrl.u32 %v6489, 16
    %v6850 = vrot.slane %v6848, 7
    %v6851 = vshll.u32 %v6489, 16
    %v6853 = vor.u32 %v6850, %v6851
    %v6854 = vrot.slane %v6850, 4
    %v6856 = vshrl.u32 %v6490, 16
    %v6858 = vrot.slane %v6856, 7
    %v6859 = vshll.u32 %v6490, 16
    %v6861 = vor.u32 %v6858, %v6859
    %v6862 = vrot.slane %v6858, 4
    %v6864 = vshrl.u32 %v6491, 16
    %v6866 = vrot.slane %v6864, 7
    %v6867 = vshll.u32 %v6491, 16
    %v6869 = vor.u32 %v6866, %v6867
    %v6870 = vrot.slane %v6866, 4
    %v6872 = vshrl.u32 %v6492, 16
    %v6874 = vrot.slane %v6872, 7
    %v6875 = vshll.u32 %v6492, 16
    %v6877 = vor.u32 %v6874, %v6875
    %v6878 = vrot.slane %v6874, 4
    %v6880 = vshrl.u32 %v6493, 16
    %v6882 = vrot.slane %v6880, 7
    %v6883 = vshll.u32 %v6493, 16
    %v6885 = vor.u32 %v6882, %v6883
    %v6886 = vrot.slane %v6882, 4
    %v6888 = vshrl.u32 %v6494, 16
    %v6890 = vrot.slane %v6888, 7
    %v6891 = vshll.u32 %v6494, 16
    %v6893 = vor.u32 %v6890, %v6891
    %v6894 = vrot.slane %v6890, 4
    %v6896 = vshrl.u32 %v6495, 16
    %v6898 = vrot.slane %v6896, 7
    %v6899 = vshll.u32 %v6495, 16
    %v6901 = vor.u32 %v6898, %v6899
    %v6902 = vrot.slane %v6898, 4
    %v6904 = vshrl.u32 %v6496, 16
    %v6906 = vrot.slane %v6904, 7
    %v6907 = vshll.u32 %v6496, 16
    %v6909 = vor.u32 %v6906, %v6907
    %v6910 = vrot.slane %v6906, 4
    %v6912 = vshrl.u32 %v6497, 16
    %v6914 = vrot.slane %v6912, 7
    %v6915 = vshll.u32 %v6497, 16
    %v6917 = vor.u32 %v6914, %v6915
    %v6918 = vrot.slane %v6914, 4
    %v6920 = vshrl.u32 %v6498, 16
    %v6922 = vrot.slane %v6920, 7
    %v6923 = vshll.u32 %v6498, 16
    %v6925 = vor.u32 %v6922, %v6923
    %v6926 = vrot.slane %v6922, 4
    %v6928 = vshrl.u32 %v6499, 16
    %v6930 = vrot.slane %v6928, 7
    %v6931 = vshll.u32 %v6499, 16
    %v6933 = vor.u32 %v6930, %v6931
    %v6934 = vrot.slane %v6930, 4
    %v6936 = vshrl.u32 %v6500, 16
    %v6938 = vrot.slane %v6936, 7
    %v6939 = vshll.u32 %v6500, 16
    %v6941 = vor.u32 %v6938, %v6939
    %v6942 = vrot.slane %v6938, 4
    %v6944 = vshrl.u32 %v6501, 16
    %v6946 = vrot.slane %v6944, 7
    %v6947 = vshll.u32 %v6501, 16
    %v6949 = vor.u32 %v6946, %v6947
    %v6950 = vrot.slane %v6946, 4
    %v6952 = vshrl.u32 %v6502, 16
    %v6954 = vrot.slane %v6952, 7
    %v6955 = vshll.u32 %v6502, 16
    %v6957 = vor.u32 %v6954, %v6955
    %v6958 = vrot.slane %v6954, 4
    %v6960 = vshrl.u32 %v6503, 16
    %v6962 = vrot.slane %v6960, 7
    %v6963 = vshll.u32 %v6503, 16
    %v6965 = vor.u32 %v6962, %v6963
    %v6966 = vrot.slane %v6962, 4
    %v6968 = vshrl.u32 %v6504, 16
    %v6970 = vrot.slane %v6968, 7
    %v6971 = vshll.u32 %v6504, 16
    %v6973 = vor.u32 %v6970, %v6971
    %v6974 = vrot.slane %v6970, 4
    %v6976 = vshrl.u32 %v6505, 16
    %v6978 = vrot.slane %v6976, 7
    %v6979 = vshll.u32 %v6505, 16
    %v6981 = vor.u32 %v6978, %v6979
    %v6982 = vrot.slane %v6978, 4
    %v6984 = vshrl.u32 %v6506, 16
    %v6986 = vrot.slane %v6984, 7
    %v6987 = vshll.u32 %v6506, 16
    %v6989 = vor.u32 %v6986, %v6987
    %v6990 = vrot.slane %v6986, 4
    %v6992 = vshrl.u32 %v6507, 16
    %v6994 = vrot.slane %v6992, 7
    %v6995 = vshll.u32 %v6507, 16
    %v6997 = vor.u32 %v6994, %v6995
    %v6998 = vrot.slane %v6994, 4
    %v7000 = vshrl.u32 %v6508, 16
    %v7002 = vrot.slane %v7000, 7
    %v7003 = vshll.u32 %v6508, 16
    %v7005 = vor.u32 %v7002, %v7003
    %v7006 = vrot.slane %v7002, 4
    %v7008 = vshrl.u32 %v6509, 16
    %v7010 = vrot.slane %v7008, 7
    %v7011 = vshll.u32 %v6509, 16
    %v7013 = vor.u32 %v7010, %v7011
    %v7014 = vrot.slane %v7010, 4
    %v7016 = vshrl.u32 %v6510, 16
    %v7018 = vrot.slane %v7016, 7
    %v7019 = vshll.u32 %v6510, 16
    %v7021 = vor.u32 %v7018, %v7019
    %v7022 = vrot.slane %v7018, 4
    %s7151 = scalar_lea.vmem [#allocation3], 8
    %vm7152 = vcmask 1043456
    %vm7153 = vmand %vm7152, %vm954
    %v7154 = vld [vmem:[%s7151] sm:$0xf]
    %v7155 = vsel %vm7153, %v6517, %v7154
    %7156 = vst [vmem:[%s7151] sm:$0xf] %v7155
    %vm7157 = vcmask 1040384
    %vm7158 = vmand %vm7157, %vm960
    %v7159 = vld [vmem:[%s7151 + $0x4] sm:$0x1]
    %v7160 = vsel %vm7158, %v6518, %v7159
    %7161 = vst [vmem:[%s7151 + $0x4] sm:$0x1] %v7160
    %v7162 = vld [vmem:[%s7151 + $0x8] sm:$0xf]
    %v7163 = vsel %vm7153, %v6525, %v7162
    %7164 = vst [vmem:[%s7151 + $0x8] sm:$0xf] %v7163
    %v7165 = vld [vmem:[%s7151 + $0xc] sm:$0x1]
    %v7166 = vsel %vm7158, %v6526, %v7165
    %7167 = vst [vmem:[%s7151 + $0xc] sm:$0x1] %v7166
    %v7168 = vld [vmem:[%s7151 + $0x10] sm:$0xf]
    %v7169 = vsel %vm7153, %v6533, %v7168
    %7170 = vst [vmem:[%s7151 + $0x10] sm:$0xf] %v7169
    %v7171 = vld [vmem:[%s7151 + $0x14] sm:$0x1]
    %v7172 = vsel %vm7158, %v6534, %v7171
    %7173 = vst [vmem:[%s7151 + $0x14] sm:$0x1] %v7172
    %v7174 = vld [vmem:[%s7151 + $0x18] sm:$0xf]
    %v7175 = vsel %vm7153, %v6541, %v7174
    %7176 = vst [vmem:[%s7151 + $0x18] sm:$0xf] %v7175
    %v7177 = vld [vmem:[%s7151 + $0x1c] sm:$0x1]
    %v7178 = vsel %vm7158, %v6542, %v7177
    %7179 = vst [vmem:[%s7151 + $0x1c] sm:$0x1] %v7178
    %v7180 = vld [vmem:[%s7151 + $0x20] sm:$0xf]
    %v7181 = vsel %vm7153, %v6549, %v7180
    %7182 = vst [vmem:[%s7151 + $0x20] sm:$0xf] %v7181
    %v7183 = vld [vmem:[%s7151 + $0x24] sm:$0x1]
    %v7184 = vsel %vm7158, %v6550, %v7183
    %7185 = vst [vmem:[%s7151 + $0x24] sm:$0x1] %v7184
    %v7186 = vld [vmem:[%s7151 + $0x28] sm:$0xf]
    %v7187 = vsel %vm7153, %v6557, %v7186
    %7188 = vst [vmem:[%s7151 + $0x28] sm:$0xf] %v7187
    %v7189 = vld [vmem:[%s7151 + $0x2c] sm:$0x1]
    %v7190 = vsel %vm7158, %v6558, %v7189
    %7191 = vst [vmem:[%s7151 + $0x2c] sm:$0x1] %v7190
    %v7192 = vld [vmem:[%s7151 + $0x30] sm:$0xf]
    %v7193 = vsel %vm7153, %v6565, %v7192
    %7194 = vst [vmem:[%s7151 + $0x30] sm:$0xf] %v7193
    %v7195 = vld [vmem:[%s7151 + $0x34] sm:$0x1]
    %v7196 = vsel %vm7158, %v6566, %v7195
    %7197 = vst [vmem:[%s7151 + $0x34] sm:$0x1] %v7196
    %v7198 = vld [vmem:[%s7151 + $0x38] sm:$0xf]
    %v7199 = vsel %vm7153, %v6573, %v7198
    %7200 = vst [vmem:[%s7151 + $0x38] sm:$0xf] %v7199
    %v7201 = vld [vmem:[%s7151 + $0x3c] sm:$0x1]
    %v7202 = vsel %vm7158, %v6574, %v7201
    %7203 = vst [vmem:[%s7151 + $0x3c] sm:$0x1] %v7202
    %v7204 = vld [vmem:[%s7151 + $0x50] sm:$0xf]
    %v7205 = vsel %vm7153, %v6581, %v7204
    %7206 = vst [vmem:[%s7151 + $0x50] sm:$0xf] %v7205
    %v7207 = vld [vmem:[%s7151 + $0x54] sm:$0x1]
    %v7208 = vsel %vm7158, %v6582, %v7207
    %7209 = vst [vmem:[%s7151 + $0x54] sm:$0x1] %v7208
    %v7210 = vld [vmem:[%s7151 + $0x58] sm:$0xf]
    %v7211 = vsel %vm7153, %v6589, %v7210
    %7212 = vst [vmem:[%s7151 + $0x58] sm:$0xf] %v7211
    %v7213 = vld [vmem:[%s7151 + $0x5c] sm:$0x1]
    %v7214 = vsel %vm7158, %v6590, %v7213
    %7215 = vst [vmem:[%s7151 + $0x5c] sm:$0x1] %v7214
    %v7216 = vld [vmem:[%s7151 + $0x60] sm:$0xf]
    %v7217 = vsel %vm7153, %v6597, %v7216
    %7218 = vst [vmem:[%s7151 + $0x60] sm:$0xf] %v7217
    %v7219 = vld [vmem:[%s7151 + $0x64] sm:$0x1]
    %v7220 = vsel %vm7158, %v6598, %v7219
    %7221 = vst [vmem:[%s7151 + $0x64] sm:$0x1] %v7220
    %v7222 = vld [vmem:[%s7151 + $0x68] sm:$0xf]
    %v7223 = vsel %vm7153, %v6605, %v7222
    %7224 = vst [vmem:[%s7151 + $0x68] sm:$0xf] %v7223
    %v7225 = vld [vmem:[%s7151 + $0x6c] sm:$0x1]
    %v7226 = vsel %vm7158, %v6606, %v7225
    %7227 = vst [vmem:[%s7151 + $0x6c] sm:$0x1] %v7226
    %v7228 = vld [vmem:[%s7151 + $0x70] sm:$0xf]
    %v7229 = vsel %vm7153, %v6613, %v7228
    %7230 = vst [vmem:[%s7151 + $0x70] sm:$0xf] %v7229
    %v7231 = vld [vmem:[%s7151 + $0x74] sm:$0x1]
    %v7232 = vsel %vm7158, %v6614, %v7231
    %7233 = vst [vmem:[%s7151 + $0x74] sm:$0x1] %v7232
    %v7234 = vld [vmem:[%s7151 + $0x78] sm:$0xf]
    %v7235 = vsel %vm7153, %v6621, %v7234
    %7236 = vst [vmem:[%s7151 + $0x78] sm:$0xf] %v7235
    %v7237 = vld [vmem:[%s7151 + $0x7c] sm:$0x1]
    %v7238 = vsel %vm7158, %v6622, %v7237
    %7239 = vst [vmem:[%s7151 + $0x7c] sm:$0x1] %v7238
    %v7240 = vld [vmem:[%s7151 + $0x80] sm:$0xf]
    %v7241 = vsel %vm7153, %v6629, %v7240
    %7242 = vst [vmem:[%s7151 + $0x80] sm:$0xf] %v7241
    %v7243 = vld [vmem:[%s7151 + $0x84] sm:$0x1]
    %v7244 = vsel %vm7158, %v6630, %v7243
    %7245 = vst [vmem:[%s7151 + $0x84] sm:$0x1] %v7244
    %v7246 = vld [vmem:[%s7151 + $0x88] sm:$0xf]
    %v7247 = vsel %vm7153, %v6637, %v7246
    %7248 = vst [vmem:[%s7151 + $0x88] sm:$0xf] %v7247
    %v7249 = vld [vmem:[%s7151 + $0x8c] sm:$0x1]
    %v7250 = vsel %vm7158, %v6638, %v7249
    %7251 = vst [vmem:[%s7151 + $0x8c] sm:$0x1] %v7250
    %v7252 = vld [vmem:[%s7151 + $0xa0] sm:$0xf]
    %v7253 = vsel %vm7153, %v6645, %v7252
    %7254 = vst [vmem:[%s7151 + $0xa0] sm:$0xf] %v7253
    %v7255 = vld [vmem:[%s7151 + $0xa4] sm:$0x1]
    %v7256 = vsel %vm7158, %v6646, %v7255
    %7257 = vst [vmem:[%s7151 + $0xa4] sm:$0x1] %v7256
    %v7258 = vld [vmem:[%s7151 + $0xa8] sm:$0xf]
    %v7259 = vsel %vm7153, %v6653, %v7258
    %7260 = vst [vmem:[%s7151 + $0xa8] sm:$0xf] %v7259
    %v7261 = vld [vmem:[%s7151 + $0xac] sm:$0x1]
    %v7262 = vsel %vm7158, %v6654, %v7261
    %7263 = vst [vmem:[%s7151 + $0xac] sm:$0x1] %v7262
    %v7264 = vld [vmem:[%s7151 + $0xb0] sm:$0xf]
    %v7265 = vsel %vm7153, %v6661, %v7264
    %7266 = vst [vmem:[%s7151 + $0xb0] sm:$0xf] %v7265
    %v7267 = vld [vmem:[%s7151 + $0xb4] sm:$0x1]
    %v7268 = vsel %vm7158, %v6662, %v7267
    %7269 = vst [vmem:[%s7151 + $0xb4] sm:$0x1] %v7268
    %v7270 = vld [vmem:[%s7151 + $0xb8] sm:$0xf]
    %v7271 = vsel %vm7153, %v6669, %v7270
    %7272 = vst [vmem:[%s7151 + $0xb8] sm:$0xf] %v7271
    %v7273 = vld [vmem:[%s7151 + $0xbc] sm:$0x1]
    %v7274 = vsel %vm7158, %v6670, %v7273
    %7275 = vst [vmem:[%s7151 + $0xbc] sm:$0x1] %v7274
    %v7276 = vld [vmem:[%s7151 + $0xc0] sm:$0xf]
    %v7277 = vsel %vm7153, %v6677, %v7276
    %7278 = vst [vmem:[%s7151 + $0xc0] sm:$0xf] %v7277
    %v7279 = vld [vmem:[%s7151 + $0xc4] sm:$0x1]
    %v7280 = vsel %vm7158, %v6678, %v7279
    %7281 = vst [vmem:[%s7151 + $0xc4] sm:$0x1] %v7280
    %v7282 = vld [vmem:[%s7151 + $0xc8] sm:$0xf]
    %v7283 = vsel %vm7153, %v6685, %v7282
    %7284 = vst [vmem:[%s7151 + $0xc8] sm:$0xf] %v7283
    %v7285 = vld [vmem:[%s7151 + $0xcc] sm:$0x1]
    %v7286 = vsel %vm7158, %v6686, %v7285
    %7287 = vst [vmem:[%s7151 + $0xcc] sm:$0x1] %v7286
    %v7288 = vld [vmem:[%s7151 + $0xd0] sm:$0xf]
    %v7289 = vsel %vm7153, %v6693, %v7288
    %7290 = vst [vmem:[%s7151 + $0xd0] sm:$0xf] %v7289
    %v7291 = vld [vmem:[%s7151 + $0xd4] sm:$0x1]
    %v7292 = vsel %vm7158, %v6694, %v7291
    %7293 = vst [vmem:[%s7151 + $0xd4] sm:$0x1] %v7292
    %v7294 = vld [vmem:[%s7151 + $0xd8] sm:$0xf]
    %v7295 = vsel %vm7153, %v6701, %v7294
    %7296 = vst [vmem:[%s7151 + $0xd8] sm:$0xf] %v7295
    %v7297 = vld [vmem:[%s7151 + $0xdc] sm:$0x1]
    %v7298 = vsel %vm7158, %v6702, %v7297
    %7299 = vst [vmem:[%s7151 + $0xdc] sm:$0x1] %v7298
    %v7300 = vld [vmem:[%s7151 + $0xf0] sm:$0xf]
    %v7301 = vsel %vm7153, %v6709, %v7300
    %7302 = vst [vmem:[%s7151 + $0xf0] sm:$0xf] %v7301
    %v7303 = vld [vmem:[%s7151 + $0xf4] sm:$0x1]
    %v7304 = vsel %vm7158, %v6710, %v7303
    %7305 = vst [vmem:[%s7151 + $0xf4] sm:$0x1] %v7304
    %v7306 = vld [vmem:[%s7151 + $0xf8] sm:$0xf]
    %v7307 = vsel %vm7153, %v6717, %v7306
    %7308 = vst [vmem:[%s7151 + $0xf8] sm:$0xf] %v7307
    %v7309 = vld [vmem:[%s7151 + $0xfc] sm:$0x1]
    %v7310 = vsel %vm7158, %v6718, %v7309
    %7311 = vst [vmem:[%s7151 + $0xfc] sm:$0x1] %v7310
    %v7312 = vld [vmem:[%s7151 + $0x100] sm:$0xf]
    %v7313 = vsel %vm7153, %v6725, %v7312
    %7314 = vst [vmem:[%s7151 + $0x100] sm:$0xf] %v7313
    %v7315 = vld [vmem:[%s7151 + $0x104] sm:$0x1]
    %v7316 = vsel %vm7158, %v6726, %v7315
    %7317 = vst [vmem:[%s7151 + $0x104] sm:$0x1] %v7316
    %v7318 = vld [vmem:[%s7151 + $0x108] sm:$0xf]
    %v7319 = vsel %vm7153, %v6733, %v7318
    %7320 = vst [vmem:[%s7151 + $0x108] sm:$0xf] %v7319
    %v7321 = vld [vmem:[%s7151 + $0x10c] sm:$0x1]
    %v7322 = vsel %vm7158, %v6734, %v7321
    %7323 = vst [vmem:[%s7151 + $0x10c] sm:$0x1] %v7322
    %v7324 = vld [vmem:[%s7151 + $0x110] sm:$0xf]
    %v7325 = vsel %vm7153, %v6741, %v7324
    %7326 = vst [vmem:[%s7151 + $0x110] sm:$0xf] %v7325
    %v7327 = vld [vmem:[%s7151 + $0x114] sm:$0x1]
    %v7328 = vsel %vm7158, %v6742, %v7327
    %7329 = vst [vmem:[%s7151 + $0x114] sm:$0x1] %v7328
    %v7330 = vld [vmem:[%s7151 + $0x118] sm:$0xf]
    %v7331 = vsel %vm7153, %v6749, %v7330
    %7332 = vst [vmem:[%s7151 + $0x118] sm:$0xf] %v7331
    %v7333 = vld [vmem:[%s7151 + $0x11c] sm:$0x1]
    %v7334 = vsel %vm7158, %v6750, %v7333
    %7335 = vst [vmem:[%s7151 + $0x11c] sm:$0x1] %v7334
    %v7336 = vld [vmem:[%s7151 + $0x120] sm:$0xf]
    %v7337 = vsel %vm7153, %v6757, %v7336
    %7338 = vst [vmem:[%s7151 + $0x120] sm:$0xf] %v7337
    %v7339 = vld [vmem:[%s7151 + $0x124] sm:$0x1]
    %v7340 = vsel %vm7158, %v6758, %v7339
    %7341 = vst [vmem:[%s7151 + $0x124] sm:$0x1] %v7340
    %v7342 = vld [vmem:[%s7151 + $0x128] sm:$0xf]
    %v7343 = vsel %vm7153, %v6765, %v7342
    %7344 = vst [vmem:[%s7151 + $0x128] sm:$0xf] %v7343
    %v7345 = vld [vmem:[%s7151 + $0x12c] sm:$0x1]
    %v7346 = vsel %vm7158, %v6766, %v7345
    %7347 = vst [vmem:[%s7151 + $0x12c] sm:$0x1] %v7346
    %v7348 = vld [vmem:[%s7151 + $0x140] sm:$0xf]
    %v7349 = vsel %vm7153, %v6773, %v7348
    %7350 = vst [vmem:[%s7151 + $0x140] sm:$0xf] %v7349
    %v7351 = vld [vmem:[%s7151 + $0x144] sm:$0x1]
    %v7352 = vsel %vm7158, %v6774, %v7351
    %7353 = vst [vmem:[%s7151 + $0x144] sm:$0x1] %v7352
    %v7354 = vld [vmem:[%s7151 + $0x148] sm:$0xf]
    %v7355 = vsel %vm7153, %v6781, %v7354
    %7356 = vst [vmem:[%s7151 + $0x148] sm:$0xf] %v7355
    %v7357 = vld [vmem:[%s7151 + $0x14c] sm:$0x1]
    %v7358 = vsel %vm7158, %v6782, %v7357
    %7359 = vst [vmem:[%s7151 + $0x14c] sm:$0x1] %v7358
    %v7360 = vld [vmem:[%s7151 + $0x150] sm:$0xf]
    %v7361 = vsel %vm7153, %v6789, %v7360
    %7362 = vst [vmem:[%s7151 + $0x150] sm:$0xf] %v7361
    %v7363 = vld [vmem:[%s7151 + $0x154] sm:$0x1]
    %v7364 = vsel %vm7158, %v6790, %v7363
    %7365 = vst [vmem:[%s7151 + $0x154] sm:$0x1] %v7364
    %v7366 = vld [vmem:[%s7151 + $0x158] sm:$0xf]
    %v7367 = vsel %vm7153, %v6797, %v7366
    %7368 = vst [vmem:[%s7151 + $0x158] sm:$0xf] %v7367
    %v7369 = vld [vmem:[%s7151 + $0x15c] sm:$0x1]
    %v7370 = vsel %vm7158, %v6798, %v7369
    %7371 = vst [vmem:[%s7151 + $0x15c] sm:$0x1] %v7370
    %v7372 = vld [vmem:[%s7151 + $0x160] sm:$0xf]
    %v7373 = vsel %vm7153, %v6805, %v7372
    %7374 = vst [vmem:[%s7151 + $0x160] sm:$0xf] %v7373
    %v7375 = vld [vmem:[%s7151 + $0x164] sm:$0x1]
    %v7376 = vsel %vm7158, %v6806, %v7375
    %7377 = vst [vmem:[%s7151 + $0x164] sm:$0x1] %v7376
    %v7378 = vld [vmem:[%s7151 + $0x168] sm:$0xf]
    %v7379 = vsel %vm7153, %v6813, %v7378
    %7380 = vst [vmem:[%s7151 + $0x168] sm:$0xf] %v7379
    %v7381 = vld [vmem:[%s7151 + $0x16c] sm:$0x1]
    %v7382 = vsel %vm7158, %v6814, %v7381
    %7383 = vst [vmem:[%s7151 + $0x16c] sm:$0x1] %v7382
    %v7384 = vld [vmem:[%s7151 + $0x170] sm:$0xf]
    %v7385 = vsel %vm7153, %v6821, %v7384
    %7386 = vst [vmem:[%s7151 + $0x170] sm:$0xf] %v7385
    %v7387 = vld [vmem:[%s7151 + $0x174] sm:$0x1]
    %v7388 = vsel %vm7158, %v6822, %v7387
    %7389 = vst [vmem:[%s7151 + $0x174] sm:$0x1] %v7388
    %v7390 = vld [vmem:[%s7151 + $0x178] sm:$0xf]
    %v7391 = vsel %vm7153, %v6829, %v7390
    %7392 = vst [vmem:[%s7151 + $0x178] sm:$0xf] %v7391
    %v7393 = vld [vmem:[%s7151 + $0x17c] sm:$0x1]
    %v7394 = vsel %vm7158, %v6830, %v7393
    %7395 = vst [vmem:[%s7151 + $0x17c] sm:$0x1] %v7394
    %v7396 = vld [vmem:[%s7151 + $0x190] sm:$0xf]
    %v7397 = vsel %vm7153, %v6837, %v7396
    %7398 = vst [vmem:[%s7151 + $0x190] sm:$0xf] %v7397
    %v7399 = vld [vmem:[%s7151 + $0x194] sm:$0x1]
    %v7400 = vsel %vm7158, %v6838, %v7399
    %7401 = vst [vmem:[%s7151 + $0x194] sm:$0x1] %v7400
    %v7402 = vld [vmem:[%s7151 + $0x198] sm:$0xf]
    %v7403 = vsel %vm7153, %v6845, %v7402
    %7404 = vst [vmem:[%s7151 + $0x198] sm:$0xf] %v7403
    %v7405 = vld [vmem:[%s7151 + $0x19c] sm:$0x1]
    %v7406 = vsel %vm7158, %v6846, %v7405
    %7407 = vst [vmem:[%s7151 + $0x19c] sm:$0x1] %v7406
    %v7408 = vld [vmem:[%s7151 + $0x1a0] sm:$0xf]
    %v7409 = vsel %vm7153, %v6853, %v7408
    %7410 = vst [vmem:[%s7151 + $0x1a0] sm:$0xf] %v7409
    %v7411 = vld [vmem:[%s7151 + $0x1a4] sm:$0x1]
    %v7412 = vsel %vm7158, %v6854, %v7411
    %7413 = vst [vmem:[%s7151 + $0x1a4] sm:$0x1] %v7412
    %v7414 = vld [vmem:[%s7151 + $0x1a8] sm:$0xf]
    %v7415 = vsel %vm7153, %v6861, %v7414
    %7416 = vst [vmem:[%s7151 + $0x1a8] sm:$0xf] %v7415
    %v7417 = vld [vmem:[%s7151 + $0x1ac] sm:$0x1]
    %v7418 = vsel %vm7158, %v6862, %v7417
    %7419 = vst [vmem:[%s7151 + $0x1ac] sm:$0x1] %v7418
    %v7420 = vld [vmem:[%s7151 + $0x1b0] sm:$0xf]
    %v7421 = vsel %vm7153, %v6869, %v7420
    %7422 = vst [vmem:[%s7151 + $0x1b0] sm:$0xf] %v7421
    %v7423 = vld [vmem:[%s7151 + $0x1b4] sm:$0x1]
    %v7424 = vsel %vm7158, %v6870, %v7423
    %7425 = vst [vmem:[%s7151 + $0x1b4] sm:$0x1] %v7424
    %v7426 = vld [vmem:[%s7151 + $0x1b8] sm:$0xf]
    %v7427 = vsel %vm7153, %v6877, %v7426
    %7428 = vst [vmem:[%s7151 + $0x1b8] sm:$0xf] %v7427
    %v7429 = vld [vmem:[%s7151 + $0x1bc] sm:$0x1]
    %v7430 = vsel %vm7158, %v6878, %v7429
    %7431 = vst [vmem:[%s7151 + $0x1bc] sm:$0x1] %v7430
    %v7432 = vld [vmem:[%s7151 + $0x1c0] sm:$0xf]
    %v7433 = vsel %vm7153, %v6885, %v7432
    %7434 = vst [vmem:[%s7151 + $0x1c0] sm:$0xf] %v7433
    %v7435 = vld [vmem:[%s7151 + $0x1c4] sm:$0x1]
    %v7436 = vsel %vm7158, %v6886, %v7435
    %7437 = vst [vmem:[%s7151 + $0x1c4] sm:$0x1] %v7436
    %v7438 = vld [vmem:[%s7151 + $0x1c8] sm:$0xf]
    %v7439 = vsel %vm7153, %v6893, %v7438
    %7440 = vst [vmem:[%s7151 + $0x1c8] sm:$0xf] %v7439
    %v7441 = vld [vmem:[%s7151 + $0x1cc] sm:$0x1]
    %v7442 = vsel %vm7158, %v6894, %v7441
    %7443 = vst [vmem:[%s7151 + $0x1cc] sm:$0x1] %v7442
    %v7444 = vld [vmem:[%s7151 + $0x1e0] sm:$0xf]
    %v7445 = vsel %vm7153, %v6901, %v7444
    %7446 = vst [vmem:[%s7151 + $0x1e0] sm:$0xf] %v7445
    %v7447 = vld [vmem:[%s7151 + $0x1e4] sm:$0x1]
    %v7448 = vsel %vm7158, %v6902, %v7447
    %7449 = vst [vmem:[%s7151 + $0x1e4] sm:$0x1] %v7448
    %v7450 = vld [vmem:[%s7151 + $0x1e8] sm:$0xf]
    %v7451 = vsel %vm7153, %v6909, %v7450
    %7452 = vst [vmem:[%s7151 + $0x1e8] sm:$0xf] %v7451
    %v7453 = vld [vmem:[%s7151 + $0x1ec] sm:$0x1]
    %v7454 = vsel %vm7158, %v6910, %v7453
    %7455 = vst [vmem:[%s7151 + $0x1ec] sm:$0x1] %v7454
    %v7456 = vld [vmem:[%s7151 + $0x1f0] sm:$0xf]
    %v7457 = vsel %vm7153, %v6917, %v7456
    %7458 = vst [vmem:[%s7151 + $0x1f0] sm:$0xf] %v7457
    %v7459 = vld [vmem:[%s7151 + $0x1f4] sm:$0x1]
    %v7460 = vsel %vm7158, %v6918, %v7459
    %7461 = vst [vmem:[%s7151 + $0x1f4] sm:$0x1] %v7460
    %v7462 = vld [vmem:[%s7151 + $0x1f8] sm:$0xf]
    %v7463 = vsel %vm7153, %v6925, %v7462
    %7464 = vst [vmem:[%s7151 + $0x1f8] sm:$0xf] %v7463
    %v7465 = vld [vmem:[%s7151 + $0x1fc] sm:$0x1]
    %v7466 = vsel %vm7158, %v6926, %v7465
    %7467 = vst [vmem:[%s7151 + $0x1fc] sm:$0x1] %v7466
    %v7468 = vld [vmem:[%s7151 + $0x200] sm:$0xf]
    %v7469 = vsel %vm7153, %v6933, %v7468
    %7470 = vst [vmem:[%s7151 + $0x200] sm:$0xf] %v7469
    %v7471 = vld [vmem:[%s7151 + $0x204] sm:$0x1]
    %v7472 = vsel %vm7158, %v6934, %v7471
    %7473 = vst [vmem:[%s7151 + $0x204] sm:$0x1] %v7472
    %v7474 = vld [vmem:[%s7151 + $0x208] sm:$0xf]
    %v7475 = vsel %vm7153, %v6941, %v7474
    %7476 = vst [vmem:[%s7151 + $0x208] sm:$0xf] %v7475
    %v7477 = vld [vmem:[%s7151 + $0x20c] sm:$0x1]
    %v7478 = vsel %vm7158, %v6942, %v7477
    %7479 = vst [vmem:[%s7151 + $0x20c] sm:$0x1] %v7478
    %v7480 = vld [vmem:[%s7151 + $0x210] sm:$0xf]
    %v7481 = vsel %vm7153, %v6949, %v7480
    %7482 = vst [vmem:[%s7151 + $0x210] sm:$0xf] %v7481
    %v7483 = vld [vmem:[%s7151 + $0x214] sm:$0x1]
    %v7484 = vsel %vm7158, %v6950, %v7483
    %7485 = vst [vmem:[%s7151 + $0x214] sm:$0x1] %v7484
    %v7486 = vld [vmem:[%s7151 + $0x218] sm:$0xf]
    %v7487 = vsel %vm7153, %v6957, %v7486
    %7488 = vst [vmem:[%s7151 + $0x218] sm:$0xf] %v7487
    %v7489 = vld [vmem:[%s7151 + $0x21c] sm:$0x1]
    %v7490 = vsel %vm7158, %v6958, %v7489
    %7491 = vst [vmem:[%s7151 + $0x21c] sm:$0x1] %v7490
    %v7492 = vld [vmem:[%s7151 + $0x230] sm:$0xf]
    %v7493 = vsel %vm7153, %v6965, %v7492
    %7494 = vst [vmem:[%s7151 + $0x230] sm:$0xf] %v7493
    %v7495 = vld [vmem:[%s7151 + $0x234] sm:$0x1]
    %v7496 = vsel %vm7158, %v6966, %v7495
    %7497 = vst [vmem:[%s7151 + $0x234] sm:$0x1] %v7496
    %v7498 = vld [vmem:[%s7151 + $0x238] sm:$0xf]
    %v7499 = vsel %vm7153, %v6973, %v7498
    %7500 = vst [vmem:[%s7151 + $0x238] sm:$0xf] %v7499
    %v7501 = vld [vmem:[%s7151 + $0x23c] sm:$0x1]
    %v7502 = vsel %vm7158, %v6974, %v7501
    %7503 = vst [vmem:[%s7151 + $0x23c] sm:$0x1] %v7502
    %v7504 = vld [vmem:[%s7151 + $0x240] sm:$0xf]
    %v7505 = vsel %vm7153, %v6981, %v7504
    %7506 = vst [vmem:[%s7151 + $0x240] sm:$0xf] %v7505
    %v7507 = vld [vmem:[%s7151 + $0x244] sm:$0x1]
    %v7508 = vsel %vm7158, %v6982, %v7507
    %7509 = vst [vmem:[%s7151 + $0x244] sm:$0x1] %v7508
    %v7510 = vld [vmem:[%s7151 + $0x248] sm:$0xf]
    %v7511 = vsel %vm7153, %v6989, %v7510
    %7512 = vst [vmem:[%s7151 + $0x248] sm:$0xf] %v7511
    %v7513 = vld [vmem:[%s7151 + $0x24c] sm:$0x1]
    %v7514 = vsel %vm7158, %v6990, %v7513
    %7515 = vst [vmem:[%s7151 + $0x24c] sm:$0x1] %v7514
    %v7516 = vld [vmem:[%s7151 + $0x250] sm:$0xf]
    %v7517 = vsel %vm7153, %v6997, %v7516
    %7518 = vst [vmem:[%s7151 + $0x250] sm:$0xf] %v7517
    %v7519 = vld [vmem:[%s7151 + $0x254] sm:$0x1]
    %v7520 = vsel %vm7158, %v6998, %v7519
    %7521 = vst [vmem:[%s7151 + $0x254] sm:$0x1] %v7520
    %v7522 = vld [vmem:[%s7151 + $0x258] sm:$0xf]
    %v7523 = vsel %vm7153, %v7005, %v7522
    %7524 = vst [vmem:[%s7151 + $0x258] sm:$0xf] %v7523
    %v7525 = vld [vmem:[%s7151 + $0x25c] sm:$0x1]
    %v7526 = vsel %vm7158, %v7006, %v7525
    %7527 = vst [vmem:[%s7151 + $0x25c] sm:$0x1] %v7526
    %v7528 = vld [vmem:[%s7151 + $0x260] sm:$0xf]
    %v7529 = vsel %vm7153, %v7013, %v7528
    %7530 = vst [vmem:[%s7151 + $0x260] sm:$0xf] %v7529
    %v7531 = vld [vmem:[%s7151 + $0x264] sm:$0x1]
    %v7532 = vsel %vm7158, %v7014, %v7531
    %7533 = vst [vmem:[%s7151 + $0x264] sm:$0x1] %v7532
    %v7534 = vld [vmem:[%s7151 + $0x268] sm:$0xf]
    %v7535 = vsel %vm7153, %v7021, %v7534
    %7536 = vst [vmem:[%s7151 + $0x268] sm:$0xf] %v7535
    %v7537 = vld [vmem:[%s7151 + $0x26c] sm:$0x1]
    %v7538 = vsel %vm7158, %v7022, %v7537
    %7539 = vst [vmem:[%s7151 + $0x26c] sm:$0x1] %v7538
    %s7540 = scalar_lea.vmem [#allocation3], 480
    %v7541 = vld [vmem:[%s7540] sm:$0xf]
    %v7542 = vld [vmem:[%s7540 + $0x8] sm:$0xf]
    %v7543 = vld [vmem:[%s7540 + $0x10] sm:$0xf]
    %v7544 = vld [vmem:[%s7540 + $0x18] sm:$0xf]
    %v7545 = vld [vmem:[%s7540 + $0x20] sm:$0xf]
    %v7546 = vld [vmem:[%s7540 + $0x28] sm:$0xf]
    %v7547 = vld [vmem:[%s7540 + $0x30] sm:$0xf]
    %v7548 = vld [vmem:[%s7540 + $0x38] sm:$0xf]
    %v7549 = vld [vmem:[%s7540 + $0x50] sm:$0xf]
    %v7550 = vld [vmem:[%s7540 + $0x58] sm:$0xf]
    %v7551 = vld [vmem:[%s7540 + $0x60] sm:$0xf]
    %v7552 = vld [vmem:[%s7540 + $0x68] sm:$0xf]
    %v7553 = vld [vmem:[%s7540 + $0x70] sm:$0xf]
    %v7554 = vld [vmem:[%s7540 + $0x78] sm:$0xf]
    %v7555 = vld [vmem:[%s7540 + $0x80] sm:$0xf]
    %v7556 = vld [vmem:[%s7540 + $0x88] sm:$0xf]
    %s7557 = scalar_lea.vmem [#allocation3], 320
    %v7558 = vld [vmem:[%s7557] sm:$0xf]
    %v7559 = vld [vmem:[%s7557 + $0x4] sm:$0x1]
    %v7560 = vld [vmem:[%s7557 + $0x8] sm:$0xf]
    %v7561 = vld [vmem:[%s7557 + $0xc] sm:$0x1]
    %v7562 = vld [vmem:[%s7557 + $0x10] sm:$0xf]
    %v7563 = vld [vmem:[%s7557 + $0x14] sm:$0x1]
    %v7564 = vld [vmem:[%s7557 + $0x18] sm:$0xf]
    %v7565 = vld [vmem:[%s7557 + $0x1c] sm:$0x1]
    %v7566 = vld [vmem:[%s7557 + $0x20] sm:$0xf]
    %v7567 = vld [vmem:[%s7557 + $0x24] sm:$0x1]
    %v7568 = vld [vmem:[%s7557 + $0x28] sm:$0xf]
    %v7569 = vld [vmem:[%s7557 + $0x2c] sm:$0x1]
    %v7570 = vld [vmem:[%s7557 + $0x30] sm:$0xf]
    %v7571 = vld [vmem:[%s7557 + $0x34] sm:$0x1]
    %v7572 = vld [vmem:[%s7557 + $0x38] sm:$0xf]
    %v7573 = vld [vmem:[%s7557 + $0x3c] sm:$0x1]
    %v7574 = vld [vmem:[%s7557 + $0x50] sm:$0xf]
    %v7575 = vld [vmem:[%s7557 + $0x54] sm:$0x1]
    %v7576 = vld [vmem:[%s7557 + $0x58] sm:$0xf]
    %v7577 = vld [vmem:[%s7557 + $0x5c] sm:$0x1]
    %v7578 = vld [vmem:[%s7557 + $0x60] sm:$0xf]
    %v7579 = vld [vmem:[%s7557 + $0x64] sm:$0x1]
    %v7580 = vld [vmem:[%s7557 + $0x68] sm:$0xf]
    %v7581 = vld [vmem:[%s7557 + $0x6c] sm:$0x1]
    %v7582 = vld [vmem:[%s7557 + $0x70] sm:$0xf]
    %v7583 = vld [vmem:[%s7557 + $0x74] sm:$0x1]
    %v7584 = vld [vmem:[%s7557 + $0x78] sm:$0xf]
    %v7585 = vld [vmem:[%s7557 + $0x7c] sm:$0x1]
    %v7586 = vld [vmem:[%s7557 + $0x80] sm:$0xf]
    %v7587 = vld [vmem:[%s7557 + $0x84] sm:$0x1]
    %v7588 = vld [vmem:[%s7557 + $0x88] sm:$0xf]
    %v7589 = vld [vmem:[%s7557 + $0x8c] sm:$0x1]
    %v7591 = vshrl.u32 %v7558, 16
    %v7593 = vrot.slane %v7591, 4
    %v7594 = vshll.u32 %v7558, 16
    %v7596 = vrot.slane %v7594, 5
    %v7597 = vor.u32 %v7593, %v7596
    %v7598 = vrot.slane %v7597, 4
    %v7600 = vshll.u32 %v7559, 16
    %v7602 = vrot.slane %v7600, 5
    %v7603 = vsel %vm1395, %v7598, %v7602
    %v7605 = vshrl.u32 %v7560, 16
    %v7607 = vrot.slane %v7605, 4
    %v7608 = vshll.u32 %v7560, 16
    %v7610 = vrot.slane %v7608, 5
    %v7611 = vor.u32 %v7607, %v7610
    %v7612 = vrot.slane %v7611, 4
    %v7614 = vshll.u32 %v7561, 16
    %v7616 = vrot.slane %v7614, 5
    %v7617 = vsel %vm1395, %v7612, %v7616
    %v7619 = vshrl.u32 %v7562, 16
    %v7621 = vrot.slane %v7619, 4
    %v7622 = vshll.u32 %v7562, 16
    %v7624 = vrot.slane %v7622, 5
    %v7625 = vor.u32 %v7621, %v7624
    %v7626 = vrot.slane %v7625, 4
    %v7628 = vshll.u32 %v7563, 16
    %v7630 = vrot.slane %v7628, 5
    %v7631 = vsel %vm1395, %v7626, %v7630
    %v7633 = vshrl.u32 %v7564, 16
    %v7635 = vrot.slane %v7633, 4
    %v7636 = vshll.u32 %v7564, 16
    %v7638 = vrot.slane %v7636, 5
    %v7639 = vor.u32 %v7635, %v7638
    %v7640 = vrot.slane %v7639, 4
    %v7642 = vshll.u32 %v7565, 16
    %v7644 = vrot.slane %v7642, 5
    %v7645 = vsel %vm1395, %v7640, %v7644
    %v7647 = vshrl.u32 %v7566, 16
    %v7649 = vrot.slane %v7647, 4
    %v7650 = vshll.u32 %v7566, 16
    %v7652 = vrot.slane %v7650, 5
    %v7653 = vor.u32 %v7649, %v7652
    %v7654 = vrot.slane %v7653, 4
    %v7656 = vshll.u32 %v7567, 16
    %v7658 = vrot.slane %v7656, 5
    %v7659 = vsel %vm1395, %v7654, %v7658
    %v7661 = vshrl.u32 %v7568, 16
    %v7663 = vrot.slane %v7661, 4
    %v7664 = vshll.u32 %v7568, 16
    %v7666 = vrot.slane %v7664, 5
    %v7667 = vor.u32 %v7663, %v7666
    %v7668 = vrot.slane %v7667, 4
    %v7670 = vshll.u32 %v7569, 16
    %v7672 = vrot.slane %v7670, 5
    %v7673 = vsel %vm1395, %v7668, %v7672
    %v7675 = vshrl.u32 %v7570, 16
    %v7677 = vrot.slane %v7675, 4
    %v7678 = vshll.u32 %v7570, 16
    %v7680 = vrot.slane %v7678, 5
    %v7681 = vor.u32 %v7677, %v7680
    %v7682 = vrot.slane %v7681, 4
    %v7684 = vshll.u32 %v7571, 16
    %v7686 = vrot.slane %v7684, 5
    %v7687 = vsel %vm1395, %v7682, %v7686
    %v7689 = vshrl.u32 %v7572, 16
    %v7691 = vrot.slane %v7689, 4
    %v7692 = vshll.u32 %v7572, 16
    %v7694 = vrot.slane %v7692, 5
    %v7695 = vor.u32 %v7691, %v7694
    %v7696 = vrot.slane %v7695, 4
    %v7698 = vshll.u32 %v7573, 16
    %v7700 = vrot.slane %v7698, 5
    %v7701 = vsel %vm1395, %v7696, %v7700
    %v7703 = vshrl.u32 %v7574, 16
    %v7705 = vrot.slane %v7703, 4
    %v7706 = vshll.u32 %v7574, 16
    %v7708 = vrot.slane %v7706, 5
    %v7709 = vor.u32 %v7705, %v7708
    %v7710 = vrot.slane %v7709, 4
    %v7712 = vshll.u32 %v7575, 16
    %v7714 = vrot.slane %v7712, 5
    %v7715 = vsel %vm1395, %v7710, %v7714
    %v7717 = vshrl.u32 %v7576, 16
    %v7719 = vrot.slane %v7717, 4
    %v7720 = vshll.u32 %v7576, 16
    %v7722 = vrot.slane %v7720, 5
    %v7723 = vor.u32 %v7719, %v7722
    %v7724 = vrot.slane %v7723, 4
    %v7726 = vshll.u32 %v7577, 16
    %v7728 = vrot.slane %v7726, 5
    %v7729 = vsel %vm1395, %v7724, %v7728
    %v7731 = vshrl.u32 %v7578, 16
    %v7733 = vrot.slane %v7731, 4
    %v7734 = vshll.u32 %v7578, 16
    %v7736 = vrot.slane %v7734, 5
    %v7737 = vor.u32 %v7733, %v7736
    %v7738 = vrot.slane %v7737, 4
    %v7740 = vshll.u32 %v7579, 16
    %v7742 = vrot.slane %v7740, 5
    %v7743 = vsel %vm1395, %v7738, %v7742
    %v7745 = vshrl.u32 %v7580, 16
    %v7747 = vrot.slane %v7745, 4
    %v7748 = vshll.u32 %v7580, 16
    %v7750 = vrot.slane %v7748, 5
    %v7751 = vor.u32 %v7747, %v7750
    %v7752 = vrot.slane %v7751, 4
    %v7754 = vshll.u32 %v7581, 16
    %v7756 = vrot.slane %v7754, 5
    %v7757 = vsel %vm1395, %v7752, %v7756
    %v7759 = vshrl.u32 %v7582, 16
    %v7761 = vrot.slane %v7759, 4
    %v7762 = vshll.u32 %v7582, 16
    %v7764 = vrot.slane %v7762, 5
    %v7765 = vor.u32 %v7761, %v7764
    %v7766 = vrot.slane %v7765, 4
    %v7768 = vshll.u32 %v7583, 16
    %v7770 = vrot.slane %v7768, 5
    %v7771 = vsel %vm1395, %v7766, %v7770
    %v7773 = vshrl.u32 %v7584, 16
    %v7775 = vrot.slane %v7773, 4
    %v7776 = vshll.u32 %v7584, 16
    %v7778 = vrot.slane %v7776, 5
    %v7779 = vor.u32 %v7775, %v7778
    %v7780 = vrot.slane %v7779, 4
    %v7782 = vshll.u32 %v7585, 16
    %v7784 = vrot.slane %v7782, 5
    %v7785 = vsel %vm1395, %v7780, %v7784
    %v7787 = vshrl.u32 %v7586, 16
    %v7789 = vrot.slane %v7787, 4
    %v7790 = vshll.u32 %v7586, 16
    %v7792 = vrot.slane %v7790, 5
    %v7793 = vor.u32 %v7789, %v7792
    %v7794 = vrot.slane %v7793, 4
    %v7796 = vshll.u32 %v7587, 16
    %v7798 = vrot.slane %v7796, 5
    %v7799 = vsel %vm1395, %v7794, %v7798
    %v7801 = vshrl.u32 %v7588, 16
    %v7803 = vrot.slane %v7801, 4
    %v7804 = vshll.u32 %v7588, 16
    %v7806 = vrot.slane %v7804, 5
    %v7807 = vor.u32 %v7803, %v7806
    %v7808 = vrot.slane %v7807, 4
    %v7810 = vshll.u32 %v7589, 16
    %v7812 = vrot.slane %v7810, 5
    %v7813 = vsel %vm1395, %v7808, %v7812
    %v7814 = vld [vmem:[%s7540 + $0x4] sm:$0x1]
    %v7815 = vld [vmem:[%s7540 + $0xc] sm:$0x1]
    %v7816 = vld [vmem:[%s7540 + $0x14] sm:$0x1]
    %v7817 = vld [vmem:[%s7540 + $0x1c] sm:$0x1]
    %v7818 = vld [vmem:[%s7540 + $0x24] sm:$0x1]
    %v7819 = vld [vmem:[%s7540 + $0x2c] sm:$0x1]
    %v7820 = vld [vmem:[%s7540 + $0x34] sm:$0x1]
    %v7821 = vld [vmem:[%s7540 + $0x3c] sm:$0x1]
    %v7822 = vld [vmem:[%s7540 + $0x54] sm:$0x1]
    %v7823 = vld [vmem:[%s7540 + $0x5c] sm:$0x1]
    %v7824 = vld [vmem:[%s7540 + $0x64] sm:$0x1]
    %v7825 = vld [vmem:[%s7540 + $0x6c] sm:$0x1]
    %v7826 = vld [vmem:[%s7540 + $0x74] sm:$0x1]
    %v7827 = vld [vmem:[%s7540 + $0x7c] sm:$0x1]
    %v7828 = vld [vmem:[%s7540 + $0x84] sm:$0x1]
    %v7829 = vld [vmem:[%s7540 + $0x8c] sm:$0x1]
    %v7831 = vshrl.u32 %v7541, 16
    %v7833 = vrot.slane %v7831, 4
    %v7834 = vshll.u32 %v7541, 16
    %v7836 = vrot.slane %v7834, 5
    %v7837 = vor.u32 %v7833, %v7836
    %v7838 = vrot.slane %v7837, 4
    %v7840 = vshll.u32 %v7814, 16
    %v7842 = vrot.slane %v7840, 5
    %v7843 = vsel %vm1395, %v7838, %v7842
    %v7845 = vshrl.u32 %v7542, 16
    %v7847 = vrot.slane %v7845, 4
    %v7848 = vshll.u32 %v7542, 16
    %v7850 = vrot.slane %v7848, 5
    %v7851 = vor.u32 %v7847, %v7850
    %v7852 = vrot.slane %v7851, 4
    %v7854 = vshll.u32 %v7815, 16
    %v7856 = vrot.slane %v7854, 5
    %v7857 = vsel %vm1395, %v7852, %v7856
    %v7859 = vshrl.u32 %v7543, 16
    %v7861 = vrot.slane %v7859, 4
    %v7862 = vshll.u32 %v7543, 16
    %v7864 = vrot.slane %v7862, 5
    %v7865 = vor.u32 %v7861, %v7864
    %v7866 = vrot.slane %v7865, 4
    %v7868 = vshll.u32 %v7816, 16
    %v7870 = vrot.slane %v7868, 5
    %v7871 = vsel %vm1395, %v7866, %v7870
    %v7873 = vshrl.u32 %v7544, 16
    %v7875 = vrot.slane %v7873, 4
    %v7876 = vshll.u32 %v7544, 16
    %v7878 = vrot.slane %v7876, 5
    %v7879 = vor.u32 %v7875, %v7878
    %v7880 = vrot.slane %v7879, 4
    %v7882 = vshll.u32 %v7817, 16
    %v7884 = vrot.slane %v7882, 5
    %v7885 = vsel %vm1395, %v7880, %v7884
    %v7887 = vshrl.u32 %v7545, 16
    %v7889 = vrot.slane %v7887, 4
    %v7890 = vshll.u32 %v7545, 16
    %v7892 = vrot.slane %v7890, 5
    %v7893 = vor.u32 %v7889, %v7892
    %v7894 = vrot.slane %v7893, 4
    %v7896 = vshll.u32 %v7818, 16
    %v7898 = vrot.slane %v7896, 5
    %v7899 = vsel %vm1395, %v7894, %v7898
    %v7901 = vshrl.u32 %v7546, 16
    %v7903 = vrot.slane %v7901, 4
    %v7904 = vshll.u32 %v7546, 16
    %v7906 = vrot.slane %v7904, 5
    %v7907 = vor.u32 %v7903, %v7906
    %v7908 = vrot.slane %v7907, 4
    %v7910 = vshll.u32 %v7819, 16
    %v7912 = vrot.slane %v7910, 5
    %v7913 = vsel %vm1395, %v7908, %v7912
    %v7915 = vshrl.u32 %v7547, 16
    %v7917 = vrot.slane %v7915, 4
    %v7918 = vshll.u32 %v7547, 16
    %v7920 = vrot.slane %v7918, 5
    %v7921 = vor.u32 %v7917, %v7920
    %v7922 = vrot.slane %v7921, 4
    %v7924 = vshll.u32 %v7820, 16
    %v7926 = vrot.slane %v7924, 5
    %v7927 = vsel %vm1395, %v7922, %v7926
    %v7929 = vshrl.u32 %v7548, 16
    %v7931 = vrot.slane %v7929, 4
    %v7932 = vshll.u32 %v7548, 16
    %v7934 = vrot.slane %v7932, 5
    %v7935 = vor.u32 %v7931, %v7934
    %v7936 = vrot.slane %v7935, 4
    %v7938 = vshll.u32 %v7821, 16
    %v7940 = vrot.slane %v7938, 5
    %v7941 = vsel %vm1395, %v7936, %v7940
    %v7943 = vshrl.u32 %v7549, 16
    %v7945 = vrot.slane %v7943, 4
    %v7946 = vshll.u32 %v7549, 16
    %v7948 = vrot.slane %v7946, 5
    %v7949 = vor.u32 %v7945, %v7948
    %v7950 = vrot.slane %v7949, 4
    %v7952 = vshll.u32 %v7822, 16
    %v7954 = vrot.slane %v7952, 5
    %v7955 = vsel %vm1395, %v7950, %v7954
    %v7957 = vshrl.u32 %v7550, 16
    %v7959 = vrot.slane %v7957, 4
    %v7960 = vshll.u32 %v7550, 16
    %v7962 = vrot.slane %v7960, 5
    %v7963 = vor.u32 %v7959, %v7962
    %v7964 = vrot.slane %v7963, 4
    %v7966 = vshll.u32 %v7823, 16
    %v7968 = vrot.slane %v7966, 5
    %v7969 = vsel %vm1395, %v7964, %v7968
    %v7971 = vshrl.u32 %v7551, 16
    %v7973 = vrot.slane %v7971, 4
    %v7974 = vshll.u32 %v7551, 16
    %v7976 = vrot.slane %v7974, 5
    %v7977 = vor.u32 %v7973, %v7976
    %v7978 = vrot.slane %v7977, 4
    %v7980 = vshll.u32 %v7824, 16
    %v7982 = vrot.slane %v7980, 5
    %v7983 = vsel %vm1395, %v7978, %v7982
    %v7985 = vshrl.u32 %v7552, 16
    %v7987 = vrot.slane %v7985, 4
    %v7988 = vshll.u32 %v7552, 16
    %v7990 = vrot.slane %v7988, 5
    %v7991 = vor.u32 %v7987, %v7990
    %v7992 = vrot.slane %v7991, 4
    %v7994 = vshll.u32 %v7825, 16
    %v7996 = vrot.slane %v7994, 5
    %v7997 = vsel %vm1395, %v7992, %v7996
    %v7999 = vshrl.u32 %v7553, 16
    %v8001 = vrot.slane %v7999, 4
    %v8002 = vshll.u32 %v7553, 16
    %v8004 = vrot.slane %v8002, 5
    %v8005 = vor.u32 %v8001, %v8004
    %v8006 = vrot.slane %v8005, 4
    %v8008 = vshll.u32 %v7826, 16
    %v8010 = vrot.slane %v8008, 5
    %v8011 = vsel %vm1395, %v8006, %v8010
    %v8013 = vshrl.u32 %v7554, 16
    %v8015 = vrot.slane %v8013, 4
    %v8016 = vshll.u32 %v7554, 16
    %v8018 = vrot.slane %v8016, 5
    %v8019 = vor.u32 %v8015, %v8018
    %v8020 = vrot.slane %v8019, 4
    %v8022 = vshll.u32 %v7827, 16
    %v8024 = vrot.slane %v8022, 5
    %v8025 = vsel %vm1395, %v8020, %v8024
    %v8027 = vshrl.u32 %v7555, 16
    %v8029 = vrot.slane %v8027, 4
    %v8030 = vshll.u32 %v7555, 16
    %v8032 = vrot.slane %v8030, 5
    %v8033 = vor.u32 %v8029, %v8032
    %v8034 = vrot.slane %v8033, 4
    %v8036 = vshll.u32 %v7828, 16
    %v8038 = vrot.slane %v8036, 5
    %v8039 = vsel %vm1395, %v8034, %v8038
    %v8041 = vshrl.u32 %v7556, 16
    %v8043 = vrot.slane %v8041, 4
    %v8044 = vshll.u32 %v7556, 16
    %v8046 = vrot.slane %v8044, 5
    %v8047 = vor.u32 %v8043, %v8046
    %v8048 = vrot.slane %v8047, 4
    %v8050 = vshll.u32 %v7829, 16
    %v8052 = vrot.slane %v8050, 5
    %v8053 = vsel %vm1395, %v8048, %v8052
    %s8054 = scalar_lea.vmem [#allocation3], 168
    %v8055 = vld [vmem:[%s8054] sm:$0xf]
    %v8056 = vld [vmem:[%s8054 + $0x8] sm:$0xf]
    %v8057 = vld [vmem:[%s8054 + $0x10] sm:$0xf]
    %v8058 = vld [vmem:[%s8054 + $0x18] sm:$0xf]
    %v8059 = vld [vmem:[%s8054 + $0x20] sm:$0xf]
    %v8060 = vld [vmem:[%s8054 + $0x28] sm:$0xf]
    %v8061 = vld [vmem:[%s8054 + $0x30] sm:$0xf]
    %v8062 = vld [vmem:[%s8054 + $0x38] sm:$0xf]
    %v8063 = vld [vmem:[%s8054 + $0x50] sm:$0xf]
    %v8064 = vld [vmem:[%s8054 + $0x58] sm:$0xf]
    %v8065 = vld [vmem:[%s8054 + $0x60] sm:$0xf]
    %v8066 = vld [vmem:[%s8054 + $0x68] sm:$0xf]
    %v8067 = vld [vmem:[%s8054 + $0x70] sm:$0xf]
    %v8068 = vld [vmem:[%s8054 + $0x78] sm:$0xf]
    %v8069 = vld [vmem:[%s8054 + $0x80] sm:$0xf]
    %v8070 = vld [vmem:[%s8054 + $0x88] sm:$0xf]
    %v8071 = vld [vmem:[%s7151] sm:$0xf]
    %v8072 = vld [vmem:[%s7151 + $0x4] sm:$0x1]
    %v8073 = vld [vmem:[%s7151 + $0x8] sm:$0xf]
    %v8074 = vld [vmem:[%s7151 + $0xc] sm:$0x1]
    %v8075 = vld [vmem:[%s7151 + $0x10] sm:$0xf]
    %v8076 = vld [vmem:[%s7151 + $0x14] sm:$0x1]
    %v8077 = vld [vmem:[%s7151 + $0x18] sm:$0xf]
    %v8078 = vld [vmem:[%s7151 + $0x1c] sm:$0x1]
    %v8079 = vld [vmem:[%s7151 + $0x20] sm:$0xf]
    %v8080 = vld [vmem:[%s7151 + $0x24] sm:$0x1]
    %v8081 = vld [vmem:[%s7151 + $0x28] sm:$0xf]
    %v8082 = vld [vmem:[%s7151 + $0x2c] sm:$0x1]
    %v8083 = vld [vmem:[%s7151 + $0x30] sm:$0xf]
    %v8084 = vld [vmem:[%s7151 + $0x34] sm:$0x1]
    %v8085 = vld [vmem:[%s7151 + $0x38] sm:$0xf]
    %v8086 = vld [vmem:[%s7151 + $0x3c] sm:$0x1]
    %v8087 = vld [vmem:[%s7151 + $0x50] sm:$0xf]
    %v8088 = vld [vmem:[%s7151 + $0x54] sm:$0x1]
    %v8089 = vld [vmem:[%s7151 + $0x58] sm:$0xf]
    %v8090 = vld [vmem:[%s7151 + $0x5c] sm:$0x1]
    %v8091 = vld [vmem:[%s7151 + $0x60] sm:$0xf]
    %v8092 = vld [vmem:[%s7151 + $0x64] sm:$0x1]
    %v8093 = vld [vmem:[%s7151 + $0x68] sm:$0xf]
    %v8094 = vld [vmem:[%s7151 + $0x6c] sm:$0x1]
    %v8095 = vld [vmem:[%s7151 + $0x70] sm:$0xf]
    %v8096 = vld [vmem:[%s7151 + $0x74] sm:$0x1]
    %v8097 = vld [vmem:[%s7151 + $0x78] sm:$0xf]
    %v8098 = vld [vmem:[%s7151 + $0x7c] sm:$0x1]
    %v8099 = vld [vmem:[%s7151 + $0x80] sm:$0xf]
    %v8100 = vld [vmem:[%s7151 + $0x84] sm:$0x1]
    %v8101 = vld [vmem:[%s7151 + $0x88] sm:$0xf]
    %v8102 = vld [vmem:[%s7151 + $0x8c] sm:$0x1]
    %v8104 = vshrl.u32 %v8071, 16
    %v8106 = vrot.slane %v8104, 4
    %v8107 = vshll.u32 %v8071, 16
    %v8109 = vrot.slane %v8107, 5
    %v8110 = vor.u32 %v8106, %v8109
    %v8111 = vrot.slane %v8110, 4
    %v8113 = vshll.u32 %v8072, 16
    %v8115 = vrot.slane %v8113, 5
    %v8116 = vsel %vm1395, %v8111, %v8115
    %v8118 = vshrl.u32 %v8073, 16
    %v8120 = vrot.slane %v8118, 4
    %v8121 = vshll.u32 %v8073, 16
    %v8123 = vrot.slane %v8121, 5
    %v8124 = vor.u32 %v8120, %v8123
    %v8125 = vrot.slane %v8124, 4
    %v8127 = vshll.u32 %v8074, 16
    %v8129 = vrot.slane %v8127, 5
    %v8130 = vsel %vm1395, %v8125, %v8129
    %v8132 = vshrl.u32 %v8075, 16
    %v8134 = vrot.slane %v8132, 4
    %v8135 = vshll.u32 %v8075, 16
    %v8137 = vrot.slane %v8135, 5
    %v8138 = vor.u32 %v8134, %v8137
    %v8139 = vrot.slane %v8138, 4
    %v8141 = vshll.u32 %v8076, 16
    %v8143 = vrot.slane %v8141, 5
    %v8144 = vsel %vm1395, %v8139, %v8143
    %v8146 = vshrl.u32 %v8077, 16
    %v8148 = vrot.slane %v8146, 4
    %v8149 = vshll.u32 %v8077, 16
    %v8151 = vrot.slane %v8149, 5
    %v8152 = vor.u32 %v8148, %v8151
    %v8153 = vrot.slane %v8152, 4
    %v8155 = vshll.u32 %v8078, 16
    %v8157 = vrot.slane %v8155, 5
    %v8158 = vsel %vm1395, %v8153, %v8157
    %v8160 = vshrl.u32 %v8079, 16
    %v8162 = vrot.slane %v8160, 4
    %v8163 = vshll.u32 %v8079, 16
    %v8165 = vrot.slane %v8163, 5
    %v8166 = vor.u32 %v8162, %v8165
    %v8167 = vrot.slane %v8166, 4
    %v8169 = vshll.u32 %v8080, 16
    %v8171 = vrot.slane %v8169, 5
    %v8172 = vsel %vm1395, %v8167, %v8171
    %v8174 = vshrl.u32 %v8081, 16
    %v8176 = vrot.slane %v8174, 4
    %v8177 = vshll.u32 %v8081, 16
    %v8179 = vrot.slane %v8177, 5
    %v8180 = vor.u32 %v8176, %v8179
    %v8181 = vrot.slane %v8180, 4
    %v8183 = vshll.u32 %v8082, 16
    %v8185 = vrot.slane %v8183, 5
    %v8186 = vsel %vm1395, %v8181, %v8185
    %v8188 = vshrl.u32 %v8083, 16
    %v8190 = vrot.slane %v8188, 4
    %v8191 = vshll.u32 %v8083, 16
    %v8193 = vrot.slane %v8191, 5
    %v8194 = vor.u32 %v8190, %v8193
    %v8195 = vrot.slane %v8194, 4
    %v8197 = vshll.u32 %v8084, 16
    %v8199 = vrot.slane %v8197, 5
    %v8200 = vsel %vm1395, %v8195, %v8199
    %v8202 = vshrl.u32 %v8085, 16
    %v8204 = vrot.slane %v8202, 4
    %v8205 = vshll.u32 %v8085, 16
    %v8207 = vrot.slane %v8205, 5
    %v8208 = vor.u32 %v8204, %v8207
    %v8209 = vrot.slane %v8208, 4
    %v8211 = vshll.u32 %v8086, 16
    %v8213 = vrot.slane %v8211, 5
    %v8214 = vsel %vm1395, %v8209, %v8213
    %v8216 = vshrl.u32 %v8087, 16
    %v8218 = vrot.slane %v8216, 4
    %v8219 = vshll.u32 %v8087, 16
    %v8221 = vrot.slane %v8219, 5
    %v8222 = vor.u32 %v8218, %v8221
    %v8223 = vrot.slane %v8222, 4
    %v8225 = vshll.u32 %v8088, 16
    %v8227 = vrot.slane %v8225, 5
    %v8228 = vsel %vm1395, %v8223, %v8227
    %v8230 = vshrl.u32 %v8089, 16
    %v8232 = vrot.slane %v8230, 4
    %v8233 = vshll.u32 %v8089, 16
    %v8235 = vrot.slane %v8233, 5
    %v8236 = vor.u32 %v8232, %v8235
    %v8237 = vrot.slane %v8236, 4
    %v8239 = vshll.u32 %v8090, 16
    %v8241 = vrot.slane %v8239, 5
    %v8242 = vsel %vm1395, %v8237, %v8241
    %v8244 = vshrl.u32 %v8091, 16
    %v8246 = vrot.slane %v8244, 4
    %v8247 = vshll.u32 %v8091, 16
    %v8249 = vrot.slane %v8247, 5
    %v8250 = vor.u32 %v8246, %v8249
    %v8251 = vrot.slane %v8250, 4
    %v8253 = vshll.u32 %v8092, 16
    %v8255 = vrot.slane %v8253, 5
    %v8256 = vsel %vm1395, %v8251, %v8255
    %v8258 = vshrl.u32 %v8093, 16
    %v8260 = vrot.slane %v8258, 4
    %v8261 = vshll.u32 %v8093, 16
    %v8263 = vrot.slane %v8261, 5
    %v8264 = vor.u32 %v8260, %v8263
    %v8265 = vrot.slane %v8264, 4
    %v8267 = vshll.u32 %v8094, 16
    %v8269 = vrot.slane %v8267, 5
    %v8270 = vsel %vm1395, %v8265, %v8269
    %v8272 = vshrl.u32 %v8095, 16
    %v8274 = vrot.slane %v8272, 4
    %v8275 = vshll.u32 %v8095, 16
    %v8277 = vrot.slane %v8275, 5
    %v8278 = vor.u32 %v8274, %v8277
    %v8279 = vrot.slane %v8278, 4
    %v8281 = vshll.u32 %v8096, 16
    %v8283 = vrot.slane %v8281, 5
    %v8284 = vsel %vm1395, %v8279, %v8283
    %v8286 = vshrl.u32 %v8097, 16
    %v8288 = vrot.slane %v8286, 4
    %v8289 = vshll.u32 %v8097, 16
    %v8291 = vrot.slane %v8289, 5
    %v8292 = vor.u32 %v8288, %v8291
    %v8293 = vrot.slane %v8292, 4
    %v8295 = vshll.u32 %v8098, 16
    %v8297 = vrot.slane %v8295, 5
    %v8298 = vsel %vm1395, %v8293, %v8297
    %v8300 = vshrl.u32 %v8099, 16
    %v8302 = vrot.slane %v8300, 4
    %v8303 = vshll.u32 %v8099, 16
    %v8305 = vrot.slane %v8303, 5
    %v8306 = vor.u32 %v8302, %v8305
    %v8307 = vrot.slane %v8306, 4
    %v8309 = vshll.u32 %v8100, 16
    %v8311 = vrot.slane %v8309, 5
    %v8312 = vsel %vm1395, %v8307, %v8311
    %v8314 = vshrl.u32 %v8101, 16
    %v8316 = vrot.slane %v8314, 4
    %v8317 = vshll.u32 %v8101, 16
    %v8319 = vrot.slane %v8317, 5
    %v8320 = vor.u32 %v8316, %v8319
    %v8321 = vrot.slane %v8320, 4
    %v8323 = vshll.u32 %v8102, 16
    %v8325 = vrot.slane %v8323, 5
    %v8326 = vsel %vm1395, %v8321, %v8325
    %v8327 = vld [vmem:[%s8054 + $0x4] sm:$0x1]
    %v8328 = vld [vmem:[%s8054 + $0xc] sm:$0x1]
    %v8329 = vld [vmem:[%s8054 + $0x14] sm:$0x1]
    %v8330 = vld [vmem:[%s8054 + $0x1c] sm:$0x1]
    %v8331 = vld [vmem:[%s8054 + $0x24] sm:$0x1]
    %v8332 = vld [vmem:[%s8054 + $0x2c] sm:$0x1]
    %v8333 = vld [vmem:[%s8054 + $0x34] sm:$0x1]
    %v8334 = vld [vmem:[%s8054 + $0x3c] sm:$0x1]
    %v8335 = vld [vmem:[%s8054 + $0x54] sm:$0x1]
    %v8336 = vld [vmem:[%s8054 + $0x5c] sm:$0x1]
    %v8337 = vld [vmem:[%s8054 + $0x64] sm:$0x1]
    %v8338 = vld [vmem:[%s8054 + $0x6c] sm:$0x1]
    %v8339 = vld [vmem:[%s8054 + $0x74] sm:$0x1]
    %v8340 = vld [vmem:[%s8054 + $0x7c] sm:$0x1]
    %v8341 = vld [vmem:[%s8054 + $0x84] sm:$0x1]
    %v8342 = vld [vmem:[%s8054 + $0x8c] sm:$0x1]
    %v8344 = vshrl.u32 %v8055, 16
    %v8346 = vrot.slane %v8344, 4
    %v8347 = vshll.u32 %v8055, 16
    %v8349 = vrot.slane %v8347, 5
    %v8350 = vor.u32 %v8346, %v8349
    %v8351 = vrot.slane %v8350, 4
    %v8353 = vshll.u32 %v8327, 16
    %v8355 = vrot.slane %v8353, 5
    %v8356 = vsel %vm1395, %v8351, %v8355
    %v8358 = vshrl.u32 %v8056, 16
    %v8360 = vrot.slane %v8358, 4
    %v8361 = vshll.u32 %v8056, 16
    %v8363 = vrot.slane %v8361, 5
    %v8364 = vor.u32 %v8360, %v8363
    %v8365 = vrot.slane %v8364, 4
    %v8367 = vshll.u32 %v8328, 16
    %v8369 = vrot.slane %v8367, 5
    %v8370 = vsel %vm1395, %v8365, %v8369
    %v8372 = vshrl.u32 %v8057, 16
    %v8374 = vrot.slane %v8372, 4
    %v8375 = vshll.u32 %v8057, 16
    %v8377 = vrot.slane %v8375, 5
    %v8378 = vor.u32 %v8374, %v8377
    %v8379 = vrot.slane %v8378, 4
    %v8381 = vshll.u32 %v8329, 16
    %v8383 = vrot.slane %v8381, 5
    %v8384 = vsel %vm1395, %v8379, %v8383
    %v8386 = vshrl.u32 %v8058, 16
    %v8388 = vrot.slane %v8386, 4
    %v8389 = vshll.u32 %v8058, 16
    %v8391 = vrot.slane %v8389, 5
    %v8392 = vor.u32 %v8388, %v8391
    %v8393 = vrot.slane %v8392, 4
    %v8395 = vshll.u32 %v8330, 16
    %v8397 = vrot.slane %v8395, 5
    %v8398 = vsel %vm1395, %v8393, %v8397
    %v8400 = vshrl.u32 %v8059, 16
    %v8402 = vrot.slane %v8400, 4
    %v8403 = vshll.u32 %v8059, 16
    %v8405 = vrot.slane %v8403, 5
    %v8406 = vor.u32 %v8402, %v8405
    %v8407 = vrot.slane %v8406, 4
    %v8409 = vshll.u32 %v8331, 16
    %v8411 = vrot.slane %v8409, 5
    %v8412 = vsel %vm1395, %v8407, %v8411
    %v8414 = vshrl.u32 %v8060, 16
    %v8416 = vrot.slane %v8414, 4
    %v8417 = vshll.u32 %v8060, 16
    %v8419 = vrot.slane %v8417, 5
    %v8420 = vor.u32 %v8416, %v8419
    %v8421 = vrot.slane %v8420, 4
    %v8423 = vshll.u32 %v8332, 16
    %v8425 = vrot.slane %v8423, 5
    %v8426 = vsel %vm1395, %v8421, %v8425
    %v8428 = vshrl.u32 %v8061, 16
    %v8430 = vrot.slane %v8428, 4
    %v8431 = vshll.u32 %v8061, 16
    %v8433 = vrot.slane %v8431, 5
    %v8434 = vor.u32 %v8430, %v8433
    %v8435 = vrot.slane %v8434, 4
    %v8437 = vshll.u32 %v8333, 16
    %v8439 = vrot.slane %v8437, 5
    %v8440 = vsel %vm1395, %v8435, %v8439
    %v8442 = vshrl.u32 %v8062, 16
    %v8444 = vrot.slane %v8442, 4
    %v8445 = vshll.u32 %v8062, 16
    %v8447 = vrot.slane %v8445, 5
    %v8448 = vor.u32 %v8444, %v8447
    %v8449 = vrot.slane %v8448, 4
    %v8451 = vshll.u32 %v8334, 16
    %v8453 = vrot.slane %v8451, 5
    %v8454 = vsel %vm1395, %v8449, %v8453
    %v8456 = vshrl.u32 %v8063, 16
    %v8458 = vrot.slane %v8456, 4
    %v8459 = vshll.u32 %v8063, 16
    %v8461 = vrot.slane %v8459, 5
    %v8462 = vor.u32 %v8458, %v8461
    %v8463 = vrot.slane %v8462, 4
    %v8465 = vshll.u32 %v8335, 16
    %v8467 = vrot.slane %v8465, 5
    %v8468 = vsel %vm1395, %v8463, %v8467
    %v8470 = vshrl.u32 %v8064, 16
    %v8472 = vrot.slane %v8470, 4
    %v8473 = vshll.u32 %v8064, 16
    %v8475 = vrot.slane %v8473, 5
    %v8476 = vor.u32 %v8472, %v8475
    %v8477 = vrot.slane %v8476, 4
    %v8479 = vshll.u32 %v8336, 16
    %v8481 = vrot.slane %v8479, 5
    %v8482 = vsel %vm1395, %v8477, %v8481
    %v8484 = vshrl.u32 %v8065, 16
    %v8486 = vrot.slane %v8484, 4
    %v8487 = vshll.u32 %v8065, 16
    %v8489 = vrot.slane %v8487, 5
    %v8490 = vor.u32 %v8486, %v8489
    %v8491 = vrot.slane %v8490, 4
    %v8493 = vshll.u32 %v8337, 16
    %v8495 = vrot.slane %v8493, 5
    %v8496 = vsel %vm1395, %v8491, %v8495
    %v8498 = vshrl.u32 %v8066, 16
    %v8500 = vrot.slane %v8498, 4
    %v8501 = vshll.u32 %v8066, 16
    %v8503 = vrot.slane %v8501, 5
    %v8504 = vor.u32 %v8500, %v8503
    %v8505 = vrot.slane %v8504, 4
    %v8507 = vshll.u32 %v8338, 16
    %v8509 = vrot.slane %v8507, 5
    %v8510 = vsel %vm1395, %v8505, %v8509
    %v8512 = vshrl.u32 %v8067, 16
    %v8514 = vrot.slane %v8512, 4
    %v8515 = vshll.u32 %v8067, 16
    %v8517 = vrot.slane %v8515, 5
    %v8518 = vor.u32 %v8514, %v8517
    %v8519 = vrot.slane %v8518, 4
    %v8521 = vshll.u32 %v8339, 16
    %v8523 = vrot.slane %v8521, 5
    %v8524 = vsel %vm1395, %v8519, %v8523
    %v8526 = vshrl.u32 %v8068, 16
    %v8528 = vrot.slane %v8526, 4
    %v8529 = vshll.u32 %v8068, 16
    %v8531 = vrot.slane %v8529, 5
    %v8532 = vor.u32 %v8528, %v8531
    %v8533 = vrot.slane %v8532, 4
    %v8535 = vshll.u32 %v8340, 16
    %v8537 = vrot.slane %v8535, 5
    %v8538 = vsel %vm1395, %v8533, %v8537
    %v8540 = vshrl.u32 %v8069, 16
    %v8542 = vrot.slane %v8540, 4
    %v8543 = vshll.u32 %v8069, 16
    %v8545 = vrot.slane %v8543, 5
    %v8546 = vor.u32 %v8542, %v8545
    %v8547 = vrot.slane %v8546, 4
    %v8549 = vshll.u32 %v8341, 16
    %v8551 = vrot.slane %v8549, 5
    %v8552 = vsel %vm1395, %v8547, %v8551
    %v8554 = vshrl.u32 %v8070, 16
    %v8556 = vrot.slane %v8554, 4
    %v8557 = vshll.u32 %v8070, 16
    %v8559 = vrot.slane %v8557, 5
    %v8560 = vor.u32 %v8556, %v8559
    %v8561 = vrot.slane %v8560, 4
    %v8563 = vshll.u32 %v8342, 16
    %v8565 = vrot.slane %v8563, 5
    %v8566 = vsel %vm1395, %v8561, %v8565
    %s8567 = scalar_lea.vmem [#allocation3], 488
    %v8568 = vld [vmem:[%s8567] sm:$0xf]
    %v8569 = vld [vmem:[%s8567 + $0x8] sm:$0xf]
    %v8570 = vld [vmem:[%s8567 + $0x10] sm:$0xf]
    %v8571 = vld [vmem:[%s8567 + $0x18] sm:$0xf]
    %v8572 = vld [vmem:[%s8567 + $0x20] sm:$0xf]
    %v8573 = vld [vmem:[%s8567 + $0x28] sm:$0xf]
    %v8574 = vld [vmem:[%s8567 + $0x30] sm:$0xf]
    %v8575 = vld [vmem:[%s8567 + $0x38] sm:$0xf]
    %v8576 = vld [vmem:[%s8567 + $0x50] sm:$0xf]
    %v8577 = vld [vmem:[%s8567 + $0x58] sm:$0xf]
    %v8578 = vld [vmem:[%s8567 + $0x60] sm:$0xf]
    %v8579 = vld [vmem:[%s8567 + $0x68] sm:$0xf]
    %v8580 = vld [vmem:[%s8567 + $0x70] sm:$0xf]
    %v8581 = vld [vmem:[%s8567 + $0x78] sm:$0xf]
    %v8582 = vld [vmem:[%s8567 + $0x80] sm:$0xf]
    %v8583 = vld [vmem:[%s8567 + $0x88] sm:$0xf]
    %s8584 = scalar_lea.vmem [#allocation3], 328
    %v8585 = vld [vmem:[%s8584] sm:$0xf]
    %v8586 = vld [vmem:[%s8584 + $0x4] sm:$0x1]
    %v8587 = vld [vmem:[%s8584 + $0x8] sm:$0xf]
    %v8588 = vld [vmem:[%s8584 + $0xc] sm:$0x1]
    %v8589 = vld [vmem:[%s8584 + $0x10] sm:$0xf]
    %v8590 = vld [vmem:[%s8584 + $0x14] sm:$0x1]
    %v8591 = vld [vmem:[%s8584 + $0x18] sm:$0xf]
    %v8592 = vld [vmem:[%s8584 + $0x1c] sm:$0x1]
    %v8593 = vld [vmem:[%s8584 + $0x20] sm:$0xf]
    %v8594 = vld [vmem:[%s8584 + $0x24] sm:$0x1]
    %v8595 = vld [vmem:[%s8584 + $0x28] sm:$0xf]
    %v8596 = vld [vmem:[%s8584 + $0x2c] sm:$0x1]
    %v8597 = vld [vmem:[%s8584 + $0x30] sm:$0xf]
    %v8598 = vld [vmem:[%s8584 + $0x34] sm:$0x1]
    %v8599 = vld [vmem:[%s8584 + $0x38] sm:$0xf]
    %v8600 = vld [vmem:[%s8584 + $0x3c] sm:$0x1]
    %v8601 = vld [vmem:[%s8584 + $0x50] sm:$0xf]
    %v8602 = vld [vmem:[%s8584 + $0x54] sm:$0x1]
    %v8603 = vld [vmem:[%s8584 + $0x58] sm:$0xf]
    %v8604 = vld [vmem:[%s8584 + $0x5c] sm:$0x1]
    %v8605 = vld [vmem:[%s8584 + $0x60] sm:$0xf]
    %v8606 = vld [vmem:[%s8584 + $0x64] sm:$0x1]
    %v8607 = vld [vmem:[%s8584 + $0x68] sm:$0xf]
    %v8608 = vld [vmem:[%s8584 + $0x6c] sm:$0x1]
    %v8609 = vld [vmem:[%s8584 + $0x70] sm:$0xf]
    %v8610 = vld [vmem:[%s8584 + $0x74] sm:$0x1]
    %v8611 = vld [vmem:[%s8584 + $0x78] sm:$0xf]
    %v8612 = vld [vmem:[%s8584 + $0x7c] sm:$0x1]
    %v8613 = vld [vmem:[%s8584 + $0x80] sm:$0xf]
    %v8614 = vld [vmem:[%s8584 + $0x84] sm:$0x1]
    %v8615 = vld [vmem:[%s8584 + $0x88] sm:$0xf]
    %v8616 = vld [vmem:[%s8584 + $0x8c] sm:$0x1]
    %v8618 = vshrl.u32 %v8585, 16
    %v8620 = vrot.slane %v8618, 4
    %v8621 = vshll.u32 %v8585, 16
    %v8623 = vrot.slane %v8621, 5
    %v8624 = vor.u32 %v8620, %v8623
    %v8625 = vrot.slane %v8624, 4
    %v8627 = vshll.u32 %v8586, 16
    %v8629 = vrot.slane %v8627, 5
    %v8630 = vsel %vm1395, %v8625, %v8629
    %v8632 = vshrl.u32 %v8587, 16
    %v8634 = vrot.slane %v8632, 4
    %v8635 = vshll.u32 %v8587, 16
    %v8637 = vrot.slane %v8635, 5
    %v8638 = vor.u32 %v8634, %v8637
    %v8639 = vrot.slane %v8638, 4
    %v8641 = vshll.u32 %v8588, 16
    %v8643 = vrot.slane %v8641, 5
    %v8644 = vsel %vm1395, %v8639, %v8643
    %v8646 = vshrl.u32 %v8589, 16
    %v8648 = vrot.slane %v8646, 4
    %v8649 = vshll.u32 %v8589, 16
    %v8651 = vrot.slane %v8649, 5
    %v8652 = vor.u32 %v8648, %v8651
    %v8653 = vrot.slane %v8652, 4
    %v8655 = vshll.u32 %v8590, 16
    %v8657 = vrot.slane %v8655, 5
    %v8658 = vsel %vm1395, %v8653, %v8657
    %v8660 = vshrl.u32 %v8591, 16
    %v8662 = vrot.slane %v8660, 4
    %v8663 = vshll.u32 %v8591, 16
    %v8665 = vrot.slane %v8663, 5
    %v8666 = vor.u32 %v8662, %v8665
    %v8667 = vrot.slane %v8666, 4
    %v8669 = vshll.u32 %v8592, 16
    %v8671 = vrot.slane %v8669, 5
    %v8672 = vsel %vm1395, %v8667, %v8671
    %v8674 = vshrl.u32 %v8593, 16
    %v8676 = vrot.slane %v8674, 4
    %v8677 = vshll.u32 %v8593, 16
    %v8679 = vrot.slane %v8677, 5
    %v8680 = vor.u32 %v8676, %v8679
    %v8681 = vrot.slane %v8680, 4
    %v8683 = vshll.u32 %v8594, 16
    %v8685 = vrot.slane %v8683, 5
    %v8686 = vsel %vm1395, %v8681, %v8685
    %v8688 = vshrl.u32 %v8595, 16
    %v8690 = vrot.slane %v8688, 4
    %v8691 = vshll.u32 %v8595, 16
    %v8693 = vrot.slane %v8691, 5
    %v8694 = vor.u32 %v8690, %v8693
    %v8695 = vrot.slane %v8694, 4
    %v8697 = vshll.u32 %v8596, 16
    %v8699 = vrot.slane %v8697, 5
    %v8700 = vsel %vm1395, %v8695, %v8699
    %v8702 = vshrl.u32 %v8597, 16
    %v8704 = vrot.slane %v8702, 4
    %v8705 = vshll.u32 %v8597, 16
    %v8707 = vrot.slane %v8705, 5
    %v8708 = vor.u32 %v8704, %v8707
    %v8709 = vrot.slane %v8708, 4
    %v8711 = vshll.u32 %v8598, 16
    %v8713 = vrot.slane %v8711, 5
    %v8714 = vsel %vm1395, %v8709, %v8713
    %v8716 = vshrl.u32 %v8599, 16
    %v8718 = vrot.slane %v8716, 4
    %v8719 = vshll.u32 %v8599, 16
    %v8721 = vrot.slane %v8719, 5
    %v8722 = vor.u32 %v8718, %v8721
    %v8723 = vrot.slane %v8722, 4
    %v8725 = vshll.u32 %v8600, 16
    %v8727 = vrot.slane %v8725, 5
    %v8728 = vsel %vm1395, %v8723, %v8727
    %v8730 = vshrl.u32 %v8601, 16
    %v8732 = vrot.slane %v8730, 4
    %v8733 = vshll.u32 %v8601, 16
    %v8735 = vrot.slane %v8733, 5
    %v8736 = vor.u32 %v8732, %v8735
    %v8737 = vrot.slane %v8736, 4
    %v8739 = vshll.u32 %v8602, 16
    %v8741 = vrot.slane %v8739, 5
    %v8742 = vsel %vm1395, %v8737, %v8741
    %v8744 = vshrl.u32 %v8603, 16
    %v8746 = vrot.slane %v8744, 4
    %v8747 = vshll.u32 %v8603, 16
    %v8749 = vrot.slane %v8747, 5
    %v8750 = vor.u32 %v8746, %v8749
    %v8751 = vrot.slane %v8750, 4
    %v8753 = vshll.u32 %v8604, 16
    %v8755 = vrot.slane %v8753, 5
    %v8756 = vsel %vm1395, %v8751, %v8755
    %v8758 = vshrl.u32 %v8605, 16
    %v8760 = vrot.slane %v8758, 4
    %v8761 = vshll.u32 %v8605, 16
    %v8763 = vrot.slane %v8761, 5
    %v8764 = vor.u32 %v8760, %v8763
    %v8765 = vrot.slane %v8764, 4
    %v8767 = vshll.u32 %v8606, 16
    %v8769 = vrot.slane %v8767, 5
    %v8770 = vsel %vm1395, %v8765, %v8769
    %v8772 = vshrl.u32 %v8607, 16
    %v8774 = vrot.slane %v8772, 4
    %v8775 = vshll.u32 %v8607, 16
    %v8777 = vrot.slane %v8775, 5
    %v8778 = vor.u32 %v8774, %v8777
    %v8779 = vrot.slane %v8778, 4
    %v8781 = vshll.u32 %v8608, 16
    %v8783 = vrot.slane %v8781, 5
    %v8784 = vsel %vm1395, %v8779, %v8783
    %v8786 = vshrl.u32 %v8609, 16
    %v8788 = vrot.slane %v8786, 4
    %v8789 = vshll.u32 %v8609, 16
    %v8791 = vrot.slane %v8789, 5
    %v8792 = vor.u32 %v8788, %v8791
    %v8793 = vrot.slane %v8792, 4
    %v8795 = vshll.u32 %v8610, 16
    %v8797 = vrot.slane %v8795, 5
    %v8798 = vsel %vm1395, %v8793, %v8797
    %v8800 = vshrl.u32 %v8611, 16
    %v8802 = vrot.slane %v8800, 4
    %v8803 = vshll.u32 %v8611, 16
    %v8805 = vrot.slane %v8803, 5
    %v8806 = vor.u32 %v8802, %v8805
    %v8807 = vrot.slane %v8806, 4
    %v8809 = vshll.u32 %v8612, 16
    %v8811 = vrot.slane %v8809, 5
    %v8812 = vsel %vm1395, %v8807, %v8811
    %v8814 = vshrl.u32 %v8613, 16
    %v8816 = vrot.slane %v8814, 4
    %v8817 = vshll.u32 %v8613, 16
    %v8819 = vrot.slane %v8817, 5
    %v8820 = vor.u32 %v8816, %v8819
    %v8821 = vrot.slane %v8820, 4
    %v8823 = vshll.u32 %v8614, 16
    %v8825 = vrot.slane %v8823, 5
    %v8826 = vsel %vm1395, %v8821, %v8825
    %v8828 = vshrl.u32 %v8615, 16
    %v8830 = vrot.slane %v8828, 4
    %v8831 = vshll.u32 %v8615, 16
    %v8833 = vrot.slane %v8831, 5
    %v8834 = vor.u32 %v8830, %v8833
    %v8835 = vrot.slane %v8834, 4
    %v8837 = vshll.u32 %v8616, 16
    %v8839 = vrot.slane %v8837, 5
    %v8840 = vsel %vm1395, %v8835, %v8839
    %v8841 = vld [vmem:[%s8567 + $0x4] sm:$0x1]
    %v8842 = vld [vmem:[%s8567 + $0xc] sm:$0x1]
    %v8843 = vld [vmem:[%s8567 + $0x14] sm:$0x1]
    %v8844 = vld [vmem:[%s8567 + $0x1c] sm:$0x1]
    %v8845 = vld [vmem:[%s8567 + $0x24] sm:$0x1]
    %v8846 = vld [vmem:[%s8567 + $0x2c] sm:$0x1]
    %v8847 = vld [vmem:[%s8567 + $0x34] sm:$0x1]
    %v8848 = vld [vmem:[%s8567 + $0x3c] sm:$0x1]
    %v8849 = vld [vmem:[%s8567 + $0x54] sm:$0x1]
    %v8850 = vld [vmem:[%s8567 + $0x5c] sm:$0x1]
    %v8851 = vld [vmem:[%s8567 + $0x64] sm:$0x1]
    %v8852 = vld [vmem:[%s8567 + $0x6c] sm:$0x1]
    %v8853 = vld [vmem:[%s8567 + $0x74] sm:$0x1]
    %v8854 = vld [vmem:[%s8567 + $0x7c] sm:$0x1]
    %v8855 = vld [vmem:[%s8567 + $0x84] sm:$0x1]
    %v8856 = vld [vmem:[%s8567 + $0x8c] sm:$0x1]
    %v8858 = vshrl.u32 %v8568, 16
    %v8860 = vrot.slane %v8858, 4
    %v8861 = vshll.u32 %v8568, 16
    %v8863 = vrot.slane %v8861, 5
    %v8864 = vor.u32 %v8860, %v8863
    %v8865 = vrot.slane %v8864, 4
    %v8867 = vshll.u32 %v8841, 16
    %v8869 = vrot.slane %v8867, 5
    %v8870 = vsel %vm1395, %v8865, %v8869
    %v8872 = vshrl.u32 %v8569, 16
    %v8874 = vrot.slane %v8872, 4
    %v8875 = vshll.u32 %v8569, 16
    %v8877 = vrot.slane %v8875, 5
    %v8878 = vor.u32 %v8874, %v8877
    %v8879 = vrot.slane %v8878, 4
    %v8881 = vshll.u32 %v8842, 16
    %v8883 = vrot.slane %v8881, 5
    %v8884 = vsel %vm1395, %v8879, %v8883
    %v8886 = vshrl.u32 %v8570, 16
    %v8888 = vrot.slane %v8886, 4
    %v8889 = vshll.u32 %v8570, 16
    %v8891 = vrot.slane %v8889, 5
    %v8892 = vor.u32 %v8888, %v8891
    %v8893 = vrot.slane %v8892, 4
    %v8895 = vshll.u32 %v8843, 16
    %v8897 = vrot.slane %v8895, 5
    %v8898 = vsel %vm1395, %v8893, %v8897
    %v8900 = vshrl.u32 %v8571, 16
    %v8902 = vrot.slane %v8900, 4
    %v8903 = vshll.u32 %v8571, 16
    %v8905 = vrot.slane %v8903, 5
    %v8906 = vor.u32 %v8902, %v8905
    %v8907 = vrot.slane %v8906, 4
    %v8909 = vshll.u32 %v8844, 16
    %v8911 = vrot.slane %v8909, 5
    %v8912 = vsel %vm1395, %v8907, %v8911
    %v8914 = vshrl.u32 %v8572, 16
    %v8916 = vrot.slane %v8914, 4
    %v8917 = vshll.u32 %v8572, 16
    %v8919 = vrot.slane %v8917, 5
    %v8920 = vor.u32 %v8916, %v8919
    %v8921 = vrot.slane %v8920, 4
    %v8923 = vshll.u32 %v8845, 16
    %v8925 = vrot.slane %v8923, 5
    %v8926 = vsel %vm1395, %v8921, %v8925
    %v8928 = vshrl.u32 %v8573, 16
    %v8930 = vrot.slane %v8928, 4
    %v8931 = vshll.u32 %v8573, 16
    %v8933 = vrot.slane %v8931, 5
    %v8934 = vor.u32 %v8930, %v8933
    %v8935 = vrot.slane %v8934, 4
    %v8937 = vshll.u32 %v8846, 16
    %v8939 = vrot.slane %v8937, 5
    %v8940 = vsel %vm1395, %v8935, %v8939
    %v8942 = vshrl.u32 %v8574, 16
    %v8944 = vrot.slane %v8942, 4
    %v8945 = vshll.u32 %v8574, 16
    %v8947 = vrot.slane %v8945, 5
    %v8948 = vor.u32 %v8944, %v8947
    %v8949 = vrot.slane %v8948, 4
    %v8951 = vshll.u32 %v8847, 16
    %v8953 = vrot.slane %v8951, 5
    %v8954 = vsel %vm1395, %v8949, %v8953
    %v8956 = vshrl.u32 %v8575, 16
    %v8958 = vrot.slane %v8956, 4
    %v8959 = vshll.u32 %v8575, 16
    %v8961 = vrot.slane %v8959, 5
    %v8962 = vor.u32 %v8958, %v8961
    %v8963 = vrot.slane %v8962, 4
    %v8965 = vshll.u32 %v8848, 16
    %v8967 = vrot.slane %v8965, 5
    %v8968 = vsel %vm1395, %v8963, %v8967
    %v8970 = vshrl.u32 %v8576, 16
    %v8972 = vrot.slane %v8970, 4
    %v8973 = vshll.u32 %v8576, 16
    %v8975 = vrot.slane %v8973, 5
    %v8976 = vor.u32 %v8972, %v8975
    %v8977 = vrot.slane %v8976, 4
    %v8979 = vshll.u32 %v8849, 16
    %v8981 = vrot.slane %v8979, 5
    %v8982 = vsel %vm1395, %v8977, %v8981
    %v8984 = vshrl.u32 %v8577, 16
    %v8986 = vrot.slane %v8984, 4
    %v8987 = vshll.u32 %v8577, 16
    %v8989 = vrot.slane %v8987, 5
    %v8990 = vor.u32 %v8986, %v8989
    %v8991 = vrot.slane %v8990, 4
    %v8993 = vshll.u32 %v8850, 16
    %v8995 = vrot.slane %v8993, 5
    %v8996 = vsel %vm1395, %v8991, %v8995
    %v8998 = vshrl.u32 %v8578, 16
    %v9000 = vrot.slane %v8998, 4
    %v9001 = vshll.u32 %v8578, 16
    %v9003 = vrot.slane %v9001, 5
    %v9004 = vor.u32 %v9000, %v9003
    %v9005 = vrot.slane %v9004, 4
    %v9007 = vshll.u32 %v8851, 16
    %v9009 = vrot.slane %v9007, 5
    %v9010 = vsel %vm1395, %v9005, %v9009
    %v9012 = vshrl.u32 %v8579, 16
    %v9014 = vrot.slane %v9012, 4
    %v9015 = vshll.u32 %v8579, 16
    %v9017 = vrot.slane %v9015, 5
    %v9018 = vor.u32 %v9014, %v9017
    %v9019 = vrot.slane %v9018, 4
    %v9021 = vshll.u32 %v8852, 16
    %v9023 = vrot.slane %v9021, 5
    %v9024 = vsel %vm1395, %v9019, %v9023
    %v9026 = vshrl.u32 %v8580, 16
    %v9028 = vrot.slane %v9026, 4
    %v9029 = vshll.u32 %v8580, 16
    %v9031 = vrot.slane %v9029, 5
    %v9032 = vor.u32 %v9028, %v9031
    %v9033 = vrot.slane %v9032, 4
    %v9035 = vshll.u32 %v8853, 16
    %v9037 = vrot.slane %v9035, 5
    %v9038 = vsel %vm1395, %v9033, %v9037
    %v9040 = vshrl.u32 %v8581, 16
    %v9042 = vrot.slane %v9040, 4
    %v9043 = vshll.u32 %v8581, 16
    %v9045 = vrot.slane %v9043, 5
    %v9046 = vor.u32 %v9042, %v9045
    %v9047 = vrot.slane %v9046, 4
    %v9049 = vshll.u32 %v8854, 16
    %v9051 = vrot.slane %v9049, 5
    %v9052 = vsel %vm1395, %v9047, %v9051
    %v9054 = vshrl.u32 %v8582, 16
    %v9056 = vrot.slane %v9054, 4
    %v9057 = vshll.u32 %v8582, 16
    %v9059 = vrot.slane %v9057, 5
    %v9060 = vor.u32 %v9056, %v9059
    %v9061 = vrot.slane %v9060, 4
    %v9063 = vshll.u32 %v8855, 16
    %v9065 = vrot.slane %v9063, 5
    %v9066 = vsel %vm1395, %v9061, %v9065
    %v9068 = vshrl.u32 %v8583, 16
    %v9070 = vrot.slane %v9068, 4
    %v9071 = vshll.u32 %v8583, 16
    %v9073 = vrot.slane %v9071, 5
    %v9074 = vor.u32 %v9070, %v9073
    %v9075 = vrot.slane %v9074, 4
    %v9077 = vshll.u32 %v8856, 16
    %v9079 = vrot.slane %v9077, 5
    %v9080 = vsel %vm1395, %v9075, %v9079
    %v9097 = vunpack.c.l.b16 %v7541
    %v9098 = vunpack.c.l.b16 %v7542
    %v9099 = vunpack.c.l.b16 %v7543
    %v9100 = vunpack.c.l.b16 %v7544
    %v9101 = vunpack.c.l.b16 %v7545
    %v9102 = vunpack.c.l.b16 %v7546
    %v9103 = vunpack.c.l.b16 %v7547
    %v9104 = vunpack.c.l.b16 %v7548
    %v9105 = vunpack.c.l.b16 %v7549
    %v9106 = vunpack.c.l.b16 %v7550
    %v9107 = vunpack.c.l.b16 %v7551
    %v9108 = vunpack.c.l.b16 %v7552
    %v9109 = vunpack.c.l.b16 %v7553
    %v9110 = vunpack.c.l.b16 %v7554
    %v9111 = vunpack.c.l.b16 %v7555
    %v9112 = vunpack.c.l.b16 %v7556
    %v9113 = vpack.c.b16 %v9098, %v9097
    %v9114 = vpack.c.b16 %v9100, %v9099
    %v9115 = vpack.c.b16 %v9102, %v9101
    %v9116 = vpack.c.b16 %v9104, %v9103
    %v9117 = vpack.c.b16 %v9106, %v9105
    %v9118 = vpack.c.b16 %v9108, %v9107
    %v9119 = vpack.c.b16 %v9110, %v9109
    %v9120 = vpack.c.b16 %v9112, %v9111
    %v9129 = vunpack.c.l.b16 %v7603
    %v9130 = vunpack.c.l.b16 %v7617
    %v9131 = vunpack.c.l.b16 %v7631
    %v9132 = vunpack.c.l.b16 %v7645
    %v9133 = vunpack.c.l.b16 %v7659
    %v9134 = vunpack.c.l.b16 %v7673
    %v9135 = vunpack.c.l.b16 %v7687
    %v9136 = vunpack.c.l.b16 %v7701
    %v9137 = vunpack.c.l.b16 %v7715
    %v9138 = vunpack.c.l.b16 %v7729
    %v9139 = vunpack.c.l.b16 %v7743
    %v9140 = vunpack.c.l.b16 %v7757
    %v9141 = vunpack.c.l.b16 %v7771
    %v9142 = vunpack.c.l.b16 %v7785
    %v9143 = vunpack.c.l.b16 %v7799
    %v9144 = vunpack.c.l.b16 %v7813
    %v9145 = vpack.c.b16 %v9130, %v9129
    %v9146 = vpack.c.b16 %v9132, %v9131
    %v9147 = vpack.c.b16 %v9134, %v9133
    %v9148 = vpack.c.b16 %v9136, %v9135
    %v9149 = vpack.c.b16 %v9138, %v9137
    %v9150 = vpack.c.b16 %v9140, %v9139
    %v9151 = vpack.c.b16 %v9142, %v9141
    %v9152 = vpack.c.b16 %v9144, %v9143
    %v9161 = vunpack.c.l.b16 %v7843
    %v9162 = vunpack.c.l.b16 %v7857
    %v9163 = vunpack.c.l.b16 %v7871
    %v9164 = vunpack.c.l.b16 %v7885
    %v9165 = vunpack.c.l.b16 %v7899
    %v9166 = vunpack.c.l.b16 %v7913
    %v9167 = vunpack.c.l.b16 %v7927
    %v9168 = vunpack.c.l.b16 %v7941
    %v9169 = vunpack.c.l.b16 %v7955
    %v9170 = vunpack.c.l.b16 %v7969
    %v9171 = vunpack.c.l.b16 %v7983
    %v9172 = vunpack.c.l.b16 %v7997
    %v9173 = vunpack.c.l.b16 %v8011
    %v9174 = vunpack.c.l.b16 %v8025
    %v9175 = vunpack.c.l.b16 %v8039
    %v9176 = vunpack.c.l.b16 %v8053
    %v9177 = vpack.c.b16 %v9162, %v9161
    %v9178 = vpack.c.b16 %v9164, %v9163
    %v9179 = vpack.c.b16 %v9166, %v9165
    %v9180 = vpack.c.b16 %v9168, %v9167
    %v9181 = vpack.c.b16 %v9170, %v9169
    %v9182 = vpack.c.b16 %v9172, %v9171
    %v9183 = vpack.c.b16 %v9174, %v9173
    %v9184 = vpack.c.b16 %v9176, %v9175
    %v9209 = vunpack.c.l.b16 %v8055
    %v9210 = vunpack.c.l.b16 %v8056
    %v9211 = vunpack.c.l.b16 %v8057
    %v9212 = vunpack.c.l.b16 %v8058
    %v9213 = vunpack.c.l.b16 %v8059
    %v9214 = vunpack.c.l.b16 %v8060
    %v9215 = vunpack.c.l.b16 %v8061
    %v9216 = vunpack.c.l.b16 %v8062
    %v9217 = vunpack.c.l.b16 %v8063
    %v9218 = vunpack.c.l.b16 %v8064
    %v9219 = vunpack.c.l.b16 %v8065
    %v9220 = vunpack.c.l.b16 %v8066
    %v9221 = vunpack.c.l.b16 %v8067
    %v9222 = vunpack.c.l.b16 %v8068
    %v9223 = vunpack.c.l.b16 %v8069
    %v9224 = vunpack.c.l.b16 %v8070
    %v9225 = vpack.c.b16 %v9210, %v9209
    %v9226 = vpack.c.b16 %v9212, %v9211
    %v9227 = vpack.c.b16 %v9214, %v9213
    %v9228 = vpack.c.b16 %v9216, %v9215
    %v9229 = vpack.c.b16 %v9218, %v9217
    %v9230 = vpack.c.b16 %v9220, %v9219
    %v9231 = vpack.c.b16 %v9222, %v9221
    %v9232 = vpack.c.b16 %v9224, %v9223
    %v9241 = vunpack.c.l.b16 %v8116
    %v9242 = vunpack.c.l.b16 %v8130
    %v9243 = vunpack.c.l.b16 %v8144
    %v9244 = vunpack.c.l.b16 %v8158
    %v9245 = vunpack.c.l.b16 %v8172
    %v9246 = vunpack.c.l.b16 %v8186
    %v9247 = vunpack.c.l.b16 %v8200
    %v9248 = vunpack.c.l.b16 %v8214
    %v9249 = vunpack.c.l.b16 %v8228
    %v9250 = vunpack.c.l.b16 %v8242
    %v9251 = vunpack.c.l.b16 %v8256
    %v9252 = vunpack.c.l.b16 %v8270
    %v9253 = vunpack.c.l.b16 %v8284
    %v9254 = vunpack.c.l.b16 %v8298
    %v9255 = vunpack.c.l.b16 %v8312
    %v9256 = vunpack.c.l.b16 %v8326
    %v9257 = vpack.c.b16 %v9242, %v9241
    %v9258 = vpack.c.b16 %v9244, %v9243
    %v9259 = vpack.c.b16 %v9246, %v9245
    %v9260 = vpack.c.b16 %v9248, %v9247
    %v9261 = vpack.c.b16 %v9250, %v9249
    %v9262 = vpack.c.b16 %v9252, %v9251
    %v9263 = vpack.c.b16 %v9254, %v9253
    %v9264 = vpack.c.b16 %v9256, %v9255
    %v9273 = vunpack.c.l.b16 %v8356
    %v9274 = vunpack.c.l.b16 %v8370
    %v9275 = vunpack.c.l.b16 %v8384
    %v9276 = vunpack.c.l.b16 %v8398
    %v9277 = vunpack.c.l.b16 %v8412
    %v9278 = vunpack.c.l.b16 %v8426
    %v9279 = vunpack.c.l.b16 %v8440
    %v9280 = vunpack.c.l.b16 %v8454
    %v9281 = vunpack.c.l.b16 %v8468
    %v9282 = vunpack.c.l.b16 %v8482
    %v9283 = vunpack.c.l.b16 %v8496
    %v9284 = vunpack.c.l.b16 %v8510
    %v9285 = vunpack.c.l.b16 %v8524
    %v9286 = vunpack.c.l.b16 %v8538
    %v9287 = vunpack.c.l.b16 %v8552
    %v9288 = vunpack.c.l.b16 %v8566
    %v9289 = vpack.c.b16 %v9274, %v9273
    %v9290 = vpack.c.b16 %v9276, %v9275
    %v9291 = vpack.c.b16 %v9278, %v9277
    %v9292 = vpack.c.b16 %v9280, %v9279
    %v9293 = vpack.c.b16 %v9282, %v9281
    %v9294 = vpack.c.b16 %v9284, %v9283
    %v9295 = vpack.c.b16 %v9286, %v9285
    %v9296 = vpack.c.b16 %v9288, %v9287
    %v9321 = vunpack.c.l.b16 %v8568
    %v9322 = vunpack.c.l.b16 %v8569
    %v9323 = vunpack.c.l.b16 %v8570
    %v9324 = vunpack.c.l.b16 %v8571
    %v9325 = vunpack.c.l.b16 %v8572
    %v9326 = vunpack.c.l.b16 %v8573
    %v9327 = vunpack.c.l.b16 %v8574
    %v9328 = vunpack.c.l.b16 %v8575
    %v9329 = vunpack.c.l.b16 %v8576
    %v9330 = vunpack.c.l.b16 %v8577
    %v9331 = vunpack.c.l.b16 %v8578
    %v9332 = vunpack.c.l.b16 %v8579
    %v9333 = vunpack.c.l.b16 %v8580
    %v9334 = vunpack.c.l.b16 %v8581
    %v9335 = vunpack.c.l.b16 %v8582
    %v9336 = vunpack.c.l.b16 %v8583
    %v9337 = vpack.c.b16 %v9322, %v9321
    %v9338 = vpack.c.b16 %v9324, %v9323
    %v9339 = vpack.c.b16 %v9326, %v9325
    %v9340 = vpack.c.b16 %v9328, %v9327
    %v9341 = vpack.c.b16 %v9330, %v9329
    %v9342 = vpack.c.b16 %v9332, %v9331
    %v9343 = vpack.c.b16 %v9334, %v9333
    %v9344 = vpack.c.b16 %v9336, %v9335
    %v9353 = vunpack.c.l.b16 %v8630
    %v9354 = vunpack.c.l.b16 %v8644
    %v9355 = vunpack.c.l.b16 %v8658
    %v9356 = vunpack.c.l.b16 %v8672
    %v9357 = vunpack.c.l.b16 %v8686
    %v9358 = vunpack.c.l.b16 %v8700
    %v9359 = vunpack.c.l.b16 %v8714
    %v9360 = vunpack.c.l.b16 %v8728
    %v9361 = vunpack.c.l.b16 %v8742
    %v9362 = vunpack.c.l.b16 %v8756
    %v9363 = vunpack.c.l.b16 %v8770
    %v9364 = vunpack.c.l.b16 %v8784
    %v9365 = vunpack.c.l.b16 %v8798
    %v9366 = vunpack.c.l.b16 %v8812
    %v9367 = vunpack.c.l.b16 %v8826
    %v9368 = vunpack.c.l.b16 %v8840
    %v9369 = vpack.c.b16 %v9354, %v9353
    %v9370 = vpack.c.b16 %v9356, %v9355
    %v9371 = vpack.c.b16 %v9358, %v9357
    %v9372 = vpack.c.b16 %v9360, %v9359
    %v9373 = vpack.c.b16 %v9362, %v9361
    %v9374 = vpack.c.b16 %v9364, %v9363
    %v9375 = vpack.c.b16 %v9366, %v9365
    %v9376 = vpack.c.b16 %v9368, %v9367
    %v9385 = vunpack.c.l.b16 %v8870
    %v9386 = vunpack.c.l.b16 %v8884
    %v9387 = vunpack.c.l.b16 %v8898
    %v9388 = vunpack.c.l.b16 %v8912
    %v9389 = vunpack.c.l.b16 %v8926
    %v9390 = vunpack.c.l.b16 %v8940
    %v9391 = vunpack.c.l.b16 %v8954
    %v9392 = vunpack.c.l.b16 %v8968
    %v9393 = vunpack.c.l.b16 %v8982
    %v9394 = vunpack.c.l.b16 %v8996
    %v9395 = vunpack.c.l.b16 %v9010
    %v9396 = vunpack.c.l.b16 %v9024
    %v9397 = vunpack.c.l.b16 %v9038
    %v9398 = vunpack.c.l.b16 %v9052
    %v9399 = vunpack.c.l.b16 %v9066
    %v9400 = vunpack.c.l.b16 %v9080
    %v9401 = vpack.c.b16 %v9386, %v9385
    %v9402 = vpack.c.b16 %v9388, %v9387
    %v9403 = vpack.c.b16 %v9390, %v9389
    %v9404 = vpack.c.b16 %v9392, %v9391
    %v9405 = vpack.c.b16 %v9394, %v9393
    %v9406 = vpack.c.b16 %v9396, %v9395
    %v9407 = vpack.c.b16 %v9398, %v9397
    %v9408 = vpack.c.b16 %v9400, %v9399
    %v9417 = vld [vmem:[#allocation9] sm:$0xf]
    %v9418 = vld [vmem:[#allocation9 + $0x4] sm:$0xf]
    %v9419 = vld [vmem:[#allocation9 + $0x8] sm:$0xf]
    %v9420 = vld [vmem:[#allocation9 + $0xc] sm:$0xf]
    %v9421 = vld [vmem:[#allocation9 + $0x10] sm:$0xf]
    %v9422 = vld [vmem:[#allocation9 + $0x14] sm:$0xf]
    %v9423 = vld [vmem:[#allocation9 + $0x18] sm:$0xf]
    %v9424 = vld [vmem:[#allocation9 + $0x1c] sm:$0xf]
    %v9425 = vld [vmem:[#allocation9 + $0x20] sm:$0xf]
    %v9426 = vld [vmem:[#allocation9 + $0x24] sm:$0xf]
    %v9427 = vld [vmem:[#allocation9 + $0x28] sm:$0xf]
    %v9428 = vld [vmem:[#allocation9 + $0x2c] sm:$0xf]
    %v9429 = vld [vmem:[#allocation9 + $0x30] sm:$0xf]
    %v9430 = vld [vmem:[#allocation9 + $0x34] sm:$0xf]
    %v9431 = vld [vmem:[#allocation9 + $0x38] sm:$0xf]
    %v9432 = vld [vmem:[#allocation9 + $0x3c] sm:$0xf]
    %v9433 = vld [vmem:[#allocation9 + $0x40] sm:$0xf]
    %v9434 = vld [vmem:[#allocation9 + $0x44] sm:$0xf]
    %v9435 = vld [vmem:[#allocation9 + $0x48] sm:$0xf]
    %v9436 = vld [vmem:[#allocation9 + $0x4c] sm:$0xf]
    %v9437 = vld [vmem:[#allocation9 + $0x50] sm:$0xf]
    %v9438 = vld [vmem:[#allocation9 + $0x54] sm:$0xf]
    %v9439 = vld [vmem:[#allocation9 + $0x58] sm:$0xf]
    %v9440 = vld [vmem:[#allocation9 + $0x5c] sm:$0xf]
    %v9441 = vld [vmem:[#allocation9 + $0x60] sm:$0xf]
    %v9442 = vld [vmem:[#allocation9 + $0x64] sm:$0xf]
    %v9443 = vld [vmem:[#allocation9 + $0x68] sm:$0xf]
    %v9444 = vld [vmem:[#allocation9 + $0x6c] sm:$0xf]
    %v9445 = vld [vmem:[#allocation9 + $0x70] sm:$0xf]
    %v9446 = vld [vmem:[#allocation9 + $0x74] sm:$0xf]
    %v9447 = vld [vmem:[#allocation9 + $0x78] sm:$0xf]
    %v9448 = vld [vmem:[#allocation9 + $0x7c] sm:$0xf]
    %v9449 = vld [vmem:[#allocation9 + $0x80] sm:$0xf]
    %v9450 = vld [vmem:[#allocation9 + $0x84] sm:$0xf]
    %v9451 = vld [vmem:[#allocation9 + $0x88] sm:$0xf]
    %v9452 = vld [vmem:[#allocation9 + $0x8c] sm:$0xf]
    %v9453 = vld [vmem:[#allocation9 + $0x90] sm:$0xf]
    %v9454 = vld [vmem:[#allocation9 + $0x94] sm:$0xf]
    %v9455 = vld [vmem:[#allocation9 + $0x98] sm:$0xf]
    %v9456 = vld [vmem:[#allocation9 + $0x9c] sm:$0xf]
    %v9457 = vld [vmem:[#allocation9 + $0xa0] sm:$0xf]
    %v9458 = vld [vmem:[#allocation9 + $0xa4] sm:$0xf]
    %v9459 = vld [vmem:[#allocation9 + $0xa8] sm:$0xf]
    %v9460 = vld [vmem:[#allocation9 + $0xac] sm:$0xf]
    %v9461 = vld [vmem:[#allocation9 + $0xb0] sm:$0xf]
    %v9462 = vld [vmem:[#allocation9 + $0xb4] sm:$0xf]
    %v9463 = vld [vmem:[#allocation9 + $0xb8] sm:$0xf]
    %v9464 = vld [vmem:[#allocation9 + $0xbc] sm:$0xf]
    %v9465 = vld [vmem:[#allocation9 + $0xc0] sm:$0xf]
    %v9466 = vld [vmem:[#allocation9 + $0xc4] sm:$0xf]
    %v9467 = vld [vmem:[#allocation9 + $0xc8] sm:$0xf]
    %v9468 = vld [vmem:[#allocation9 + $0xcc] sm:$0xf]
    %v9469 = vld [vmem:[#allocation9 + $0xd0] sm:$0xf]
    %v9470 = vld [vmem:[#allocation9 + $0xd4] sm:$0xf]
    %v9471 = vld [vmem:[#allocation9 + $0xd8] sm:$0xf]
    %v9472 = vld [vmem:[#allocation9 + $0xdc] sm:$0xf]
    %v9473 = vld [vmem:[#allocation9 + $0xe0] sm:$0xf]
    %v9474 = vld [vmem:[#allocation9 + $0xe4] sm:$0xf]
    %v9475 = vld [vmem:[#allocation9 + $0xe8] sm:$0xf]
    %v9476 = vld [vmem:[#allocation9 + $0xec] sm:$0xf]
    %v9477 = vld [vmem:[#allocation9 + $0xf0] sm:$0xf]
    %v9478 = vld [vmem:[#allocation9 + $0xf4] sm:$0xf]
    %v9479 = vld [vmem:[#allocation9 + $0xf8] sm:$0xf]
    %v9480 = vld [vmem:[#allocation9 + $0xfc] sm:$0xf]
    %v9481 = vld [vmem:[#allocation9 + $0x100] sm:$0xf]
    %v9482 = vld [vmem:[#allocation9 + $0x104] sm:$0xf]
    %v9483 = vld [vmem:[#allocation9 + $0x108] sm:$0xf]
    %v9484 = vld [vmem:[#allocation9 + $0x10c] sm:$0xf]
    %v9485 = vld [vmem:[#allocation9 + $0x110] sm:$0xf]
    %v9486 = vld [vmem:[#allocation9 + $0x114] sm:$0xf]
    %v9487 = vld [vmem:[#allocation9 + $0x118] sm:$0xf]
    %v9488 = vld [vmem:[#allocation9 + $0x11c] sm:$0xf]
    %v9489 = vld [vmem:[#allocation9 + $0x120] sm:$0xf]
    %v9490 = vld [vmem:[#allocation9 + $0x124] sm:$0xf]
    %v9491 = vld [vmem:[#allocation9 + $0x128] sm:$0xf]
    %v9492 = vld [vmem:[#allocation9 + $0x12c] sm:$0xf]
    %v9493 = vld [vmem:[#allocation9 + $0x130] sm:$0xf]
    %v9494 = vld [vmem:[#allocation9 + $0x134] sm:$0xf]
    %v9495 = vld [vmem:[#allocation9 + $0x138] sm:$0xf]
    %v9496 = vld [vmem:[#allocation9 + $0x13c] sm:$0xf]
    %v9497 = vld [vmem:[#allocation9 + $0x140] sm:$0xf]
    %v9498 = vld [vmem:[#allocation9 + $0x144] sm:$0xf]
    %v9499 = vld [vmem:[#allocation9 + $0x148] sm:$0xf]
    %v9500 = vld [vmem:[#allocation9 + $0x14c] sm:$0xf]
    %v9501 = vld [vmem:[#allocation9 + $0x150] sm:$0xf]
    %v9502 = vld [vmem:[#allocation9 + $0x154] sm:$0xf]
    %v9503 = vld [vmem:[#allocation9 + $0x158] sm:$0xf]
    %v9504 = vld [vmem:[#allocation9 + $0x15c] sm:$0xf]
    %v9505 = vld [vmem:[#allocation9 + $0x160] sm:$0xf]
    %v9506 = vld [vmem:[#allocation9 + $0x164] sm:$0xf]
    %v9507 = vld [vmem:[#allocation9 + $0x168] sm:$0xf]
    %v9508 = vld [vmem:[#allocation9 + $0x16c] sm:$0xf]
    %v9509 = vld [vmem:[#allocation9 + $0x170] sm:$0xf]
    %v9510 = vld [vmem:[#allocation9 + $0x174] sm:$0xf]
    %v9511 = vld [vmem:[#allocation9 + $0x178] sm:$0xf]
    %v9512 = vld [vmem:[#allocation9 + $0x17c] sm:$0xf]
    %v9513 = vld [vmem:[#allocation9 + $0x180] sm:$0xf]
    %v9514 = vld [vmem:[#allocation9 + $0x184] sm:$0xf]
    %v9515 = vld [vmem:[#allocation9 + $0x188] sm:$0xf]
    %v9516 = vld [vmem:[#allocation9 + $0x18c] sm:$0xf]
    %v9517 = vld [vmem:[#allocation9 + $0x190] sm:$0xf]
    %v9518 = vld [vmem:[#allocation9 + $0x194] sm:$0xf]
    %v9519 = vld [vmem:[#allocation9 + $0x198] sm:$0xf]
    %v9520 = vld [vmem:[#allocation9 + $0x19c] sm:$0xf]
    %v9521 = vld [vmem:[#allocation9 + $0x1a0] sm:$0xf]
    %v9522 = vld [vmem:[#allocation9 + $0x1a4] sm:$0xf]
    %v9523 = vld [vmem:[#allocation9 + $0x1a8] sm:$0xf]
    %v9524 = vld [vmem:[#allocation9 + $0x1ac] sm:$0xf]
    %v9525 = vld [vmem:[#allocation9 + $0x1b0] sm:$0xf]
    %v9526 = vld [vmem:[#allocation9 + $0x1b4] sm:$0xf]
    %v9527 = vld [vmem:[#allocation9 + $0x1b8] sm:$0xf]
    %v9528 = vld [vmem:[#allocation9 + $0x1bc] sm:$0xf]
    %v9529 = vld [vmem:[#allocation9 + $0x1c0] sm:$0xf]
    %v9530 = vld [vmem:[#allocation9 + $0x1c4] sm:$0xf]
    %v9531 = vld [vmem:[#allocation9 + $0x1c8] sm:$0xf]
    %v9532 = vld [vmem:[#allocation9 + $0x1cc] sm:$0xf]
    %v9533 = vld [vmem:[#allocation9 + $0x1d0] sm:$0xf]
    %v9534 = vld [vmem:[#allocation9 + $0x1d4] sm:$0xf]
    %v9535 = vld [vmem:[#allocation9 + $0x1d8] sm:$0xf]
    %v9536 = vld [vmem:[#allocation9 + $0x1dc] sm:$0xf]
    %v9537 = vld [vmem:[#allocation9 + $0x1e0] sm:$0xf]
    %v9538 = vld [vmem:[#allocation9 + $0x1e4] sm:$0xf]
    %v9539 = vld [vmem:[#allocation9 + $0x1e8] sm:$0xf]
    %v9540 = vld [vmem:[#allocation9 + $0x1ec] sm:$0xf]
    %v9541 = vld [vmem:[#allocation9 + $0x1f0] sm:$0xf]
    %v9542 = vld [vmem:[#allocation9 + $0x1f4] sm:$0xf]
    %v9543 = vld [vmem:[#allocation9 + $0x1f8] sm:$0xf]
    %v9544 = vld [vmem:[#allocation9 + $0x1fc] sm:$0xf]
    %v9545 = vld [vmem:[#allocation9 + $0x200] sm:$0xf]
    %v9546 = vld [vmem:[#allocation9 + $0x204] sm:$0xf]
    %v9547 = vld [vmem:[#allocation9 + $0x208] sm:$0xf]
    %v9548 = vld [vmem:[#allocation9 + $0x20c] sm:$0xf]
    %v9549 = vld [vmem:[#allocation9 + $0x210] sm:$0xf]
    %v9550 = vld [vmem:[#allocation9 + $0x214] sm:$0xf]
    %v9551 = vld [vmem:[#allocation9 + $0x218] sm:$0xf]
    %v9552 = vld [vmem:[#allocation9 + $0x21c] sm:$0xf]
    %v9553 = vld [vmem:[#allocation9 + $0x220] sm:$0xf]
    %v9554 = vld [vmem:[#allocation9 + $0x224] sm:$0xf]
    %v9555 = vld [vmem:[#allocation9 + $0x228] sm:$0xf]
    %v9556 = vld [vmem:[#allocation9 + $0x22c] sm:$0xf]
    %v9557 = vld [vmem:[#allocation9 + $0x230] sm:$0xf]
    %v9558 = vld [vmem:[#allocation9 + $0x234] sm:$0xf]
    %v9559 = vld [vmem:[#allocation9 + $0x238] sm:$0xf]
    %v9560 = vld [vmem:[#allocation9 + $0x23c] sm:$0xf]
    %v9705 = vunpack.c.l.b16 %v9417
    %v9706 = vunpack.c.l.b16 %v9418
    %v9707 = vunpack.c.l.b16 %v9419
    %v9708 = vunpack.c.l.b16 %v9420
    %v9709 = vunpack.c.l.b16 %v9421
    %v9710 = vunpack.c.l.b16 %v9422
    %v9711 = vunpack.c.l.b16 %v9423
    %v9712 = vunpack.c.l.b16 %v9424
    %v9713 = vunpack.c.l.b16 %v9425
    %v9714 = vunpack.c.l.b16 %v9426
    %v9715 = vunpack.c.l.b16 %v9427
    %v9716 = vunpack.c.l.b16 %v9428
    %v9717 = vunpack.c.l.b16 %v9429
    %v9718 = vunpack.c.l.b16 %v9430
    %v9719 = vunpack.c.l.b16 %v9431
    %v9720 = vunpack.c.l.b16 %v9432
    %v9721 = vunpack.c.l.b16 %v9433
    %v9722 = vunpack.c.l.b16 %v9434
    %v9723 = vunpack.c.l.b16 %v9435
    %v9724 = vunpack.c.l.b16 %v9436
    %v9725 = vunpack.c.l.b16 %v9437
    %v9726 = vunpack.c.l.b16 %v9438
    %v9727 = vunpack.c.l.b16 %v9439
    %v9728 = vunpack.c.l.b16 %v9440
    %v9729 = vunpack.c.l.b16 %v9441
    %v9730 = vunpack.c.l.b16 %v9442
    %v9731 = vunpack.c.l.b16 %v9443
    %v9732 = vunpack.c.l.b16 %v9444
    %v9733 = vunpack.c.l.b16 %v9445
    %v9734 = vunpack.c.l.b16 %v9446
    %v9735 = vunpack.c.l.b16 %v9447
    %v9736 = vunpack.c.l.b16 %v9448
    %v9737 = vunpack.c.l.b16 %v9449
    %v9738 = vunpack.c.l.b16 %v9450
    %v9739 = vunpack.c.l.b16 %v9451
    %v9740 = vunpack.c.l.b16 %v9452
    %v9741 = vunpack.c.l.b16 %v9453
    %v9742 = vunpack.c.l.b16 %v9454
    %v9743 = vunpack.c.l.b16 %v9455
    %v9744 = vunpack.c.l.b16 %v9456
    %v9745 = vunpack.c.l.b16 %v9457
    %v9746 = vunpack.c.l.b16 %v9458
    %v9747 = vunpack.c.l.b16 %v9459
    %v9748 = vunpack.c.l.b16 %v9460
    %v9749 = vunpack.c.l.b16 %v9461
    %v9750 = vunpack.c.l.b16 %v9462
    %v9751 = vunpack.c.l.b16 %v9463
    %v9752 = vunpack.c.l.b16 %v9464
    %v9753 = vunpack.c.l.b16 %v9465
    %v9754 = vunpack.c.l.b16 %v9466
    %v9755 = vunpack.c.l.b16 %v9467
    %v9756 = vunpack.c.l.b16 %v9468
    %v9757 = vunpack.c.l.b16 %v9469
    %v9758 = vunpack.c.l.b16 %v9470
    %v9759 = vunpack.c.l.b16 %v9471
    %v9760 = vunpack.c.l.b16 %v9472
    %v9761 = vunpack.c.l.b16 %v9473
    %v9762 = vunpack.c.l.b16 %v9474
    %v9763 = vunpack.c.l.b16 %v9475
    %v9764 = vunpack.c.l.b16 %v9476
    %v9765 = vunpack.c.l.b16 %v9477
    %v9766 = vunpack.c.l.b16 %v9478
    %v9767 = vunpack.c.l.b16 %v9479
    %v9768 = vunpack.c.l.b16 %v9480
    %v9769 = vunpack.c.l.b16 %v9481
    %v9770 = vunpack.c.l.b16 %v9482
    %v9771 = vunpack.c.l.b16 %v9483
    %v9772 = vunpack.c.l.b16 %v9484
    %v9773 = vunpack.c.l.b16 %v9485
    %v9774 = vunpack.c.l.b16 %v9486
    %v9775 = vunpack.c.l.b16 %v9487
    %v9776 = vunpack.c.l.b16 %v9488
    %v9777 = vunpack.c.l.b16 %v9489
    %v9778 = vunpack.c.l.b16 %v9490
    %v9779 = vunpack.c.l.b16 %v9491
    %v9780 = vunpack.c.l.b16 %v9492
    %v9781 = vunpack.c.l.b16 %v9493
    %v9782 = vunpack.c.l.b16 %v9494
    %v9783 = vunpack.c.l.b16 %v9495
    %v9784 = vunpack.c.l.b16 %v9496
    %v9785 = vunpack.c.l.b16 %v9497
    %v9786 = vunpack.c.l.b16 %v9498
    %v9787 = vunpack.c.l.b16 %v9499
    %v9788 = vunpack.c.l.b16 %v9500
    %v9789 = vunpack.c.l.b16 %v9501
    %v9790 = vunpack.c.l.b16 %v9502
    %v9791 = vunpack.c.l.b16 %v9503
    %v9792 = vunpack.c.l.b16 %v9504
    %v9793 = vunpack.c.l.b16 %v9505
    %v9794 = vunpack.c.l.b16 %v9506
    %v9795 = vunpack.c.l.b16 %v9507
    %v9796 = vunpack.c.l.b16 %v9508
    %v9797 = vunpack.c.l.b16 %v9509
    %v9798 = vunpack.c.l.b16 %v9510
    %v9799 = vunpack.c.l.b16 %v9511
    %v9800 = vunpack.c.l.b16 %v9512
    %v9801 = vunpack.c.l.b16 %v9513
    %v9802 = vunpack.c.l.b16 %v9514
    %v9803 = vunpack.c.l.b16 %v9515
    %v9804 = vunpack.c.l.b16 %v9516
    %v9805 = vunpack.c.l.b16 %v9517
    %v9806 = vunpack.c.l.b16 %v9518
    %v9807 = vunpack.c.l.b16 %v9519
    %v9808 = vunpack.c.l.b16 %v9520
    %v9809 = vunpack.c.l.b16 %v9521
    %v9810 = vunpack.c.l.b16 %v9522
    %v9811 = vunpack.c.l.b16 %v9523
    %v9812 = vunpack.c.l.b16 %v9524
    %v9813 = vunpack.c.l.b16 %v9525
    %v9814 = vunpack.c.l.b16 %v9526
    %v9815 = vunpack.c.l.b16 %v9527
    %v9816 = vunpack.c.l.b16 %v9528
    %v9817 = vunpack.c.l.b16 %v9529
    %v9818 = vunpack.c.l.b16 %v9530
    %v9819 = vunpack.c.l.b16 %v9531
    %v9820 = vunpack.c.l.b16 %v9532
    %v9821 = vunpack.c.l.b16 %v9533
    %v9822 = vunpack.c.l.b16 %v9534
    %v9823 = vunpack.c.l.b16 %v9535
    %v9824 = vunpack.c.l.b16 %v9536
    %v9825 = vunpack.c.l.b16 %v9537
    %v9826 = vunpack.c.l.b16 %v9538
    %v9827 = vunpack.c.l.b16 %v9539
    %v9828 = vunpack.c.l.b16 %v9540
    %v9829 = vunpack.c.l.b16 %v9541
    %v9830 = vunpack.c.l.b16 %v9542
    %v9831 = vunpack.c.l.b16 %v9543
    %v9832 = vunpack.c.l.b16 %v9544
    %v9833 = vunpack.c.l.b16 %v9545
    %v9834 = vunpack.c.l.b16 %v9546
    %v9835 = vunpack.c.l.b16 %v9547
    %v9836 = vunpack.c.l.b16 %v9548
    %v9837 = vunpack.c.l.b16 %v9549
    %v9838 = vunpack.c.l.b16 %v9550
    %v9839 = vunpack.c.l.b16 %v9551
    %v9840 = vunpack.c.l.b16 %v9552
    %v9841 = vunpack.c.l.b16 %v9553
    %v9842 = vunpack.c.l.b16 %v9554
    %v9843 = vunpack.c.l.b16 %v9555
    %v9844 = vunpack.c.l.b16 %v9556
    %v9845 = vunpack.c.l.b16 %v9557
    %v9846 = vunpack.c.l.b16 %v9558
    %v9847 = vunpack.c.l.b16 %v9559
    %v9848 = vunpack.c.l.b16 %v9560
    %v9849 = vpack.c.b16 %v9706, %v9705
    %v9850 = vpack.c.b16 %v9708, %v9707
    %v9851 = vpack.c.b16 %v9710, %v9709
    %v9852 = vpack.c.b16 %v9712, %v9711
    %v9853 = vpack.c.b16 %v9714, %v9713
    %v9854 = vpack.c.b16 %v9716, %v9715
    %v9855 = vpack.c.b16 %v9718, %v9717
    %v9856 = vpack.c.b16 %v9720, %v9719
    %v9857 = vpack.c.b16 %v9722, %v9721
    %v9858 = vpack.c.b16 %v9724, %v9723
    %v9859 = vpack.c.b16 %v9726, %v9725
    %v9860 = vpack.c.b16 %v9728, %v9727
    %v9861 = vpack.c.b16 %v9730, %v9729
    %v9862 = vpack.c.b16 %v9732, %v9731
    %v9863 = vpack.c.b16 %v9734, %v9733
    %v9864 = vpack.c.b16 %v9736, %v9735
    %v9865 = vpack.c.b16 %v9738, %v9737
    %v9866 = vpack.c.b16 %v9740, %v9739
    %v9867 = vpack.c.b16 %v9742, %v9741
    %v9868 = vpack.c.b16 %v9744, %v9743
    %v9869 = vpack.c.b16 %v9746, %v9745
    %v9870 = vpack.c.b16 %v9748, %v9747
    %v9871 = vpack.c.b16 %v9750, %v9749
    %v9872 = vpack.c.b16 %v9752, %v9751
    %v9873 = vpack.c.b16 %v9754, %v9753
    %v9874 = vpack.c.b16 %v9756, %v9755
    %v9875 = vpack.c.b16 %v9758, %v9757
    %v9876 = vpack.c.b16 %v9760, %v9759
    %v9877 = vpack.c.b16 %v9762, %v9761
    %v9878 = vpack.c.b16 %v9764, %v9763
    %v9879 = vpack.c.b16 %v9766, %v9765
    %v9880 = vpack.c.b16 %v9768, %v9767
    %v9881 = vpack.c.b16 %v9770, %v9769
    %v9882 = vpack.c.b16 %v9772, %v9771
    %v9883 = vpack.c.b16 %v9774, %v9773
    %v9884 = vpack.c.b16 %v9776, %v9775
    %v9885 = vpack.c.b16 %v9778, %v9777
    %v9886 = vpack.c.b16 %v9780, %v9779
    %v9887 = vpack.c.b16 %v9782, %v9781
    %v9888 = vpack.c.b16 %v9784, %v9783
    %v9889 = vpack.c.b16 %v9786, %v9785
    %v9890 = vpack.c.b16 %v9788, %v9787
    %v9891 = vpack.c.b16 %v9790, %v9789
    %v9892 = vpack.c.b16 %v9792, %v9791
    %v9893 = vpack.c.b16 %v9794, %v9793
    %v9894 = vpack.c.b16 %v9796, %v9795
    %v9895 = vpack.c.b16 %v9798, %v9797
    %v9896 = vpack.c.b16 %v9800, %v9799
    %v9897 = vpack.c.b16 %v9802, %v9801
    %v9898 = vpack.c.b16 %v9804, %v9803
    %v9899 = vpack.c.b16 %v9806, %v9805
    %v9900 = vpack.c.b16 %v9808, %v9807
    %v9901 = vpack.c.b16 %v9810, %v9809
    %v9902 = vpack.c.b16 %v9812, %v9811
    %v9903 = vpack.c.b16 %v9814, %v9813
    %v9904 = vpack.c.b16 %v9816, %v9815
    %v9905 = vpack.c.b16 %v9818, %v9817
    %v9906 = vpack.c.b16 %v9820, %v9819
    %v9907 = vpack.c.b16 %v9822, %v9821
    %v9908 = vpack.c.b16 %v9824, %v9823
    %v9909 = vpack.c.b16 %v9826, %v9825
    %v9910 = vpack.c.b16 %v9828, %v9827
    %v9911 = vpack.c.b16 %v9830, %v9829
    %v9912 = vpack.c.b16 %v9832, %v9831
    %v9913 = vpack.c.b16 %v9834, %v9833
    %v9914 = vpack.c.b16 %v9836, %v9835
    %v9915 = vpack.c.b16 %v9838, %v9837
    %v9916 = vpack.c.b16 %v9840, %v9839
    %v9917 = vpack.c.b16 %v9842, %v9841
    %v9918 = vpack.c.b16 %v9844, %v9843
    %v9919 = vpack.c.b16 %v9846, %v9845
    %v9920 = vpack.c.b16 %v9848, %v9847
    %9993 = vmatprep.subr.bf16.mxu0 0
    %9994 = vmatpush1.bf16.msra.mxu0 %v9849
    %9995 = vmatprep.subr.bf16.mxu0 0
    %9996 = vmatpush1.bf16.msra.mxu0 %v9850
    %9997 = vmatprep.subr.bf16.mxu0 0
    %9998 = vmatpush1.bf16.msra.mxu0 %v9851
    %9999 = vmatprep.subr.bf16.mxu0 0
    %10000 = vmatpush1.bf16.msra.mxu0 %v9852
    %10001 = vmatprep.subr.bf16.mxu0 0
    %10002 = vmatpush1.bf16.msra.mxu0 %v9853
    %10003 = vmatprep.subr.bf16.mxu0 0
    %10004 = vmatpush1.bf16.msra.mxu0 %v9854
    %10005 = vmatprep.subr.bf16.mxu0 0
    %10006 = vmatpush1.bf16.msra.mxu0 %v9855
    %10007 = vmatprep.subr.bf16.mxu0 0
    %10008 = vmatpush1.bf16.msra.mxu0 %v9856
    %10009 = vmatprep.subr.bf16.mxu0 0
    %10010 = vmatpush1.bf16.msra.mxu0 %v9857
    %10011 = vmatprep.subr.bf16.mxu0 0
    %10012 = vmatpush1.bf16.msra.mxu0 %v9858
    %10013 = vmatprep.subr.bf16.mxu0 0
    %10014 = vmatpush1.bf16.msra.mxu0 %v9859
    %10015 = vmatprep.subr.bf16.mxu0 0
    %10016 = vmatpush1.bf16.msra.mxu0 %v9860
    %10017 = vmatprep.subr.bf16.mxu0 0
    %10018 = vmatpush1.bf16.msra.mxu0 %v9861
    %10019 = vmatprep.subr.bf16.mxu0 0
    %10020 = vmatpush1.bf16.msra.mxu0 %v9862
    %10021 = vmatprep.subr.bf16.mxu0 0
    %10022 = vmatpush1.bf16.msra.mxu0 %v9863
    %10023 = vmatprep.subr.bf16.mxu0 0
    %10024 = vmatpush1.bf16.msra.mxu0 %v9864
    %10025 = vmatprep.mubr.bf16.mxu0 %v9145
    %10026 = vmatmul.mubr.bf16.gmra.mrb[0].mxu0 %v9113
    %v10027 = vpop.f32.mrb[0].mxu0
    %v10028 = vadd.f32 0.0, %v10027
    %v10029 = vpop.f32.mrb[0].mxu0
    %v10030 = vpop.f32.mrb[0].mxu0
    %v10031 = vadd.f32 0.0, %v10030
    %v10032 = vpop.f32.mrb[0].mxu0
    %10033 = vmatprep.mubr.bf16.mxu0 %v9146
    %10034 = vmatmul.mubr.bf16.gmra.mrb[0].mxu0 %v9114
    %v10035 = vpop.f32.mrb[0].mxu0
    %v10036 = vadd.f32 0.0, %v10035
    %v10037 = vpop.f32.mrb[0].mxu0
    %v10038 = vpop.f32.mrb[0].mxu0
    %v10039 = vadd.f32 0.0, %v10038
    %v10040 = vpop.f32.mrb[0].mxu0
    %10041 = vmatprep.mubr.bf16.mxu0 %v9147
    %10042 = vmatmul.mubr.bf16.gmra.mrb[0].mxu0 %v9115
    %v10043 = vpop.f32.mrb[0].mxu0
    %v10044 = vadd.f32 0.0, %v10043
    %v10045 = vpop.f32.mrb[0].mxu0
    %v10046 = vpop.f32.mrb[0].mxu0
    %v10047 = vadd.f32 0.0, %v10046
    %v10048 = vpop.f32.mrb[0].mxu0
    %10049 = vmatprep.mubr.bf16.mxu0 %v9148
    %10050 = vmatmul.mubr.bf16.gmra.mrb[0].mxu0 %v9116
    %v10051 = vpop.f32.mrb[0].mxu0
    %v10052 = vadd.f32 0.0, %v10051
    %v10053 = vpop.f32.mrb[0].mxu0
    %v10054 = vpop.f32.mrb[0].mxu0
    %v10055 = vadd.f32 0.0, %v10054
    %v10056 = vpop.f32.mrb[0].mxu0
    %10057 = vmatprep.mubr.bf16.mxu0 %v9149
    %10058 = vmatmul.mubr.bf16.gmra.mrb[0].mxu0 %v9117
    %v10059 = vpop.f32.mrb[0].mxu0
    %v10060 = vadd.f32 0.0, %v10059
    %v10061 = vpop.f32.mrb[0].mxu0
    %v10062 = vpop.f32.mrb[0].mxu0
    %v10063 = vadd.f32 0.0, %v10062
    %v10064 = vpop.f32.mrb[0].mxu0
    %10065 = vmatprep.mubr.bf16.mxu0 %v9150
    %10066 = vmatmul.mubr.bf16.gmra.mrb[0].mxu0 %v9118
    %v10067 = vpop.f32.mrb[0].mxu0
    %v10068 = vadd.f32 0.0, %v10067
    %v10069 = vpop.f32.mrb[0].mxu0
    %v10070 = vpop.f32.mrb[0].mxu0
    %v10071 = vadd.f32 0.0, %v10070
    %v10072 = vpop.f32.mrb[0].mxu0
    %10073 = vmatprep.mubr.bf16.mxu0 %v9151
    %10074 = vmatmul.mubr.bf16.gmra.mrb[0].mxu0 %v9119
    %v10075 = vpop.f32.mrb[0].mxu0
    %v10076 = vadd.f32 0.0, %v10075
    %v10077 = vpop.f32.mrb[0].mxu0
    %v10078 = vpop.f32.mrb[0].mxu0
    %v10079 = vadd.f32 0.0, %v10078
    %v10080 = vpop.f32.mrb[0].mxu0
    %10081 = vmatprep.mubr.bf16.mxu0 %v9152
    %10082 = vmatmul.mubr.bf16.gmra.mrb[0].mxu0 %v9120
    %v10083 = vpop.f32.mrb[0].mxu0
    %v10084 = vadd.f32 0.0, %v10083
    %v10085 = vpop.f32.mrb[0].mxu0
    %v10086 = vpop.f32.mrb[0].mxu0
    %v10087 = vadd.f32 0.0, %v10086
    %v10088 = vpop.f32.mrb[0].mxu0
    %10089 = vdwg.mxu0
    %10090 = vmatprep.subr.bf16.mxu0 0
    %10091 = vmatpush1.bf16.msra.mxu0 %v9865
    %10092 = vmatprep.subr.bf16.mxu0 0
    %10093 = vmatpush1.bf16.msra.mxu0 %v9866
    %10094 = vmatprep.subr.bf16.mxu0 0
    %10095 = vmatpush1.bf16.msra.mxu0 %v9867
    %10096 = vmatprep.subr.bf16.mxu0 0
    %10097 = vmatpush1.bf16.msra.mxu0 %v9868
    %10098 = vmatprep.subr.bf16.mxu0 0
    %10099 = vmatpush1.bf16.msra.mxu0 %v9869
    %10100 = vmatprep.subr.bf16.mxu0 0
    %10101 = vmatpush1.bf16.msra.mxu0 %v9870
    %10102 = vmatprep.subr.bf16.mxu0 0
    %10103 = vmatpush1.bf16.msra.mxu0 %v9871
    %10104 = vmatprep.subr.bf16.mxu0 0
    %10105 = vmatpush1.bf16.msra.mxu0 %v9872
    %10106 = vmatprep.subr.bf16.mxu0 0
    %10107 = vmatpush1.bf16.msra.mxu0 %v9873
    %10108 = vmatprep.subr.bf16.mxu0 0
    %10109 = vmatpush1.bf16.msra.mxu0 %v9874
    %10110 = vmatprep.subr.bf16.mxu0 0
    %10111 = vmatpush1.bf16.msra.mxu0 %v9875
    %10112 = vmatprep.subr.bf16.mxu0 0
    %10113 = vmatpush1.bf16.msra.mxu0 %v9876
    %10114 = vmatprep.subr.bf16.mxu0 0
    %10115 = vmatpush1.bf16.msra.mxu0 %v9877
    %10116 = vmatprep.subr.bf16.mxu0 0
    %10117 = vmatpush1.bf16.msra.mxu0 %v9878
    %10118 = vmatprep.subr.bf16.mxu0 0
    %10119 = vmatpush1.bf16.msra.mxu0 %v9879
    %10120 = vmatprep.subr.bf16.mxu0 0
    %10121 = vmatpush1.bf16.msra.mxu0 %v9880
    %10122 = vmatprep.mubr.bf16.mxu0 %v9225
    %10123 = vmatmul.mubr.bf16.gmra.mrb[0].mxu0 %v9177
    %v10124 = vpop.f32.mrb[0].mxu0
    %v10125 = vadd.f32 %v10028, %v10124
    %v10126 = vpop.f32.mrb[0].mxu0
    %v10127 = vpop.f32.mrb[0].mxu0
    %v10128 = vadd.f32 %v10031, %v10127
    %v10129 = vpop.f32.mrb[0].mxu0
    %10130 = vmatprep.mubr.bf16.mxu0 %v9226
    %10131 = vmatmul.mubr.bf16.gmra.mrb[0].mxu0 %v9178
    %v10132 = vpop.f32.mrb[0].mxu0
    %v10133 = vadd.f32 %v10036, %v10132
    %v10134 = vpop.f32.mrb[0].mxu0
    %v10135 = vpop.f32.mrb[0].mxu0
    %v10136 = vadd.f32 %v10039, %v10135
    %v10137 = vpop.f32.mrb[0].mxu0
    %10138 = vmatprep.mubr.bf16.mxu0 %v9227
    %10139 = vmatmul.mubr.bf16.gmra.mrb[0].mxu0 %v9179
    %v10140 = vpop.f32.mrb[0].mxu0
    %v10141 = vadd.f32 %v10044, %v10140
    %v10142 = vpop.f32.mrb[0].mxu0
    %v10143 = vpop.f32.mrb[0].mxu0
    %v10144 = vadd.f32 %v10047, %v10143
    %v10145 = vpop.f32.mrb[0].mxu0
    %10146 = vmatprep.mubr.bf16.mxu0 %v9228
    %10147 = vmatmul.mubr.bf16.gmra.mrb[0].mxu0 %v9180
    %v10148 = vpop.f32.mrb[0].mxu0
    %v10149 = vadd.f32 %v10052, %v10148
    %v10150 = vpop.f32.mrb[0].mxu0
    %v10151 = vpop.f32.mrb[0].mxu0
    %v10152 = vadd.f32 %v10055, %v10151
    %v10153 = vpop.f32.mrb[0].mxu0
    %10154 = vmatprep.mubr.bf16.mxu0 %v9229
    %10155 = vmatmul.mubr.bf16.gmra.mrb[0].mxu0 %v9181
    %v10156 = vpop.f32.mrb[0].mxu0
    %v10157 = vadd.f32 %v10060, %v10156
    %v10158 = vpop.f32.mrb[0].mxu0
    %v10159 = vpop.f32.mrb[0].mxu0
    %v10160 = vadd.f32 %v10063, %v10159
    %v10161 = vpop.f32.mrb[0].mxu0
    %10162 = vmatprep.mubr.bf16.mxu0 %v9230
    %10163 = vmatmul.mubr.bf16.gmra.mrb[0].mxu0 %v9182
    %v10164 = vpop.f32.mrb[0].mxu0
    %v10165 = vadd.f32 %v10068, %v10164
    %v10166 = vpop.f32.mrb[0].mxu0
    %v10167 = vpop.f32.mrb[0].mxu0
    %v10168 = vadd.f32 %v10071, %v10167
    %v10169 = vpop.f32.mrb[0].mxu0
    %10170 = vmatprep.mubr.bf16.mxu0 %v9231
    %10171 = vmatmul.mubr.bf16.gmra.mrb[0].mxu0 %v9183
    %v10172 = vpop.f32.mrb[0].mxu0
    %v10173 = vadd.f32 %v10076, %v10172
    %v10174 = vpop.f32.mrb[0].mxu0
    %v10175 = vpop.f32.mrb[0].mxu0
    %v10176 = vadd.f32 %v10079, %v10175
    %v10177 = vpop.f32.mrb[0].mxu0
    %10178 = vmatprep.mubr.bf16.mxu0 %v9232
    %10179 = vmatmul.mubr.bf16.gmra.mrb[0].mxu0 %v9184
    %v10180 = vpop.f32.mrb[0].mxu0
    %v10181 = vadd.f32 %v10084, %v10180
    %v10182 = vpop.f32.mrb[0].mxu0
    %v10183 = vpop.f32.mrb[0].mxu0
    %v10184 = vadd.f32 %v10087, %v10183
    %v10185 = vpop.f32.mrb[0].mxu0
    %10186 = vdwg.mxu0
    %10187 = vmatprep.subr.bf16.mxu0 0
    %10188 = vmatpush1.bf16.msra.mxu0 %v9881
    %10189 = vmatprep.subr.bf16.mxu0 0
    %10190 = vmatpush1.bf16.msra.mxu0 %v9882
    %10191 = vmatprep.subr.bf16.mxu0 0
    %10192 = vmatpush1.bf16.msra.mxu0 %v9883
    %10193 = vmatprep.subr.bf16.mxu0 0
    %10194 = vmatpush1.bf16.msra.mxu0 %v9884
    %10195 = vmatprep.subr.bf16.mxu0 0
    %10196 = vmatpush1.bf16.msra.mxu0 %v9885
    %10197 = vmatprep.subr.bf16.mxu0 0
    %10198 = vmatpush1.bf16.msra.mxu0 %v9886
    %10199 = vmatprep.subr.bf16.mxu0 0
    %10200 = vmatpush1.bf16.msra.mxu0 %v9887
    %10201 = vmatprep.subr.bf16.mxu0 0
    %10202 = vmatpush1.bf16.msra.mxu0 %v9888
    %10203 = vmatprep.subr.bf16.mxu0 0
    %10204 = vmatpush1.bf16.msra.mxu0 %v9889
    %10205 = vmatprep.subr.bf16.mxu0 0
    %10206 = vmatpush1.bf16.msra.mxu0 %v9890
    %10207 = vmatprep.subr.bf16.mxu0 0
    %10208 = vmatpush1.bf16.msra.mxu0 %v9891
    %10209 = vmatprep.subr.bf16.mxu0 0
    %10210 = vmatpush1.bf16.msra.mxu0 %v9892
    %10211 = vmatprep.subr.bf16.mxu0 0
    %10212 = vmatpush1.bf16.msra.mxu0 %v9893
    %10213 = vmatprep.subr.bf16.mxu0 0
    %10214 = vmatpush1.bf16.msra.mxu0 %v9894
    %10215 = vmatprep.subr.bf16.mxu0 0
    %10216 = vmatpush1.bf16.msra.mxu0 %v9895
    %10217 = vmatprep.subr.bf16.mxu0 0
    %10218 = vmatpush1.bf16.msra.mxu0 %v9896
    %10219 = vmatprep.mubr.bf16.mxu0 %v9289
    %10220 = vmatmul.mubr.bf16.gmra.mrb[0].mxu0 %v9257
    %v10221 = vpop.f32.mrb[0].mxu0
    %v10222 = vadd.f32 %v10125, %v10221
    %v10223 = vpop.f32.mrb[0].mxu0
    %v10224 = vpop.f32.mrb[0].mxu0
    %v10225 = vadd.f32 %v10128, %v10224
    %v10226 = vpop.f32.mrb[0].mxu0
    %10227 = vmatprep.mubr.bf16.mxu0 %v9290
    %10228 = vmatmul.mubr.bf16.gmra.mrb[0].mxu0 %v9258
    %v10229 = vpop.f32.mrb[0].mxu0
    %v10230 = vadd.f32 %v10133, %v10229
    %v10231 = vpop.f32.mrb[0].mxu0
    %v10232 = vpop.f32.mrb[0].mxu0
    %v10233 = vadd.f32 %v10136, %v10232
    %v10234 = vpop.f32.mrb[0].mxu0
    %10235 = vmatprep.mubr.bf16.mxu0 %v9291
    %10236 = vmatmul.mubr.bf16.gmra.mrb[0].mxu0 %v9259
    %v10237 = vpop.f32.mrb[0].mxu0
    %v10238 = vadd.f32 %v10141, %v10237
    %v10239 = vpop.f32.mrb[0].mxu0
    %v10240 = vpop.f32.mrb[0].mxu0
    %v10241 = vadd.f32 %v10144, %v10240
    %v10242 = vpop.f32.mrb[0].mxu0
    %10243 = vmatprep.mubr.bf16.mxu0 %v9292
    %10244 = vmatmul.mubr.bf16.gmra.mrb[0].mxu0 %v9260
    %v10245 = vpop.f32.mrb[0].mxu0
    %v10246 = vadd.f32 %v10149, %v10245
    %v10247 = vpop.f32.mrb[0].mxu0
    %v10248 = vpop.f32.mrb[0].mxu0
    %v10249 = vadd.f32 %v10152, %v10248
    %v10250 = vpop.f32.mrb[0].mxu0
    %10251 = vmatprep.mubr.bf16.mxu0 %v9293
    %10252 = vmatmul.mubr.bf16.gmra.mrb[0].mxu0 %v9261
    %v10253 = vpop.f32.mrb[0].mxu0
    %v10254 = vadd.f32 %v10157, %v10253
    %v10255 = vpop.f32.mrb[0].mxu0
    %v10256 = vpop.f32.mrb[0].mxu0
    %v10257 = vadd.f32 %v10160, %v10256
    %v10258 = vpop.f32.mrb[0].mxu0
    %10259 = vmatprep.mubr.bf16.mxu0 %v9294
    %10260 = vmatmul.mubr.bf16.gmra.mrb[0].mxu0 %v9262
    %v10261 = vpop.f32.mrb[0].mxu0
    %v10262 = vadd.f32 %v10165, %v10261
    %v10263 = vpop.f32.mrb[0].mxu0
    %v10264 = vpop.f32.mrb[0].mxu0
    %v10265 = vadd.f32 %v10168, %v10264
    %v10266 = vpop.f32.mrb[0].mxu0
    %10267 = vmatprep.mubr.bf16.mxu0 %v9295
    %10268 = vmatmul.mubr.bf16.gmra.mrb[0].mxu0 %v9263
    %v10269 = vpop.f32.mrb[0].mxu0
    %v10270 = vadd.f32 %v10173, %v10269
    %v10271 = vpop.f32.mrb[0].mxu0
    %v10272 = vpop.f32.mrb[0].mxu0
    %v10273 = vadd.f32 %v10176, %v10272
    %v10274 = vpop.f32.mrb[0].mxu0
    %10275 = vmatprep.mubr.bf16.mxu0 %v9296
    %10276 = vmatmul.mubr.bf16.gmra.mrb[0].mxu0 %v9264
    %v10277 = vpop.f32.mrb[0].mxu0
    %v10278 = vadd.f32 %v10181, %v10277
    %v10279 = vpop.f32.mrb[0].mxu0
    %v10280 = vpop.f32.mrb[0].mxu0
    %v10281 = vadd.f32 %v10184, %v10280
    %v10282 = vpop.f32.mrb[0].mxu0
    %10283 = vdwg.mxu0
    %10284 = vmatprep.subr.bf16.mxu0 0
    %10285 = vmatpush1.bf16.msra.mxu0 %v9897
    %10286 = vmatprep.subr.bf16.mxu0 0
    %10287 = vmatpush1.bf16.msra.mxu0 %v9898
    %10288 = vmatprep.subr.bf16.mxu0 0
    %10289 = vmatpush1.bf16.msra.mxu0 %v9899
    %10290 = vmatprep.subr.bf16.mxu0 0
    %10291 = vmatpush1.bf16.msra.mxu0 %v9900
    %10292 = vmatprep.subr.bf16.mxu0 0
    %10293 = vmatpush1.bf16.msra.mxu0 %v9901
    %10294 = vmatprep.subr.bf16.mxu0 0
    %10295 = vmatpush1.bf16.msra.mxu0 %v9902
    %10296 = vmatprep.subr.bf16.mxu0 0
    %10297 = vmatpush1.bf16.msra.mxu0 %v9903
    %10298 = vmatprep.subr.bf16.mxu0 0
    %10299 = vmatpush1.bf16.msra.mxu0 %v9904
    %10300 = vmatprep.subr.bf16.mxu0 0
    %10301 = vmatpush1.bf16.msra.mxu0 %v9905
    %10302 = vmatprep.subr.bf16.mxu0 0
    %10303 = vmatpush1.bf16.msra.mxu0 %v9906
    %10304 = vmatprep.subr.bf16.mxu0 0
    %10305 = vmatpush1.bf16.msra.mxu0 %v9907
    %10306 = vmatprep.subr.bf16.mxu0 0
    %10307 = vmatpush1.bf16.msra.mxu0 %v9908
    %10308 = vmatprep.subr.bf16.mxu0 0
    %10309 = vmatpush1.bf16.msra.mxu0 %v9909
    %10310 = vmatprep.subr.bf16.mxu0 0
    %10311 = vmatpush1.bf16.msra.mxu0 %v9910
    %10312 = vmatprep.subr.bf16.mxu0 0
    %10313 = vmatpush1.bf16.msra.mxu0 %v9911
    %10314 = vmatprep.subr.bf16.mxu0 0
    %10315 = vmatpush1.bf16.msra.mxu0 %v9912
    %10316 = vmatprep.mubr.bf16.mxu0 %v9369
    %10317 = vmatmul.mubr.bf16.gmra.mrb[0].mxu0 %v9337
    %v10318 = vpop.f32.mrb[0].mxu0
    %v10319 = vadd.f32 %v10222, %v10318
    %v10320 = vpop.f32.mrb[0].mxu0
    %v10321 = vpop.f32.mrb[0].mxu0
    %v10322 = vadd.f32 %v10225, %v10321
    %v10323 = vpop.f32.mrb[0].mxu0
    %10324 = vmatprep.mubr.bf16.mxu0 %v9370
    %10325 = vmatmul.mubr.bf16.gmra.mrb[0].mxu0 %v9338
    %v10326 = vpop.f32.mrb[0].mxu0
    %v10327 = vadd.f32 %v10230, %v10326
    %v10328 = vpop.f32.mrb[0].mxu0
    %v10329 = vpop.f32.mrb[0].mxu0
    %v10330 = vadd.f32 %v10233, %v10329
    %v10331 = vpop.f32.mrb[0].mxu0
    %10332 = vmatprep.mubr.bf16.mxu0 %v9371
    %10333 = vmatmul.mubr.bf16.gmra.mrb[0].mxu0 %v9339
    %v10334 = vpop.f32.mrb[0].mxu0
    %v10335 = vadd.f32 %v10238, %v10334
    %v10336 = vpop.f32.mrb[0].mxu0
    %v10337 = vpop.f32.mrb[0].mxu0
    %v10338 = vadd.f32 %v10241, %v10337
    %v10339 = vpop.f32.mrb[0].mxu0
    %10340 = vmatprep.mubr.bf16.mxu0 %v9372
    %10341 = vmatmul.mubr.bf16.gmra.mrb[0].mxu0 %v9340
    %v10342 = vpop.f32.mrb[0].mxu0
    %v10343 = vadd.f32 %v10246, %v10342
    %v10344 = vpop.f32.mrb[0].mxu0
    %v10345 = vpop.f32.mrb[0].mxu0
    %v10346 = vadd.f32 %v10249, %v10345
    %v10347 = vpop.f32.mrb[0].mxu0
    %10348 = vmatprep.mubr.bf16.mxu0 %v9373
    %10349 = vmatmul.mubr.bf16.gmra.mrb[0].mxu0 %v9341
    %v10350 = vpop.f32.mrb[0].mxu0
    %v10351 = vadd.f32 %v10254, %v10350
    %v10352 = vpop.f32.mrb[0].mxu0
    %v10353 = vpop.f32.mrb[0].mxu0
    %v10354 = vadd.f32 %v10257, %v10353
    %v10355 = vpop.f32.mrb[0].mxu0
    %10356 = vmatprep.mubr.bf16.mxu0 %v9374
    %10357 = vmatmul.mubr.bf16.gmra.mrb[0].mxu0 %v9342
    %v10358 = vpop.f32.mrb[0].mxu0
    %v10359 = vadd.f32 %v10262, %v10358
    %v10360 = vpop.f32.mrb[0].mxu0
    %v10361 = vpop.f32.mrb[0].mxu0
    %v10362 = vadd.f32 %v10265, %v10361
    %v10363 = vpop.f32.mrb[0].mxu0
    %10364 = vmatprep.mubr.bf16.mxu0 %v9375
    %10365 = vmatmul.mubr.bf16.gmra.mrb[0].mxu0 %v9343
    %v10366 = vpop.f32.mrb[0].mxu0
    %v10367 = vadd.f32 %v10270, %v10366
    %v10368 = vpop.f32.mrb[0].mxu0
    %v10369 = vpop.f32.mrb[0].mxu0
    %v10370 = vadd.f32 %v10273, %v10369
    %v10371 = vpop.f32.mrb[0].mxu0
    %10372 = vmatprep.mubr.bf16.mxu0 %v9376
    %10373 = vmatmul.mubr.bf16.gmra.mrb[0].mxu0 %v9344
    %v10374 = vpop.f32.mrb[0].mxu0
    %v10375 = vadd.f32 %v10278, %v10374
    %v10376 = vpop.f32.mrb[0].mxu0
    %v10377 = vpop.f32.mrb[0].mxu0
    %v10378 = vadd.f32 %v10281, %v10377
    %v10379 = vpop.f32.mrb[0].mxu0
    %10380 = vdwg.mxu0
    %10381 = vmatprep.subr.bf16.mxu0 0
    %10382 = vmatpush1.bf16.msra.mxu0 %v9913
    %10383 = vmatprep.subr.bf16.mxu0 0
    %10384 = vmatpush1.bf16.msra.mxu0 %v9914
    %10385 = vmatprep.subr.bf16.mxu0 0
    %10386 = vmatpush1.bf16.msra.mxu0 %v9915
    %10387 = vmatprep.subr.bf16.mxu0 0
    %10388 = vmatpush1.bf16.msra.mxu0 %v9916
    %10389 = vmatprep.subr.bf16.mxu0 0
    %10390 = vmatpush1.bf16.msra.mxu0 %v9917
    %10391 = vmatprep.subr.bf16.mxu0 0
    %10392 = vmatpush1.bf16.msra.mxu0 %v9918
    %10393 = vmatprep.subr.bf16.mxu0 0
    %10394 = vmatpush1.bf16.msra.mxu0 %v9919
    %10395 = vmatprep.subr.bf16.mxu0 0
    %10396 = vmatpush1.bf16.msra.mxu0 %v9920
    %10397 = vmatprep.subr.bf16.mxu0 0
    %10398 = vmatpush1.bf16.msra.mxu0 0
    %10399 = vmatprep.subr.bf16.mxu0 0
    %10400 = vmatpush1.bf16.msra.mxu0 0
    %10401 = vmatprep.subr.bf16.mxu0 0
    %10402 = vmatpush1.bf16.msra.mxu0 0
    %10403 = vmatprep.subr.bf16.mxu0 0
    %10404 = vmatpush1.bf16.msra.mxu0 0
    %10405 = vmatprep.subr.bf16.mxu0 0
    %10406 = vmatpush1.bf16.msra.mxu0 0
    %10407 = vmatprep.subr.bf16.mxu0 0
    %10408 = vmatpush1.bf16.msra.mxu0 0
    %10409 = vmatprep.subr.bf16.mxu0 0
    %10410 = vmatpush1.bf16.msra.mxu0 0
    %10411 = vmatprep.subr.bf16.mxu0 0
    %10412 = vmatpush1.bf16.msra.mxu0 0
    %10413 = vmatprep.mubr.bf16.mxu0 0
    %10414 = vmatmul.mubr.bf16.gmra.mrb[0].mxu0 %v9401
    %v10415 = vpop.f32.mrb[0].mxu0
    %v10416 = vadd.f32 %v10319, %v10415
    %v10417 = vpop.f32.mrb[0].mxu0
    %v10418 = vpop.f32.mrb[0].mxu0
    %v10419 = vadd.f32 %v10322, %v10418
    %v10420 = vpop.f32.mrb[0].mxu0
    %10421 = vmatprep.mubr.bf16.mxu0 0
    %10422 = vmatmul.mubr.bf16.gmra.mrb[0].mxu0 %v9402
    %v10423 = vpop.f32.mrb[0].mxu0
    %v10424 = vadd.f32 %v10327, %v10423
    %v10425 = vpop.f32.mrb[0].mxu0
    %v10426 = vpop.f32.mrb[0].mxu0
    %v10427 = vadd.f32 %v10330, %v10426
    %v10428 = vpop.f32.mrb[0].mxu0
    %10429 = vmatprep.mubr.bf16.mxu0 0
    %10430 = vmatmul.mubr.bf16.gmra.mrb[0].mxu0 %v9403
    %v10431 = vpop.f32.mrb[0].mxu0
    %v10432 = vadd.f32 %v10335, %v10431
    %v10433 = vpop.f32.mrb[0].mxu0
    %v10434 = vpop.f32.mrb[0].mxu0
    %v10435 = vadd.f32 %v10338, %v10434
    %v10436 = vpop.f32.mrb[0].mxu0
    %10437 = vmatprep.mubr.bf16.mxu0 0
    %10438 = vmatmul.mubr.bf16.gmra.mrb[0].mxu0 %v9404
    %v10439 = vpop.f32.mrb[0].mxu0
    %v10440 = vadd.f32 %v10343, %v10439
    %v10441 = vpop.f32.mrb[0].mxu0
    %v10442 = vpop.f32.mrb[0].mxu0
    %v10443 = vadd.f32 %v10346, %v10442
    %v10444 = vpop.f32.mrb[0].mxu0
    %10445 = vmatprep.mubr.bf16.mxu0 0
    %10446 = vmatmul.mubr.bf16.gmra.mrb[0].mxu0 %v9405
    %v10447 = vpop.f32.mrb[0].mxu0
    %v10448 = vadd.f32 %v10351, %v10447
    %v10449 = vpop.f32.mrb[0].mxu0
    %v10450 = vpop.f32.mrb[0].mxu0
    %v10451 = vadd.f32 %v10354, %v10450
    %v10452 = vpop.f32.mrb[0].mxu0
    %10453 = vmatprep.mubr.bf16.mxu0 0
    %10454 = vmatmul.mubr.bf16.gmra.mrb[0].mxu0 %v9406
    %v10455 = vpop.f32.mrb[0].mxu0
    %v10456 = vadd.f32 %v10359, %v10455
    %v10457 = vpop.f32.mrb[0].mxu0
    %v10458 = vpop.f32.mrb[0].mxu0
    %v10459 = vadd.f32 %v10362, %v10458
    %v10460 = vpop.f32.mrb[0].mxu0
    %10461 = vmatprep.mubr.bf16.mxu0 0
    %10462 = vmatmul.mubr.bf16.gmra.mrb[0].mxu0 %v9407
    %v10463 = vpop.f32.mrb[0].mxu0
    %v10464 = vadd.f32 %v10367, %v10463
    %v10465 = vpop.f32.mrb[0].mxu0
    %v10466 = vpop.f32.mrb[0].mxu0
    %v10467 = vadd.f32 %v10370, %v10466
    %v10468 = vpop.f32.mrb[0].mxu0
    %10469 = vmatprep.mubr.bf16.mxu0 0
    %10470 = vmatmul.mubr.bf16.gmra.mrb[0].mxu0 %v9408
    %v10471 = vpop.f32.mrb[0].mxu0
    %v10472 = vadd.f32 %v10375, %v10471
    %v10473 = vpop.f32.mrb[0].mxu0
    %v10474 = vpop.f32.mrb[0].mxu0
    %v10475 = vadd.f32 %v10378, %v10474
    %v10476 = vpop.f32.mrb[0].mxu0
    %10477 = vdwg.mxu0
    %10478 = vst [vmem:[#allocation13] sm:$0xff] %v10416
    %10479 = vst [vmem:[#allocation13 + $0x8] sm:$0xff] %v10419
    %10480 = vst [vmem:[#allocation13 + $0x10] sm:$0xff] %v10424
    %10481 = vst [vmem:[#allocation13 + $0x18] sm:$0xff] %v10427
    %10482 = vst [vmem:[#allocation13 + $0x20] sm:$0xff] %v10432
    %10483 = vst [vmem:[#allocation13 + $0x28] sm:$0xff] %v10435
    %10484 = vst [vmem:[#allocation13 + $0x30] sm:$0xff] %v10440
    %10485 = vst [vmem:[#allocation13 + $0x38] sm:$0xff] %v10443
    %10486 = vst [vmem:[#allocation13 + $0x40] sm:$0xff] %v10448
    %10487 = vst [vmem:[#allocation13 + $0x48] sm:$0xff] %v10451
    %10488 = vst [vmem:[#allocation13 + $0x50] sm:$0xff] %v10456
    %10489 = vst [vmem:[#allocation13 + $0x58] sm:$0xff] %v10459
    %10490 = vst [vmem:[#allocation13 + $0x60] sm:$0xff] %v10464
    %10491 = vst [vmem:[#allocation13 + $0x68] sm:$0xff] %v10467
    %10492 = vst [vmem:[#allocation13 + $0x70] sm:$0xff] %v10472
    %10493 = vst [vmem:[#allocation13 + $0x78] sm:$0xff] %v10475
    // Predicated region
    $region42: #{tpu_custom_call.1} parent=1 // pred_check
      _
    $region43: #{tpu_custom_call.1} parent=1 // pred_check_branch
      %10495 = sbr.rel (0) target = $region45
    $region44: #{tpu_custom_call.1} parent=1 // pred_region
      %s10497 = ssub.s32 2048, 2048
      %10498 = vsyncadd [#allocation6], %s10497
      %s10499 = sshll.u32 [#allocation13], 4
      %s10500 = int_to_ptr.vmem [resolvable:$true] %s10499
      %10505 = dma.vmem_to_hbm [thread:$0]  %s10500, 2048, %s5, [#allocation6], 128, 128, 8
    $region45: #{tpu_custom_call.1} parent=1 // pred_fallthru
      _
    // Predicated region
    $region46: #{tpu_custom_call.1} parent=1 // pred_check
      _
    $region47: #{tpu_custom_call.1} parent=1 // pred_check_branch
      %10507 = sbr.rel (0) target = $region49
    $region48: #{tpu_custom_call.1} parent=1 // pred_region
      %10508 = dma.done [#allocation6], 2048
    $region49: #{tpu_custom_call.1} parent=1 // pred_fallthru
      _
    %10509 = vsyncpa [#allocation5], 1
    %10510 = vsyncpa [#allocation8], 1
    %10511 = vsyncpa [#allocation11], 1
    %10512 = vsyncpa [#allocation6], 1

</llo_original>
